<compile_context>
chip_gen: v5e
topology: v5e:2x2
jax: 0.10.0
libtpu: 0.0.40
codegen_flags: <defaults>
</compile_context>

<pallas_src>
import functools

import numpy as np
import jax
import jax.numpy as jnp
from jax.experimental import pallas as pl
from jax.experimental.pallas import tpu as pltpu


# ---------------------------------------------------------------------------
# Host-side (run once, outside jit): parity-decomposed per-tap weight packing
# for ConvTranspose2d(kernel=4, stride=2, padding=1, bias=False).
#
#   out[n, co, 2p+rh, 2q+rw] = sum_{dh,dw,ci} x[n, ci, p+dh, q+dw]
#                                            * w[ci, co, rh-2*dh+1, rw-2*dw+1]
#
# Packed as w_pack[tap, (rh*2+rw)*Cout + co, ci] (taps with kh/kw outside
# [0,4) stay zero), ready for the planar in-kernel GEMM  w_pack[t] @ x_tap.
# ---------------------------------------------------------------------------
def pack_deconv_weight(w):
    w = np.asarray(w, dtype=np.float32)               # (Cin, Cout, 4, 4) PyTorch layout
    cin, cout = w.shape[0], w.shape[1]
    packed = np.zeros((9, 4 * cout, cin), np.float32)
    for dh in (-1, 0, 1):
        for dw in (-1, 0, 1):
            t = (dh + 1) * 3 + (dw + 1)
            for rh in (0, 1):
                kh = rh - 2 * dh + 1
                if not 0 <= kh < 4:
                    continue
                for rw in (0, 1):
                    kw = rw - 2 * dw + 1
                    if not 0 <= kw < 4:
                        continue
                    par = rh * 2 + rw
                    packed[t, par * cout:(par + 1) * cout, :] = w[:, :, kh, kw].T
    return packed


def prepare_params(params, *, dim_h, n_channel):
    """One-time prep (hoisted out of the jitted forward): pack / transpose / cast."""
    chans = [dim_h * 8, dim_h * 4, dim_h * 2, dim_h, n_channel]
    prepped = {
        "fc_w_t": jnp.asarray(params["fc_w"]).T.astype(jnp.float32),   # (n_z, dim_h*8*16)
        "fc_b": jnp.asarray(params["fc_b"]).astype(jnp.float32)[None, :],
    }
    for li in range(4):
        cout = chans[li + 1]
        prepped[f"w{li}"] = jnp.asarray(
            pack_deconv_weight(params[f"deconv{li}_w"]), dtype=jnp.bfloat16)
        if li < 3:
            prepped[f"g{li}"] = jnp.asarray(
                params[f"bn{li}_gamma"], dtype=jnp.float32).reshape(cout, 1)
            prepped[f"b{li}"] = jnp.asarray(
                params[f"bn{li}_beta"], dtype=jnp.float32).reshape(cout, 1)
    return prepped


# ---------------------------------------------------------------------------
# Fused per-layer Pallas kernel.
#
# Planar layout:  input  h : (Cin, M)        rows = in-channels, cols = (n, p, q)
#                 output y : (4*Cout, M)     rows = (rh, rw, co), cols = (n, p, q)
# with M = N*H*W.  Tap formation, GEMM, BN (batch stats) + ReLU / Tanh all fused.
# ---------------------------------------------------------------------------
def _make_deconv_kernel(*, H, W, Cin, Cout, N, last):
    M = N * H * W
    pad = W + 1                                       # >= max |tap shift|
    lw = int(np.log2(W))
    lh = int(np.log2(H))
    assert (1 << lw) == W and (1 << lh) == H, "H, W must be powers of two"
    inv_cnt = 1.0 / float(4 * M)                      # BN count = N * 2H * 2W

    def taps_matmul(h_ref, w_ref):
        zpad = jnp.zeros((Cin, pad), h_ref.dtype)
        hp = jnp.concatenate([zpad, h_ref[...], zpad], axis=1)      # (Cin, M + 2*pad)
        col = jax.lax.broadcasted_iota(jnp.int32, (1, M), 1)
        q = col & (W - 1)
        p = (col >> lw) & (H - 1)
        acc = jnp.zeros((4 * Cout, M), jnp.float32)
        for dh in (-1, 0, 1):
            for dw in (-1, 0, 1):
                t = (dh + 1) * 3 + (dw + 1)
                s = dh * W + dw
                a = hp[:, pad + s: pad + s + M]        # x[n, :, p+dh, q+dw] (shifted cols)
                conds = []
                if dh == -1:
                    conds.append(p >= 1)
                elif dh == 1:
                    conds.append(p <= H - 2)
                if dw == -1:
                    conds.append(q >= 1)
                elif dw == 1:
                    conds.append(q <= W - 2)
                if conds:
                    valid = conds[0]
                    for c in conds[1:]:
                        valid = jnp.logical_and(valid, c)
                    a = jnp.where(valid, a, jnp.zeros_like(a))
                acc = acc + jnp.dot(w_ref[t], a,
                                    preferred_element_type=jnp.float32)
        return acc

    if last:
        def kernel(h_ref, w_ref, o_ref):
            o_ref[...] = jnp.tanh(taps_matmul(h_ref, w_ref))
        return kernel

    def kernel(h_ref, w_ref, g_ref, b_ref, o_ref):
        acc = taps_matmul(h_ref, w_ref)
        # Fused train-mode BatchNorm (batch statistics) + ReLU epilogue.
        s1 = jnp.sum(acc, axis=1, keepdims=True)                    # (4*Cout, 1)
        s2 = jnp.sum(acc * acc, axis=1, keepdims=True)
        s1c = (s1[0:Cout] + s1[Cout:2 * Cout]
               + s1[2 * Cout:3 * Cout] + s1[3 * Cout:4 * Cout])     # fold 4 parities
        s2c = (s2[0:Cout] + s2[Cout:2 * Cout]
               + s2[2 * Cout:3 * Cout] + s2[3 * Cout:4 * Cout])
        mean = s1c * inv_cnt
        var = jnp.maximum(s2c * inv_cnt - mean * mean, 0.0)         # biased (train BN)
        scale = g_ref[...] * jax.lax.rsqrt(var + 1e-5)
        shift = b_ref[...] - mean * scale
        scale4 = jnp.concatenate([scale, scale, scale, scale], axis=0)
        shift4 = jnp.concatenate([shift, shift, shift, shift], axis=0)
        o_ref[...] = jnp.maximum(acc * scale4 + shift4, 0.0).astype(o_ref.dtype)

    return kernel


def _full_spec(shape):
    return pl.BlockSpec(shape, lambda i: (0,) * len(shape))


def deconv_bn_relu(h, w_pack, gamma, beta, *, H, W, Cin, Cout, N):
    M = N * H * W
    kernel = _make_deconv_kernel(H=H, W=W, Cin=Cin, Cout=Cout, N=N, last=False)
    return pl.pallas_call(
        kernel,
        out_shape=jax.ShapeDtypeStruct((4 * Cout, M), jnp.bfloat16),
        grid=(1,),
        in_specs=[_full_spec(h.shape), _full_spec(w_pack.shape),
                  _full_spec(gamma.shape), _full_spec(beta.shape)],
        out_specs=_full_spec((4 * Cout, M)),
        compiler_params=pltpu.CompilerParams(dimension_semantics=("arbitrary",)),
    )(h, w_pack, gamma, beta)


def deconv_tanh(h, w_pack, *, H, W, Cin, Cout, N):
    M = N * H * W
    kernel = _make_deconv_kernel(H=H, W=W, Cin=Cin, Cout=Cout, N=N, last=True)
    return pl.pallas_call(
        kernel,
        out_shape=jax.ShapeDtypeStruct((4 * Cout, M), jnp.float32),
        grid=(1,),
        in_specs=[_full_spec(h.shape), _full_spec(w_pack.shape)],
        out_specs=_full_spec((4 * Cout, M)),
        compiler_params=pltpu.CompilerParams(dimension_semantics=("arbitrary",)),
    )(h, w_pack)


# ---------------------------------------------------------------------------
# Decoder forward
# ---------------------------------------------------------------------------
def decoder_forward(x, p, *, dim_h, n_channel):
    B = x.shape[0]
    chans = [dim_h * 8, dim_h * 4, dim_h * 2, dim_h, n_channel]

    # fc + ReLU: left to XLA (tiny GEMM; a dedicated kernel is pure launch cost).
    h = jnp.maximum(x @ p["fc_w_t"] + p["fc_b"], 0.0)             # (B, dim_h*8*16) f32
    # Planar layout for layer 0: rows = channels, cols = (n, p, q) at 4x4.
    hT = (h.reshape(B, chans[0], 16)
            .transpose(1, 0, 2)
            .reshape(chans[0], B * 16)
            .astype(jnp.bfloat16))                                # (dim_h*8, B*16)

    H = W = 4
    for li in range(3):
        cin, cout = chans[li], chans[li + 1]
        y = deconv_bn_relu(hT, p[f"w{li}"], p[f"g{li}"], p[f"b{li}"],
                           H=H, W=W, Cin=cin, Cout=cout, N=B)     # (4*cout, B*H*W) bf16
        # Depth-to-space into the next layer's planar input (one tiny XLA transpose):
        # rows (rh,rw,c), cols (n,p,q)  ->  rows c, cols (n, 2p+rh, 2q+rw).
        hT = (y.reshape(2, 2, cout, B, H, W)
                .transpose(2, 3, 4, 0, 5, 1)
                .reshape(cout, B * 2 * H * 2 * W))
        H, W = 2 * H, 2 * W

    # Final ConvTranspose2d + Tanh (no BN), lane-dense (4*n_channel, B*H*W) output.
    y = deconv_tanh(hT, p["w3"], H=H, W=W, Cin=chans[3], Cout=n_channel, N=B)
    out = (y.reshape(2, 2, n_channel, B, H, W)
             .transpose(3, 2, 4, 0, 5, 1)
             .reshape(B, n_channel, 2 * H, 2 * W))                # NCHW float32
    return out


# ---------------------------------------------------------------------------
# Deterministic parameter construction (shapes from the PyTorch module)
# ---------------------------------------------------------------------------
def make_params(key, n_z, dim_h, n_channel):
    ks = jax.random.split(key, 6)
    chans = [dim_h * 8, dim_h * 4, dim_h * 2, dim_h, n_channel]
    params = {
        "fc_w": 0.05 * jax.random.normal(ks[0], (dim_h * 8 * 4 * 4, n_z), jnp.float32),
        "fc_b": 0.05 * jax.random.normal(ks[1], (dim_h * 8 * 4 * 4,), jnp.float32),
    }
    for li in range(4):
        cin, cout = chans[li], chans[li + 1]
        params[f"deconv{li}_w"] = 0.05 * jax.random.normal(
            ks[2 + li], (cin, cout, 4, 4), jnp.float32)            # ConvTranspose2d layout
        if li < 3:
            params[f"bn{li}_gamma"] = jnp.ones((cout,), jnp.float32)
            params[f"bn{li}_beta"] = jnp.zeros((cout,), jnp.float32)
    return params


if __name__ == "__main__":
    # args = {'n_channel': 3, 'dim_h': 8, 'n_z': 16}
    n_channel, dim_h, n_z = 3, 8, 16
    batch = 2

    key = jax.random.PRNGKey(0)
    kp, kx = jax.random.split(key)
    params = make_params(kp, n_z, dim_h, n_channel)
    prepped = prepare_params(params, dim_h=dim_h, n_channel=n_channel)  # hoisted prep
    x = jax.random.normal(kx, (batch, n_z), jnp.float32)

    fwd = jax.jit(functools.partial(decoder_forward, dim_h=dim_h, n_channel=n_channel))
    out = fwd(x, prepped)
    jax.block_until_ready(out)

    assert out.shape == (batch, n_channel, 64, 64), out.shape
    assert out.dtype == jnp.float32
    assert bool(jnp.all(jnp.isfinite(out)))
    assert bool(jnp.all(jnp.abs(out) <= 1.0))     # Tanh range sanity check
    print("KERNEL_OK")
</pallas_src>

<mosaic_0001>
module attributes {stable_mosaic.version = 11 : i64} {
  func.func @kernel(%arg0: i32, %arg1: memref<64x32xbf16, #tpu.memory_space<vmem>>, %arg2: memref<9x128x64xbf16, #tpu.memory_space<vmem>>, %arg3: memref<32x1xf32, #tpu.memory_space<vmem>>, %arg4: memref<32x1xf32, #tpu.memory_space<vmem>>, %arg5: memref<128x32xbf16, #tpu.memory_space<vmem>>) attributes {dimension_semantics = [#tpu.dimension_semantics<arbitrary>], iteration_bounds = array<i64: 1>, scalar_prefetch = 0 : i64, scratch_operands = 0 : i64, tpu.core_type = #tpu.core_type<tc>, window_params = [{pipeline_mode = #tpu.pipeline_mode<synchronous>, transform_indices = @transform_0, window_bounds = array<i64: 64, 32>}, {pipeline_mode = #tpu.pipeline_mode<synchronous>, transform_indices = @transform_1, window_bounds = array<i64: 9, 128, 64>}, {pipeline_mode = #tpu.pipeline_mode<synchronous>, transform_indices = @transform_2, window_bounds = array<i64: 32, 1>}, {pipeline_mode = #tpu.pipeline_mode<synchronous>, transform_indices = @transform_3, window_bounds = array<i64: 32, 1>}, {pipeline_mode = #tpu.pipeline_mode<synchronous>, transform_indices = @transform_4, window_bounds = array<i64: 128, 32>}]} {
    %cst = arith.constant 0.000000e+00 : bf16
    %0 = vector.broadcast %cst : bf16 to vector<64x5xbf16>
    %c0 = arith.constant 0 : index
    %c0_0 = arith.constant 0 : index
    %1 = vector.load %arg1[%c0, %c0_0] : memref<64x32xbf16, #tpu.memory_space<vmem>>, vector<64x32xbf16>
    %2 = tpu.concatenate %0, %1, %0 in 1 : vector<64x5xbf16>, vector<64x32xbf16>, vector<64x5xbf16> -> vector<64x42xbf16>
    %3 = tpu.iota {dimensions = array<i32: 1>} : vector<1x32xi32>
    %c3_i32 = arith.constant 3 : i32
    %4 = vector.broadcast %c3_i32 : i32 to vector<1x32xi32>
    %5 = arith.andi %3, %4 : vector<1x32xi32>
    %c2_i32 = arith.constant 2 : i32
    %6 = vector.broadcast %c2_i32 : i32 to vector<1x32xi32>
    %7 = arith.shrsi %3, %6 : vector<1x32xi32>
    %c3_i32_1 = arith.constant 3 : i32
    %8 = vector.broadcast %c3_i32_1 : i32 to vector<1x32xi32>
    %9 = arith.andi %7, %8 : vector<1x32xi32>
    %cst_2 = arith.constant 0.000000e+00 : f32
    %10 = vector.broadcast %cst_2 : f32 to vector<128x32xf32>
    %11 = vector.extract_strided_slice %2 {offsets = [0, 0], sizes = [64, 32], strides = [1, 1]} : vector<64x42xbf16> to vector<64x32xbf16>
    %c1_i32 = arith.constant 1 : i32
    %12 = vector.broadcast %c1_i32 : i32 to vector<1x32xi32>
    %13 = arith.cmpi sge, %9, %12 : vector<1x32xi32>
    %c1_i32_3 = arith.constant 1 : i32
    %14 = vector.broadcast %c1_i32_3 : i32 to vector<1x32xi32>
    %15 = arith.cmpi sge, %5, %14 : vector<1x32xi32>
    %16 = arith.andi %13, %15 : vector<1x32xi1>
    %cst_4 = arith.constant 0.000000e+00 : bf16
    %17 = vector.broadcast %cst_4 : bf16 to vector<64x32xbf16>
    %18 = vector.shape_cast %16 : vector<1x32xi1> to vector<1x32xi1>
    %19 = vector.broadcast %18 : vector<1x32xi1> to vector<64x32xi1>
    %20 = arith.select %19, %11, %17 : vector<64x32xi1>, vector<64x32xbf16>
    %c0_5 = arith.constant 0 : index
    %c0_6 = arith.constant 0 : index
    %c0_7 = arith.constant 0 : index
    %21 = vector.load %arg2[%c0_5, %c0_6, %c0_7] : memref<9x128x64xbf16, #tpu.memory_space<vmem>>, vector<1x128x64xbf16>
    %22 = vector.shape_cast %21 : vector<1x128x64xbf16> to vector<128x64xbf16>
    %cst_8 = arith.constant dense<0.000000e+00> : vector<128x32xf32>
    %23 = tpu.matmul %22, %20, %cst_8 {dimension_numbers = #tpu.dot_dimension_numbers<[1], [0], [0], [1], [0, 0, 1, 1], [], []>} : vector<128x64xbf16>, vector<64x32xbf16>, vector<128x32xf32> -> vector<128x32xf32>
    %24 = arith.addf %10, %23 : vector<128x32xf32>
    %25 = vector.extract_strided_slice %2 {offsets = [0, 1], sizes = [64, 32], strides = [1, 1]} : vector<64x42xbf16> to vector<64x32xbf16>
    %c1_i32_9 = arith.constant 1 : i32
    %26 = vector.broadcast %c1_i32_9 : i32 to vector<1x32xi32>
    %27 = arith.cmpi sge, %9, %26 : vector<1x32xi32>
    %cst_10 = arith.constant 0.000000e+00 : bf16
    %28 = vector.broadcast %cst_10 : bf16 to vector<64x32xbf16>
    %29 = vector.shape_cast %27 : vector<1x32xi1> to vector<1x32xi1>
    %30 = vector.broadcast %29 : vector<1x32xi1> to vector<64x32xi1>
    %31 = arith.select %30, %25, %28 : vector<64x32xi1>, vector<64x32xbf16>
    %c1 = arith.constant 1 : index
    %c0_11 = arith.constant 0 : index
    %c0_12 = arith.constant 0 : index
    %32 = vector.load %arg2[%c1, %c0_11, %c0_12] : memref<9x128x64xbf16, #tpu.memory_space<vmem>>, vector<1x128x64xbf16>
    %33 = vector.shape_cast %32 : vector<1x128x64xbf16> to vector<128x64xbf16>
    %cst_13 = arith.constant dense<0.000000e+00> : vector<128x32xf32>
    %34 = tpu.matmul %33, %31, %cst_13 {dimension_numbers = #tpu.dot_dimension_numbers<[1], [0], [0], [1], [0, 0, 1, 1], [], []>} : vector<128x64xbf16>, vector<64x32xbf16>, vector<128x32xf32> -> vector<128x32xf32>
    %35 = arith.addf %24, %34 : vector<128x32xf32>
    %36 = vector.extract_strided_slice %2 {offsets = [0, 2], sizes = [64, 32], strides = [1, 1]} : vector<64x42xbf16> to vector<64x32xbf16>
    %c1_i32_14 = arith.constant 1 : i32
    %37 = vector.broadcast %c1_i32_14 : i32 to vector<1x32xi32>
    %38 = arith.cmpi sge, %9, %37 : vector<1x32xi32>
    %c2_i32_15 = arith.constant 2 : i32
    %39 = vector.broadcast %c2_i32_15 : i32 to vector<1x32xi32>
    %40 = arith.cmpi sle, %5, %39 : vector<1x32xi32>
    %41 = arith.andi %38, %40 : vector<1x32xi1>
    %cst_16 = arith.constant 0.000000e+00 : bf16
    %42 = vector.broadcast %cst_16 : bf16 to vector<64x32xbf16>
    %43 = vector.shape_cast %41 : vector<1x32xi1> to vector<1x32xi1>
    %44 = vector.broadcast %43 : vector<1x32xi1> to vector<64x32xi1>
    %45 = arith.select %44, %36, %42 : vector<64x32xi1>, vector<64x32xbf16>
    %c2 = arith.constant 2 : index
    %c0_17 = arith.constant 0 : index
    %c0_18 = arith.constant 0 : index
    %46 = vector.load %arg2[%c2, %c0_17, %c0_18] : memref<9x128x64xbf16, #tpu.memory_space<vmem>>, vector<1x128x64xbf16>
    %47 = vector.shape_cast %46 : vector<1x128x64xbf16> to vector<128x64xbf16>
    %cst_19 = arith.constant dense<0.000000e+00> : vector<128x32xf32>
    %48 = tpu.matmul %47, %45, %cst_19 {dimension_numbers = #tpu.dot_dimension_numbers<[1], [0], [0], [1], [0, 0, 1, 1], [], []>} : vector<128x64xbf16>, vector<64x32xbf16>, vector<128x32xf32> -> vector<128x32xf32>
    %49 = arith.addf %35, %48 : vector<128x32xf32>
    %50 = vector.extract_strided_slice %2 {offsets = [0, 4], sizes = [64, 32], strides = [1, 1]} : vector<64x42xbf16> to vector<64x32xbf16>
    %c1_i32_20 = arith.constant 1 : i32
    %51 = vector.broadcast %c1_i32_20 : i32 to vector<1x32xi32>
    %52 = arith.cmpi sge, %5, %51 : vector<1x32xi32>
    %cst_21 = arith.constant 0.000000e+00 : bf16
    %53 = vector.broadcast %cst_21 : bf16 to vector<64x32xbf16>
    %54 = vector.shape_cast %52 : vector<1x32xi1> to vector<1x32xi1>
    %55 = vector.broadcast %54 : vector<1x32xi1> to vector<64x32xi1>
    %56 = arith.select %55, %50, %53 : vector<64x32xi1>, vector<64x32xbf16>
    %c3 = arith.constant 3 : index
    %c0_22 = arith.constant 0 : index
    %c0_23 = arith.constant 0 : index
    %57 = vector.load %arg2[%c3, %c0_22, %c0_23] : memref<9x128x64xbf16, #tpu.memory_space<vmem>>, vector<1x128x64xbf16>
    %58 = vector.shape_cast %57 : vector<1x128x64xbf16> to vector<128x64xbf16>
    %cst_24 = arith.constant dense<0.000000e+00> : vector<128x32xf32>
    %59 = tpu.matmul %58, %56, %cst_24 {dimension_numbers = #tpu.dot_dimension_numbers<[1], [0], [0], [1], [0, 0, 1, 1], [], []>} : vector<128x64xbf16>, vector<64x32xbf16>, vector<128x32xf32> -> vector<128x32xf32>
    %60 = arith.addf %49, %59 : vector<128x32xf32>
    %61 = vector.extract_strided_slice %2 {offsets = [0, 5], sizes = [64, 32], strides = [1, 1]} : vector<64x42xbf16> to vector<64x32xbf16>
    %c4 = arith.constant 4 : index
    %c0_25 = arith.constant 0 : index
    %c0_26 = arith.constant 0 : index
    %62 = vector.load %arg2[%c4, %c0_25, %c0_26] : memref<9x128x64xbf16, #tpu.memory_space<vmem>>, vector<1x128x64xbf16>
    %63 = vector.shape_cast %62 : vector<1x128x64xbf16> to vector<128x64xbf16>
    %cst_27 = arith.constant dense<0.000000e+00> : vector<128x32xf32>
    %64 = tpu.matmul %63, %61, %cst_27 {dimension_numbers = #tpu.dot_dimension_numbers<[1], [0], [0], [1], [0, 0, 1, 1], [], []>} : vector<128x64xbf16>, vector<64x32xbf16>, vector<128x32xf32> -> vector<128x32xf32>
    %65 = arith.addf %60, %64 : vector<128x32xf32>
    %66 = vector.extract_strided_slice %2 {offsets = [0, 6], sizes = [64, 32], strides = [1, 1]} : vector<64x42xbf16> to vector<64x32xbf16>
    %c2_i32_28 = arith.constant 2 : i32
    %67 = vector.broadcast %c2_i32_28 : i32 to vector<1x32xi32>
    %68 = arith.cmpi sle, %5, %67 : vector<1x32xi32>
    %cst_29 = arith.constant 0.000000e+00 : bf16
    %69 = vector.broadcast %cst_29 : bf16 to vector<64x32xbf16>
    %70 = vector.shape_cast %68 : vector<1x32xi1> to vector<1x32xi1>
    %71 = vector.broadcast %70 : vector<1x32xi1> to vector<64x32xi1>
    %72 = arith.select %71, %66, %69 : vector<64x32xi1>, vector<64x32xbf16>
    %c5 = arith.constant 5 : index
    %c0_30 = arith.constant 0 : index
    %c0_31 = arith.constant 0 : index
    %73 = vector.load %arg2[%c5, %c0_30, %c0_31] : memref<9x128x64xbf16, #tpu.memory_space<vmem>>, vector<1x128x64xbf16>
    %74 = vector.shape_cast %73 : vector<1x128x64xbf16> to vector<128x64xbf16>
    %cst_32 = arith.constant dense<0.000000e+00> : vector<128x32xf32>
    %75 = tpu.matmul %74, %72, %cst_32 {dimension_numbers = #tpu.dot_dimension_numbers<[1], [0], [0], [1], [0, 0, 1, 1], [], []>} : vector<128x64xbf16>, vector<64x32xbf16>, vector<128x32xf32> -> vector<128x32xf32>
    %76 = arith.addf %65, %75 : vector<128x32xf32>
    %77 = vector.extract_strided_slice %2 {offsets = [0, 8], sizes = [64, 32], strides = [1, 1]} : vector<64x42xbf16> to vector<64x32xbf16>
    %c2_i32_33 = arith.constant 2 : i32
    %78 = vector.broadcast %c2_i32_33 : i32 to vector<1x32xi32>
    %79 = arith.cmpi sle, %9, %78 : vector<1x32xi32>
    %c1_i32_34 = arith.constant 1 : i32
    %80 = vector.broadcast %c1_i32_34 : i32 to vector<1x32xi32>
    %81 = arith.cmpi sge, %5, %80 : vector<1x32xi32>
    %82 = arith.andi %79, %81 : vector<1x32xi1>
    %cst_35 = arith.constant 0.000000e+00 : bf16
    %83 = vector.broadcast %cst_35 : bf16 to vector<64x32xbf16>
    %84 = vector.shape_cast %82 : vector<1x32xi1> to vector<1x32xi1>
    %85 = vector.broadcast %84 : vector<1x32xi1> to vector<64x32xi1>
    %86 = arith.select %85, %77, %83 : vector<64x32xi1>, vector<64x32xbf16>
    %c6 = arith.constant 6 : index
    %c0_36 = arith.constant 0 : index
    %c0_37 = arith.constant 0 : index
    %87 = vector.load %arg2[%c6, %c0_36, %c0_37] : memref<9x128x64xbf16, #tpu.memory_space<vmem>>, vector<1x128x64xbf16>
    %88 = vector.shape_cast %87 : vector<1x128x64xbf16> to vector<128x64xbf16>
    %cst_38 = arith.constant dense<0.000000e+00> : vector<128x32xf32>
    %89 = tpu.matmul %88, %86, %cst_38 {dimension_numbers = #tpu.dot_dimension_numbers<[1], [0], [0], [1], [0, 0, 1, 1], [], []>} : vector<128x64xbf16>, vector<64x32xbf16>, vector<128x32xf32> -> vector<128x32xf32>
    %90 = arith.addf %76, %89 : vector<128x32xf32>
    %91 = vector.extract_strided_slice %2 {offsets = [0, 9], sizes = [64, 32], strides = [1, 1]} : vector<64x42xbf16> to vector<64x32xbf16>
    %c2_i32_39 = arith.constant 2 : i32
    %92 = vector.broadcast %c2_i32_39 : i32 to vector<1x32xi32>
    %93 = arith.cmpi sle, %9, %92 : vector<1x32xi32>
    %cst_40 = arith.constant 0.000000e+00 : bf16
    %94 = vector.broadcast %cst_40 : bf16 to vector<64x32xbf16>
    %95 = vector.shape_cast %93 : vector<1x32xi1> to vector<1x32xi1>
    %96 = vector.broadcast %95 : vector<1x32xi1> to vector<64x32xi1>
    %97 = arith.select %96, %91, %94 : vector<64x32xi1>, vector<64x32xbf16>
    %c7 = arith.constant 7 : index
    %c0_41 = arith.constant 0 : index
    %c0_42 = arith.constant 0 : index
    %98 = vector.load %arg2[%c7, %c0_41, %c0_42] : memref<9x128x64xbf16, #tpu.memory_space<vmem>>, vector<1x128x64xbf16>
    %99 = vector.shape_cast %98 : vector<1x128x64xbf16> to vector<128x64xbf16>
    %cst_43 = arith.constant dense<0.000000e+00> : vector<128x32xf32>
    %100 = tpu.matmul %99, %97, %cst_43 {dimension_numbers = #tpu.dot_dimension_numbers<[1], [0], [0], [1], [0, 0, 1, 1], [], []>} : vector<128x64xbf16>, vector<64x32xbf16>, vector<128x32xf32> -> vector<128x32xf32>
    %101 = arith.addf %90, %100 : vector<128x32xf32>
    %102 = vector.extract_strided_slice %2 {offsets = [0, 10], sizes = [64, 32], strides = [1, 1]} : vector<64x42xbf16> to vector<64x32xbf16>
    %c2_i32_44 = arith.constant 2 : i32
    %103 = vector.broadcast %c2_i32_44 : i32 to vector<1x32xi32>
    %104 = arith.cmpi sle, %9, %103 : vector<1x32xi32>
    %c2_i32_45 = arith.constant 2 : i32
    %105 = vector.broadcast %c2_i32_45 : i32 to vector<1x32xi32>
    %106 = arith.cmpi sle, %5, %105 : vector<1x32xi32>
    %107 = arith.andi %104, %106 : vector<1x32xi1>
    %cst_46 = arith.constant 0.000000e+00 : bf16
    %108 = vector.broadcast %cst_46 : bf16 to vector<64x32xbf16>
    %109 = vector.shape_cast %107 : vector<1x32xi1> to vector<1x32xi1>
    %110 = vector.broadcast %109 : vector<1x32xi1> to vector<64x32xi1>
    %111 = arith.select %110, %102, %108 : vector<64x32xi1>, vector<64x32xbf16>
    %c8 = arith.constant 8 : index
    %c0_47 = arith.constant 0 : index
    %c0_48 = arith.constant 0 : index
    %112 = vector.load %arg2[%c8, %c0_47, %c0_48] : memref<9x128x64xbf16, #tpu.memory_space<vmem>>, vector<1x128x64xbf16>
    %113 = vector.shape_cast %112 : vector<1x128x64xbf16> to vector<128x64xbf16>
    %cst_49 = arith.constant dense<0.000000e+00> : vector<128x32xf32>
    %114 = tpu.matmul %113, %111, %cst_49 {dimension_numbers = #tpu.dot_dimension_numbers<[1], [0], [0], [1], [0, 0, 1, 1], [], []>} : vector<128x64xbf16>, vector<64x32xbf16>, vector<128x32xf32> -> vector<128x32xf32>
    %115 = arith.addf %101, %114 : vector<128x32xf32>
    %cst_50 = arith.constant dense<0.000000e+00> : vector<128xf32>
    %116 = vector.multi_reduction <add>, %115, %cst_50 [1] : vector<128x32xf32> to vector<128xf32>
    %117 = vector.shape_cast %116 : vector<128xf32> to vector<128x1xf32>
    %118 = arith.mulf %115, %115 : vector<128x32xf32>
    %cst_51 = arith.constant dense<0.000000e+00> : vector<128xf32>
    %119 = vector.multi_reduction <add>, %118, %cst_51 [1] : vector<128x32xf32> to vector<128xf32>
    %120 = vector.shape_cast %119 : vector<128xf32> to vector<128x1xf32>
    %121 = vector.extract_strided_slice %117 {offsets = [0, 0], sizes = [32, 1], strides = [1, 1]} : vector<128x1xf32> to vector<32x1xf32>
    %122 = vector.extract_strided_slice %117 {offsets = [32, 0], sizes = [32, 1], strides = [1, 1]} : vector<128x1xf32> to vector<32x1xf32>
    %123 = arith.addf %121, %122 : vector<32x1xf32>
    %124 = vector.extract_strided_slice %117 {offsets = [64, 0], sizes = [32, 1], strides = [1, 1]} : vector<128x1xf32> to vector<32x1xf32>
    %125 = arith.addf %123, %124 : vector<32x1xf32>
    %126 = vector.extract_strided_slice %117 {offsets = [96, 0], sizes = [32, 1], strides = [1, 1]} : vector<128x1xf32> to vector<32x1xf32>
    %127 = arith.addf %125, %126 : vector<32x1xf32>
    %128 = vector.extract_strided_slice %120 {offsets = [0, 0], sizes = [32, 1], strides = [1, 1]} : vector<128x1xf32> to vector<32x1xf32>
    %129 = vector.extract_strided_slice %120 {offsets = [32, 0], sizes = [32, 1], strides = [1, 1]} : vector<128x1xf32> to vector<32x1xf32>
    %130 = arith.addf %128, %129 : vector<32x1xf32>
    %131 = vector.extract_strided_slice %120 {offsets = [64, 0], sizes = [32, 1], strides = [1, 1]} : vector<128x1xf32> to vector<32x1xf32>
    %132 = arith.addf %130, %131 : vector<32x1xf32>
    %133 = vector.extract_strided_slice %120 {offsets = [96, 0], sizes = [32, 1], strides = [1, 1]} : vector<128x1xf32> to vector<32x1xf32>
    %134 = arith.addf %132, %133 : vector<32x1xf32>
    %cst_52 = arith.constant 7.812500e-03 : f32
    %135 = vector.broadcast %cst_52 : f32 to vector<32x1xf32>
    %136 = arith.mulf %127, %135 : vector<32x1xf32>
    %cst_53 = arith.constant 7.812500e-03 : f32
    %137 = vector.broadcast %cst_53 : f32 to vector<32x1xf32>
    %138 = arith.mulf %134, %137 : vector<32x1xf32>
    %139 = arith.mulf %136, %136 : vector<32x1xf32>
    %140 = arith.subf %138, %139 : vector<32x1xf32>
    %cst_54 = arith.constant 0.000000e+00 : f32
    %141 = vector.broadcast %cst_54 : f32 to vector<32x1xf32>
    %142 = arith.maximumf %140, %141 : vector<32x1xf32>
    %c0_55 = arith.constant 0 : index
    %c0_56 = arith.constant 0 : index
    %143 = vector.load %arg3[%c0_55, %c0_56] : memref<32x1xf32, #tpu.memory_space<vmem>>, vector<32x1xf32>
    %cst_57 = arith.constant 9.99999974E-6 : f32
    %144 = vector.broadcast %cst_57 : f32 to vector<32x1xf32>
    %145 = arith.addf %142, %144 : vector<32x1xf32>
    %146 = math.rsqrt %145 : vector<32x1xf32>
    %147 = arith.mulf %143, %146 : vector<32x1xf32>
    %c0_58 = arith.constant 0 : index
    %c0_59 = arith.constant 0 : index
    %148 = vector.load %arg4[%c0_58, %c0_59] : memref<32x1xf32, #tpu.memory_space<vmem>>, vector<32x1xf32>
    %149 = arith.mulf %136, %147 : vector<32x1xf32>
    %150 = arith.subf %148, %149 : vector<32x1xf32>
    %151 = tpu.concatenate %147, %147, %147, %147 in 0 : vector<32x1xf32>, vector<32x1xf32>, vector<32x1xf32>, vector<32x1xf32> -> vector<128x1xf32>
    %152 = tpu.concatenate %150, %150, %150, %150 in 0 : vector<32x1xf32>, vector<32x1xf32>, vector<32x1xf32>, vector<32x1xf32> -> vector<128x1xf32>
    %153 = vector.broadcast %151 : vector<128x1xf32> to vector<128x32xf32>
    %154 = arith.mulf %115, %153 : vector<128x32xf32>
    %155 = vector.broadcast %152 : vector<128x1xf32> to vector<128x32xf32>
    %156 = arith.addf %154, %155 : vector<128x32xf32>
    %cst_60 = arith.constant 0.000000e+00 : f32
    %157 = vector.broadcast %cst_60 : f32 to vector<128x32xf32>
    %158 = arith.maximumf %156, %157 : vector<128x32xf32>
    %159 = arith.truncf %158 : vector<128x32xf32> to vector<128x32xbf16>
    %c0_61 = arith.constant 0 : index
    %c0_62 = arith.constant 0 : index
    %160 = vector.load %arg5[%c0_61, %c0_62] : memref<128x32xbf16, #tpu.memory_space<vmem>>, vector<128x32xbf16>
    tpu.vector_store %arg5[%c0_61, %c0_62], %159 {strides = array<i32>} : memref<128x32xbf16, #tpu.memory_space<vmem>>, vector<128x32xbf16>,
    return
  }
  func.func @transform_0(%arg0: i32) -> (i32, i32) {
    %c0_i32 = arith.constant 0 : i32
    %c0_i32_0 = arith.constant 0 : i32
    %c0_i32_1 = arith.constant 0 : i32
    return %c0_i32, %c0_i32_0 : i32, i32
  }
  func.func @transform_1(%arg0: i32) -> (i32, i32, i32) {
    %c0_i32 = arith.constant 0 : i32
    %c0_i32_0 = arith.constant 0 : i32
    %c0_i32_1 = arith.constant 0 : i32
    %c0_i32_2 = arith.constant 0 : i32
    return %c0_i32, %c0_i32_0, %c0_i32_1 : i32, i32, i32
  }
  func.func @transform_2(%arg0: i32) -> (i32, i32) {
    %c0_i32 = arith.constant 0 : i32
    %c0_i32_0 = arith.constant 0 : i32
    %c0_i32_1 = arith.constant 0 : i32
    return %c0_i32, %c0_i32_0 : i32, i32
  }
  func.func @transform_3(%arg0: i32) -> (i32, i32) {
    %c0_i32 = arith.constant 0 : i32
    %c0_i32_0 = arith.constant 0 : i32
    %c0_i32_1 = arith.constant 0 : i32
    return %c0_i32, %c0_i32_0 : i32, i32
  }
  func.func @transform_4(%arg0: i32) -> (i32, i32) {
    %c0_i32 = arith.constant 0 : i32
    %c0_i32_0 = arith.constant 0 : i32
    %c0_i32_1 = arith.constant 0 : i32
    return %c0_i32, %c0_i32_0 : i32, i32
  }
}

module attributes {stable_mosaic.version = 11 : i64} {
  func.func @kernel(%arg0: i32, %arg1: memref<32x128xbf16, #tpu.memory_space<vmem>>, %arg2: memref<9x64x32xbf16, #tpu.memory_space<vmem>>, %arg3: memref<16x1xf32, #tpu.memory_space<vmem>>, %arg4: memref<16x1xf32, #tpu.memory_space<vmem>>, %arg5: memref<64x128xbf16, #tpu.memory_space<vmem>>) attributes {dimension_semantics = [#tpu.dimension_semantics<arbitrary>], iteration_bounds = array<i64: 1>, scalar_prefetch = 0 : i64, scratch_operands = 0 : i64, tpu.core_type = #tpu.core_type<tc>, window_params = [{pipeline_mode = #tpu.pipeline_mode<synchronous>, transform_indices = @transform_0, window_bounds = array<i64: 32, 128>}, {pipeline_mode = #tpu.pipeline_mode<synchronous>, transform_indices = @transform_1, window_bounds = array<i64: 9, 64, 32>}, {pipeline_mode = #tpu.pipeline_mode<synchronous>, transform_indices = @transform_2, window_bounds = array<i64: 16, 1>}, {pipeline_mode = #tpu.pipeline_mode<synchronous>, transform_indices = @transform_3, window_bounds = array<i64: 16, 1>}, {pipeline_mode = #tpu.pipeline_mode<synchronous>, transform_indices = @transform_4, window_bounds = array<i64: 64, 128>}]} {
    %cst = arith.constant 0.000000e+00 : bf16
    %0 = vector.broadcast %cst : bf16 to vector<32x9xbf16>
    %c0 = arith.constant 0 : index
    %c0_0 = arith.constant 0 : index
    %1 = vector.load %arg1[%c0, %c0_0] : memref<32x128xbf16, #tpu.memory_space<vmem>>, vector<32x128xbf16>
    %2 = tpu.concatenate %0, %1, %0 in 1 : vector<32x9xbf16>, vector<32x128xbf16>, vector<32x9xbf16> -> vector<32x146xbf16>
    %3 = tpu.iota {dimensions = array<i32: 1>} : vector<1x128xi32>
    %c7_i32 = arith.constant 7 : i32
    %4 = vector.broadcast %c7_i32 : i32 to vector<1x128xi32>
    %5 = arith.andi %3, %4 : vector<1x128xi32>
    %c3_i32 = arith.constant 3 : i32
    %6 = vector.broadcast %c3_i32 : i32 to vector<1x128xi32>
    %7 = arith.shrsi %3, %6 : vector<1x128xi32>
    %c7_i32_1 = arith.constant 7 : i32
    %8 = vector.broadcast %c7_i32_1 : i32 to vector<1x128xi32>
    %9 = arith.andi %7, %8 : vector<1x128xi32>
    %cst_2 = arith.constant 0.000000e+00 : f32
    %10 = vector.broadcast %cst_2 : f32 to vector<64x128xf32>
    %11 = vector.extract_strided_slice %2 {offsets = [0, 0], sizes = [32, 128], strides = [1, 1]} : vector<32x146xbf16> to vector<32x128xbf16>
    %c1_i32 = arith.constant 1 : i32
    %12 = vector.broadcast %c1_i32 : i32 to vector<1x128xi32>
    %13 = arith.cmpi sge, %9, %12 : vector<1x128xi32>
    %c1_i32_3 = arith.constant 1 : i32
    %14 = vector.broadcast %c1_i32_3 : i32 to vector<1x128xi32>
    %15 = arith.cmpi sge, %5, %14 : vector<1x128xi32>
    %16 = arith.andi %13, %15 : vector<1x128xi1>
    %cst_4 = arith.constant 0.000000e+00 : bf16
    %17 = vector.broadcast %cst_4 : bf16 to vector<32x128xbf16>
    %18 = vector.shape_cast %16 : vector<1x128xi1> to vector<1x128xi1>
    %19 = vector.broadcast %18 : vector<1x128xi1> to vector<32x128xi1>
    %20 = arith.select %19, %11, %17 : vector<32x128xi1>, vector<32x128xbf16>
    %c0_5 = arith.constant 0 : index
    %c0_6 = arith.constant 0 : index
    %c0_7 = arith.constant 0 : index
    %21 = vector.load %arg2[%c0_5, %c0_6, %c0_7] : memref<9x64x32xbf16, #tpu.memory_space<vmem>>, vector<1x64x32xbf16>
    %22 = vector.shape_cast %21 : vector<1x64x32xbf16> to vector<64x32xbf16>
    %cst_8 = arith.constant dense<0.000000e+00> : vector<64x128xf32>
    %23 = tpu.matmul %22, %20, %cst_8 {dimension_numbers = #tpu.dot_dimension_numbers<[1], [0], [0], [1], [0, 0, 1, 1], [], []>} : vector<64x32xbf16>, vector<32x128xbf16>, vector<64x128xf32> -> vector<64x128xf32>
    %24 = arith.addf %10, %23 : vector<64x128xf32>
    %25 = vector.extract_strided_slice %2 {offsets = [0, 1], sizes = [32, 128], strides = [1, 1]} : vector<32x146xbf16> to vector<32x128xbf16>
    %c1_i32_9 = arith.constant 1 : i32
    %26 = vector.broadcast %c1_i32_9 : i32 to vector<1x128xi32>
    %27 = arith.cmpi sge, %9, %26 : vector<1x128xi32>
    %cst_10 = arith.constant 0.000000e+00 : bf16
    %28 = vector.broadcast %cst_10 : bf16 to vector<32x128xbf16>
    %29 = vector.shape_cast %27 : vector<1x128xi1> to vector<1x128xi1>
    %30 = vector.broadcast %29 : vector<1x128xi1> to vector<32x128xi1>
    %31 = arith.select %30, %25, %28 : vector<32x128xi1>, vector<32x128xbf16>
    %c1 = arith.constant 1 : index
    %c0_11 = arith.constant 0 : index
    %c0_12 = arith.constant 0 : index
    %32 = vector.load %arg2[%c1, %c0_11, %c0_12] : memref<9x64x32xbf16, #tpu.memory_space<vmem>>, vector<1x64x32xbf16>
    %33 = vector.shape_cast %32 : vector<1x64x32xbf16> to vector<64x32xbf16>
    %cst_13 = arith.constant dense<0.000000e+00> : vector<64x128xf32>
    %34 = tpu.matmul %33, %31, %cst_13 {dimension_numbers = #tpu.dot_dimension_numbers<[1], [0], [0], [1], [0, 0, 1, 1], [], []>} : vector<64x32xbf16>, vector<32x128xbf16>, vector<64x128xf32> -> vector<64x128xf32>
    %35 = arith.addf %24, %34 : vector<64x128xf32>
    %36 = vector.extract_strided_slice %2 {offsets = [0, 2], sizes = [32, 128], strides = [1, 1]} : vector<32x146xbf16> to vector<32x128xbf16>
    %c1_i32_14 = arith.constant 1 : i32
    %37 = vector.broadcast %c1_i32_14 : i32 to vector<1x128xi32>
    %38 = arith.cmpi sge, %9, %37 : vector<1x128xi32>
    %c6_i32 = arith.constant 6 : i32
    %39 = vector.broadcast %c6_i32 : i32 to vector<1x128xi32>
    %40 = arith.cmpi sle, %5, %39 : vector<1x128xi32>
    %41 = arith.andi %38, %40 : vector<1x128xi1>
    %cst_15 = arith.constant 0.000000e+00 : bf16
    %42 = vector.broadcast %cst_15 : bf16 to vector<32x128xbf16>
    %43 = vector.shape_cast %41 : vector<1x128xi1> to vector<1x128xi1>
    %44 = vector.broadcast %43 : vector<1x128xi1> to vector<32x128xi1>
    %45 = arith.select %44, %36, %42 : vector<32x128xi1>, vector<32x128xbf16>
    %c2 = arith.constant 2 : index
    %c0_16 = arith.constant 0 : index
    %c0_17 = arith.constant 0 : index
    %46 = vector.load %arg2[%c2, %c0_16, %c0_17] : memref<9x64x32xbf16, #tpu.memory_space<vmem>>, vector<1x64x32xbf16>
    %47 = vector.shape_cast %46 : vector<1x64x32xbf16> to vector<64x32xbf16>
    %cst_18 = arith.constant dense<0.000000e+00> : vector<64x128xf32>
    %48 = tpu.matmul %47, %45, %cst_18 {dimension_numbers = #tpu.dot_dimension_numbers<[1], [0], [0], [1], [0, 0, 1, 1], [], []>} : vector<64x32xbf16>, vector<32x128xbf16>, vector<64x128xf32> -> vector<64x128xf32>
    %49 = arith.addf %35, %48 : vector<64x128xf32>
    %50 = vector.extract_strided_slice %2 {offsets = [0, 8], sizes = [32, 128], strides = [1, 1]} : vector<32x146xbf16> to vector<32x128xbf16>
    %c1_i32_19 = arith.constant 1 : i32
    %51 = vector.broadcast %c1_i32_19 : i32 to vector<1x128xi32>
    %52 = arith.cmpi sge, %5, %51 : vector<1x128xi32>
    %cst_20 = arith.constant 0.000000e+00 : bf16
    %53 = vector.broadcast %cst_20 : bf16 to vector<32x128xbf16>
    %54 = vector.shape_cast %52 : vector<1x128xi1> to vector<1x128xi1>
    %55 = vector.broadcast %54 : vector<1x128xi1> to vector<32x128xi1>
    %56 = arith.select %55, %50, %53 : vector<32x128xi1>, vector<32x128xbf16>
    %c3 = arith.constant 3 : index
    %c0_21 = arith.constant 0 : index
    %c0_22 = arith.constant 0 : index
    %57 = vector.load %arg2[%c3, %c0_21, %c0_22] : memref<9x64x32xbf16, #tpu.memory_space<vmem>>, vector<1x64x32xbf16>
    %58 = vector.shape_cast %57 : vector<1x64x32xbf16> to vector<64x32xbf16>
    %cst_23 = arith.constant dense<0.000000e+00> : vector<64x128xf32>
    %59 = tpu.matmul %58, %56, %cst_23 {dimension_numbers = #tpu.dot_dimension_numbers<[1], [0], [0], [1], [0, 0, 1, 1], [], []>} : vector<64x32xbf16>, vector<32x128xbf16>, vector<64x128xf32> -> vector<64x128xf32>
    %60 = arith.addf %49, %59 : vector<64x128xf32>
    %61 = vector.extract_strided_slice %2 {offsets = [0, 9], sizes = [32, 128], strides = [1, 1]} : vector<32x146xbf16> to vector<32x128xbf16>
    %c4 = arith.constant 4 : index
    %c0_24 = arith.constant 0 : index
    %c0_25 = arith.constant 0 : index
    %62 = vector.load %arg2[%c4, %c0_24, %c0_25] : memref<9x64x32xbf16, #tpu.memory_space<vmem>>, vector<1x64x32xbf16>
    %63 = vector.shape_cast %62 : vector<1x64x32xbf16> to vector<64x32xbf16>
    %cst_26 = arith.constant dense<0.000000e+00> : vector<64x128xf32>
    %64 = tpu.matmul %63, %61, %cst_26 {dimension_numbers = #tpu.dot_dimension_numbers<[1], [0], [0], [1], [0, 0, 1, 1], [], []>} : vector<64x32xbf16>, vector<32x128xbf16>, vector<64x128xf32> -> vector<64x128xf32>
    %65 = arith.addf %60, %64 : vector<64x128xf32>
    %66 = vector.extract_strided_slice %2 {offsets = [0, 10], sizes = [32, 128], strides = [1, 1]} : vector<32x146xbf16> to vector<32x128xbf16>
    %c6_i32_27 = arith.constant 6 : i32
    %67 = vector.broadcast %c6_i32_27 : i32 to vector<1x128xi32>
    %68 = arith.cmpi sle, %5, %67 : vector<1x128xi32>
    %cst_28 = arith.constant 0.000000e+00 : bf16
    %69 = vector.broadcast %cst_28 : bf16 to vector<32x128xbf16>
    %70 = vector.shape_cast %68 : vector<1x128xi1> to vector<1x128xi1>
    %71 = vector.broadcast %70 : vector<1x128xi1> to vector<32x128xi1>
    %72 = arith.select %71, %66, %69 : vector<32x128xi1>, vector<32x128xbf16>
    %c5 = arith.constant 5 : index
    %c0_29 = arith.constant 0 : index
    %c0_30 = arith.constant 0 : index
    %73 = vector.load %arg2[%c5, %c0_29, %c0_30] : memref<9x64x32xbf16, #tpu.memory_space<vmem>>, vector<1x64x32xbf16>
    %74 = vector.shape_cast %73 : vector<1x64x32xbf16> to vector<64x32xbf16>
    %cst_31 = arith.constant dense<0.000000e+00> : vector<64x128xf32>
    %75 = tpu.matmul %74, %72, %cst_31 {dimension_numbers = #tpu.dot_dimension_numbers<[1], [0], [0], [1], [0, 0, 1, 1], [], []>} : vector<64x32xbf16>, vector<32x128xbf16>, vector<64x128xf32> -> vector<64x128xf32>
    %76 = arith.addf %65, %75 : vector<64x128xf32>
    %77 = vector.extract_strided_slice %2 {offsets = [0, 16], sizes = [32, 128], strides = [1, 1]} : vector<32x146xbf16> to vector<32x128xbf16>
    %c6_i32_32 = arith.constant 6 : i32
    %78 = vector.broadcast %c6_i32_32 : i32 to vector<1x128xi32>
    %79 = arith.cmpi sle, %9, %78 : vector<1x128xi32>
    %c1_i32_33 = arith.constant 1 : i32
    %80 = vector.broadcast %c1_i32_33 : i32 to vector<1x128xi32>
    %81 = arith.cmpi sge, %5, %80 : vector<1x128xi32>
    %82 = arith.andi %79, %81 : vector<1x128xi1>
    %cst_34 = arith.constant 0.000000e+00 : bf16
    %83 = vector.broadcast %cst_34 : bf16 to vector<32x128xbf16>
    %84 = vector.shape_cast %82 : vector<1x128xi1> to vector<1x128xi1>
    %85 = vector.broadcast %84 : vector<1x128xi1> to vector<32x128xi1>
    %86 = arith.select %85, %77, %83 : vector<32x128xi1>, vector<32x128xbf16>
    %c6 = arith.constant 6 : index
    %c0_35 = arith.constant 0 : index
    %c0_36 = arith.constant 0 : index
    %87 = vector.load %arg2[%c6, %c0_35, %c0_36] : memref<9x64x32xbf16, #tpu.memory_space<vmem>>, vector<1x64x32xbf16>
    %88 = vector.shape_cast %87 : vector<1x64x32xbf16> to vector<64x32xbf16>
    %cst_37 = arith.constant dense<0.000000e+00> : vector<64x128xf32>
    %89 = tpu.matmul %88, %86, %cst_37 {dimension_numbers = #tpu.dot_dimension_numbers<[1], [0], [0], [1], [0, 0, 1, 1], [], []>} : vector<64x32xbf16>, vector<32x128xbf16>, vector<64x128xf32> -> vector<64x128xf32>
    %90 = arith.addf %76, %89 : vector<64x128xf32>
    %91 = vector.extract_strided_slice %2 {offsets = [0, 17], sizes = [32, 128], strides = [1, 1]} : vector<32x146xbf16> to vector<32x128xbf16>
    %c6_i32_38 = arith.constant 6 : i32
    %92 = vector.broadcast %c6_i32_38 : i32 to vector<1x128xi32>
    %93 = arith.cmpi sle, %9, %92 : vector<1x128xi32>
    %cst_39 = arith.constant 0.000000e+00 : bf16
    %94 = vector.broadcast %cst_39 : bf16 to vector<32x128xbf16>
    %95 = vector.shape_cast %93 : vector<1x128xi1> to vector<1x128xi1>
    %96 = vector.broadcast %95 : vector<1x128xi1> to vector<32x128xi1>
    %97 = arith.select %96, %91, %94 : vector<32x128xi1>, vector<32x128xbf16>
    %c7 = arith.constant 7 : index
    %c0_40 = arith.constant 0 : index
    %c0_41 = arith.constant 0 : index
    %98 = vector.load %arg2[%c7, %c0_40, %c0_41] : memref<9x64x32xbf16, #tpu.memory_space<vmem>>, vector<1x64x32xbf16>
    %99 = vector.shape_cast %98 : vector<1x64x32xbf16> to vector<64x32xbf16>
    %cst_42 = arith.constant dense<0.000000e+00> : vector<64x128xf32>
    %100 = tpu.matmul %99, %97, %cst_42 {dimension_numbers = #tpu.dot_dimension_numbers<[1], [0], [0], [1], [0, 0, 1, 1], [], []>} : vector<64x32xbf16>, vector<32x128xbf16>, vector<64x128xf32> -> vector<64x128xf32>
    %101 = arith.addf %90, %100 : vector<64x128xf32>
    %102 = vector.extract_strided_slice %2 {offsets = [0, 18], sizes = [32, 128], strides = [1, 1]} : vector<32x146xbf16> to vector<32x128xbf16>
    %c6_i32_43 = arith.constant 6 : i32
    %103 = vector.broadcast %c6_i32_43 : i32 to vector<1x128xi32>
    %104 = arith.cmpi sle, %9, %103 : vector<1x128xi32>
    %c6_i32_44 = arith.constant 6 : i32
    %105 = vector.broadcast %c6_i32_44 : i32 to vector<1x128xi32>
    %106 = arith.cmpi sle, %5, %105 : vector<1x128xi32>
    %107 = arith.andi %104, %106 : vector<1x128xi1>
    %cst_45 = arith.constant 0.000000e+00 : bf16
    %108 = vector.broadcast %cst_45 : bf16 to vector<32x128xbf16>
    %109 = vector.shape_cast %107 : vector<1x128xi1> to vector<1x128xi1>
    %110 = vector.broadcast %109 : vector<1x128xi1> to vector<32x128xi1>
    %111 = arith.select %110, %102, %108 : vector<32x128xi1>, vector<32x128xbf16>
    %c8 = arith.constant 8 : index
    %c0_46 = arith.constant 0 : index
    %c0_47 = arith.constant 0 : index
    %112 = vector.load %arg2[%c8, %c0_46, %c0_47] : memref<9x64x32xbf16, #tpu.memory_space<vmem>>, vector<1x64x32xbf16>
    %113 = vector.shape_cast %112 : vector<1x64x32xbf16> to vector<64x32xbf16>
    %cst_48 = arith.constant dense<0.000000e+00> : vector<64x128xf32>
    %114 = tpu.matmul %113, %111, %cst_48 {dimension_numbers = #tpu.dot_dimension_numbers<[1], [0], [0], [1], [0, 0, 1, 1], [], []>} : vector<64x32xbf16>, vector<32x128xbf16>, vector<64x128xf32> -> vector<64x128xf32>
    %115 = arith.addf %101, %114 : vector<64x128xf32>
    %cst_49 = arith.constant dense<0.000000e+00> : vector<64xf32>
    %116 = vector.multi_reduction <add>, %115, %cst_49 [1] : vector<64x128xf32> to vector<64xf32>
    %117 = vector.shape_cast %116 : vector<64xf32> to vector<64x1xf32>
    %118 = arith.mulf %115, %115 : vector<64x128xf32>
    %cst_50 = arith.constant dense<0.000000e+00> : vector<64xf32>
    %119 = vector.multi_reduction <add>, %118, %cst_50 [1] : vector<64x128xf32> to vector<64xf32>
    %120 = vector.shape_cast %119 : vector<64xf32> to vector<64x1xf32>
    %121 = vector.extract_strided_slice %117 {offsets = [0, 0], sizes = [16, 1], strides = [1, 1]} : vector<64x1xf32> to vector<16x1xf32>
    %122 = vector.extract_strided_slice %117 {offsets = [16, 0], sizes = [16, 1], strides = [1, 1]} : vector<64x1xf32> to vector<16x1xf32>
    %123 = arith.addf %121, %122 : vector<16x1xf32>
    %124 = vector.extract_strided_slice %117 {offsets = [32, 0], sizes = [16, 1], strides = [1, 1]} : vector<64x1xf32> to vector<16x1xf32>
    %125 = arith.addf %123, %124 : vector<16x1xf32>
    %126 = vector.extract_strided_slice %117 {offsets = [48, 0], sizes = [16, 1], strides = [1, 1]} : vector<64x1xf32> to vector<16x1xf32>
    %127 = arith.addf %125, %126 : vector<16x1xf32>
    %128 = vector.extract_strided_slice %120 {offsets = [0, 0], sizes = [16, 1], strides = [1, 1]} : vector<64x1xf32> to vector<16x1xf32>
    %129 = vector.extract_strided_slice %120 {offsets = [16, 0], sizes = [16, 1], strides = [1, 1]} : vector<64x1xf32> to vector<16x1xf32>
    %130 = arith.addf %128, %129 : vector<16x1xf32>
    %131 = vector.extract_strided_slice %120 {offsets = [32, 0], sizes = [16, 1], strides = [1, 1]} : vector<64x1xf32> to vector<16x1xf32>
    %132 = arith.addf %130, %131 : vector<16x1xf32>
    %133 = vector.extract_strided_slice %120 {offsets = [48, 0], sizes = [16, 1], strides = [1, 1]} : vector<64x1xf32> to vector<16x1xf32>
    %134 = arith.addf %132, %133 : vector<16x1xf32>
    %cst_51 = arith.constant 0.001953125 : f32
    %135 = vector.broadcast %cst_51 : f32 to vector<16x1xf32>
    %136 = arith.mulf %127, %135 : vector<16x1xf32>
    %cst_52 = arith.constant 0.001953125 : f32
    %137 = vector.broadcast %cst_52 : f32 to vector<16x1xf32>
    %138 = arith.mulf %134, %137 : vector<16x1xf32>
    %139 = arith.mulf %136, %136 : vector<16x1xf32>
    %140 = arith.subf %138, %139 : vector<16x1xf32>
    %cst_53 = arith.constant 0.000000e+00 : f32
    %141 = vector.broadcast %cst_53 : f32 to vector<16x1xf32>
    %142 = arith.maximumf %140, %141 : vector<16x1xf32>
    %c0_54 = arith.constant 0 : index
    %c0_55 = arith.constant 0 : index
    %143 = vector.load %arg3[%c0_54, %c0_55] : memref<16x1xf32, #tpu.memory_space<vmem>>, vector<16x1xf32>
    %cst_56 = arith.constant 9.99999974E-6 : f32
    %144 = vector.broadcast %cst_56 : f32 to vector<16x1xf32>
    %145 = arith.addf %142, %144 : vector<16x1xf32>
    %146 = math.rsqrt %145 : vector<16x1xf32>
    %147 = arith.mulf %143, %146 : vector<16x1xf32>
    %c0_57 = arith.constant 0 : index
    %c0_58 = arith.constant 0 : index
    %148 = vector.load %arg4[%c0_57, %c0_58] : memref<16x1xf32, #tpu.memory_space<vmem>>, vector<16x1xf32>
    %149 = arith.mulf %136, %147 : vector<16x1xf32>
    %150 = arith.subf %148, %149 : vector<16x1xf32>
    %151 = tpu.concatenate %147, %147, %147, %147 in 0 : vector<16x1xf32>, vector<16x1xf32>, vector<16x1xf32>, vector<16x1xf32> -> vector<64x1xf32>
    %152 = tpu.concatenate %150, %150, %150, %150 in 0 : vector<16x1xf32>, vector<16x1xf32>, vector<16x1xf32>, vector<16x1xf32> -> vector<64x1xf32>
    %153 = vector.broadcast %151 : vector<64x1xf32> to vector<64x128xf32>
    %154 = arith.mulf %115, %153 : vector<64x128xf32>
    %155 = vector.broadcast %152 : vector<64x1xf32> to vector<64x128xf32>
    %156 = arith.addf %154, %155 : vector<64x128xf32>
    %cst_59 = arith.constant 0.000000e+00 : f32
    %157 = vector.broadcast %cst_59 : f32 to vector<64x128xf32>
    %158 = arith.maximumf %156, %157 : vector<64x128xf32>
    %159 = arith.truncf %158 : vector<64x128xf32> to vector<64x128xbf16>
    %c0_60 = arith.constant 0 : index
    %c0_61 = arith.constant 0 : index
    %160 = vector.load %arg5[%c0_60, %c0_61] : memref<64x128xbf16, #tpu.memory_space<vmem>>, vector<64x128xbf16>
    tpu.vector_store %arg5[%c0_60, %c0_61], %159 {strides = array<i32>} : memref<64x128xbf16, #tpu.memory_space<vmem>>, vector<64x128xbf16>,
    return
  }
  func.func @transform_0(%arg0: i32) -> (i32, i32) {
    %c0_i32 = arith.constant 0 : i32
    %c0_i32_0 = arith.constant 0 : i32
    %c0_i32_1 = arith.constant 0 : i32
    return %c0_i32, %c0_i32_0 : i32, i32
  }
  func.func @transform_1(%arg0: i32) -> (i32, i32, i32) {
    %c0_i32 = arith.constant 0 : i32
    %c0_i32_0 = arith.constant 0 : i32
    %c0_i32_1 = arith.constant 0 : i32
    %c0_i32_2 = arith.constant 0 : i32
    return %c0_i32, %c0_i32_0, %c0_i32_1 : i32, i32, i32
  }
  func.func @transform_2(%arg0: i32) -> (i32, i32) {
    %c0_i32 = arith.constant 0 : i32
    %c0_i32_0 = arith.constant 0 : i32
    %c0_i32_1 = arith.constant 0 : i32
    return %c0_i32, %c0_i32_0 : i32, i32
  }
  func.func @transform_3(%arg0: i32) -> (i32, i32) {
    %c0_i32 = arith.constant 0 : i32
    %c0_i32_0 = arith.constant 0 : i32
    %c0_i32_1 = arith.constant 0 : i32
    return %c0_i32, %c0_i32_0 : i32, i32
  }
  func.func @transform_4(%arg0: i32) -> (i32, i32) {
    %c0_i32 = arith.constant 0 : i32
    %c0_i32_0 = arith.constant 0 : i32
    %c0_i32_1 = arith.constant 0 : i32
    return %c0_i32, %c0_i32_0 : i32, i32
  }
}

module attributes {stable_mosaic.version = 11 : i64} {
  func.func @kernel(%arg0: i32, %arg1: memref<16x512xbf16, #tpu.memory_space<vmem>>, %arg2: memref<9x32x16xbf16, #tpu.memory_space<vmem>>, %arg3: memref<8x1xf32, #tpu.memory_space<vmem>>, %arg4: memref<8x1xf32, #tpu.memory_space<vmem>>, %arg5: memref<32x512xbf16, #tpu.memory_space<vmem>>) attributes {dimension_semantics = [#tpu.dimension_semantics<arbitrary>], iteration_bounds = array<i64: 1>, scalar_prefetch = 0 : i64, scratch_operands = 0 : i64, tpu.core_type = #tpu.core_type<tc>, window_params = [{pipeline_mode = #tpu.pipeline_mode<synchronous>, transform_indices = @transform_0, window_bounds = array<i64: 16, 512>}, {pipeline_mode = #tpu.pipeline_mode<synchronous>, transform_indices = @transform_1, window_bounds = array<i64: 9, 32, 16>}, {pipeline_mode = #tpu.pipeline_mode<synchronous>, transform_indices = @transform_2, window_bounds = array<i64: 8, 1>}, {pipeline_mode = #tpu.pipeline_mode<synchronous>, transform_indices = @transform_3, window_bounds = array<i64: 8, 1>}, {pipeline_mode = #tpu.pipeline_mode<synchronous>, transform_indices = @transform_4, window_bounds = array<i64: 32, 512>}]} {
    %cst = arith.constant 0.000000e+00 : bf16
    %0 = vector.broadcast %cst : bf16 to vector<16x17xbf16>
    %c0 = arith.constant 0 : index
    %c0_0 = arith.constant 0 : index
    %1 = vector.load %arg1[%c0, %c0_0] : memref<16x512xbf16, #tpu.memory_space<vmem>>, vector<16x512xbf16>
    %2 = tpu.concatenate %0, %1, %0 in 1 : vector<16x17xbf16>, vector<16x512xbf16>, vector<16x17xbf16> -> vector<16x546xbf16>
    %3 = tpu.iota {dimensions = array<i32: 1>} : vector<1x512xi32>
    %c15_i32 = arith.constant 15 : i32
    %4 = vector.broadcast %c15_i32 : i32 to vector<1x512xi32>
    %5 = arith.andi %3, %4 : vector<1x512xi32>
    %c4_i32 = arith.constant 4 : i32
    %6 = vector.broadcast %c4_i32 : i32 to vector<1x512xi32>
    %7 = arith.shrsi %3, %6 : vector<1x512xi32>
    %c15_i32_1 = arith.constant 15 : i32
    %8 = vector.broadcast %c15_i32_1 : i32 to vector<1x512xi32>
    %9 = arith.andi %7, %8 : vector<1x512xi32>
    %cst_2 = arith.constant 0.000000e+00 : f32
    %10 = vector.broadcast %cst_2 : f32 to vector<32x512xf32>
    %11 = vector.extract_strided_slice %2 {offsets = [0, 0], sizes = [16, 512], strides = [1, 1]} : vector<16x546xbf16> to vector<16x512xbf16>
    %c1_i32 = arith.constant 1 : i32
    %12 = vector.broadcast %c1_i32 : i32 to vector<1x512xi32>
    %13 = arith.cmpi sge, %9, %12 : vector<1x512xi32>
    %c1_i32_3 = arith.constant 1 : i32
    %14 = vector.broadcast %c1_i32_3 : i32 to vector<1x512xi32>
    %15 = arith.cmpi sge, %5, %14 : vector<1x512xi32>
    %16 = arith.andi %13, %15 : vector<1x512xi1>
    %cst_4 = arith.constant 0.000000e+00 : bf16
    %17 = vector.broadcast %cst_4 : bf16 to vector<16x512xbf16>
    %18 = vector.shape_cast %16 : vector<1x512xi1> to vector<1x512xi1>
    %19 = vector.broadcast %18 : vector<1x512xi1> to vector<16x512xi1>
    %20 = arith.select %19, %11, %17 : vector<16x512xi1>, vector<16x512xbf16>
    %c0_5 = arith.constant 0 : index
    %c0_6 = arith.constant 0 : index
    %c0_7 = arith.constant 0 : index
    %21 = vector.load %arg2[%c0_5, %c0_6, %c0_7] : memref<9x32x16xbf16, #tpu.memory_space<vmem>>, vector<1x32x16xbf16>
    %22 = vector.shape_cast %21 : vector<1x32x16xbf16> to vector<32x16xbf16>
    %cst_8 = arith.constant dense<0.000000e+00> : vector<32x512xf32>
    %23 = tpu.matmul %22, %20, %cst_8 {dimension_numbers = #tpu.dot_dimension_numbers<[1], [0], [0], [1], [0, 0, 1, 1], [], []>} : vector<32x16xbf16>, vector<16x512xbf16>, vector<32x512xf32> -> vector<32x512xf32>
    %24 = arith.addf %10, %23 : vector<32x512xf32>
    %25 = vector.extract_strided_slice %2 {offsets = [0, 1], sizes = [16, 512], strides = [1, 1]} : vector<16x546xbf16> to vector<16x512xbf16>
    %c1_i32_9 = arith.constant 1 : i32
    %26 = vector.broadcast %c1_i32_9 : i32 to vector<1x512xi32>
    %27 = arith.cmpi sge, %9, %26 : vector<1x512xi32>
    %cst_10 = arith.constant 0.000000e+00 : bf16
    %28 = vector.broadcast %cst_10 : bf16 to vector<16x512xbf16>
    %29 = vector.shape_cast %27 : vector<1x512xi1> to vector<1x512xi1>
    %30 = vector.broadcast %29 : vector<1x512xi1> to vector<16x512xi1>
    %31 = arith.select %30, %25, %28 : vector<16x512xi1>, vector<16x512xbf16>
    %c1 = arith.constant 1 : index
    %c0_11 = arith.constant 0 : index
    %c0_12 = arith.constant 0 : index
    %32 = vector.load %arg2[%c1, %c0_11, %c0_12] : memref<9x32x16xbf16, #tpu.memory_space<vmem>>, vector<1x32x16xbf16>
    %33 = vector.shape_cast %32 : vector<1x32x16xbf16> to vector<32x16xbf16>
    %cst_13 = arith.constant dense<0.000000e+00> : vector<32x512xf32>
    %34 = tpu.matmul %33, %31, %cst_13 {dimension_numbers = #tpu.dot_dimension_numbers<[1], [0], [0], [1], [0, 0, 1, 1], [], []>} : vector<32x16xbf16>, vector<16x512xbf16>, vector<32x512xf32> -> vector<32x512xf32>
    %35 = arith.addf %24, %34 : vector<32x512xf32>
    %36 = vector.extract_strided_slice %2 {offsets = [0, 2], sizes = [16, 512], strides = [1, 1]} : vector<16x546xbf16> to vector<16x512xbf16>
    %c1_i32_14 = arith.constant 1 : i32
    %37 = vector.broadcast %c1_i32_14 : i32 to vector<1x512xi32>
    %38 = arith.cmpi sge, %9, %37 : vector<1x512xi32>
    %c14_i32 = arith.constant 14 : i32
    %39 = vector.broadcast %c14_i32 : i32 to vector<1x512xi32>
    %40 = arith.cmpi sle, %5, %39 : vector<1x512xi32>
    %41 = arith.andi %38, %40 : vector<1x512xi1>
    %cst_15 = arith.constant 0.000000e+00 : bf16
    %42 = vector.broadcast %cst_15 : bf16 to vector<16x512xbf16>
    %43 = vector.shape_cast %41 : vector<1x512xi1> to vector<1x512xi1>
    %44 = vector.broadcast %43 : vector<1x512xi1> to vector<16x512xi1>
    %45 = arith.select %44, %36, %42 : vector<16x512xi1>, vector<16x512xbf16>
    %c2 = arith.constant 2 : index
    %c0_16 = arith.constant 0 : index
    %c0_17 = arith.constant 0 : index
    %46 = vector.load %arg2[%c2, %c0_16, %c0_17] : memref<9x32x16xbf16, #tpu.memory_space<vmem>>, vector<1x32x16xbf16>
    %47 = vector.shape_cast %46 : vector<1x32x16xbf16> to vector<32x16xbf16>
    %cst_18 = arith.constant dense<0.000000e+00> : vector<32x512xf32>
    %48 = tpu.matmul %47, %45, %cst_18 {dimension_numbers = #tpu.dot_dimension_numbers<[1], [0], [0], [1], [0, 0, 1, 1], [], []>} : vector<32x16xbf16>, vector<16x512xbf16>, vector<32x512xf32> -> vector<32x512xf32>
    %49 = arith.addf %35, %48 : vector<32x512xf32>
    %50 = vector.extract_strided_slice %2 {offsets = [0, 16], sizes = [16, 512], strides = [1, 1]} : vector<16x546xbf16> to vector<16x512xbf16>
    %c1_i32_19 = arith.constant 1 : i32
    %51 = vector.broadcast %c1_i32_19 : i32 to vector<1x512xi32>
    %52 = arith.cmpi sge, %5, %51 : vector<1x512xi32>
    %cst_20 = arith.constant 0.000000e+00 : bf16
    %53 = vector.broadcast %cst_20 : bf16 to vector<16x512xbf16>
    %54 = vector.shape_cast %52 : vector<1x512xi1> to vector<1x512xi1>
    %55 = vector.broadcast %54 : vector<1x512xi1> to vector<16x512xi1>
    %56 = arith.select %55, %50, %53 : vector<16x512xi1>, vector<16x512xbf16>
    %c3 = arith.constant 3 : index
    %c0_21 = arith.constant 0 : index
    %c0_22 = arith.constant 0 : index
    %57 = vector.load %arg2[%c3, %c0_21, %c0_22] : memref<9x32x16xbf16, #tpu.memory_space<vmem>>, vector<1x32x16xbf16>
    %58 = vector.shape_cast %57 : vector<1x32x16xbf16> to vector<32x16xbf16>
    %cst_23 = arith.constant dense<0.000000e+00> : vector<32x512xf32>
    %59 = tpu.matmul %58, %56, %cst_23 {dimension_numbers = #tpu.dot_dimension_numbers<[1], [0], [0], [1], [0, 0, 1, 1], [], []>} : vector<32x16xbf16>, vector<16x512xbf16>, vector<32x512xf32> -> vector<32x512xf32>
    %60 = arith.addf %49, %59 : vector<32x512xf32>
    %61 = vector.extract_strided_slice %2 {offsets = [0, 17], sizes = [16, 512], strides = [1, 1]} : vector<16x546xbf16> to vector<16x512xbf16>
    %c4 = arith.constant 4 : index
    %c0_24 = arith.constant 0 : index
    %c0_25 = arith.constant 0 : index
    %62 = vector.load %arg2[%c4, %c0_24, %c0_25] : memref<9x32x16xbf16, #tpu.memory_space<vmem>>, vector<1x32x16xbf16>
    %63 = vector.shape_cast %62 : vector<1x32x16xbf16> to vector<32x16xbf16>
    %cst_26 = arith.constant dense<0.000000e+00> : vector<32x512xf32>
    %64 = tpu.matmul %63, %61, %cst_26 {dimension_numbers = #tpu.dot_dimension_numbers<[1], [0], [0], [1], [0, 0, 1, 1], [], []>} : vector<32x16xbf16>, vector<16x512xbf16>, vector<32x512xf32> -> vector<32x512xf32>
    %65 = arith.addf %60, %64 : vector<32x512xf32>
    %66 = vector.extract_strided_slice %2 {offsets = [0, 18], sizes = [16, 512], strides = [1, 1]} : vector<16x546xbf16> to vector<16x512xbf16>
    %c14_i32_27 = arith.constant 14 : i32
    %67 = vector.broadcast %c14_i32_27 : i32 to vector<1x512xi32>
    %68 = arith.cmpi sle, %5, %67 : vector<1x512xi32>
    %cst_28 = arith.constant 0.000000e+00 : bf16
    %69 = vector.broadcast %cst_28 : bf16 to vector<16x512xbf16>
    %70 = vector.shape_cast %68 : vector<1x512xi1> to vector<1x512xi1>
    %71 = vector.broadcast %70 : vector<1x512xi1> to vector<16x512xi1>
    %72 = arith.select %71, %66, %69 : vector<16x512xi1>, vector<16x512xbf16>
    %c5 = arith.constant 5 : index
    %c0_29 = arith.constant 0 : index
    %c0_30 = arith.constant 0 : index
    %73 = vector.load %arg2[%c5, %c0_29, %c0_30] : memref<9x32x16xbf16, #tpu.memory_space<vmem>>, vector<1x32x16xbf16>
    %74 = vector.shape_cast %73 : vector<1x32x16xbf16> to vector<32x16xbf16>
    %cst_31 = arith.constant dense<0.000000e+00> : vector<32x512xf32>
    %75 = tpu.matmul %74, %72, %cst_31 {dimension_numbers = #tpu.dot_dimension_numbers<[1], [0], [0], [1], [0, 0, 1, 1], [], []>} : vector<32x16xbf16>, vector<16x512xbf16>, vector<32x512xf32> -> vector<32x512xf32>
    %76 = arith.addf %65, %75 : vector<32x512xf32>
    %77 = vector.extract_strided_slice %2 {offsets = [0, 32], sizes = [16, 512], strides = [1, 1]} : vector<16x546xbf16> to vector<16x512xbf16>
    %c14_i32_32 = arith.constant 14 : i32
    %78 = vector.broadcast %c14_i32_32 : i32 to vector<1x512xi32>
    %79 = arith.cmpi sle, %9, %78 : vector<1x512xi32>
    %c1_i32_33 = arith.constant 1 : i32
    %80 = vector.broadcast %c1_i32_33 : i32 to vector<1x512xi32>
    %81 = arith.cmpi sge, %5, %80 : vector<1x512xi32>
    %82 = arith.andi %79, %81 : vector<1x512xi1>
    %cst_34 = arith.constant 0.000000e+00 : bf16
    %83 = vector.broadcast %cst_34 : bf16 to vector<16x512xbf16>
    %84 = vector.shape_cast %82 : vector<1x512xi1> to vector<1x512xi1>
    %85 = vector.broadcast %84 : vector<1x512xi1> to vector<16x512xi1>
    %86 = arith.select %85, %77, %83 : vector<16x512xi1>, vector<16x512xbf16>
    %c6 = arith.constant 6 : index
    %c0_35 = arith.constant 0 : index
    %c0_36 = arith.constant 0 : index
    %87 = vector.load %arg2[%c6, %c0_35, %c0_36] : memref<9x32x16xbf16, #tpu.memory_space<vmem>>, vector<1x32x16xbf16>
    %88 = vector.shape_cast %87 : vector<1x32x16xbf16> to vector<32x16xbf16>
    %cst_37 = arith.constant dense<0.000000e+00> : vector<32x512xf32>
    %89 = tpu.matmul %88, %86, %cst_37 {dimension_numbers = #tpu.dot_dimension_numbers<[1], [0], [0], [1], [0, 0, 1, 1], [], []>} : vector<32x16xbf16>, vector<16x512xbf16>, vector<32x512xf32> -> vector<32x512xf32>
    %90 = arith.addf %76, %89 : vector<32x512xf32>
    %91 = vector.extract_strided_slice %2 {offsets = [0, 33], sizes = [16, 512], strides = [1, 1]} : vector<16x546xbf16> to vector<16x512xbf16>
    %c14_i32_38 = arith.constant 14 : i32
    %92 = vector.broadcast %c14_i32_38 : i32 to vector<1x512xi32>
    %93 = arith.cmpi sle, %9, %92 : vector<1x512xi32>
    %cst_39 = arith.constant 0.000000e+00 : bf16
    %94 = vector.broadcast %cst_39 : bf16 to vector<16x512xbf16>
    %95 = vector.shape_cast %93 : vector<1x512xi1> to vector<1x512xi1>
    %96 = vector.broadcast %95 : vector<1x512xi1> to vector<16x512xi1>
    %97 = arith.select %96, %91, %94 : vector<16x512xi1>, vector<16x512xbf16>
    %c7 = arith.constant 7 : index
    %c0_40 = arith.constant 0 : index
    %c0_41 = arith.constant 0 : index
    %98 = vector.load %arg2[%c7, %c0_40, %c0_41] : memref<9x32x16xbf16, #tpu.memory_space<vmem>>, vector<1x32x16xbf16>
    %99 = vector.shape_cast %98 : vector<1x32x16xbf16> to vector<32x16xbf16>
    %cst_42 = arith.constant dense<0.000000e+00> : vector<32x512xf32>
    %100 = tpu.matmul %99, %97, %cst_42 {dimension_numbers = #tpu.dot_dimension_numbers<[1], [0], [0], [1], [0, 0, 1, 1], [], []>} : vector<32x16xbf16>, vector<16x512xbf16>, vector<32x512xf32> -> vector<32x512xf32>
    %101 = arith.addf %90, %100 : vector<32x512xf32>
    %102 = vector.extract_strided_slice %2 {offsets = [0, 34], sizes = [16, 512], strides = [1, 1]} : vector<16x546xbf16> to vector<16x512xbf16>
    %c14_i32_43 = arith.constant 14 : i32
    %103 = vector.broadcast %c14_i32_43 : i32 to vector<1x512xi32>
    %104 = arith.cmpi sle, %9, %103 : vector<1x512xi32>
    %c14_i32_44 = arith.constant 14 : i32
    %105 = vector.broadcast %c14_i32_44 : i32 to vector<1x512xi32>
    %106 = arith.cmpi sle, %5, %105 : vector<1x512xi32>
    %107 = arith.andi %104, %106 : vector<1x512xi1>
    %cst_45 = arith.constant 0.000000e+00 : bf16
    %108 = vector.broadcast %cst_45 : bf16 to vector<16x512xbf16>
    %109 = vector.shape_cast %107 : vector<1x512xi1> to vector<1x512xi1>
    %110 = vector.broadcast %109 : vector<1x512xi1> to vector<16x512xi1>
    %111 = arith.select %110, %102, %108 : vector<16x512xi1>, vector<16x512xbf16>
    %c8 = arith.constant 8 : index
    %c0_46 = arith.constant 0 : index
    %c0_47 = arith.constant 0 : index
    %112 = vector.load %arg2[%c8, %c0_46, %c0_47] : memref<9x32x16xbf16, #tpu.memory_space<vmem>>, vector<1x32x16xbf16>
    %113 = vector.shape_cast %112 : vector<1x32x16xbf16> to vector<32x16xbf16>
    %cst_48 = arith.constant dense<0.000000e+00> : vector<32x512xf32>
    %114 = tpu.matmul %113, %111, %cst_48 {dimension_numbers = #tpu.dot_dimension_numbers<[1], [0], [0], [1], [0, 0, 1, 1], [], []>} : vector<32x16xbf16>, vector<16x512xbf16>, vector<32x512xf32> -> vector<32x512xf32>
    %115 = arith.addf %101, %114 : vector<32x512xf32>
    %cst_49 = arith.constant dense<0.000000e+00> : vector<32xf32>
    %116 = vector.multi_reduction <add>, %115, %cst_49 [1] : vector<32x512xf32> to vector<32xf32>
    %117 = vector.shape_cast %116 : vector<32xf32> to vector<32x1xf32>
    %118 = arith.mulf %115, %115 : vector<32x512xf32>
    %cst_50 = arith.constant dense<0.000000e+00> : vector<32xf32>
    %119 = vector.multi_reduction <add>, %118, %cst_50 [1] : vector<32x512xf32> to vector<32xf32>
    %120 = vector.shape_cast %119 : vector<32xf32> to vector<32x1xf32>
    %121 = vector.extract_strided_slice %117 {offsets = [0, 0], sizes = [8, 1], strides = [1, 1]} : vector<32x1xf32> to vector<8x1xf32>
    %122 = vector.extract_strided_slice %117 {offsets = [8, 0], sizes = [8, 1], strides = [1, 1]} : vector<32x1xf32> to vector<8x1xf32>
    %123 = arith.addf %121, %122 : vector<8x1xf32>
    %124 = vector.extract_strided_slice %117 {offsets = [16, 0], sizes = [8, 1], strides = [1, 1]} : vector<32x1xf32> to vector<8x1xf32>
    %125 = arith.addf %123, %124 : vector<8x1xf32>
    %126 = vector.extract_strided_slice %117 {offsets = [24, 0], sizes = [8, 1], strides = [1, 1]} : vector<32x1xf32> to vector<8x1xf32>
    %127 = arith.addf %125, %126 : vector<8x1xf32>
    %128 = vector.extract_strided_slice %120 {offsets = [0, 0], sizes = [8, 1], strides = [1, 1]} : vector<32x1xf32> to vector<8x1xf32>
    %129 = vector.extract_strided_slice %120 {offsets = [8, 0], sizes = [8, 1], strides = [1, 1]} : vector<32x1xf32> to vector<8x1xf32>
    %130 = arith.addf %128, %129 : vector<8x1xf32>
    %131 = vector.extract_strided_slice %120 {offsets = [16, 0], sizes = [8, 1], strides = [1, 1]} : vector<32x1xf32> to vector<8x1xf32>
    %132 = arith.addf %130, %131 : vector<8x1xf32>
    %133 = vector.extract_strided_slice %120 {offsets = [24, 0], sizes = [8, 1], strides = [1, 1]} : vector<32x1xf32> to vector<8x1xf32>
    %134 = arith.addf %132, %133 : vector<8x1xf32>
    %cst_51 = arith.constant 4.8828125E-4 : f32
    %135 = vector.broadcast %cst_51 : f32 to vector<8x1xf32>
    %136 = arith.mulf %127, %135 : vector<8x1xf32>
    %cst_52 = arith.constant 4.8828125E-4 : f32
    %137 = vector.broadcast %cst_52 : f32 to vector<8x1xf32>
    %138 = arith.mulf %134, %137 : vector<8x1xf32>
    %139 = arith.mulf %136, %136 : vector<8x1xf32>
    %140 = arith.subf %138, %139 : vector<8x1xf32>
    %cst_53 = arith.constant 0.000000e+00 : f32
    %141 = vector.broadcast %cst_53 : f32 to vector<8x1xf32>
    %142 = arith.maximumf %140, %141 : vector<8x1xf32>
    %c0_54 = arith.constant 0 : index
    %c0_55 = arith.constant 0 : index
    %143 = vector.load %arg3[%c0_54, %c0_55] : memref<8x1xf32, #tpu.memory_space<vmem>>, vector<8x1xf32>
    %cst_56 = arith.constant 9.99999974E-6 : f32
    %144 = vector.broadcast %cst_56 : f32 to vector<8x1xf32>
    %145 = arith.addf %142, %144 : vector<8x1xf32>
    %146 = math.rsqrt %145 : vector<8x1xf32>
    %147 = arith.mulf %143, %146 : vector<8x1xf32>
    %c0_57 = arith.constant 0 : index
    %c0_58 = arith.constant 0 : index
    %148 = vector.load %arg4[%c0_57, %c0_58] : memref<8x1xf32, #tpu.memory_space<vmem>>, vector<8x1xf32>
    %149 = arith.mulf %136, %147 : vector<8x1xf32>
    %150 = arith.subf %148, %149 : vector<8x1xf32>
    %151 = tpu.concatenate %147, %147, %147, %147 in 0 : vector<8x1xf32>, vector<8x1xf32>, vector<8x1xf32>, vector<8x1xf32> -> vector<32x1xf32>
    %152 = tpu.concatenate %150, %150, %150, %150 in 0 : vector<8x1xf32>, vector<8x1xf32>, vector<8x1xf32>, vector<8x1xf32> -> vector<32x1xf32>
    %153 = vector.broadcast %151 : vector<32x1xf32> to vector<32x512xf32>
    %154 = arith.mulf %115, %153 : vector<32x512xf32>
    %155 = vector.broadcast %152 : vector<32x1xf32> to vector<32x512xf32>
    %156 = arith.addf %154, %155 : vector<32x512xf32>
    %cst_59 = arith.constant 0.000000e+00 : f32
    %157 = vector.broadcast %cst_59 : f32 to vector<32x512xf32>
    %158 = arith.maximumf %156, %157 : vector<32x512xf32>
    %159 = arith.truncf %158 : vector<32x512xf32> to vector<32x512xbf16>
    %c0_60 = arith.constant 0 : index
    %c0_61 = arith.constant 0 : index
    %160 = vector.load %arg5[%c0_60, %c0_61] : memref<32x512xbf16, #tpu.memory_space<vmem>>, vector<32x512xbf16>
    tpu.vector_store %arg5[%c0_60, %c0_61], %159 {strides = array<i32>} : memref<32x512xbf16, #tpu.memory_space<vmem>>, vector<32x512xbf16>,
    return
  }
  func.func @transform_0(%arg0: i32) -> (i32, i32) {
    %c0_i32 = arith.constant 0 : i32
    %c0_i32_0 = arith.constant 0 : i32
    %c0_i32_1 = arith.constant 0 : i32
    return %c0_i32, %c0_i32_0 : i32, i32
  }
  func.func @transform_1(%arg0: i32) -> (i32, i32, i32) {
    %c0_i32 = arith.constant 0 : i32
    %c0_i32_0 = arith.constant 0 : i32
    %c0_i32_1 = arith.constant 0 : i32
    %c0_i32_2 = arith.constant 0 : i32
    return %c0_i32, %c0_i32_0, %c0_i32_1 : i32, i32, i32
  }
  func.func @transform_2(%arg0: i32) -> (i32, i32) {
    %c0_i32 = arith.constant 0 : i32
    %c0_i32_0 = arith.constant 0 : i32
    %c0_i32_1 = arith.constant 0 : i32
    return %c0_i32, %c0_i32_0 : i32, i32
  }
  func.func @transform_3(%arg0: i32) -> (i32, i32) {
    %c0_i32 = arith.constant 0 : i32
    %c0_i32_0 = arith.constant 0 : i32
    %c0_i32_1 = arith.constant 0 : i32
    return %c0_i32, %c0_i32_0 : i32, i32
  }
  func.func @transform_4(%arg0: i32) -> (i32, i32) {
    %c0_i32 = arith.constant 0 : i32
    %c0_i32_0 = arith.constant 0 : i32
    %c0_i32_1 = arith.constant 0 : i32
    return %c0_i32, %c0_i32_0 : i32, i32
  }
}

module attributes {stable_mosaic.version = 11 : i64} {
  func.func @kernel(%arg0: i32, %arg1: memref<8x2048xbf16, #tpu.memory_space<vmem>>, %arg2: memref<9x12x8xbf16, #tpu.memory_space<vmem>>, %arg3: memref<12x2048xf32, #tpu.memory_space<vmem>>) attributes {dimension_semantics = [#tpu.dimension_semantics<arbitrary>], iteration_bounds = array<i64: 1>, scalar_prefetch = 0 : i64, scratch_operands = 0 : i64, tpu.core_type = #tpu.core_type<tc>, window_params = [{pipeline_mode = #tpu.pipeline_mode<synchronous>, transform_indices = @transform_0, window_bounds = array<i64: 8, 2048>}, {pipeline_mode = #tpu.pipeline_mode<synchronous>, transform_indices = @transform_1, window_bounds = array<i64: 9, 12, 8>}, {pipeline_mode = #tpu.pipeline_mode<synchronous>, transform_indices = @transform_2, window_bounds = array<i64: 12, 2048>}]} {
    %cst = arith.constant 0.000000e+00 : bf16
    %0 = vector.broadcast %cst : bf16 to vector<8x33xbf16>
    %c0 = arith.constant 0 : index
    %c0_0 = arith.constant 0 : index
    %1 = vector.load %arg1[%c0, %c0_0] : memref<8x2048xbf16, #tpu.memory_space<vmem>>, vector<8x2048xbf16>
    %2 = tpu.concatenate %0, %1, %0 in 1 : vector<8x33xbf16>, vector<8x2048xbf16>, vector<8x33xbf16> -> vector<8x2114xbf16>
    %3 = tpu.iota {dimensions = array<i32: 1>} : vector<1x2048xi32>
    %c31_i32 = arith.constant 31 : i32
    %4 = vector.broadcast %c31_i32 : i32 to vector<1x2048xi32>
    %5 = arith.andi %3, %4 : vector<1x2048xi32>
    %c5_i32 = arith.constant 5 : i32
    %6 = vector.broadcast %c5_i32 : i32 to vector<1x2048xi32>
    %7 = arith.shrsi %3, %6 : vector<1x2048xi32>
    %c31_i32_1 = arith.constant 31 : i32
    %8 = vector.broadcast %c31_i32_1 : i32 to vector<1x2048xi32>
    %9 = arith.andi %7, %8 : vector<1x2048xi32>
    %cst_2 = arith.constant 0.000000e+00 : f32
    %10 = vector.broadcast %cst_2 : f32 to vector<12x2048xf32>
    %11 = vector.extract_strided_slice %2 {offsets = [0, 0], sizes = [8, 2048], strides = [1, 1]} : vector<8x2114xbf16> to vector<8x2048xbf16>
    %c1_i32 = arith.constant 1 : i32
    %12 = vector.broadcast %c1_i32 : i32 to vector<1x2048xi32>
    %13 = arith.cmpi sge, %9, %12 : vector<1x2048xi32>
    %c1_i32_3 = arith.constant 1 : i32
    %14 = vector.broadcast %c1_i32_3 : i32 to vector<1x2048xi32>
    %15 = arith.cmpi sge, %5, %14 : vector<1x2048xi32>
    %16 = arith.andi %13, %15 : vector<1x2048xi1>
    %cst_4 = arith.constant 0.000000e+00 : bf16
    %17 = vector.broadcast %cst_4 : bf16 to vector<8x2048xbf16>
    %18 = vector.shape_cast %16 : vector<1x2048xi1> to vector<1x2048xi1>
    %19 = vector.broadcast %18 : vector<1x2048xi1> to vector<8x2048xi1>
    %20 = arith.select %19, %11, %17 : vector<8x2048xi1>, vector<8x2048xbf16>
    %c0_5 = arith.constant 0 : index
    %c0_6 = arith.constant 0 : index
    %c0_7 = arith.constant 0 : index
    %21 = vector.load %arg2[%c0_5, %c0_6, %c0_7] : memref<9x12x8xbf16, #tpu.memory_space<vmem>>, vector<1x12x8xbf16>
    %22 = vector.shape_cast %21 : vector<1x12x8xbf16> to vector<12x8xbf16>
    %cst_8 = arith.constant dense<0.000000e+00> : vector<12x2048xf32>
    %23 = tpu.matmul %22, %20, %cst_8 {dimension_numbers = #tpu.dot_dimension_numbers<[1], [0], [0], [1], [0, 0, 1, 1], [], []>} : vector<12x8xbf16>, vector<8x2048xbf16>, vector<12x2048xf32> -> vector<12x2048xf32>
    %24 = arith.addf %10, %23 : vector<12x2048xf32>
    %25 = vector.extract_strided_slice %2 {offsets = [0, 1], sizes = [8, 2048], strides = [1, 1]} : vector<8x2114xbf16> to vector<8x2048xbf16>
    %c1_i32_9 = arith.constant 1 : i32
    %26 = vector.broadcast %c1_i32_9 : i32 to vector<1x2048xi32>
    %27 = arith.cmpi sge, %9, %26 : vector<1x2048xi32>
    %cst_10 = arith.constant 0.000000e+00 : bf16
    %28 = vector.broadcast %cst_10 : bf16 to vector<8x2048xbf16>
    %29 = vector.shape_cast %27 : vector<1x2048xi1> to vector<1x2048xi1>
    %30 = vector.broadcast %29 : vector<1x2048xi1> to vector<8x2048xi1>
    %31 = arith.select %30, %25, %28 : vector<8x2048xi1>, vector<8x2048xbf16>
    %c1 = arith.constant 1 : index
    %c0_11 = arith.constant 0 : index
    %c0_12 = arith.constant 0 : index
    %32 = vector.load %arg2[%c1, %c0_11, %c0_12] : memref<9x12x8xbf16, #tpu.memory_space<vmem>>, vector<1x12x8xbf16>
    %33 = vector.shape_cast %32 : vector<1x12x8xbf16> to vector<12x8xbf16>
    %cst_13 = arith.constant dense<0.000000e+00> : vector<12x2048xf32>
    %34 = tpu.matmul %33, %31, %cst_13 {dimension_numbers = #tpu.dot_dimension_numbers<[1], [0], [0], [1], [0, 0, 1, 1], [], []>} : vector<12x8xbf16>, vector<8x2048xbf16>, vector<12x2048xf32> -> vector<12x2048xf32>
    %35 = arith.addf %24, %34 : vector<12x2048xf32>
    %36 = vector.extract_strided_slice %2 {offsets = [0, 2], sizes = [8, 2048], strides = [1, 1]} : vector<8x2114xbf16> to vector<8x2048xbf16>
    %c1_i32_14 = arith.constant 1 : i32
    %37 = vector.broadcast %c1_i32_14 : i32 to vector<1x2048xi32>
    %38 = arith.cmpi sge, %9, %37 : vector<1x2048xi32>
    %c30_i32 = arith.constant 30 : i32
    %39 = vector.broadcast %c30_i32 : i32 to vector<1x2048xi32>
    %40 = arith.cmpi sle, %5, %39 : vector<1x2048xi32>
    %41 = arith.andi %38, %40 : vector<1x2048xi1>
    %cst_15 = arith.constant 0.000000e+00 : bf16
    %42 = vector.broadcast %cst_15 : bf16 to vector<8x2048xbf16>
    %43 = vector.shape_cast %41 : vector<1x2048xi1> to vector<1x2048xi1>
    %44 = vector.broadcast %43 : vector<1x2048xi1> to vector<8x2048xi1>
    %45 = arith.select %44, %36, %42 : vector<8x2048xi1>, vector<8x2048xbf16>
    %c2 = arith.constant 2 : index
    %c0_16 = arith.constant 0 : index
    %c0_17 = arith.constant 0 : index
    %46 = vector.load %arg2[%c2, %c0_16, %c0_17] : memref<9x12x8xbf16, #tpu.memory_space<vmem>>, vector<1x12x8xbf16>
    %47 = vector.shape_cast %46 : vector<1x12x8xbf16> to vector<12x8xbf16>
    %cst_18 = arith.constant dense<0.000000e+00> : vector<12x2048xf32>
    %48 = tpu.matmul %47, %45, %cst_18 {dimension_numbers = #tpu.dot_dimension_numbers<[1], [0], [0], [1], [0, 0, 1, 1], [], []>} : vector<12x8xbf16>, vector<8x2048xbf16>, vector<12x2048xf32> -> vector<12x2048xf32>
    %49 = arith.addf %35, %48 : vector<12x2048xf32>
    %50 = vector.extract_strided_slice %2 {offsets = [0, 32], sizes = [8, 2048], strides = [1, 1]} : vector<8x2114xbf16> to vector<8x2048xbf16>
    %c1_i32_19 = arith.constant 1 : i32
    %51 = vector.broadcast %c1_i32_19 : i32 to vector<1x2048xi32>
    %52 = arith.cmpi sge, %5, %51 : vector<1x2048xi32>
    %cst_20 = arith.constant 0.000000e+00 : bf16
    %53 = vector.broadcast %cst_20 : bf16 to vector<8x2048xbf16>
    %54 = vector.shape_cast %52 : vector<1x2048xi1> to vector<1x2048xi1>
    %55 = vector.broadcast %54 : vector<1x2048xi1> to vector<8x2048xi1>
    %56 = arith.select %55, %50, %53 : vector<8x2048xi1>, vector<8x2048xbf16>
    %c3 = arith.constant 3 : index
    %c0_21 = arith.constant 0 : index
    %c0_22 = arith.constant 0 : index
    %57 = vector.load %arg2[%c3, %c0_21, %c0_22] : memref<9x12x8xbf16, #tpu.memory_space<vmem>>, vector<1x12x8xbf16>
    %58 = vector.shape_cast %57 : vector<1x12x8xbf16> to vector<12x8xbf16>
    %cst_23 = arith.constant dense<0.000000e+00> : vector<12x2048xf32>
    %59 = tpu.matmul %58, %56, %cst_23 {dimension_numbers = #tpu.dot_dimension_numbers<[1], [0], [0], [1], [0, 0, 1, 1], [], []>} : vector<12x8xbf16>, vector<8x2048xbf16>, vector<12x2048xf32> -> vector<12x2048xf32>
    %60 = arith.addf %49, %59 : vector<12x2048xf32>
    %61 = vector.extract_strided_slice %2 {offsets = [0, 33], sizes = [8, 2048], strides = [1, 1]} : vector<8x2114xbf16> to vector<8x2048xbf16>
    %c4 = arith.constant 4 : index
    %c0_24 = arith.constant 0 : index
    %c0_25 = arith.constant 0 : index
    %62 = vector.load %arg2[%c4, %c0_24, %c0_25] : memref<9x12x8xbf16, #tpu.memory_space<vmem>>, vector<1x12x8xbf16>
    %63 = vector.shape_cast %62 : vector<1x12x8xbf16> to vector<12x8xbf16>
    %cst_26 = arith.constant dense<0.000000e+00> : vector<12x2048xf32>
    %64 = tpu.matmul %63, %61, %cst_26 {dimension_numbers = #tpu.dot_dimension_numbers<[1], [0], [0], [1], [0, 0, 1, 1], [], []>} : vector<12x8xbf16>, vector<8x2048xbf16>, vector<12x2048xf32> -> vector<12x2048xf32>
    %65 = arith.addf %60, %64 : vector<12x2048xf32>
    %66 = vector.extract_strided_slice %2 {offsets = [0, 34], sizes = [8, 2048], strides = [1, 1]} : vector<8x2114xbf16> to vector<8x2048xbf16>
    %c30_i32_27 = arith.constant 30 : i32
    %67 = vector.broadcast %c30_i32_27 : i32 to vector<1x2048xi32>
    %68 = arith.cmpi sle, %5, %67 : vector<1x2048xi32>
    %cst_28 = arith.constant 0.000000e+00 : bf16
    %69 = vector.broadcast %cst_28 : bf16 to vector<8x2048xbf16>
    %70 = vector.shape_cast %68 : vector<1x2048xi1> to vector<1x2048xi1>
    %71 = vector.broadcast %70 : vector<1x2048xi1> to vector<8x2048xi1>
    %72 = arith.select %71, %66, %69 : vector<8x2048xi1>, vector<8x2048xbf16>
    %c5 = arith.constant 5 : index
    %c0_29 = arith.constant 0 : index
    %c0_30 = arith.constant 0 : index
    %73 = vector.load %arg2[%c5, %c0_29, %c0_30] : memref<9x12x8xbf16, #tpu.memory_space<vmem>>, vector<1x12x8xbf16>
    %74 = vector.shape_cast %73 : vector<1x12x8xbf16> to vector<12x8xbf16>
    %cst_31 = arith.constant dense<0.000000e+00> : vector<12x2048xf32>
    %75 = tpu.matmul %74, %72, %cst_31 {dimension_numbers = #tpu.dot_dimension_numbers<[1], [0], [0], [1], [0, 0, 1, 1], [], []>} : vector<12x8xbf16>, vector<8x2048xbf16>, vector<12x2048xf32> -> vector<12x2048xf32>
    %76 = arith.addf %65, %75 : vector<12x2048xf32>
    %77 = vector.extract_strided_slice %2 {offsets = [0, 64], sizes = [8, 2048], strides = [1, 1]} : vector<8x2114xbf16> to vector<8x2048xbf16>
    %c30_i32_32 = arith.constant 30 : i32
    %78 = vector.broadcast %c30_i32_32 : i32 to vector<1x2048xi32>
    %79 = arith.cmpi sle, %9, %78 : vector<1x2048xi32>
    %c1_i32_33 = arith.constant 1 : i32
    %80 = vector.broadcast %c1_i32_33 : i32 to vector<1x2048xi32>
    %81 = arith.cmpi sge, %5, %80 : vector<1x2048xi32>
    %82 = arith.andi %79, %81 : vector<1x2048xi1>
    %cst_34 = arith.constant 0.000000e+00 : bf16
    %83 = vector.broadcast %cst_34 : bf16 to vector<8x2048xbf16>
    %84 = vector.shape_cast %82 : vector<1x2048xi1> to vector<1x2048xi1>
    %85 = vector.broadcast %84 : vector<1x2048xi1> to vector<8x2048xi1>
    %86 = arith.select %85, %77, %83 : vector<8x2048xi1>, vector<8x2048xbf16>
    %c6 = arith.constant 6 : index
    %c0_35 = arith.constant 0 : index
    %c0_36 = arith.constant 0 : index
    %87 = vector.load %arg2[%c6, %c0_35, %c0_36] : memref<9x12x8xbf16, #tpu.memory_space<vmem>>, vector<1x12x8xbf16>
    %88 = vector.shape_cast %87 : vector<1x12x8xbf16> to vector<12x8xbf16>
    %cst_37 = arith.constant dense<0.000000e+00> : vector<12x2048xf32>
    %89 = tpu.matmul %88, %86, %cst_37 {dimension_numbers = #tpu.dot_dimension_numbers<[1], [0], [0], [1], [0, 0, 1, 1], [], []>} : vector<12x8xbf16>, vector<8x2048xbf16>, vector<12x2048xf32> -> vector<12x2048xf32>
    %90 = arith.addf %76, %89 : vector<12x2048xf32>
    %91 = vector.extract_strided_slice %2 {offsets = [0, 65], sizes = [8, 2048], strides = [1, 1]} : vector<8x2114xbf16> to vector<8x2048xbf16>
    %c30_i32_38 = arith.constant 30 : i32
    %92 = vector.broadcast %c30_i32_38 : i32 to vector<1x2048xi32>
    %93 = arith.cmpi sle, %9, %92 : vector<1x2048xi32>
    %cst_39 = arith.constant 0.000000e+00 : bf16
    %94 = vector.broadcast %cst_39 : bf16 to vector<8x2048xbf16>
    %95 = vector.shape_cast %93 : vector<1x2048xi1> to vector<1x2048xi1>
    %96 = vector.broadcast %95 : vector<1x2048xi1> to vector<8x2048xi1>
    %97 = arith.select %96, %91, %94 : vector<8x2048xi1>, vector<8x2048xbf16>
    %c7 = arith.constant 7 : index
    %c0_40 = arith.constant 0 : index
    %c0_41 = arith.constant 0 : index
    %98 = vector.load %arg2[%c7, %c0_40, %c0_41] : memref<9x12x8xbf16, #tpu.memory_space<vmem>>, vector<1x12x8xbf16>
    %99 = vector.shape_cast %98 : vector<1x12x8xbf16> to vector<12x8xbf16>
    %cst_42 = arith.constant dense<0.000000e+00> : vector<12x2048xf32>
    %100 = tpu.matmul %99, %97, %cst_42 {dimension_numbers = #tpu.dot_dimension_numbers<[1], [0], [0], [1], [0, 0, 1, 1], [], []>} : vector<12x8xbf16>, vector<8x2048xbf16>, vector<12x2048xf32> -> vector<12x2048xf32>
    %101 = arith.addf %90, %100 : vector<12x2048xf32>
    %102 = vector.extract_strided_slice %2 {offsets = [0, 66], sizes = [8, 2048], strides = [1, 1]} : vector<8x2114xbf16> to vector<8x2048xbf16>
    %c30_i32_43 = arith.constant 30 : i32
    %103 = vector.broadcast %c30_i32_43 : i32 to vector<1x2048xi32>
    %104 = arith.cmpi sle, %9, %103 : vector<1x2048xi32>
    %c30_i32_44 = arith.constant 30 : i32
    %105 = vector.broadcast %c30_i32_44 : i32 to vector<1x2048xi32>
    %106 = arith.cmpi sle, %5, %105 : vector<1x2048xi32>
    %107 = arith.andi %104, %106 : vector<1x2048xi1>
    %cst_45 = arith.constant 0.000000e+00 : bf16
    %108 = vector.broadcast %cst_45 : bf16 to vector<8x2048xbf16>
    %109 = vector.shape_cast %107 : vector<1x2048xi1> to vector<1x2048xi1>
    %110 = vector.broadcast %109 : vector<1x2048xi1> to vector<8x2048xi1>
    %111 = arith.select %110, %102, %108 : vector<8x2048xi1>, vector<8x2048xbf16>
    %c8 = arith.constant 8 : index
    %c0_46 = arith.constant 0 : index
    %c0_47 = arith.constant 0 : index
    %112 = vector.load %arg2[%c8, %c0_46, %c0_47] : memref<9x12x8xbf16, #tpu.memory_space<vmem>>, vector<1x12x8xbf16>
    %113 = vector.shape_cast %112 : vector<1x12x8xbf16> to vector<12x8xbf16>
    %cst_48 = arith.constant dense<0.000000e+00> : vector<12x2048xf32>
    %114 = tpu.matmul %113, %111, %cst_48 {dimension_numbers = #tpu.dot_dimension_numbers<[1], [0], [0], [1], [0, 0, 1, 1], [], []>} : vector<12x8xbf16>, vector<8x2048xbf16>, vector<12x2048xf32> -> vector<12x2048xf32>
    %115 = arith.addf %101, %114 : vector<12x2048xf32>
    %116 = math.tanh %115 : vector<12x2048xf32>
    %c0_49 = arith.constant 0 : index
    %c0_50 = arith.constant 0 : index
    %117 = vector.load %arg3[%c0_49, %c0_50] : memref<12x2048xf32, #tpu.memory_space<vmem>>, vector<12x2048xf32>
    tpu.vector_store %arg3[%c0_49, %c0_50], %116 {strides = array<i32>} : memref<12x2048xf32, #tpu.memory_space<vmem>>, vector<12x2048xf32>,
    return
  }
  func.func @transform_0(%arg0: i32) -> (i32, i32) {
    %c0_i32 = arith.constant 0 : i32
    %c0_i32_0 = arith.constant 0 : i32
    %c0_i32_1 = arith.constant 0 : i32
    return %c0_i32, %c0_i32_0 : i32, i32
  }
  func.func @transform_1(%arg0: i32) -> (i32, i32, i32) {
    %c0_i32 = arith.constant 0 : i32
    %c0_i32_0 = arith.constant 0 : i32
    %c0_i32_1 = arith.constant 0 : i32
    %c0_i32_2 = arith.constant 0 : i32
    return %c0_i32, %c0_i32_0, %c0_i32_1 : i32, i32, i32
  }
  func.func @transform_2(%arg0: i32) -> (i32, i32) {
    %c0_i32 = arith.constant 0 : i32
    %c0_i32_0 = arith.constant 0 : i32
    %c0_i32_1 = arith.constant 0 : i32
    return %c0_i32, %c0_i32_0 : i32, i32
  }
}

</mosaic_0001>

<llo_original>
// kernel: decoder_forward.4
$region0: #{decoder_forward.4}
  #allocation0 [shape = 'u32[]', space=smem, size = 0x4, offset = 0x4, fixed_abs, tag = 'smem constant byte address 0x4 - core index']
  #allocation1 [shape = 'u32[72,128]{1,0:T(1,128)}', space=vmem, size = 0x9000, scoped, tag = 'internal scratch']
  %s0 = inlined_call_operand.vmem [shape: bf16[64,32], index: 0, kind: input, shape index: {}]
  %s1 = inlined_call_operand.vmem [shape: bf16[9,128,64], index: 1, kind: input, shape index: {}]
  %s2 = inlined_call_operand.vmem [shape: f32[32,1], index: 2, kind: input, shape index: {}]
  %s3 = inlined_call_operand.vmem [shape: f32[32,1], index: 3, kind: input, shape index: {}]
  %s4 = inlined_call_operand.vmem [shape: bf16[128,32], index: 4, kind: output, shape index: {}]
  %s5 = sld [smem:[#allocation0]]
  $region26: #{decoder_forward.4} parent=0
    _
  %s7 = ssub.s32 1, %s5
  %s8 = scalar_select 0, %s7, %s5
  // Predicated region
  $region2: #{decoder_forward.4} parent=0 // pred_check
    _
  $region3: #{decoder_forward.4} parent=0 // pred_check_branch
    %10 = sbr.rel (0) target = $region5
  $region4: #{decoder_forward.4} parent=0 // pred_region
    _
  $region5: #{decoder_forward.4} parent=0 // pred_fallthru
    _
  // Predicated region
  $region6: #{decoder_forward.4} parent=0 // pred_check
    _
  $region7: #{decoder_forward.4} parent=0 // pred_check_branch
    %12 = sbr.rel (0) target = $region9
  $region8: #{decoder_forward.4} parent=0 // pred_region
    _
  $region9: #{decoder_forward.4} parent=0 // pred_fallthru
    _
  // Predicated region
  $region10: #{decoder_forward.4} parent=0 // pred_check
    _
  $region11: #{decoder_forward.4} parent=0 // pred_check_branch
    %14 = sbr.rel (0) target = $region13
  $region12: #{decoder_forward.4} parent=0 // pred_region
    _
  $region13: #{decoder_forward.4} parent=0 // pred_fallthru
    _
  // Predicated region
  $region14: #{decoder_forward.4} parent=0 // pred_check
    _
  $region15: #{decoder_forward.4} parent=0 // pred_check_branch
    %16 = sbr.rel (0) target = $region17
  $region16: #{decoder_forward.4} parent=0 // pred_region
    _
  $region17: #{decoder_forward.4} parent=0 // pred_fallthru
    _
  %v20 = vld [vmem:[%s0] sm:$0xf]
  %v21 = vld [vmem:[%s0 + $0x4] sm:$0xf]
  %v22 = vld [vmem:[%s0 + $0x8] sm:$0xf]
  %v23 = vld [vmem:[%s0 + $0xc] sm:$0xf]
  %v24 = vld [vmem:[%s0 + $0x10] sm:$0xf]
  %v25 = vld [vmem:[%s0 + $0x14] sm:$0xf]
  %v26 = vld [vmem:[%s0 + $0x18] sm:$0xf]
  %v27 = vld [vmem:[%s0 + $0x1c] sm:$0xf]
  %v36 = vunpack.c.l.b16 %v20
  %v37 = vunpack.c.l.b16 %v21
  %v38 = vunpack.c.l.b16 %v22
  %v39 = vunpack.c.l.b16 %v23
  %v40 = vunpack.c.l.b16 %v24
  %v41 = vunpack.c.l.b16 %v25
  %v42 = vunpack.c.l.b16 %v26
  %v43 = vunpack.c.l.b16 %v27
  %v44 = vpack.c.b16 %v37, %v36
  %v45 = vpack.c.b16 %v39, %v38
  %v46 = vpack.c.b16 %v41, %v40
  %v47 = vpack.c.b16 %v43, %v42
  %48 = vrot.lane.b32.xlu0 %v44, 5
  %v49 = vpop.permute.xlu0 %48
  %50 = vrot.lane.b32.xlu0 %v45, 5
  %v51 = vpop.permute.xlu0 %50
  %52 = vrot.lane.b32.xlu0 %v46, 5
  %v53 = vpop.permute.xlu0 %52
  %54 = vrot.lane.b32.xlu0 %v47, 5
  %v55 = vpop.permute.xlu0 %54
  %vm56 = vcmask 39936
  %v59 = vsel %vm56, 0, %v49
  %v61 = vsel %vm56, 0, %v51
  %v63 = vsel %vm56, 0, %v53
  %v65 = vsel %vm56, 0, %v55
  %vm66 = vcmask 302080
  %v67 = vsel %vm66, %v59, 0
  %v69 = vsel %vm66, %v61, 0
  %v71 = vsel %vm66, %v63, 0
  %v73 = vsel %vm66, %v65, 0
  %v75 = vlaneseq
  %v76 = vand.u32 %v75, 127
  %v77 = vand.u32 %v76, 3
  %v78 = vshra.s32 %v76, 2
  %v79 = vand.u32 %v78, 3
  %vm80 = vcmp.ge.s32.totalorder %v79, 1
  %vm81 = vcmp.ge.s32.totalorder %v77, 1
  %vm82 = vmand %vm80, %vm81
  %v83 = vsel %vm82, 1, 0
  %vm84 = vcmp.eq.s32.totalorder %v83, 1
  %vm85 = vmpackc.low %vm84, %vm84
  %v86 = vsel %vm85, 65537, 0
  %v87 = vperm.slane %v86, 0
  %v88 = vunpack.c.l.b16 %v87
  %v89 = vunpack.c.h.b16 %v87
  %v90 = vunpack.c.l.b16 0
  %v91 = vunpack.c.h.b16 0
  %vm92 = vcmp.ne.s32.totalorder %v88, %v90
  %vm93 = vcmp.ne.s32.totalorder %v89, %v91
  %vm94 = vmpackc.low %vm93, %vm92
  %v95 = vsel %vm94, %v67, 0
  %v96 = vsel %vm94, %v69, 0
  %v97 = vsel %vm94, %v71, 0
  %v98 = vsel %vm94, %v73, 0
  %v99 = vld [vmem:[%s1] sm:$0xf]
  %v100 = vld [vmem:[%s1 + $0x4] sm:$0xf]
  %v101 = vld [vmem:[%s1 + $0x8] sm:$0xf]
  %v102 = vld [vmem:[%s1 + $0xc] sm:$0xf]
  %v103 = vld [vmem:[%s1 + $0x10] sm:$0xf]
  %v104 = vld [vmem:[%s1 + $0x14] sm:$0xf]
  %v105 = vld [vmem:[%s1 + $0x18] sm:$0xf]
  %v106 = vld [vmem:[%s1 + $0x1c] sm:$0xf]
  %v107 = vld [vmem:[%s1 + $0x20] sm:$0xf]
  %v108 = vld [vmem:[%s1 + $0x24] sm:$0xf]
  %v109 = vld [vmem:[%s1 + $0x28] sm:$0xf]
  %v110 = vld [vmem:[%s1 + $0x2c] sm:$0xf]
  %v111 = vld [vmem:[%s1 + $0x30] sm:$0xf]
  %v112 = vld [vmem:[%s1 + $0x34] sm:$0xf]
  %v113 = vld [vmem:[%s1 + $0x38] sm:$0xf]
  %v114 = vld [vmem:[%s1 + $0x3c] sm:$0xf]
  %v115 = vsel %vm80, 1, 0
  %vm116 = vcmp.eq.s32.totalorder %v115, 1
  %vm117 = vmpackc.low %vm116, %vm116
  %v118 = vsel %vm117, 65537, 0
  %v119 = vperm.slane %v118, 0
  %120 = vrot.lane.b32.xlu0 %v119, 1
  %v121 = vpop.permute.xlu0 %120
  %v122 = vunpack.c.l.b16 %v121
  %v123 = vunpack.c.h.b16 %v121
  %v124 = vunpack.c.l.b16 0
  %v125 = vunpack.c.h.b16 0
  %vm126 = vcmp.ne.s32.totalorder %v122, %v124
  %vm127 = vcmp.ne.s32.totalorder %v123, %v125
  %vm128 = vmpackc.low %vm127, %vm126
  %v129 = vsel %vm128, %v67, 0
  %v130 = vsel %vm128, %v69, 0
  %v131 = vsel %vm128, %v71, 0
  %v132 = vsel %vm128, %v73, 0
  %s133 = scalar_lea.vmem %s1, 64
  %v134 = vld [vmem:[%s133] sm:$0xf]
  %v135 = vld [vmem:[%s133 + $0x4] sm:$0xf]
  %v136 = vld [vmem:[%s133 + $0x8] sm:$0xf]
  %v137 = vld [vmem:[%s133 + $0xc] sm:$0xf]
  %v138 = vld [vmem:[%s133 + $0x10] sm:$0xf]
  %v139 = vld [vmem:[%s133 + $0x14] sm:$0xf]
  %v140 = vld [vmem:[%s133 + $0x18] sm:$0xf]
  %v141 = vld [vmem:[%s133 + $0x1c] sm:$0xf]
  %v142 = vld [vmem:[%s133 + $0x20] sm:$0xf]
  %v143 = vld [vmem:[%s133 + $0x24] sm:$0xf]
  %v144 = vld [vmem:[%s133 + $0x28] sm:$0xf]
  %v145 = vld [vmem:[%s133 + $0x2c] sm:$0xf]
  %v146 = vld [vmem:[%s133 + $0x30] sm:$0xf]
  %v147 = vld [vmem:[%s133 + $0x34] sm:$0xf]
  %v148 = vld [vmem:[%s133 + $0x38] sm:$0xf]
  %v149 = vld [vmem:[%s133 + $0x3c] sm:$0xf]
  %v166 = vunpack.c.l.b16 %v134
  %v167 = vunpack.c.l.b16 %v135
  %v168 = vunpack.c.l.b16 %v136
  %v169 = vunpack.c.l.b16 %v137
  %v170 = vunpack.c.l.b16 %v138
  %v171 = vunpack.c.l.b16 %v139
  %v172 = vunpack.c.l.b16 %v140
  %v173 = vunpack.c.l.b16 %v141
  %v174 = vunpack.c.l.b16 %v142
  %v175 = vunpack.c.l.b16 %v143
  %v176 = vunpack.c.l.b16 %v144
  %v177 = vunpack.c.l.b16 %v145
  %v178 = vunpack.c.l.b16 %v146
  %v179 = vunpack.c.l.b16 %v147
  %v180 = vunpack.c.l.b16 %v148
  %v181 = vunpack.c.l.b16 %v149
  %v182 = vpack.c.b16 %v167, %v166
  %v183 = vpack.c.b16 %v169, %v168
  %v184 = vpack.c.b16 %v171, %v170
  %v185 = vpack.c.b16 %v173, %v172
  %v186 = vpack.c.b16 %v175, %v174
  %v187 = vpack.c.b16 %v177, %v176
  %v188 = vpack.c.b16 %v179, %v178
  %v189 = vpack.c.b16 %v181, %v180
  %194 = vrot.lane.b32.xlu0 %v129, 127
  %v195 = vpop.permute.xlu0 %194
  %196 = vrot.lane.b32.xlu0 %v130, 127
  %v197 = vpop.permute.xlu0 %196
  %198 = vrot.lane.b32.xlu0 %v131, 127
  %v199 = vpop.permute.xlu0 %198
  %200 = vrot.lane.b32.xlu0 %v132, 127
  %v201 = vpop.permute.xlu0 %200
  %vm206 = vcmask 523264
  %v208 = vsel %vm206, %v182, 0
  %v211 = vsel %vm206, %v183, 0
  %v214 = vsel %vm206, %v184, 0
  %v217 = vsel %vm206, %v185, 0
  %v220 = vsel %vm206, %v186, 0
  %v223 = vsel %vm206, %v187, 0
  %v226 = vsel %vm206, %v188, 0
  %v229 = vsel %vm206, %v189, 0
  %231 = vmatpush.bf16.msra.mxu0 0
  %232 = vmatpush.bf16.msra.mxu0 0
  %233 = vmatpush.bf16.msra.mxu0 0
  %234 = vmatpush.bf16.msra.mxu0 0
  %235 = vmatpush.bf16.msra.mxu0 %v201
  %236 = vmatpush.bf16.msra.mxu0 %v199
  %237 = vmatpush.bf16.msra.mxu0 %v197
  %238 = vmatpush.bf16.msra.mxu0 %v195
  %239 = vmatmul.bf16.gmra.mxu0 %v208
  %v240 = vpop.f32.mrf.mxu0
  %v241 = vadd.f32 0.0, %v240
  %v242 = vpop.f32.mrf.mxu0
  %v243 = vadd.f32 0.0, %v242
  %244 = vmatmul.bf16.gmra.mxu0 %v211
  %v245 = vpop.f32.mrf.mxu0
  %v246 = vadd.f32 0.0, %v245
  %v247 = vpop.f32.mrf.mxu0
  %v248 = vadd.f32 0.0, %v247
  %249 = vmatmul.bf16.gmra.mxu0 %v214
  %v250 = vpop.f32.mrf.mxu0
  %v251 = vadd.f32 0.0, %v250
  %v252 = vpop.f32.mrf.mxu0
  %v253 = vadd.f32 0.0, %v252
  %254 = vmatmul.bf16.gmra.mxu0 %v217
  %v255 = vpop.f32.mrf.mxu0
  %v256 = vadd.f32 0.0, %v255
  %v257 = vpop.f32.mrf.mxu0
  %v258 = vadd.f32 0.0, %v257
  %259 = vmatmul.bf16.gmra.mxu0 %v220
  %v260 = vpop.f32.mrf.mxu0
  %v261 = vadd.f32 0.0, %v260
  %v262 = vpop.f32.mrf.mxu0
  %v263 = vadd.f32 0.0, %v262
  %264 = vmatmul.bf16.gmra.mxu0 %v223
  %v265 = vpop.f32.mrf.mxu0
  %v266 = vadd.f32 0.0, %v265
  %v267 = vpop.f32.mrf.mxu0
  %v268 = vadd.f32 0.0, %v267
  %269 = vmatmul.bf16.gmra.mxu0 %v226
  %v270 = vpop.f32.mrf.mxu0
  %v271 = vadd.f32 0.0, %v270
  %v272 = vpop.f32.mrf.mxu0
  %v273 = vadd.f32 0.0, %v272
  %274 = vmatmul.bf16.gmra.mxu0 %v229
  %v275 = vpop.f32.mrf.mxu0
  %v276 = vadd.f32 0.0, %v275
  %v277 = vpop.f32.mrf.mxu0
  %v278 = vadd.f32 0.0, %v277
  %279 = vdwg.mxu0
  %v296 = vunpack.c.l.b16 %v99
  %v297 = vunpack.c.l.b16 %v100
  %v298 = vunpack.c.l.b16 %v101
  %v299 = vunpack.c.l.b16 %v102
  %v300 = vunpack.c.l.b16 %v103
  %v301 = vunpack.c.l.b16 %v104
  %v302 = vunpack.c.l.b16 %v105
  %v303 = vunpack.c.l.b16 %v106
  %v304 = vunpack.c.l.b16 %v107
  %v305 = vunpack.c.l.b16 %v108
  %v306 = vunpack.c.l.b16 %v109
  %v307 = vunpack.c.l.b16 %v110
  %v308 = vunpack.c.l.b16 %v111
  %v309 = vunpack.c.l.b16 %v112
  %v310 = vunpack.c.l.b16 %v113
  %v311 = vunpack.c.l.b16 %v114
  %v312 = vpack.c.b16 %v297, %v296
  %v313 = vpack.c.b16 %v299, %v298
  %v314 = vpack.c.b16 %v301, %v300
  %v315 = vpack.c.b16 %v303, %v302
  %v316 = vpack.c.b16 %v305, %v304
  %v317 = vpack.c.b16 %v307, %v306
  %v318 = vpack.c.b16 %v309, %v308
  %v319 = vpack.c.b16 %v311, %v310
  %v321 = vsel %vm206, %v312, 0
  %v324 = vsel %vm206, %v313, 0
  %v327 = vsel %vm206, %v314, 0
  %v330 = vsel %vm206, %v315, 0
  %v333 = vsel %vm206, %v316, 0
  %v336 = vsel %vm206, %v317, 0
  %v339 = vsel %vm206, %v318, 0
  %v342 = vsel %vm206, %v319, 0
  %344 = vmatpush.bf16.msra.mxu0 0
  %345 = vmatpush.bf16.msra.mxu0 0
  %346 = vmatpush.bf16.msra.mxu0 0
  %347 = vmatpush.bf16.msra.mxu0 0
  %348 = vmatpush.bf16.msra.mxu0 %v98
  %349 = vmatpush.bf16.msra.mxu0 %v97
  %350 = vmatpush.bf16.msra.mxu0 %v96
  %351 = vmatpush.bf16.msra.mxu0 %v95
  %352 = vmatmul.bf16.gmra.mxu0 %v321
  %v353 = vpop.f32.mrf.mxu0
  %v354 = vadd.f32 %v241, %v353
  %v355 = vpop.f32.mrf.mxu0
  %v356 = vadd.f32 %v243, %v355
  %357 = vmatmul.bf16.gmra.mxu0 %v324
  %v358 = vpop.f32.mrf.mxu0
  %v359 = vadd.f32 %v246, %v358
  %v360 = vpop.f32.mrf.mxu0
  %v361 = vadd.f32 %v248, %v360
  %362 = vmatmul.bf16.gmra.mxu0 %v327
  %v363 = vpop.f32.mrf.mxu0
  %v364 = vadd.f32 %v251, %v363
  %v365 = vpop.f32.mrf.mxu0
  %v366 = vadd.f32 %v253, %v365
  %367 = vmatmul.bf16.gmra.mxu0 %v330
  %v368 = vpop.f32.mrf.mxu0
  %v369 = vadd.f32 %v256, %v368
  %v370 = vpop.f32.mrf.mxu0
  %v371 = vadd.f32 %v258, %v370
  %372 = vmatmul.bf16.gmra.mxu0 %v333
  %v373 = vpop.f32.mrf.mxu0
  %v374 = vadd.f32 %v261, %v373
  %v375 = vpop.f32.mrf.mxu0
  %v376 = vadd.f32 %v263, %v375
  %377 = vmatmul.bf16.gmra.mxu0 %v336
  %v378 = vpop.f32.mrf.mxu0
  %v379 = vadd.f32 %v266, %v378
  %v380 = vpop.f32.mrf.mxu0
  %v381 = vadd.f32 %v268, %v380
  %382 = vmatmul.bf16.gmra.mxu0 %v339
  %v383 = vpop.f32.mrf.mxu0
  %v384 = vadd.f32 %v271, %v383
  %v385 = vpop.f32.mrf.mxu0
  %v386 = vadd.f32 %v273, %v385
  %387 = vmatmul.bf16.gmra.mxu0 %v342
  %v388 = vpop.f32.mrf.mxu0
  %v389 = vadd.f32 %v276, %v388
  %v390 = vpop.f32.mrf.mxu0
  %v391 = vadd.f32 %v278, %v390
  %392 = vdwg.mxu0
  %vm393 = vcmp.le.s32.totalorder %v77, 2
  %vm394 = vmand %vm80, %vm393
  %v395 = vsel %vm394, 1, 0
  %vm396 = vcmp.eq.s32.totalorder %v395, 1
  %vm397 = vmpackc.low %vm396, %vm396
  %v398 = vsel %vm397, 65537, 0
  %v399 = vperm.slane %v398, 0
  %400 = vrot.lane.b32.xlu0 %v399, 2
  %v401 = vpop.permute.xlu0 %400
  %v402 = vunpack.c.l.b16 %v401
  %v403 = vunpack.c.h.b16 %v401
  %v404 = vunpack.c.l.b16 0
  %v405 = vunpack.c.h.b16 0
  %vm406 = vcmp.ne.s32.totalorder %v402, %v404
  %vm407 = vcmp.ne.s32.totalorder %v403, %v405
  %vm408 = vmpackc.low %vm407, %vm406
  %v409 = vsel %vm408, %v67, 0
  %v410 = vsel %vm408, %v69, 0
  %v411 = vsel %vm408, %v71, 0
  %v412 = vsel %vm408, %v73, 0
  %s413 = scalar_lea.vmem %s1, 128
  %v414 = vld [vmem:[%s413] sm:$0xf]
  %v415 = vld [vmem:[%s413 + $0x4] sm:$0xf]
  %v416 = vld [vmem:[%s413 + $0x8] sm:$0xf]
  %v417 = vld [vmem:[%s413 + $0xc] sm:$0xf]
  %v418 = vld [vmem:[%s413 + $0x10] sm:$0xf]
  %v419 = vld [vmem:[%s413 + $0x14] sm:$0xf]
  %v420 = vld [vmem:[%s413 + $0x18] sm:$0xf]
  %v421 = vld [vmem:[%s413 + $0x1c] sm:$0xf]
  %v422 = vld [vmem:[%s413 + $0x20] sm:$0xf]
  %v423 = vld [vmem:[%s413 + $0x24] sm:$0xf]
  %v424 = vld [vmem:[%s413 + $0x28] sm:$0xf]
  %v425 = vld [vmem:[%s413 + $0x2c] sm:$0xf]
  %v426 = vld [vmem:[%s413 + $0x30] sm:$0xf]
  %v427 = vld [vmem:[%s413 + $0x34] sm:$0xf]
  %v428 = vld [vmem:[%s413 + $0x38] sm:$0xf]
  %v429 = vld [vmem:[%s413 + $0x3c] sm:$0xf]
  %v446 = vunpack.c.l.b16 %v414
  %v447 = vunpack.c.l.b16 %v415
  %v448 = vunpack.c.l.b16 %v416
  %v449 = vunpack.c.l.b16 %v417
  %v450 = vunpack.c.l.b16 %v418
  %v451 = vunpack.c.l.b16 %v419
  %v452 = vunpack.c.l.b16 %v420
  %v453 = vunpack.c.l.b16 %v421
  %v454 = vunpack.c.l.b16 %v422
  %v455 = vunpack.c.l.b16 %v423
  %v456 = vunpack.c.l.b16 %v424
  %v457 = vunpack.c.l.b16 %v425
  %v458 = vunpack.c.l.b16 %v426
  %v459 = vunpack.c.l.b16 %v427
  %v460 = vunpack.c.l.b16 %v428
  %v461 = vunpack.c.l.b16 %v429
  %v462 = vpack.c.b16 %v447, %v446
  %v463 = vpack.c.b16 %v449, %v448
  %v464 = vpack.c.b16 %v451, %v450
  %v465 = vpack.c.b16 %v453, %v452
  %v466 = vpack.c.b16 %v455, %v454
  %v467 = vpack.c.b16 %v457, %v456
  %v468 = vpack.c.b16 %v459, %v458
  %v469 = vpack.c.b16 %v461, %v460
  %474 = vrot.lane.b32.xlu0 %v409, 126
  %v475 = vpop.permute.xlu0 %474
  %476 = vrot.lane.b32.xlu0 %v410, 126
  %v477 = vpop.permute.xlu0 %476
  %478 = vrot.lane.b32.xlu0 %v411, 126
  %v479 = vpop.permute.xlu0 %478
  %480 = vrot.lane.b32.xlu0 %v412, 126
  %v481 = vpop.permute.xlu0 %480
  %v487 = vsel %vm206, %v462, 0
  %v490 = vsel %vm206, %v463, 0
  %v493 = vsel %vm206, %v464, 0
  %v496 = vsel %vm206, %v465, 0
  %v499 = vsel %vm206, %v466, 0
  %v502 = vsel %vm206, %v467, 0
  %v505 = vsel %vm206, %v468, 0
  %v508 = vsel %vm206, %v469, 0
  %510 = vmatpush.bf16.msra.mxu0 0
  %511 = vmatpush.bf16.msra.mxu0 0
  %512 = vmatpush.bf16.msra.mxu0 0
  %513 = vmatpush.bf16.msra.mxu0 0
  %514 = vmatpush.bf16.msra.mxu0 %v481
  %515 = vmatpush.bf16.msra.mxu0 %v479
  %516 = vmatpush.bf16.msra.mxu0 %v477
  %517 = vmatpush.bf16.msra.mxu0 %v475
  %518 = vmatmul.bf16.gmra.mxu0 %v487
  %v519 = vpop.f32.mrf.mxu0
  %v520 = vadd.f32 0.0, %v519
  %v521 = vpop.f32.mrf.mxu0
  %v522 = vadd.f32 0.0, %v521
  %523 = vmatmul.bf16.gmra.mxu0 %v490
  %v524 = vpop.f32.mrf.mxu0
  %v525 = vadd.f32 0.0, %v524
  %v526 = vpop.f32.mrf.mxu0
  %v527 = vadd.f32 0.0, %v526
  %528 = vmatmul.bf16.gmra.mxu0 %v493
  %v529 = vpop.f32.mrf.mxu0
  %v530 = vadd.f32 0.0, %v529
  %v531 = vpop.f32.mrf.mxu0
  %v532 = vadd.f32 0.0, %v531
  %533 = vmatmul.bf16.gmra.mxu0 %v496
  %v534 = vpop.f32.mrf.mxu0
  %v535 = vadd.f32 0.0, %v534
  %v536 = vpop.f32.mrf.mxu0
  %v537 = vadd.f32 0.0, %v536
  %538 = vmatmul.bf16.gmra.mxu0 %v499
  %v539 = vpop.f32.mrf.mxu0
  %v540 = vadd.f32 0.0, %v539
  %v541 = vpop.f32.mrf.mxu0
  %v542 = vadd.f32 0.0, %v541
  %543 = vmatmul.bf16.gmra.mxu0 %v502
  %v544 = vpop.f32.mrf.mxu0
  %v545 = vadd.f32 0.0, %v544
  %v546 = vpop.f32.mrf.mxu0
  %v547 = vadd.f32 0.0, %v546
  %548 = vmatmul.bf16.gmra.mxu0 %v505
  %v549 = vpop.f32.mrf.mxu0
  %v550 = vadd.f32 0.0, %v549
  %v551 = vpop.f32.mrf.mxu0
  %v552 = vadd.f32 0.0, %v551
  %553 = vmatmul.bf16.gmra.mxu0 %v508
  %v554 = vpop.f32.mrf.mxu0
  %v555 = vadd.f32 0.0, %v554
  %v556 = vpop.f32.mrf.mxu0
  %v557 = vadd.f32 0.0, %v556
  %558 = vdwg.mxu0
  %v559 = vadd.f32 %v354, %v520
  %v560 = vadd.f32 %v356, %v522
  %v561 = vadd.f32 %v359, %v525
  %v562 = vadd.f32 %v361, %v527
  %v563 = vadd.f32 %v364, %v530
  %v564 = vadd.f32 %v366, %v532
  %v565 = vadd.f32 %v369, %v535
  %v566 = vadd.f32 %v371, %v537
  %v567 = vadd.f32 %v374, %v540
  %v568 = vadd.f32 %v376, %v542
  %v569 = vadd.f32 %v379, %v545
  %v570 = vadd.f32 %v381, %v547
  %v571 = vadd.f32 %v384, %v550
  %v572 = vadd.f32 %v386, %v552
  %v573 = vadd.f32 %v389, %v555
  %v574 = vadd.f32 %v391, %v557
  %v575 = vsel %vm81, 1, 0
  %vm576 = vcmp.eq.s32.totalorder %v575, 1
  %vm577 = vmpackc.low %vm576, %vm576
  %v578 = vsel %vm577, 65537, 0
  %v579 = vperm.slane %v578, 0
  %580 = vrot.lane.b32.xlu0 %v579, 4
  %v581 = vpop.permute.xlu0 %580
  %v582 = vunpack.c.l.b16 %v581
  %v583 = vunpack.c.h.b16 %v581
  %v584 = vunpack.c.l.b16 0
  %v585 = vunpack.c.h.b16 0
  %vm586 = vcmp.ne.s32.totalorder %v582, %v584
  %vm587 = vcmp.ne.s32.totalorder %v583, %v585
  %vm588 = vmpackc.low %vm587, %vm586
  %v589 = vsel %vm588, %v67, 0
  %v590 = vsel %vm588, %v69, 0
  %v591 = vsel %vm588, %v71, 0
  %v592 = vsel %vm588, %v73, 0
  %s593 = scalar_lea.vmem %s1, 192
  %v594 = vld [vmem:[%s593] sm:$0xf]
  %v595 = vld [vmem:[%s593 + $0x4] sm:$0xf]
  %v596 = vld [vmem:[%s593 + $0x8] sm:$0xf]
  %v597 = vld [vmem:[%s593 + $0xc] sm:$0xf]
  %v598 = vld [vmem:[%s593 + $0x10] sm:$0xf]
  %v599 = vld [vmem:[%s593 + $0x14] sm:$0xf]
  %v600 = vld [vmem:[%s593 + $0x18] sm:$0xf]
  %v601 = vld [vmem:[%s593 + $0x1c] sm:$0xf]
  %v602 = vld [vmem:[%s593 + $0x20] sm:$0xf]
  %v603 = vld [vmem:[%s593 + $0x24] sm:$0xf]
  %v604 = vld [vmem:[%s593 + $0x28] sm:$0xf]
  %v605 = vld [vmem:[%s593 + $0x2c] sm:$0xf]
  %v606 = vld [vmem:[%s593 + $0x30] sm:$0xf]
  %v607 = vld [vmem:[%s593 + $0x34] sm:$0xf]
  %v608 = vld [vmem:[%s593 + $0x38] sm:$0xf]
  %v609 = vld [vmem:[%s593 + $0x3c] sm:$0xf]
  %v626 = vunpack.c.l.b16 %v594
  %v627 = vunpack.c.l.b16 %v595
  %v628 = vunpack.c.l.b16 %v596
  %v629 = vunpack.c.l.b16 %v597
  %v630 = vunpack.c.l.b16 %v598
  %v631 = vunpack.c.l.b16 %v599
  %v632 = vunpack.c.l.b16 %v600
  %v633 = vunpack.c.l.b16 %v601
  %v634 = vunpack.c.l.b16 %v602
  %v635 = vunpack.c.l.b16 %v603
  %v636 = vunpack.c.l.b16 %v604
  %v637 = vunpack.c.l.b16 %v605
  %v638 = vunpack.c.l.b16 %v606
  %v639 = vunpack.c.l.b16 %v607
  %v640 = vunpack.c.l.b16 %v608
  %v641 = vunpack.c.l.b16 %v609
  %v642 = vpack.c.b16 %v627, %v626
  %v643 = vpack.c.b16 %v629, %v628
  %v644 = vpack.c.b16 %v631, %v630
  %v645 = vpack.c.b16 %v633, %v632
  %v646 = vpack.c.b16 %v635, %v634
  %v647 = vpack.c.b16 %v637, %v636
  %v648 = vpack.c.b16 %v639, %v638
  %v649 = vpack.c.b16 %v641, %v640
  %654 = vrot.lane.b32.xlu0 %v589, 124
  %v655 = vpop.permute.xlu0 %654
  %656 = vrot.lane.b32.xlu0 %v590, 124
  %v657 = vpop.permute.xlu0 %656
  %658 = vrot.lane.b32.xlu0 %v591, 124
  %v659 = vpop.permute.xlu0 %658
  %660 = vrot.lane.b32.xlu0 %v592, 124
  %v661 = vpop.permute.xlu0 %660
  %v667 = vsel %vm206, %v642, 0
  %v670 = vsel %vm206, %v643, 0
  %v673 = vsel %vm206, %v644, 0
  %v676 = vsel %vm206, %v645, 0
  %v679 = vsel %vm206, %v646, 0
  %v682 = vsel %vm206, %v647, 0
  %v685 = vsel %vm206, %v648, 0
  %v688 = vsel %vm206, %v649, 0
  %690 = vmatpush.bf16.msra.mxu0 0
  %691 = vmatpush.bf16.msra.mxu0 0
  %692 = vmatpush.bf16.msra.mxu0 0
  %693 = vmatpush.bf16.msra.mxu0 0
  %694 = vmatpush.bf16.msra.mxu0 %v661
  %695 = vmatpush.bf16.msra.mxu0 %v659
  %696 = vmatpush.bf16.msra.mxu0 %v657
  %697 = vmatpush.bf16.msra.mxu0 %v655
  %698 = vmatmul.bf16.gmra.mxu0 %v667
  %v699 = vpop.f32.mrf.mxu0
  %v700 = vadd.f32 0.0, %v699
  %v701 = vpop.f32.mrf.mxu0
  %v702 = vadd.f32 0.0, %v701
  %703 = vmatmul.bf16.gmra.mxu0 %v670
  %v704 = vpop.f32.mrf.mxu0
  %v705 = vadd.f32 0.0, %v704
  %v706 = vpop.f32.mrf.mxu0
  %v707 = vadd.f32 0.0, %v706
  %708 = vmatmul.bf16.gmra.mxu0 %v673
  %v709 = vpop.f32.mrf.mxu0
  %v710 = vadd.f32 0.0, %v709
  %v711 = vpop.f32.mrf.mxu0
  %v712 = vadd.f32 0.0, %v711
  %713 = vmatmul.bf16.gmra.mxu0 %v676
  %v714 = vpop.f32.mrf.mxu0
  %v715 = vadd.f32 0.0, %v714
  %v716 = vpop.f32.mrf.mxu0
  %v717 = vadd.f32 0.0, %v716
  %718 = vmatmul.bf16.gmra.mxu0 %v679
  %v719 = vpop.f32.mrf.mxu0
  %v720 = vadd.f32 0.0, %v719
  %v721 = vpop.f32.mrf.mxu0
  %v722 = vadd.f32 0.0, %v721
  %723 = vmatmul.bf16.gmra.mxu0 %v682
  %v724 = vpop.f32.mrf.mxu0
  %v725 = vadd.f32 0.0, %v724
  %v726 = vpop.f32.mrf.mxu0
  %v727 = vadd.f32 0.0, %v726
  %728 = vmatmul.bf16.gmra.mxu0 %v685
  %v729 = vpop.f32.mrf.mxu0
  %v730 = vadd.f32 0.0, %v729
  %v731 = vpop.f32.mrf.mxu0
  %v732 = vadd.f32 0.0, %v731
  %733 = vmatmul.bf16.gmra.mxu0 %v688
  %v734 = vpop.f32.mrf.mxu0
  %v735 = vadd.f32 0.0, %v734
  %v736 = vpop.f32.mrf.mxu0
  %v737 = vadd.f32 0.0, %v736
  %738 = vdwg.mxu0
  %v739 = vadd.f32 %v559, %v700
  %v740 = vadd.f32 %v560, %v702
  %v741 = vadd.f32 %v561, %v705
  %v742 = vadd.f32 %v562, %v707
  %v743 = vadd.f32 %v563, %v710
  %v744 = vadd.f32 %v564, %v712
  %v745 = vadd.f32 %v565, %v715
  %v746 = vadd.f32 %v566, %v717
  %v747 = vadd.f32 %v567, %v720
  %v748 = vadd.f32 %v568, %v722
  %v749 = vadd.f32 %v569, %v725
  %v750 = vadd.f32 %v570, %v727
  %v751 = vadd.f32 %v571, %v730
  %v752 = vadd.f32 %v572, %v732
  %v753 = vadd.f32 %v573, %v735
  %v754 = vadd.f32 %v574, %v737
  %s755 = scalar_lea.vmem %s1, 256
  %v756 = vld [vmem:[%s755] sm:$0xf]
  %v757 = vld [vmem:[%s755 + $0x4] sm:$0xf]
  %v758 = vld [vmem:[%s755 + $0x8] sm:$0xf]
  %v759 = vld [vmem:[%s755 + $0xc] sm:$0xf]
  %v760 = vld [vmem:[%s755 + $0x10] sm:$0xf]
  %v761 = vld [vmem:[%s755 + $0x14] sm:$0xf]
  %v762 = vld [vmem:[%s755 + $0x18] sm:$0xf]
  %v763 = vld [vmem:[%s755 + $0x1c] sm:$0xf]
  %v764 = vld [vmem:[%s755 + $0x20] sm:$0xf]
  %v765 = vld [vmem:[%s755 + $0x24] sm:$0xf]
  %v766 = vld [vmem:[%s755 + $0x28] sm:$0xf]
  %v767 = vld [vmem:[%s755 + $0x2c] sm:$0xf]
  %v768 = vld [vmem:[%s755 + $0x30] sm:$0xf]
  %v769 = vld [vmem:[%s755 + $0x34] sm:$0xf]
  %v770 = vld [vmem:[%s755 + $0x38] sm:$0xf]
  %v771 = vld [vmem:[%s755 + $0x3c] sm:$0xf]
  %v788 = vunpack.c.l.b16 %v756
  %v789 = vunpack.c.l.b16 %v757
  %v790 = vunpack.c.l.b16 %v758
  %v791 = vunpack.c.l.b16 %v759
  %v792 = vunpack.c.l.b16 %v760
  %v793 = vunpack.c.l.b16 %v761
  %v794 = vunpack.c.l.b16 %v762
  %v795 = vunpack.c.l.b16 %v763
  %v796 = vunpack.c.l.b16 %v764
  %v797 = vunpack.c.l.b16 %v765
  %v798 = vunpack.c.l.b16 %v766
  %v799 = vunpack.c.l.b16 %v767
  %v800 = vunpack.c.l.b16 %v768
  %v801 = vunpack.c.l.b16 %v769
  %v802 = vunpack.c.l.b16 %v770
  %v803 = vunpack.c.l.b16 %v771
  %v804 = vpack.c.b16 %v789, %v788
  %v805 = vpack.c.b16 %v791, %v790
  %v806 = vpack.c.b16 %v793, %v792
  %v807 = vpack.c.b16 %v795, %v794
  %v808 = vpack.c.b16 %v797, %v796
  %v809 = vpack.c.b16 %v799, %v798
  %v810 = vpack.c.b16 %v801, %v800
  %v811 = vpack.c.b16 %v803, %v802
  %816 = vrot.lane.b32.xlu0 %v67, 123
  %v817 = vpop.permute.xlu0 %816
  %818 = vrot.lane.b32.xlu0 %v69, 123
  %v819 = vpop.permute.xlu0 %818
  %820 = vrot.lane.b32.xlu0 %v71, 123
  %v821 = vpop.permute.xlu0 %820
  %822 = vrot.lane.b32.xlu0 %v73, 123
  %v823 = vpop.permute.xlu0 %822
  %v829 = vsel %vm206, %v804, 0
  %v832 = vsel %vm206, %v805, 0
  %v835 = vsel %vm206, %v806, 0
  %v838 = vsel %vm206, %v807, 0
  %v841 = vsel %vm206, %v808, 0
  %v844 = vsel %vm206, %v809, 0
  %v847 = vsel %vm206, %v810, 0
  %v850 = vsel %vm206, %v811, 0
  %852 = vmatpush.bf16.msra.mxu0 0
  %853 = vmatpush.bf16.msra.mxu0 0
  %854 = vmatpush.bf16.msra.mxu0 0
  %855 = vmatpush.bf16.msra.mxu0 0
  %856 = vmatpush.bf16.msra.mxu0 %v823
  %857 = vmatpush.bf16.msra.mxu0 %v821
  %858 = vmatpush.bf16.msra.mxu0 %v819
  %859 = vmatpush.bf16.msra.mxu0 %v817
  %860 = vmatmul.bf16.gmra.mxu0 %v829
  %v861 = vpop.f32.mrf.mxu0
  %v862 = vadd.f32 0.0, %v861
  %v863 = vpop.f32.mrf.mxu0
  %v864 = vadd.f32 0.0, %v863
  %865 = vmatmul.bf16.gmra.mxu0 %v832
  %v866 = vpop.f32.mrf.mxu0
  %v867 = vadd.f32 0.0, %v866
  %v868 = vpop.f32.mrf.mxu0
  %v869 = vadd.f32 0.0, %v868
  %870 = vmatmul.bf16.gmra.mxu0 %v835
  %v871 = vpop.f32.mrf.mxu0
  %v872 = vadd.f32 0.0, %v871
  %v873 = vpop.f32.mrf.mxu0
  %v874 = vadd.f32 0.0, %v873
  %875 = vmatmul.bf16.gmra.mxu0 %v838
  %v876 = vpop.f32.mrf.mxu0
  %v877 = vadd.f32 0.0, %v876
  %v878 = vpop.f32.mrf.mxu0
  %v879 = vadd.f32 0.0, %v878
  %880 = vmatmul.bf16.gmra.mxu0 %v841
  %v881 = vpop.f32.mrf.mxu0
  %v882 = vadd.f32 0.0, %v881
  %v883 = vpop.f32.mrf.mxu0
  %v884 = vadd.f32 0.0, %v883
  %885 = vmatmul.bf16.gmra.mxu0 %v844
  %v886 = vpop.f32.mrf.mxu0
  %v887 = vadd.f32 0.0, %v886
  %v888 = vpop.f32.mrf.mxu0
  %v889 = vadd.f32 0.0, %v888
  %890 = vmatmul.bf16.gmra.mxu0 %v847
  %v891 = vpop.f32.mrf.mxu0
  %v892 = vadd.f32 0.0, %v891
  %v893 = vpop.f32.mrf.mxu0
  %v894 = vadd.f32 0.0, %v893
  %895 = vmatmul.bf16.gmra.mxu0 %v850
  %v896 = vpop.f32.mrf.mxu0
  %v897 = vadd.f32 0.0, %v896
  %v898 = vpop.f32.mrf.mxu0
  %v899 = vadd.f32 0.0, %v898
  %900 = vdwg.mxu0
  %v901 = vadd.f32 %v739, %v862
  %v902 = vadd.f32 %v740, %v864
  %v903 = vadd.f32 %v741, %v867
  %v904 = vadd.f32 %v742, %v869
  %v905 = vadd.f32 %v743, %v872
  %v906 = vadd.f32 %v744, %v874
  %v907 = vadd.f32 %v745, %v877
  %v908 = vadd.f32 %v746, %v879
  %v909 = vadd.f32 %v747, %v882
  %v910 = vadd.f32 %v748, %v884
  %v911 = vadd.f32 %v749, %v887
  %v912 = vadd.f32 %v750, %v889
  %v913 = vadd.f32 %v751, %v892
  %v914 = vadd.f32 %v752, %v894
  %v915 = vadd.f32 %v753, %v897
  %v916 = vadd.f32 %v754, %v899
  %v917 = vsel %vm393, 1, 0
  %vm918 = vcmp.eq.s32.totalorder %v917, 1
  %vm919 = vmpackc.low %vm918, %vm918
  %v920 = vsel %vm919, 65537, 0
  %v921 = vperm.slane %v920, 0
  %922 = vrot.lane.b32.xlu0 %v921, 6
  %v923 = vpop.permute.xlu0 %922
  %v924 = vunpack.c.l.b16 %v923
  %v925 = vunpack.c.h.b16 %v923
  %v926 = vunpack.c.l.b16 0
  %v927 = vunpack.c.h.b16 0
  %vm928 = vcmp.ne.s32.totalorder %v924, %v926
  %vm929 = vcmp.ne.s32.totalorder %v925, %v927
  %vm930 = vmpackc.low %vm929, %vm928
  %v931 = vsel %vm930, %v67, 0
  %v932 = vsel %vm930, %v69, 0
  %v933 = vsel %vm930, %v71, 0
  %v934 = vsel %vm930, %v73, 0
  %s935 = scalar_lea.vmem %s1, 320
  %v936 = vld [vmem:[%s935] sm:$0xf]
  %v937 = vld [vmem:[%s935 + $0x4] sm:$0xf]
  %v938 = vld [vmem:[%s935 + $0x8] sm:$0xf]
  %v939 = vld [vmem:[%s935 + $0xc] sm:$0xf]
  %v940 = vld [vmem:[%s935 + $0x10] sm:$0xf]
  %v941 = vld [vmem:[%s935 + $0x14] sm:$0xf]
  %v942 = vld [vmem:[%s935 + $0x18] sm:$0xf]
  %v943 = vld [vmem:[%s935 + $0x1c] sm:$0xf]
  %v944 = vld [vmem:[%s935 + $0x20] sm:$0xf]
  %v945 = vld [vmem:[%s935 + $0x24] sm:$0xf]
  %v946 = vld [vmem:[%s935 + $0x28] sm:$0xf]
  %v947 = vld [vmem:[%s935 + $0x2c] sm:$0xf]
  %v948 = vld [vmem:[%s935 + $0x30] sm:$0xf]
  %v949 = vld [vmem:[%s935 + $0x34] sm:$0xf]
  %v950 = vld [vmem:[%s935 + $0x38] sm:$0xf]
  %v951 = vld [vmem:[%s935 + $0x3c] sm:$0xf]
  %v968 = vunpack.c.l.b16 %v936
  %v969 = vunpack.c.l.b16 %v937
  %v970 = vunpack.c.l.b16 %v938
  %v971 = vunpack.c.l.b16 %v939
  %v972 = vunpack.c.l.b16 %v940
  %v973 = vunpack.c.l.b16 %v941
  %v974 = vunpack.c.l.b16 %v942
  %v975 = vunpack.c.l.b16 %v943
  %v976 = vunpack.c.l.b16 %v944
  %v977 = vunpack.c.l.b16 %v945
  %v978 = vunpack.c.l.b16 %v946
  %v979 = vunpack.c.l.b16 %v947
  %v980 = vunpack.c.l.b16 %v948
  %v981 = vunpack.c.l.b16 %v949
  %v982 = vunpack.c.l.b16 %v950
  %v983 = vunpack.c.l.b16 %v951
  %v984 = vpack.c.b16 %v969, %v968
  %v985 = vpack.c.b16 %v971, %v970
  %v986 = vpack.c.b16 %v973, %v972
  %v987 = vpack.c.b16 %v975, %v974
  %v988 = vpack.c.b16 %v977, %v976
  %v989 = vpack.c.b16 %v979, %v978
  %v990 = vpack.c.b16 %v981, %v980
  %v991 = vpack.c.b16 %v983, %v982
  %996 = vrot.lane.b32.xlu0 %v931, 122
  %v997 = vpop.permute.xlu0 %996
  %998 = vrot.lane.b32.xlu0 %v932, 122
  %v999 = vpop.permute.xlu0 %998
  %1000 = vrot.lane.b32.xlu0 %v933, 122
  %v1001 = vpop.permute.xlu0 %1000
  %1002 = vrot.lane.b32.xlu0 %v934, 122
  %v1003 = vpop.permute.xlu0 %1002
  %v1009 = vsel %vm206, %v984, 0
  %v1012 = vsel %vm206, %v985, 0
  %v1015 = vsel %vm206, %v986, 0
  %v1018 = vsel %vm206, %v987, 0
  %v1021 = vsel %vm206, %v988, 0
  %v1024 = vsel %vm206, %v989, 0
  %v1027 = vsel %vm206, %v990, 0
  %v1030 = vsel %vm206, %v991, 0
  %1032 = vmatpush.bf16.msra.mxu0 0
  %1033 = vmatpush.bf16.msra.mxu0 0
  %1034 = vmatpush.bf16.msra.mxu0 0
  %1035 = vmatpush.bf16.msra.mxu0 0
  %1036 = vmatpush.bf16.msra.mxu0 %v1003
  %1037 = vmatpush.bf16.msra.mxu0 %v1001
  %1038 = vmatpush.bf16.msra.mxu0 %v999
  %1039 = vmatpush.bf16.msra.mxu0 %v997
  %1040 = vmatmul.bf16.gmra.mxu0 %v1009
  %v1041 = vpop.f32.mrf.mxu0
  %v1042 = vadd.f32 0.0, %v1041
  %v1043 = vpop.f32.mrf.mxu0
  %v1044 = vadd.f32 0.0, %v1043
  %1045 = vmatmul.bf16.gmra.mxu0 %v1012
  %v1046 = vpop.f32.mrf.mxu0
  %v1047 = vadd.f32 0.0, %v1046
  %v1048 = vpop.f32.mrf.mxu0
  %v1049 = vadd.f32 0.0, %v1048
  %1050 = vmatmul.bf16.gmra.mxu0 %v1015
  %v1051 = vpop.f32.mrf.mxu0
  %v1052 = vadd.f32 0.0, %v1051
  %v1053 = vpop.f32.mrf.mxu0
  %v1054 = vadd.f32 0.0, %v1053
  %1055 = vmatmul.bf16.gmra.mxu0 %v1018
  %v1056 = vpop.f32.mrf.mxu0
  %v1057 = vadd.f32 0.0, %v1056
  %v1058 = vpop.f32.mrf.mxu0
  %v1059 = vadd.f32 0.0, %v1058
  %1060 = vmatmul.bf16.gmra.mxu0 %v1021
  %v1061 = vpop.f32.mrf.mxu0
  %v1062 = vadd.f32 0.0, %v1061
  %v1063 = vpop.f32.mrf.mxu0
  %v1064 = vadd.f32 0.0, %v1063
  %1065 = vmatmul.bf16.gmra.mxu0 %v1024
  %v1066 = vpop.f32.mrf.mxu0
  %v1067 = vadd.f32 0.0, %v1066
  %v1068 = vpop.f32.mrf.mxu0
  %v1069 = vadd.f32 0.0, %v1068
  %1070 = vmatmul.bf16.gmra.mxu0 %v1027
  %v1071 = vpop.f32.mrf.mxu0
  %v1072 = vadd.f32 0.0, %v1071
  %v1073 = vpop.f32.mrf.mxu0
  %v1074 = vadd.f32 0.0, %v1073
  %1075 = vmatmul.bf16.gmra.mxu0 %v1030
  %v1076 = vpop.f32.mrf.mxu0
  %v1077 = vadd.f32 0.0, %v1076
  %v1078 = vpop.f32.mrf.mxu0
  %v1079 = vadd.f32 0.0, %v1078
  %1080 = vdwg.mxu0
  %v1081 = vadd.f32 %v901, %v1042
  %v1082 = vadd.f32 %v902, %v1044
  %v1083 = vadd.f32 %v903, %v1047
  %v1084 = vadd.f32 %v904, %v1049
  %v1085 = vadd.f32 %v905, %v1052
  %v1086 = vadd.f32 %v906, %v1054
  %v1087 = vadd.f32 %v907, %v1057
  %v1088 = vadd.f32 %v908, %v1059
  %v1089 = vadd.f32 %v909, %v1062
  %v1090 = vadd.f32 %v910, %v1064
  %v1091 = vadd.f32 %v911, %v1067
  %v1092 = vadd.f32 %v912, %v1069
  %v1093 = vadd.f32 %v913, %v1072
  %v1094 = vadd.f32 %v914, %v1074
  %v1095 = vadd.f32 %v915, %v1077
  %v1096 = vadd.f32 %v916, %v1079
  %vm1097 = vcmp.le.s32.totalorder %v79, 2
  %vm1098 = vmand %vm1097, %vm81
  %v1099 = vsel %vm1098, 1, 0
  %vm1100 = vcmp.eq.s32.totalorder %v1099, 1
  %vm1101 = vmpackc.low %vm1100, %vm1100
  %v1102 = vsel %vm1101, 65537, 0
  %v1103 = vperm.slane %v1102, 0
  %1104 = vrot.lane.b32.xlu0 %v1103, 8
  %v1105 = vpop.permute.xlu0 %1104
  %v1106 = vunpack.c.l.b16 %v1105
  %v1107 = vunpack.c.h.b16 %v1105
  %v1108 = vunpack.c.l.b16 0
  %v1109 = vunpack.c.h.b16 0
  %vm1110 = vcmp.ne.s32.totalorder %v1106, %v1108
  %vm1111 = vcmp.ne.s32.totalorder %v1107, %v1109
  %vm1112 = vmpackc.low %vm1111, %vm1110
  %v1113 = vsel %vm1112, %v67, 0
  %v1114 = vsel %vm1112, %v69, 0
  %v1115 = vsel %vm1112, %v71, 0
  %v1116 = vsel %vm1112, %v73, 0
  %s1117 = scalar_lea.vmem %s1, 384
  %v1118 = vld [vmem:[%s1117] sm:$0xf]
  %v1119 = vld [vmem:[%s1117 + $0x4] sm:$0xf]
  %v1120 = vld [vmem:[%s1117 + $0x8] sm:$0xf]
  %v1121 = vld [vmem:[%s1117 + $0xc] sm:$0xf]
  %v1122 = vld [vmem:[%s1117 + $0x10] sm:$0xf]
  %v1123 = vld [vmem:[%s1117 + $0x14] sm:$0xf]
  %v1124 = vld [vmem:[%s1117 + $0x18] sm:$0xf]
  %v1125 = vld [vmem:[%s1117 + $0x1c] sm:$0xf]
  %v1126 = vld [vmem:[%s1117 + $0x20] sm:$0xf]
  %v1127 = vld [vmem:[%s1117 + $0x24] sm:$0xf]
  %v1128 = vld [vmem:[%s1117 + $0x28] sm:$0xf]
  %v1129 = vld [vmem:[%s1117 + $0x2c] sm:$0xf]
  %v1130 = vld [vmem:[%s1117 + $0x30] sm:$0xf]
  %v1131 = vld [vmem:[%s1117 + $0x34] sm:$0xf]
  %v1132 = vld [vmem:[%s1117 + $0x38] sm:$0xf]
  %v1133 = vld [vmem:[%s1117 + $0x3c] sm:$0xf]
  %v1150 = vunpack.c.l.b16 %v1118
  %v1151 = vunpack.c.l.b16 %v1119
  %v1152 = vunpack.c.l.b16 %v1120
  %v1153 = vunpack.c.l.b16 %v1121
  %v1154 = vunpack.c.l.b16 %v1122
  %v1155 = vunpack.c.l.b16 %v1123
  %v1156 = vunpack.c.l.b16 %v1124
  %v1157 = vunpack.c.l.b16 %v1125
  %v1158 = vunpack.c.l.b16 %v1126
  %v1159 = vunpack.c.l.b16 %v1127
  %v1160 = vunpack.c.l.b16 %v1128
  %v1161 = vunpack.c.l.b16 %v1129
  %v1162 = vunpack.c.l.b16 %v1130
  %v1163 = vunpack.c.l.b16 %v1131
  %v1164 = vunpack.c.l.b16 %v1132
  %v1165 = vunpack.c.l.b16 %v1133
  %v1166 = vpack.c.b16 %v1151, %v1150
  %v1167 = vpack.c.b16 %v1153, %v1152
  %v1168 = vpack.c.b16 %v1155, %v1154
  %v1169 = vpack.c.b16 %v1157, %v1156
  %v1170 = vpack.c.b16 %v1159, %v1158
  %v1171 = vpack.c.b16 %v1161, %v1160
  %v1172 = vpack.c.b16 %v1163, %v1162
  %v1173 = vpack.c.b16 %v1165, %v1164
  %1178 = vrot.lane.b32.xlu0 %v1113, 120
  %v1179 = vpop.permute.xlu0 %1178
  %1180 = vrot.lane.b32.xlu0 %v1114, 120
  %v1181 = vpop.permute.xlu0 %1180
  %1182 = vrot.lane.b32.xlu0 %v1115, 120
  %v1183 = vpop.permute.xlu0 %1182
  %1184 = vrot.lane.b32.xlu0 %v1116, 120
  %v1185 = vpop.permute.xlu0 %1184
  %v1191 = vsel %vm206, %v1166, 0
  %v1194 = vsel %vm206, %v1167, 0
  %v1197 = vsel %vm206, %v1168, 0
  %v1200 = vsel %vm206, %v1169, 0
  %v1203 = vsel %vm206, %v1170, 0
  %v1206 = vsel %vm206, %v1171, 0
  %v1209 = vsel %vm206, %v1172, 0
  %v1212 = vsel %vm206, %v1173, 0
  %1214 = vmatpush.bf16.msra.mxu0 0
  %1215 = vmatpush.bf16.msra.mxu0 0
  %1216 = vmatpush.bf16.msra.mxu0 0
  %1217 = vmatpush.bf16.msra.mxu0 0
  %1218 = vmatpush.bf16.msra.mxu0 %v1185
  %1219 = vmatpush.bf16.msra.mxu0 %v1183
  %1220 = vmatpush.bf16.msra.mxu0 %v1181
  %1221 = vmatpush.bf16.msra.mxu0 %v1179
  %1222 = vmatmul.bf16.gmra.mxu0 %v1191
  %v1223 = vpop.f32.mrf.mxu0
  %v1224 = vadd.f32 0.0, %v1223
  %v1225 = vpop.f32.mrf.mxu0
  %v1226 = vadd.f32 0.0, %v1225
  %1227 = vmatmul.bf16.gmra.mxu0 %v1194
  %v1228 = vpop.f32.mrf.mxu0
  %v1229 = vadd.f32 0.0, %v1228
  %v1230 = vpop.f32.mrf.mxu0
  %v1231 = vadd.f32 0.0, %v1230
  %1232 = vmatmul.bf16.gmra.mxu0 %v1197
  %v1233 = vpop.f32.mrf.mxu0
  %v1234 = vadd.f32 0.0, %v1233
  %v1235 = vpop.f32.mrf.mxu0
  %v1236 = vadd.f32 0.0, %v1235
  %1237 = vmatmul.bf16.gmra.mxu0 %v1200
  %v1238 = vpop.f32.mrf.mxu0
  %v1239 = vadd.f32 0.0, %v1238
  %v1240 = vpop.f32.mrf.mxu0
  %v1241 = vadd.f32 0.0, %v1240
  %1242 = vmatmul.bf16.gmra.mxu0 %v1203
  %v1243 = vpop.f32.mrf.mxu0
  %v1244 = vadd.f32 0.0, %v1243
  %v1245 = vpop.f32.mrf.mxu0
  %v1246 = vadd.f32 0.0, %v1245
  %1247 = vmatmul.bf16.gmra.mxu0 %v1206
  %v1248 = vpop.f32.mrf.mxu0
  %v1249 = vadd.f32 0.0, %v1248
  %v1250 = vpop.f32.mrf.mxu0
  %v1251 = vadd.f32 0.0, %v1250
  %1252 = vmatmul.bf16.gmra.mxu0 %v1209
  %v1253 = vpop.f32.mrf.mxu0
  %v1254 = vadd.f32 0.0, %v1253
  %v1255 = vpop.f32.mrf.mxu0
  %v1256 = vadd.f32 0.0, %v1255
  %1257 = vmatmul.bf16.gmra.mxu0 %v1212
  %v1258 = vpop.f32.mrf.mxu0
  %v1259 = vadd.f32 0.0, %v1258
  %v1260 = vpop.f32.mrf.mxu0
  %v1261 = vadd.f32 0.0, %v1260
  %1262 = vdwg.mxu0
  %v1263 = vadd.f32 %v1081, %v1224
  %v1264 = vadd.f32 %v1082, %v1226
  %v1265 = vadd.f32 %v1083, %v1229
  %v1266 = vadd.f32 %v1084, %v1231
  %v1267 = vadd.f32 %v1085, %v1234
  %v1268 = vadd.f32 %v1086, %v1236
  %v1269 = vadd.f32 %v1087, %v1239
  %v1270 = vadd.f32 %v1088, %v1241
  %v1271 = vadd.f32 %v1089, %v1244
  %v1272 = vadd.f32 %v1090, %v1246
  %v1273 = vadd.f32 %v1091, %v1249
  %v1274 = vadd.f32 %v1092, %v1251
  %v1275 = vadd.f32 %v1093, %v1254
  %v1276 = vadd.f32 %v1094, %v1256
  %v1277 = vadd.f32 %v1095, %v1259
  %v1278 = vadd.f32 %v1096, %v1261
  %v1279 = vsel %vm1097, 1, 0
  %vm1280 = vcmp.eq.s32.totalorder %v1279, 1
  %vm1281 = vmpackc.low %vm1280, %vm1280
  %v1282 = vsel %vm1281, 65537, 0
  %v1283 = vperm.slane %v1282, 0
  %1284 = vrot.lane.b32.xlu0 %v1283, 9
  %v1285 = vpop.permute.xlu0 %1284
  %v1286 = vunpack.c.l.b16 %v1285
  %v1287 = vunpack.c.h.b16 %v1285
  %v1288 = vunpack.c.l.b16 0
  %v1289 = vunpack.c.h.b16 0
  %vm1290 = vcmp.ne.s32.totalorder %v1286, %v1288
  %vm1291 = vcmp.ne.s32.totalorder %v1287, %v1289
  %vm1292 = vmpackc.low %vm1291, %vm1290
  %v1293 = vsel %vm1292, %v67, 0
  %v1294 = vsel %vm1292, %v69, 0
  %v1295 = vsel %vm1292, %v71, 0
  %v1296 = vsel %vm1292, %v73, 0
  %s1297 = scalar_lea.vmem %s1, 448
  %v1298 = vld [vmem:[%s1297] sm:$0xf]
  %v1299 = vld [vmem:[%s1297 + $0x4] sm:$0xf]
  %v1300 = vld [vmem:[%s1297 + $0x8] sm:$0xf]
  %v1301 = vld [vmem:[%s1297 + $0xc] sm:$0xf]
  %v1302 = vld [vmem:[%s1297 + $0x10] sm:$0xf]
  %v1303 = vld [vmem:[%s1297 + $0x14] sm:$0xf]
  %v1304 = vld [vmem:[%s1297 + $0x18] sm:$0xf]
  %v1305 = vld [vmem:[%s1297 + $0x1c] sm:$0xf]
  %v1306 = vld [vmem:[%s1297 + $0x20] sm:$0xf]
  %v1307 = vld [vmem:[%s1297 + $0x24] sm:$0xf]
  %v1308 = vld [vmem:[%s1297 + $0x28] sm:$0xf]
  %v1309 = vld [vmem:[%s1297 + $0x2c] sm:$0xf]
  %v1310 = vld [vmem:[%s1297 + $0x30] sm:$0xf]
  %v1311 = vld [vmem:[%s1297 + $0x34] sm:$0xf]
  %v1312 = vld [vmem:[%s1297 + $0x38] sm:$0xf]
  %v1313 = vld [vmem:[%s1297 + $0x3c] sm:$0xf]
  %v1330 = vunpack.c.l.b16 %v1298
  %v1331 = vunpack.c.l.b16 %v1299
  %v1332 = vunpack.c.l.b16 %v1300
  %v1333 = vunpack.c.l.b16 %v1301
  %v1334 = vunpack.c.l.b16 %v1302
  %v1335 = vunpack.c.l.b16 %v1303
  %v1336 = vunpack.c.l.b16 %v1304
  %v1337 = vunpack.c.l.b16 %v1305
  %v1338 = vunpack.c.l.b16 %v1306
  %v1339 = vunpack.c.l.b16 %v1307
  %v1340 = vunpack.c.l.b16 %v1308
  %v1341 = vunpack.c.l.b16 %v1309
  %v1342 = vunpack.c.l.b16 %v1310
  %v1343 = vunpack.c.l.b16 %v1311
  %v1344 = vunpack.c.l.b16 %v1312
  %v1345 = vunpack.c.l.b16 %v1313
  %v1346 = vpack.c.b16 %v1331, %v1330
  %v1347 = vpack.c.b16 %v1333, %v1332
  %v1348 = vpack.c.b16 %v1335, %v1334
  %v1349 = vpack.c.b16 %v1337, %v1336
  %v1350 = vpack.c.b16 %v1339, %v1338
  %v1351 = vpack.c.b16 %v1341, %v1340
  %v1352 = vpack.c.b16 %v1343, %v1342
  %v1353 = vpack.c.b16 %v1345, %v1344
  %1358 = vrot.lane.b32.xlu0 %v1293, 119
  %v1359 = vpop.permute.xlu0 %1358
  %1360 = vrot.lane.b32.xlu0 %v1294, 119
  %v1361 = vpop.permute.xlu0 %1360
  %1362 = vrot.lane.b32.xlu0 %v1295, 119
  %v1363 = vpop.permute.xlu0 %1362
  %1364 = vrot.lane.b32.xlu0 %v1296, 119
  %v1365 = vpop.permute.xlu0 %1364
  %v1371 = vsel %vm206, %v1346, 0
  %v1374 = vsel %vm206, %v1347, 0
  %v1377 = vsel %vm206, %v1348, 0
  %v1380 = vsel %vm206, %v1349, 0
  %v1383 = vsel %vm206, %v1350, 0
  %v1386 = vsel %vm206, %v1351, 0
  %v1389 = vsel %vm206, %v1352, 0
  %v1392 = vsel %vm206, %v1353, 0
  %1394 = vmatpush.bf16.msra.mxu0 0
  %1395 = vmatpush.bf16.msra.mxu0 0
  %1396 = vmatpush.bf16.msra.mxu0 0
  %1397 = vmatpush.bf16.msra.mxu0 0
  %1398 = vmatpush.bf16.msra.mxu0 %v1365
  %1399 = vmatpush.bf16.msra.mxu0 %v1363
  %1400 = vmatpush.bf16.msra.mxu0 %v1361
  %1401 = vmatpush.bf16.msra.mxu0 %v1359
  %1402 = vmatmul.bf16.gmra.mxu0 %v1371
  %v1403 = vpop.f32.mrf.mxu0
  %v1404 = vadd.f32 0.0, %v1403
  %v1405 = vpop.f32.mrf.mxu0
  %v1406 = vadd.f32 0.0, %v1405
  %1407 = vmatmul.bf16.gmra.mxu0 %v1374
  %v1408 = vpop.f32.mrf.mxu0
  %v1409 = vadd.f32 0.0, %v1408
  %v1410 = vpop.f32.mrf.mxu0
  %v1411 = vadd.f32 0.0, %v1410
  %1412 = vmatmul.bf16.gmra.mxu0 %v1377
  %v1413 = vpop.f32.mrf.mxu0
  %v1414 = vadd.f32 0.0, %v1413
  %v1415 = vpop.f32.mrf.mxu0
  %v1416 = vadd.f32 0.0, %v1415
  %1417 = vmatmul.bf16.gmra.mxu0 %v1380
  %v1418 = vpop.f32.mrf.mxu0
  %v1419 = vadd.f32 0.0, %v1418
  %v1420 = vpop.f32.mrf.mxu0
  %v1421 = vadd.f32 0.0, %v1420
  %1422 = vmatmul.bf16.gmra.mxu0 %v1383
  %v1423 = vpop.f32.mrf.mxu0
  %v1424 = vadd.f32 0.0, %v1423
  %v1425 = vpop.f32.mrf.mxu0
  %v1426 = vadd.f32 0.0, %v1425
  %1427 = vmatmul.bf16.gmra.mxu0 %v1386
  %v1428 = vpop.f32.mrf.mxu0
  %v1429 = vadd.f32 0.0, %v1428
  %v1430 = vpop.f32.mrf.mxu0
  %v1431 = vadd.f32 0.0, %v1430
  %1432 = vmatmul.bf16.gmra.mxu0 %v1389
  %v1433 = vpop.f32.mrf.mxu0
  %v1434 = vadd.f32 0.0, %v1433
  %v1435 = vpop.f32.mrf.mxu0
  %v1436 = vadd.f32 0.0, %v1435
  %1437 = vmatmul.bf16.gmra.mxu0 %v1392
  %v1438 = vpop.f32.mrf.mxu0
  %v1439 = vadd.f32 0.0, %v1438
  %v1440 = vpop.f32.mrf.mxu0
  %v1441 = vadd.f32 0.0, %v1440
  %1442 = vdwg.mxu0
  %v1443 = vadd.f32 %v1263, %v1404
  %v1444 = vadd.f32 %v1264, %v1406
  %v1445 = vadd.f32 %v1265, %v1409
  %v1446 = vadd.f32 %v1266, %v1411
  %v1447 = vadd.f32 %v1267, %v1414
  %v1448 = vadd.f32 %v1268, %v1416
  %v1449 = vadd.f32 %v1269, %v1419
  %v1450 = vadd.f32 %v1270, %v1421
  %v1451 = vadd.f32 %v1271, %v1424
  %v1452 = vadd.f32 %v1272, %v1426
  %v1453 = vadd.f32 %v1273, %v1429
  %v1454 = vadd.f32 %v1274, %v1431
  %v1455 = vadd.f32 %v1275, %v1434
  %v1456 = vadd.f32 %v1276, %v1436
  %v1457 = vadd.f32 %v1277, %v1439
  %v1458 = vadd.f32 %v1278, %v1441
  %vm1459 = vmand %vm1097, %vm393
  %v1460 = vsel %vm1459, 1, 0
  %vm1461 = vcmp.eq.s32.totalorder %v1460, 1
  %vm1462 = vmpackc.low %vm1461, %vm1461
  %v1463 = vsel %vm1462, 65537, 0
  %v1464 = vperm.slane %v1463, 0
  %1465 = vrot.lane.b32.xlu0 %v1464, 10
  %v1466 = vpop.permute.xlu0 %1465
  %v1467 = vunpack.c.l.b16 %v1466
  %v1468 = vunpack.c.h.b16 %v1466
  %v1469 = vunpack.c.l.b16 0
  %v1470 = vunpack.c.h.b16 0
  %vm1471 = vcmp.ne.s32.totalorder %v1467, %v1469
  %vm1472 = vcmp.ne.s32.totalorder %v1468, %v1470
  %vm1473 = vmpackc.low %vm1472, %vm1471
  %v1474 = vsel %vm1473, %v67, 0
  %v1475 = vsel %vm1473, %v69, 0
  %v1476 = vsel %vm1473, %v71, 0
  %v1477 = vsel %vm1473, %v73, 0
  %s1478 = scalar_lea.vmem %s1, 512
  %v1479 = vld [vmem:[%s1478] sm:$0xf]
  %v1480 = vld [vmem:[%s1478 + $0x4] sm:$0xf]
  %v1481 = vld [vmem:[%s1478 + $0x8] sm:$0xf]
  %v1482 = vld [vmem:[%s1478 + $0xc] sm:$0xf]
  %v1483 = vld [vmem:[%s1478 + $0x10] sm:$0xf]
  %v1484 = vld [vmem:[%s1478 + $0x14] sm:$0xf]
  %v1485 = vld [vmem:[%s1478 + $0x18] sm:$0xf]
  %v1486 = vld [vmem:[%s1478 + $0x1c] sm:$0xf]
  %v1487 = vld [vmem:[%s1478 + $0x20] sm:$0xf]
  %v1488 = vld [vmem:[%s1478 + $0x24] sm:$0xf]
  %v1489 = vld [vmem:[%s1478 + $0x28] sm:$0xf]
  %v1490 = vld [vmem:[%s1478 + $0x2c] sm:$0xf]
  %v1491 = vld [vmem:[%s1478 + $0x30] sm:$0xf]
  %v1492 = vld [vmem:[%s1478 + $0x34] sm:$0xf]
  %v1493 = vld [vmem:[%s1478 + $0x38] sm:$0xf]
  %v1494 = vld [vmem:[%s1478 + $0x3c] sm:$0xf]
  %v1511 = vunpack.c.l.b16 %v1479
  %v1512 = vunpack.c.l.b16 %v1480
  %v1513 = vunpack.c.l.b16 %v1481
  %v1514 = vunpack.c.l.b16 %v1482
  %v1515 = vunpack.c.l.b16 %v1483
  %v1516 = vunpack.c.l.b16 %v1484
  %v1517 = vunpack.c.l.b16 %v1485
  %v1518 = vunpack.c.l.b16 %v1486
  %v1519 = vunpack.c.l.b16 %v1487
  %v1520 = vunpack.c.l.b16 %v1488
  %v1521 = vunpack.c.l.b16 %v1489
  %v1522 = vunpack.c.l.b16 %v1490
  %v1523 = vunpack.c.l.b16 %v1491
  %v1524 = vunpack.c.l.b16 %v1492
  %v1525 = vunpack.c.l.b16 %v1493
  %v1526 = vunpack.c.l.b16 %v1494
  %v1527 = vpack.c.b16 %v1512, %v1511
  %v1528 = vpack.c.b16 %v1514, %v1513
  %v1529 = vpack.c.b16 %v1516, %v1515
  %v1530 = vpack.c.b16 %v1518, %v1517
  %v1531 = vpack.c.b16 %v1520, %v1519
  %v1532 = vpack.c.b16 %v1522, %v1521
  %v1533 = vpack.c.b16 %v1524, %v1523
  %v1534 = vpack.c.b16 %v1526, %v1525
  %1539 = vrot.lane.b32.xlu0 %v1474, 118
  %v1540 = vpop.permute.xlu0 %1539
  %1541 = vrot.lane.b32.xlu0 %v1475, 118
  %v1542 = vpop.permute.xlu0 %1541
  %1543 = vrot.lane.b32.xlu0 %v1476, 118
  %v1544 = vpop.permute.xlu0 %1543
  %1545 = vrot.lane.b32.xlu0 %v1477, 118
  %v1546 = vpop.permute.xlu0 %1545
  %v1552 = vsel %vm206, %v1527, 0
  %v1555 = vsel %vm206, %v1528, 0
  %v1558 = vsel %vm206, %v1529, 0
  %v1561 = vsel %vm206, %v1530, 0
  %v1564 = vsel %vm206, %v1531, 0
  %v1567 = vsel %vm206, %v1532, 0
  %v1570 = vsel %vm206, %v1533, 0
  %v1573 = vsel %vm206, %v1534, 0
  %1575 = vmatpush.bf16.msra.mxu0 0
  %1576 = vmatpush.bf16.msra.mxu0 0
  %1577 = vmatpush.bf16.msra.mxu0 0
  %1578 = vmatpush.bf16.msra.mxu0 0
  %1579 = vmatpush.bf16.msra.mxu0 %v1546
  %1580 = vmatpush.bf16.msra.mxu0 %v1544
  %1581 = vmatpush.bf16.msra.mxu0 %v1542
  %1582 = vmatpush.bf16.msra.mxu0 %v1540
  %1583 = vmatmul.bf16.gmra.mxu0 %v1552
  %v1584 = vpop.f32.mrf.mxu0
  %v1585 = vadd.f32 0.0, %v1584
  %v1586 = vpop.f32.mrf.mxu0
  %v1587 = vadd.f32 0.0, %v1586
  %1588 = vmatmul.bf16.gmra.mxu0 %v1555
  %v1589 = vpop.f32.mrf.mxu0
  %v1590 = vadd.f32 0.0, %v1589
  %v1591 = vpop.f32.mrf.mxu0
  %v1592 = vadd.f32 0.0, %v1591
  %1593 = vmatmul.bf16.gmra.mxu0 %v1558
  %v1594 = vpop.f32.mrf.mxu0
  %v1595 = vadd.f32 0.0, %v1594
  %v1596 = vpop.f32.mrf.mxu0
  %v1597 = vadd.f32 0.0, %v1596
  %1598 = vmatmul.bf16.gmra.mxu0 %v1561
  %v1599 = vpop.f32.mrf.mxu0
  %v1600 = vadd.f32 0.0, %v1599
  %v1601 = vpop.f32.mrf.mxu0
  %v1602 = vadd.f32 0.0, %v1601
  %1603 = vmatmul.bf16.gmra.mxu0 %v1564
  %v1604 = vpop.f32.mrf.mxu0
  %v1605 = vadd.f32 0.0, %v1604
  %v1606 = vpop.f32.mrf.mxu0
  %v1607 = vadd.f32 0.0, %v1606
  %1608 = vmatmul.bf16.gmra.mxu0 %v1567
  %v1609 = vpop.f32.mrf.mxu0
  %v1610 = vadd.f32 0.0, %v1609
  %v1611 = vpop.f32.mrf.mxu0
  %v1612 = vadd.f32 0.0, %v1611
  %1613 = vmatmul.bf16.gmra.mxu0 %v1570
  %v1614 = vpop.f32.mrf.mxu0
  %v1615 = vadd.f32 0.0, %v1614
  %v1616 = vpop.f32.mrf.mxu0
  %v1617 = vadd.f32 0.0, %v1616
  %1618 = vmatmul.bf16.gmra.mxu0 %v1573
  %v1619 = vpop.f32.mrf.mxu0
  %v1620 = vadd.f32 0.0, %v1619
  %v1621 = vpop.f32.mrf.mxu0
  %v1622 = vadd.f32 0.0, %v1621
  %1623 = vdwg.mxu0
  %v1624 = vadd.f32 %v1443, %v1585
  %v1625 = vadd.f32 %v1444, %v1587
  %v1626 = vadd.f32 %v1445, %v1590
  %v1627 = vadd.f32 %v1446, %v1592
  %v1628 = vadd.f32 %v1447, %v1595
  %v1629 = vadd.f32 %v1448, %v1597
  %v1630 = vadd.f32 %v1449, %v1600
  %v1631 = vadd.f32 %v1450, %v1602
  %v1632 = vadd.f32 %v1451, %v1605
  %v1633 = vadd.f32 %v1452, %v1607
  %v1634 = vadd.f32 %v1453, %v1610
  %v1635 = vadd.f32 %v1454, %v1612
  %v1636 = vadd.f32 %v1455, %v1615
  %v1637 = vadd.f32 %v1456, %v1617
  %v1638 = vadd.f32 %v1457, %v1620
  %v1639 = vadd.f32 %v1458, %v1622
  %vm1640 = vcmask 261120
  %v1641 = vsel %vm1640, %v1624, 0.0
  %1642 = vadd.xlane.f32.xlu0 %v1641
  %v1643 = vpop.xlane.xlu0 %1642
  %v1644 = vsel %vm1640, %v1625, 0.0
  %1645 = vadd.xlane.f32.xlu0 %v1644
  %v1646 = vpop.xlane.xlu0 %1645
  %v1647 = vsel %vm1640, %v1626, 0.0
  %1648 = vadd.xlane.f32.xlu0 %v1647
  %v1649 = vpop.xlane.xlu0 %1648
  %v1650 = vsel %vm1640, %v1627, 0.0
  %1651 = vadd.xlane.f32.xlu0 %v1650
  %v1652 = vpop.xlane.xlu0 %1651
  %v1653 = vsel %vm1640, %v1628, 0.0
  %1654 = vadd.xlane.f32.xlu0 %v1653
  %v1655 = vpop.xlane.xlu0 %1654
  %v1656 = vsel %vm1640, %v1629, 0.0
  %1657 = vadd.xlane.f32.xlu0 %v1656
  %v1658 = vpop.xlane.xlu0 %1657
  %v1659 = vsel %vm1640, %v1630, 0.0
  %1660 = vadd.xlane.f32.xlu0 %v1659
  %v1661 = vpop.xlane.xlu0 %1660
  %v1662 = vsel %vm1640, %v1631, 0.0
  %1663 = vadd.xlane.f32.xlu0 %v1662
  %v1664 = vpop.xlane.xlu0 %1663
  %v1665 = vsel %vm1640, %v1632, 0.0
  %1666 = vadd.xlane.f32.xlu0 %v1665
  %v1667 = vpop.xlane.xlu0 %1666
  %v1668 = vsel %vm1640, %v1633, 0.0
  %1669 = vadd.xlane.f32.xlu0 %v1668
  %v1670 = vpop.xlane.xlu0 %1669
  %v1671 = vsel %vm1640, %v1634, 0.0
  %1672 = vadd.xlane.f32.xlu0 %v1671
  %v1673 = vpop.xlane.xlu0 %1672
  %v1674 = vsel %vm1640, %v1635, 0.0
  %1675 = vadd.xlane.f32.xlu0 %v1674
  %v1676 = vpop.xlane.xlu0 %1675
  %v1677 = vsel %vm1640, %v1636, 0.0
  %1678 = vadd.xlane.f32.xlu0 %v1677
  %v1679 = vpop.xlane.xlu0 %1678
  %v1680 = vsel %vm1640, %v1637, 0.0
  %1681 = vadd.xlane.f32.xlu0 %v1680
  %v1682 = vpop.xlane.xlu0 %1681
  %v1683 = vsel %vm1640, %v1638, 0.0
  %1684 = vadd.xlane.f32.xlu0 %v1683
  %v1685 = vpop.xlane.xlu0 %1684
  %v1686 = vsel %vm1640, %v1639, 0.0
  %1687 = vadd.xlane.f32.xlu0 %v1686
  %v1688 = vpop.xlane.xlu0 %1687
  %v1689 = vmul.f32 %v1624, %v1624
  %v1690 = vmul.f32 %v1625, %v1625
  %v1691 = vmul.f32 %v1626, %v1626
  %v1692 = vmul.f32 %v1627, %v1627
  %v1693 = vmul.f32 %v1628, %v1628
  %v1694 = vmul.f32 %v1629, %v1629
  %v1695 = vmul.f32 %v1630, %v1630
  %v1696 = vmul.f32 %v1631, %v1631
  %v1697 = vmul.f32 %v1632, %v1632
  %v1698 = vmul.f32 %v1633, %v1633
  %v1699 = vmul.f32 %v1634, %v1634
  %v1700 = vmul.f32 %v1635, %v1635
  %v1701 = vmul.f32 %v1636, %v1636
  %v1702 = vmul.f32 %v1637, %v1637
  %v1703 = vmul.f32 %v1638, %v1638
  %v1704 = vmul.f32 %v1639, %v1639
  %v1705 = vsel %vm1640, %v1689, 0.0
  %1706 = vadd.xlane.f32.xlu0 %v1705
  %v1707 = vpop.xlane.xlu0 %1706
  %v1708 = vsel %vm1640, %v1690, 0.0
  %1709 = vadd.xlane.f32.xlu0 %v1708
  %v1710 = vpop.xlane.xlu0 %1709
  %v1711 = vsel %vm1640, %v1691, 0.0
  %1712 = vadd.xlane.f32.xlu0 %v1711
  %v1713 = vpop.xlane.xlu0 %1712
  %v1714 = vsel %vm1640, %v1692, 0.0
  %1715 = vadd.xlane.f32.xlu0 %v1714
  %v1716 = vpop.xlane.xlu0 %1715
  %v1717 = vsel %vm1640, %v1693, 0.0
  %1718 = vadd.xlane.f32.xlu0 %v1717
  %v1719 = vpop.xlane.xlu0 %1718
  %v1720 = vsel %vm1640, %v1694, 0.0
  %1721 = vadd.xlane.f32.xlu0 %v1720
  %v1722 = vpop.xlane.xlu0 %1721
  %v1723 = vsel %vm1640, %v1695, 0.0
  %1724 = vadd.xlane.f32.xlu0 %v1723
  %v1725 = vpop.xlane.xlu0 %1724
  %v1726 = vsel %vm1640, %v1696, 0.0
  %1727 = vadd.xlane.f32.xlu0 %v1726
  %v1728 = vpop.xlane.xlu0 %1727
  %v1729 = vsel %vm1640, %v1697, 0.0
  %1730 = vadd.xlane.f32.xlu0 %v1729
  %v1731 = vpop.xlane.xlu0 %1730
  %v1732 = vsel %vm1640, %v1698, 0.0
  %1733 = vadd.xlane.f32.xlu0 %v1732
  %v1734 = vpop.xlane.xlu0 %1733
  %v1735 = vsel %vm1640, %v1699, 0.0
  %1736 = vadd.xlane.f32.xlu0 %v1735
  %v1737 = vpop.xlane.xlu0 %1736
  %v1738 = vsel %vm1640, %v1700, 0.0
  %1739 = vadd.xlane.f32.xlu0 %v1738
  %v1740 = vpop.xlane.xlu0 %1739
  %v1741 = vsel %vm1640, %v1701, 0.0
  %1742 = vadd.xlane.f32.xlu0 %v1741
  %v1743 = vpop.xlane.xlu0 %1742
  %v1744 = vsel %vm1640, %v1702, 0.0
  %1745 = vadd.xlane.f32.xlu0 %v1744
  %v1746 = vpop.xlane.xlu0 %1745
  %v1747 = vsel %vm1640, %v1703, 0.0
  %1748 = vadd.xlane.f32.xlu0 %v1747
  %v1749 = vpop.xlane.xlu0 %1748
  %v1750 = vsel %vm1640, %v1704, 0.0
  %1751 = vadd.xlane.f32.xlu0 %v1750
  %v1752 = vpop.xlane.xlu0 %1751
  %v1753 = vadd.f32 %v1643, %v1655
  %v1754 = vadd.f32 %v1646, %v1658
  %v1755 = vadd.f32 %v1649, %v1661
  %v1756 = vadd.f32 %v1652, %v1664
  %v1757 = vadd.f32 %v1753, %v1667
  %v1758 = vadd.f32 %v1754, %v1670
  %v1759 = vadd.f32 %v1755, %v1673
  %v1760 = vadd.f32 %v1756, %v1676
  %v1761 = vadd.f32 %v1757, %v1679
  %v1762 = vadd.f32 %v1758, %v1682
  %v1763 = vadd.f32 %v1759, %v1685
  %v1764 = vadd.f32 %v1760, %v1688
  %v1765 = vadd.f32 %v1707, %v1719
  %v1766 = vadd.f32 %v1710, %v1722
  %v1767 = vadd.f32 %v1713, %v1725
  %v1768 = vadd.f32 %v1716, %v1728
  %v1769 = vadd.f32 %v1765, %v1731
  %v1770 = vadd.f32 %v1766, %v1734
  %v1771 = vadd.f32 %v1767, %v1737
  %v1772 = vadd.f32 %v1768, %v1740
  %v1773 = vadd.f32 %v1769, %v1743
  %v1774 = vadd.f32 %v1770, %v1746
  %v1775 = vadd.f32 %v1771, %v1749
  %v1776 = vadd.f32 %v1772, %v1752
  %v1777 = vmul.f32 %v1761, 0.0078125
  %v1778 = vmul.f32 %v1762, 0.0078125
  %v1779 = vmul.f32 %v1763, 0.0078125
  %v1780 = vmul.f32 %v1764, 0.0078125
  %v1781 = vmul.f32 %v1773, 0.0078125
  %v1782 = vmul.f32 %v1774, 0.0078125
  %v1783 = vmul.f32 %v1775, 0.0078125
  %v1784 = vmul.f32 %v1776, 0.0078125
  %v1785 = vmul.f32 %v1777, %v1777
  %v1786 = vmul.f32 %v1778, %v1778
  %v1787 = vmul.f32 %v1779, %v1779
  %v1788 = vmul.f32 %v1780, %v1780
  %v1789 = vsub.f32 %v1781, %v1785
  %v1790 = vsub.f32 %v1782, %v1786
  %v1791 = vsub.f32 %v1783, %v1787
  %v1792 = vsub.f32 %v1784, %v1788
  %v1793 = vmax.f32 %v1789, 0.0
  %v1794 = vmax.f32 %v1790, 0.0
  %v1795 = vmax.f32 %v1791, 0.0
  %v1796 = vmax.f32 %v1792, 0.0
  %v1797 = vld [vmem:[%s2] sm:$0xff]
  %v1798 = vld [vmem:[%s2 + $0x8] sm:$0xff]
  %v1799 = vld [vmem:[%s2 + $0x10] sm:$0xff]
  %v1800 = vld [vmem:[%s2 + $0x18] sm:$0xff]
  %v1801 = vadd.f32 %v1793, 1e-05
  %v1802 = vadd.f32 %v1794, 1e-05
  %v1803 = vadd.f32 %v1795, 1e-05
  %v1804 = vadd.f32 %v1796, 1e-05
  %v1805 = vrsqrt.pop %v1801
  %v1806 = vmul.f32 %v1805, %v1801
  %v1807 = vmul.f32 %v1806, %v1805
  %v1808 = vmul.f32 0.5, %v1807
  %v1809 = vsub.f32 1.5, %v1808
  %v1810 = vmul.f32 %v1805, %v1809
  %vm1811 = vweird.f32 %v1801
  %vm1812 = vweird.f32 %v1805
  %vm1813 = vmor %vm1811, %vm1812
  %v1814 = vsel %vm1813, %v1805, %v1810
  %v1815 = vrsqrt.pop %v1802
  %v1816 = vmul.f32 %v1815, %v1802
  %v1817 = vmul.f32 %v1816, %v1815
  %v1818 = vmul.f32 0.5, %v1817
  %v1819 = vsub.f32 1.5, %v1818
  %v1820 = vmul.f32 %v1815, %v1819
  %vm1821 = vweird.f32 %v1802
  %vm1822 = vweird.f32 %v1815
  %vm1823 = vmor %vm1821, %vm1822
  %v1824 = vsel %vm1823, %v1815, %v1820
  %v1825 = vrsqrt.pop %v1803
  %v1826 = vmul.f32 %v1825, %v1803
  %v1827 = vmul.f32 %v1826, %v1825
  %v1828 = vmul.f32 0.5, %v1827
  %v1829 = vsub.f32 1.5, %v1828
  %v1830 = vmul.f32 %v1825, %v1829
  %vm1831 = vweird.f32 %v1803
  %vm1832 = vweird.f32 %v1825
  %vm1833 = vmor %vm1831, %vm1832
  %v1834 = vsel %vm1833, %v1825, %v1830
  %v1835 = vrsqrt.pop %v1804
  %v1836 = vmul.f32 %v1835, %v1804
  %v1837 = vmul.f32 %v1836, %v1835
  %v1838 = vmul.f32 0.5, %v1837
  %v1839 = vsub.f32 1.5, %v1838
  %v1840 = vmul.f32 %v1835, %v1839
  %vm1841 = vweird.f32 %v1804
  %vm1842 = vweird.f32 %v1835
  %vm1843 = vmor %vm1841, %vm1842
  %v1844 = vsel %vm1843, %v1835, %v1840
  %v1845 = vmul.f32 %v1797, %v1814
  %v1846 = vmul.f32 %v1798, %v1824
  %v1847 = vmul.f32 %v1799, %v1834
  %v1848 = vmul.f32 %v1800, %v1844
  %v1849 = vld [vmem:[%s3] sm:$0xff]
  %v1850 = vld [vmem:[%s3 + $0x8] sm:$0xff]
  %v1851 = vld [vmem:[%s3 + $0x10] sm:$0xff]
  %v1852 = vld [vmem:[%s3 + $0x18] sm:$0xff]
  %v1853 = vmul.f32 %v1777, %v1845
  %v1854 = vmul.f32 %v1778, %v1846
  %v1855 = vmul.f32 %v1779, %v1847
  %v1856 = vmul.f32 %v1780, %v1848
  %v1857 = vsub.f32 %v1849, %v1853
  %v1858 = vsub.f32 %v1850, %v1854
  %v1859 = vsub.f32 %v1851, %v1855
  %v1860 = vsub.f32 %v1852, %v1856
  %1862 = vset.pattern.permute.xlu0 0
  %1863 = vperm.xlu0 %1862, %v1845
  %v1864 = vpop.permute.xlu0 %1863
  %1867 = vset.pattern.permute.xlu0 0
  %1868 = vperm.xlu0 %1867, %v1846
  %v1869 = vpop.permute.xlu0 %1868
  %1872 = vset.pattern.permute.xlu0 0
  %1873 = vperm.xlu0 %1872, %v1847
  %v1874 = vpop.permute.xlu0 %1873
  %1877 = vset.pattern.permute.xlu0 0
  %1878 = vperm.xlu0 %1877, %v1848
  %v1879 = vpop.permute.xlu0 %1878
  %v1881 = vmul.f32 %v1624, %v1864
  %v1882 = vmul.f32 %v1625, %v1869
  %v1883 = vmul.f32 %v1626, %v1874
  %v1884 = vmul.f32 %v1627, %v1879
  %v1885 = vmul.f32 %v1628, %v1864
  %v1886 = vmul.f32 %v1629, %v1869
  %v1887 = vmul.f32 %v1630, %v1874
  %v1888 = vmul.f32 %v1631, %v1879
  %v1889 = vmul.f32 %v1632, %v1864
  %v1890 = vmul.f32 %v1633, %v1869
  %v1891 = vmul.f32 %v1634, %v1874
  %v1892 = vmul.f32 %v1635, %v1879
  %v1893 = vmul.f32 %v1636, %v1864
  %v1894 = vmul.f32 %v1637, %v1869
  %v1895 = vmul.f32 %v1638, %v1874
  %v1896 = vmul.f32 %v1639, %v1879
  %1898 = vset.pattern.permute.xlu0 0
  %1899 = vperm.xlu0 %1898, %v1857
  %v1900 = vpop.permute.xlu0 %1899
  %1903 = vset.pattern.permute.xlu0 0
  %1904 = vperm.xlu0 %1903, %v1858
  %v1905 = vpop.permute.xlu0 %1904
  %1908 = vset.pattern.permute.xlu0 0
  %1909 = vperm.xlu0 %1908, %v1859
  %v1910 = vpop.permute.xlu0 %1909
  %1913 = vset.pattern.permute.xlu0 0
  %1914 = vperm.xlu0 %1913, %v1860
  %v1915 = vpop.permute.xlu0 %1914
  %v1917 = vadd.f32 %v1881, %v1900
  %v1918 = vadd.f32 %v1882, %v1905
  %v1919 = vadd.f32 %v1883, %v1910
  %v1920 = vadd.f32 %v1884, %v1915
  %v1921 = vadd.f32 %v1885, %v1900
  %v1922 = vadd.f32 %v1886, %v1905
  %v1923 = vadd.f32 %v1887, %v1910
  %v1924 = vadd.f32 %v1888, %v1915
  %v1925 = vadd.f32 %v1889, %v1900
  %v1926 = vadd.f32 %v1890, %v1905
  %v1927 = vadd.f32 %v1891, %v1910
  %v1928 = vadd.f32 %v1892, %v1915
  %v1929 = vadd.f32 %v1893, %v1900
  %v1930 = vadd.f32 %v1894, %v1905
  %v1931 = vadd.f32 %v1895, %v1910
  %v1932 = vadd.f32 %v1896, %v1915
  %v1933 = vmax.f32 %v1917, 0.0
  %v1934 = vmax.f32 %v1918, 0.0
  %v1935 = vmax.f32 %v1919, 0.0
  %v1936 = vmax.f32 %v1920, 0.0
  %v1937 = vmax.f32 %v1921, 0.0
  %v1938 = vmax.f32 %v1922, 0.0
  %v1939 = vmax.f32 %v1923, 0.0
  %v1940 = vmax.f32 %v1924, 0.0
  %v1941 = vmax.f32 %v1925, 0.0
  %v1942 = vmax.f32 %v1926, 0.0
  %v1943 = vmax.f32 %v1927, 0.0
  %v1944 = vmax.f32 %v1928, 0.0
  %v1945 = vmax.f32 %v1929, 0.0
  %v1946 = vmax.f32 %v1930, 0.0
  %v1947 = vmax.f32 %v1931, 0.0
  %v1948 = vmax.f32 %v1932, 0.0
  %v1949 = vpack.c.bf16 %v1933, %v1933
  %v1950 = vpack.c.bf16 %v1934, %v1934
  %v1951 = vpack.c.bf16 %v1935, %v1935
  %v1952 = vpack.c.bf16 %v1936, %v1936
  %v1953 = vpack.c.bf16 %v1937, %v1937
  %v1954 = vpack.c.bf16 %v1938, %v1938
  %v1955 = vpack.c.bf16 %v1939, %v1939
  %v1956 = vpack.c.bf16 %v1940, %v1940
  %v1957 = vpack.c.bf16 %v1941, %v1941
  %v1958 = vpack.c.bf16 %v1942, %v1942
  %v1959 = vpack.c.bf16 %v1943, %v1943
  %v1960 = vpack.c.bf16 %v1944, %v1944
  %v1961 = vpack.c.bf16 %v1945, %v1945
  %v1962 = vpack.c.bf16 %v1946, %v1946
  %v1963 = vpack.c.bf16 %v1947, %v1947
  %v1964 = vpack.c.bf16 %v1948, %v1948
  %vm1965 = vcmask 257024
  %1966 = vst.msk [vmem:[%s4] sm:$0xf] %vm1965, %v1949
  %1967 = vst.msk [vmem:[%s4 + $0x4] sm:$0xf] %vm1965, %v1950
  %1968 = vst.msk [vmem:[%s4 + $0x8] sm:$0xf] %vm1965, %v1951
  %1969 = vst.msk [vmem:[%s4 + $0xc] sm:$0xf] %vm1965, %v1952
  %1970 = vst.msk [vmem:[%s4 + $0x10] sm:$0xf] %vm1965, %v1953
  %1971 = vst.msk [vmem:[%s4 + $0x14] sm:$0xf] %vm1965, %v1954
  %1972 = vst.msk [vmem:[%s4 + $0x18] sm:$0xf] %vm1965, %v1955
  %1973 = vst.msk [vmem:[%s4 + $0x1c] sm:$0xf] %vm1965, %v1956
  %1974 = vst.msk [vmem:[%s4 + $0x20] sm:$0xf] %vm1965, %v1957
  %1975 = vst.msk [vmem:[%s4 + $0x24] sm:$0xf] %vm1965, %v1958
  %1976 = vst.msk [vmem:[%s4 + $0x28] sm:$0xf] %vm1965, %v1959
  %1977 = vst.msk [vmem:[%s4 + $0x2c] sm:$0xf] %vm1965, %v1960
  %1978 = vst.msk [vmem:[%s4 + $0x30] sm:$0xf] %vm1965, %v1961
  %1979 = vst.msk [vmem:[%s4 + $0x34] sm:$0xf] %vm1965, %v1962
  %1980 = vst.msk [vmem:[%s4 + $0x38] sm:$0xf] %vm1965, %v1963
  %1981 = vst.msk [vmem:[%s4 + $0x3c] sm:$0xf] %vm1965, %v1964
  // Predicated region
  $region18: #{decoder_forward.4} parent=0 // pred_check
    _
  $region19: #{decoder_forward.4} parent=0 // pred_check_branch
    %1983 = sbr.rel (0) target = $region21
  $region20: #{decoder_forward.4} parent=0 // pred_region
    _
  $region21: #{decoder_forward.4} parent=0 // pred_fallthru
    _
  // Predicated region
  $region22: #{decoder_forward.4} parent=0 // pred_check
    _
  $region23: #{decoder_forward.4} parent=0 // pred_check_branch
    %1985 = sbr.rel (0) target = $region25
  $region24: #{decoder_forward.4} parent=0 // pred_region
    _
  $region25: #{decoder_forward.4} parent=0 // pred_fallthru
    _

// kernel: decoder_forward.5
$region0: #{decoder_forward.5}
  #allocation0 [shape = 'u32[]', space=smem, size = 0x4, offset = 0x4, fixed_abs, tag = 'smem constant byte address 0x4 - core index']
  #allocation1 [shape = 'u32[72,128]{1,0:T(1,128)}', space=vmem, size = 0x9000, scoped, tag = 'internal scratch']
  %s0 = inlined_call_operand.vmem [shape: bf16[32,128], index: 0, kind: input, shape index: {}]
  %s1 = inlined_call_operand.vmem [shape: bf16[9,64,32], index: 1, kind: input, shape index: {}]
  %s2 = inlined_call_operand.vmem [shape: f32[16,1], index: 2, kind: input, shape index: {}]
  %s3 = inlined_call_operand.vmem [shape: f32[16,1], index: 3, kind: input, shape index: {}]
  %s4 = inlined_call_operand.vmem [shape: bf16[64,128], index: 4, kind: output, shape index: {}]
  %s5 = sld [smem:[#allocation0]]
  $region26: #{decoder_forward.5} parent=0
    _
  %s7 = ssub.s32 1, %s5
  %s8 = scalar_select 0, %s7, %s5
  // Predicated region
  $region2: #{decoder_forward.5} parent=0 // pred_check
    _
  $region3: #{decoder_forward.5} parent=0 // pred_check_branch
    %10 = sbr.rel (0) target = $region5
  $region4: #{decoder_forward.5} parent=0 // pred_region
    _
  $region5: #{decoder_forward.5} parent=0 // pred_fallthru
    _
  // Predicated region
  $region6: #{decoder_forward.5} parent=0 // pred_check
    _
  $region7: #{decoder_forward.5} parent=0 // pred_check_branch
    %12 = sbr.rel (0) target = $region9
  $region8: #{decoder_forward.5} parent=0 // pred_region
    _
  $region9: #{decoder_forward.5} parent=0 // pred_fallthru
    _
  // Predicated region
  $region10: #{decoder_forward.5} parent=0 // pred_check
    _
  $region11: #{decoder_forward.5} parent=0 // pred_check_branch
    %14 = sbr.rel (0) target = $region13
  $region12: #{decoder_forward.5} parent=0 // pred_region
    _
  $region13: #{decoder_forward.5} parent=0 // pred_fallthru
    _
  // Predicated region
  $region14: #{decoder_forward.5} parent=0 // pred_check
    _
  $region15: #{decoder_forward.5} parent=0 // pred_check_branch
    %16 = sbr.rel (0) target = $region17
  $region16: #{decoder_forward.5} parent=0 // pred_region
    _
  $region17: #{decoder_forward.5} parent=0 // pred_fallthru
    _
  %v20 = vld [vmem:[%s0] sm:$0xf]
  %v21 = vld [vmem:[%s0 + $0x4] sm:$0xf]
  %v22 = vld [vmem:[%s0 + $0x8] sm:$0xf]
  %v23 = vld [vmem:[%s0 + $0xc] sm:$0xf]
  %v28 = vunpack.c.l.b16 %v20
  %v29 = vunpack.c.l.b16 %v21
  %v30 = vunpack.c.l.b16 %v22
  %v31 = vunpack.c.l.b16 %v23
  %v32 = vpack.c.b16 %v29, %v28
  %v33 = vpack.c.b16 %v31, %v30
  %34 = vrot.lane.b32.xlu0 %v32, 9
  %v35 = vpop.permute.xlu0 %34
  %36 = vrot.lane.b32.xlu0 %v33, 9
  %v37 = vpop.permute.xlu0 %36
  %vm38 = vcmask 72704
  %v41 = vsel %vm38, 0, %v35
  %v44 = vsel %vm38, 0, %v37
  %v46 = vsel %vm38, %v35, 0
  %v48 = vsel %vm38, %v37, 0
  %v50 = vlaneseq
  %v51 = vand.u32 %v50, 127
  %v52 = vand.u32 %v51, 7
  %v53 = vshra.s32 %v51, 3
  %v54 = vand.u32 %v53, 7
  %vm55 = vcmp.ge.s32.totalorder %v54, 1
  %vm56 = vcmp.ge.s32.totalorder %v52, 1
  %vm57 = vmand %vm55, %vm56
  %v58 = vsel %vm57, 1, 0
  %vm59 = vcmp.eq.s32.totalorder %v58, 1
  %vm60 = vmpackc.low %vm59, %vm59
  %v61 = vsel %vm60, 65537, 0
  %v62 = vperm.slane %v61, 0
  %v63 = vunpack.c.l.b16 %v62
  %v64 = vunpack.c.h.b16 %v62
  %v65 = vunpack.c.l.b16 0
  %v66 = vunpack.c.h.b16 0
  %vm67 = vcmp.ne.s32.totalorder %v63, %v65
  %vm68 = vcmp.ne.s32.totalorder %v64, %v66
  %vm69 = vmpackc.low %vm68, %vm67
  %v70 = vsel %vm69, %v41, 0
  %v71 = vsel %vm69, %v44, 0
  %v72 = vld [vmem:[%s1] sm:$0xf]
  %v73 = vld [vmem:[%s1 + $0x4] sm:$0xf]
  %v74 = vld [vmem:[%s1 + $0x8] sm:$0xf]
  %v75 = vld [vmem:[%s1 + $0xc] sm:$0xf]
  %v76 = vld [vmem:[%s1 + $0x10] sm:$0xf]
  %v77 = vld [vmem:[%s1 + $0x14] sm:$0xf]
  %v78 = vld [vmem:[%s1 + $0x18] sm:$0xf]
  %v79 = vld [vmem:[%s1 + $0x1c] sm:$0xf]
  %v80 = vsel %vm55, 1, 0
  %vm81 = vcmp.eq.s32.totalorder %v80, 1
  %vm82 = vmpackc.low %vm81, %vm81
  %v83 = vsel %vm82, 65537, 0
  %v84 = vperm.slane %v83, 0
  %85 = vrot.lane.b32.xlu0 %v84, 1
  %v86 = vpop.permute.xlu0 %85
  %v87 = vunpack.c.l.b16 %v86
  %v88 = vunpack.c.h.b16 %v86
  %v89 = vunpack.c.l.b16 0
  %v90 = vunpack.c.h.b16 0
  %vm91 = vcmp.ne.s32.totalorder %v87, %v89
  %vm92 = vcmp.ne.s32.totalorder %v88, %v90
  %vm93 = vmpackc.low %vm92, %vm91
  %v94 = vsel %vm93, %v41, 0
  %v95 = vsel %vm93, %v46, 0
  %v96 = vsel %vm93, %v44, 0
  %v97 = vsel %vm93, %v48, 0
  %s98 = scalar_lea.vmem %s1, 32
  %v99 = vld [vmem:[%s98] sm:$0xf]
  %v100 = vld [vmem:[%s98 + $0x4] sm:$0xf]
  %v101 = vld [vmem:[%s98 + $0x8] sm:$0xf]
  %v102 = vld [vmem:[%s98 + $0xc] sm:$0xf]
  %v103 = vld [vmem:[%s98 + $0x10] sm:$0xf]
  %v104 = vld [vmem:[%s98 + $0x14] sm:$0xf]
  %v105 = vld [vmem:[%s98 + $0x18] sm:$0xf]
  %v106 = vld [vmem:[%s98 + $0x1c] sm:$0xf]
  %v115 = vunpack.c.l.b16 %v99
  %v116 = vunpack.c.l.b16 %v100
  %v117 = vunpack.c.l.b16 %v101
  %v118 = vunpack.c.l.b16 %v102
  %v119 = vunpack.c.l.b16 %v103
  %v120 = vunpack.c.l.b16 %v104
  %v121 = vunpack.c.l.b16 %v105
  %v122 = vunpack.c.l.b16 %v106
  %v123 = vpack.c.b16 %v116, %v115
  %v124 = vpack.c.b16 %v118, %v117
  %v125 = vpack.c.b16 %v120, %v119
  %v126 = vpack.c.b16 %v122, %v121
  %131 = vrot.lane.b32.xlu0 %v94, 127
  %v132 = vpop.permute.xlu0 %131
  %133 = vrot.lane.b32.xlu0 %v95, 127
  %v134 = vpop.permute.xlu0 %133
  %135 = vrot.lane.b32.xlu0 %v96, 127
  %v136 = vpop.permute.xlu0 %135
  %137 = vrot.lane.b32.xlu0 %v97, 127
  %v138 = vpop.permute.xlu0 %137
  %vm139 = vcmask 1039360
  %v140 = vsel %vm139, %v132, %v134
  %v141 = vsel %vm139, %v136, %v138
  %vm144 = vcmask 261120
  %v146 = vsel %vm144, %v123, 0
  %v149 = vsel %vm144, %v124, 0
  %v152 = vsel %vm144, %v125, 0
  %v155 = vsel %vm144, %v126, 0
  %157 = vmatpush.bf16.msra.mxu0 0
  %158 = vmatpush.bf16.msra.mxu0 0
  %159 = vmatpush.bf16.msra.mxu0 0
  %160 = vmatpush.bf16.msra.mxu0 0
  %161 = vmatpush.bf16.msra.mxu0 0
  %162 = vmatpush.bf16.msra.mxu0 0
  %163 = vmatpush.bf16.msra.mxu0 %v141
  %164 = vmatpush.bf16.msra.mxu0 %v140
  %165 = vmatmul.bf16.gmra.mxu0 %v146
  %v166 = vpop.f32.mrf.mxu0
  %v167 = vadd.f32 0.0, %v166
  %v168 = vpop.f32.mrf.mxu0
  %v169 = vadd.f32 0.0, %v168
  %170 = vmatmul.bf16.gmra.mxu0 %v149
  %v171 = vpop.f32.mrf.mxu0
  %v172 = vadd.f32 0.0, %v171
  %v173 = vpop.f32.mrf.mxu0
  %v174 = vadd.f32 0.0, %v173
  %175 = vmatmul.bf16.gmra.mxu0 %v152
  %v176 = vpop.f32.mrf.mxu0
  %v177 = vadd.f32 0.0, %v176
  %v178 = vpop.f32.mrf.mxu0
  %v179 = vadd.f32 0.0, %v178
  %180 = vmatmul.bf16.gmra.mxu0 %v155
  %v181 = vpop.f32.mrf.mxu0
  %v182 = vadd.f32 0.0, %v181
  %v183 = vpop.f32.mrf.mxu0
  %v184 = vadd.f32 0.0, %v183
  %185 = vdwg.mxu0
  %v194 = vunpack.c.l.b16 %v72
  %v195 = vunpack.c.l.b16 %v73
  %v196 = vunpack.c.l.b16 %v74
  %v197 = vunpack.c.l.b16 %v75
  %v198 = vunpack.c.l.b16 %v76
  %v199 = vunpack.c.l.b16 %v77
  %v200 = vunpack.c.l.b16 %v78
  %v201 = vunpack.c.l.b16 %v79
  %v202 = vpack.c.b16 %v195, %v194
  %v203 = vpack.c.b16 %v197, %v196
  %v204 = vpack.c.b16 %v199, %v198
  %v205 = vpack.c.b16 %v201, %v200
  %v207 = vsel %vm144, %v202, 0
  %v210 = vsel %vm144, %v203, 0
  %v213 = vsel %vm144, %v204, 0
  %v216 = vsel %vm144, %v205, 0
  %218 = vmatpush.bf16.msra.mxu0 0
  %219 = vmatpush.bf16.msra.mxu0 0
  %220 = vmatpush.bf16.msra.mxu0 0
  %221 = vmatpush.bf16.msra.mxu0 0
  %222 = vmatpush.bf16.msra.mxu0 0
  %223 = vmatpush.bf16.msra.mxu0 0
  %224 = vmatpush.bf16.msra.mxu0 %v71
  %225 = vmatpush.bf16.msra.mxu0 %v70
  %226 = vmatmul.bf16.gmra.mxu0 %v207
  %v227 = vpop.f32.mrf.mxu0
  %v228 = vadd.f32 %v167, %v227
  %v229 = vpop.f32.mrf.mxu0
  %v230 = vadd.f32 %v169, %v229
  %231 = vmatmul.bf16.gmra.mxu0 %v210
  %v232 = vpop.f32.mrf.mxu0
  %v233 = vadd.f32 %v172, %v232
  %v234 = vpop.f32.mrf.mxu0
  %v235 = vadd.f32 %v174, %v234
  %236 = vmatmul.bf16.gmra.mxu0 %v213
  %v237 = vpop.f32.mrf.mxu0
  %v238 = vadd.f32 %v177, %v237
  %v239 = vpop.f32.mrf.mxu0
  %v240 = vadd.f32 %v179, %v239
  %241 = vmatmul.bf16.gmra.mxu0 %v216
  %v242 = vpop.f32.mrf.mxu0
  %v243 = vadd.f32 %v182, %v242
  %v244 = vpop.f32.mrf.mxu0
  %v245 = vadd.f32 %v184, %v244
  %246 = vdwg.mxu0
  %vm247 = vcmp.le.s32.totalorder %v52, 6
  %vm248 = vmand %vm55, %vm247
  %v249 = vsel %vm248, 1, 0
  %vm250 = vcmp.eq.s32.totalorder %v249, 1
  %vm251 = vmpackc.low %vm250, %vm250
  %v252 = vsel %vm251, 65537, 0
  %v253 = vperm.slane %v252, 0
  %254 = vrot.lane.b32.xlu0 %v253, 2
  %v255 = vpop.permute.xlu0 %254
  %v256 = vunpack.c.l.b16 %v255
  %v257 = vunpack.c.h.b16 %v255
  %v258 = vunpack.c.l.b16 0
  %v259 = vunpack.c.h.b16 0
  %vm260 = vcmp.ne.s32.totalorder %v256, %v258
  %vm261 = vcmp.ne.s32.totalorder %v257, %v259
  %vm262 = vmpackc.low %vm261, %vm260
  %v263 = vsel %vm262, %v41, 0
  %v264 = vsel %vm262, %v46, 0
  %v265 = vsel %vm262, %v44, 0
  %v266 = vsel %vm262, %v48, 0
  %s267 = scalar_lea.vmem %s1, 64
  %v268 = vld [vmem:[%s267] sm:$0xf]
  %v269 = vld [vmem:[%s267 + $0x4] sm:$0xf]
  %v270 = vld [vmem:[%s267 + $0x8] sm:$0xf]
  %v271 = vld [vmem:[%s267 + $0xc] sm:$0xf]
  %v272 = vld [vmem:[%s267 + $0x10] sm:$0xf]
  %v273 = vld [vmem:[%s267 + $0x14] sm:$0xf]
  %v274 = vld [vmem:[%s267 + $0x18] sm:$0xf]
  %v275 = vld [vmem:[%s267 + $0x1c] sm:$0xf]
  %v284 = vunpack.c.l.b16 %v268
  %v285 = vunpack.c.l.b16 %v269
  %v286 = vunpack.c.l.b16 %v270
  %v287 = vunpack.c.l.b16 %v271
  %v288 = vunpack.c.l.b16 %v272
  %v289 = vunpack.c.l.b16 %v273
  %v290 = vunpack.c.l.b16 %v274
  %v291 = vunpack.c.l.b16 %v275
  %v292 = vpack.c.b16 %v285, %v284
  %v293 = vpack.c.b16 %v287, %v286
  %v294 = vpack.c.b16 %v289, %v288
  %v295 = vpack.c.b16 %v291, %v290
  %300 = vrot.lane.b32.xlu0 %v263, 126
  %v301 = vpop.permute.xlu0 %300
  %302 = vrot.lane.b32.xlu0 %v264, 126
  %v303 = vpop.permute.xlu0 %302
  %304 = vrot.lane.b32.xlu0 %v265, 126
  %v305 = vpop.permute.xlu0 %304
  %306 = vrot.lane.b32.xlu0 %v266, 126
  %v307 = vpop.permute.xlu0 %306
  %vm308 = vcmask 1031168
  %v309 = vsel %vm308, %v301, %v303
  %v310 = vsel %vm308, %v305, %v307
  %v314 = vsel %vm144, %v292, 0
  %v317 = vsel %vm144, %v293, 0
  %v320 = vsel %vm144, %v294, 0
  %v323 = vsel %vm144, %v295, 0
  %325 = vmatpush.bf16.msra.mxu0 0
  %326 = vmatpush.bf16.msra.mxu0 0
  %327 = vmatpush.bf16.msra.mxu0 0
  %328 = vmatpush.bf16.msra.mxu0 0
  %329 = vmatpush.bf16.msra.mxu0 0
  %330 = vmatpush.bf16.msra.mxu0 0
  %331 = vmatpush.bf16.msra.mxu0 %v310
  %332 = vmatpush.bf16.msra.mxu0 %v309
  %333 = vmatmul.bf16.gmra.mxu0 %v314
  %v334 = vpop.f32.mrf.mxu0
  %v335 = vadd.f32 0.0, %v334
  %v336 = vpop.f32.mrf.mxu0
  %v337 = vadd.f32 0.0, %v336
  %338 = vmatmul.bf16.gmra.mxu0 %v317
  %v339 = vpop.f32.mrf.mxu0
  %v340 = vadd.f32 0.0, %v339
  %v341 = vpop.f32.mrf.mxu0
  %v342 = vadd.f32 0.0, %v341
  %343 = vmatmul.bf16.gmra.mxu0 %v320
  %v344 = vpop.f32.mrf.mxu0
  %v345 = vadd.f32 0.0, %v344
  %v346 = vpop.f32.mrf.mxu0
  %v347 = vadd.f32 0.0, %v346
  %348 = vmatmul.bf16.gmra.mxu0 %v323
  %v349 = vpop.f32.mrf.mxu0
  %v350 = vadd.f32 0.0, %v349
  %v351 = vpop.f32.mrf.mxu0
  %v352 = vadd.f32 0.0, %v351
  %353 = vdwg.mxu0
  %v354 = vadd.f32 %v228, %v335
  %v355 = vadd.f32 %v230, %v337
  %v356 = vadd.f32 %v233, %v340
  %v357 = vadd.f32 %v235, %v342
  %v358 = vadd.f32 %v238, %v345
  %v359 = vadd.f32 %v240, %v347
  %v360 = vadd.f32 %v243, %v350
  %v361 = vadd.f32 %v245, %v352
  %v362 = vsel %vm56, 1, 0
  %vm363 = vcmp.eq.s32.totalorder %v362, 1
  %vm364 = vmpackc.low %vm363, %vm363
  %v365 = vsel %vm364, 65537, 0
  %v366 = vperm.slane %v365, 0
  %367 = vrot.lane.b32.xlu0 %v366, 8
  %v368 = vpop.permute.xlu0 %367
  %v369 = vunpack.c.l.b16 %v368
  %v370 = vunpack.c.h.b16 %v368
  %v371 = vunpack.c.l.b16 0
  %v372 = vunpack.c.h.b16 0
  %vm373 = vcmp.ne.s32.totalorder %v369, %v371
  %vm374 = vcmp.ne.s32.totalorder %v370, %v372
  %vm375 = vmpackc.low %vm374, %vm373
  %v376 = vsel %vm375, %v41, 0
  %v377 = vsel %vm375, %v46, 0
  %v378 = vsel %vm375, %v44, 0
  %v379 = vsel %vm375, %v48, 0
  %s380 = scalar_lea.vmem %s1, 96
  %v381 = vld [vmem:[%s380] sm:$0xf]
  %v382 = vld [vmem:[%s380 + $0x4] sm:$0xf]
  %v383 = vld [vmem:[%s380 + $0x8] sm:$0xf]
  %v384 = vld [vmem:[%s380 + $0xc] sm:$0xf]
  %v385 = vld [vmem:[%s380 + $0x10] sm:$0xf]
  %v386 = vld [vmem:[%s380 + $0x14] sm:$0xf]
  %v387 = vld [vmem:[%s380 + $0x18] sm:$0xf]
  %v388 = vld [vmem:[%s380 + $0x1c] sm:$0xf]
  %v397 = vunpack.c.l.b16 %v381
  %v398 = vunpack.c.l.b16 %v382
  %v399 = vunpack.c.l.b16 %v383
  %v400 = vunpack.c.l.b16 %v384
  %v401 = vunpack.c.l.b16 %v385
  %v402 = vunpack.c.l.b16 %v386
  %v403 = vunpack.c.l.b16 %v387
  %v404 = vunpack.c.l.b16 %v388
  %v405 = vpack.c.b16 %v398, %v397
  %v406 = vpack.c.b16 %v400, %v399
  %v407 = vpack.c.b16 %v402, %v401
  %v408 = vpack.c.b16 %v404, %v403
  %413 = vrot.lane.b32.xlu0 %v376, 120
  %v414 = vpop.permute.xlu0 %413
  %415 = vrot.lane.b32.xlu0 %v377, 120
  %v416 = vpop.permute.xlu0 %415
  %417 = vrot.lane.b32.xlu0 %v378, 120
  %v418 = vpop.permute.xlu0 %417
  %419 = vrot.lane.b32.xlu0 %v379, 120
  %v420 = vpop.permute.xlu0 %419
  %vm421 = vcmask 982016
  %v422 = vsel %vm421, %v414, %v416
  %v423 = vsel %vm421, %v418, %v420
  %v427 = vsel %vm144, %v405, 0
  %v430 = vsel %vm144, %v406, 0
  %v433 = vsel %vm144, %v407, 0
  %v436 = vsel %vm144, %v408, 0
  %438 = vmatpush.bf16.msra.mxu0 0
  %439 = vmatpush.bf16.msra.mxu0 0
  %440 = vmatpush.bf16.msra.mxu0 0
  %441 = vmatpush.bf16.msra.mxu0 0
  %442 = vmatpush.bf16.msra.mxu0 0
  %443 = vmatpush.bf16.msra.mxu0 0
  %444 = vmatpush.bf16.msra.mxu0 %v423
  %445 = vmatpush.bf16.msra.mxu0 %v422
  %446 = vmatmul.bf16.gmra.mxu0 %v427
  %v447 = vpop.f32.mrf.mxu0
  %v448 = vadd.f32 0.0, %v447
  %v449 = vpop.f32.mrf.mxu0
  %v450 = vadd.f32 0.0, %v449
  %451 = vmatmul.bf16.gmra.mxu0 %v430
  %v452 = vpop.f32.mrf.mxu0
  %v453 = vadd.f32 0.0, %v452
  %v454 = vpop.f32.mrf.mxu0
  %v455 = vadd.f32 0.0, %v454
  %456 = vmatmul.bf16.gmra.mxu0 %v433
  %v457 = vpop.f32.mrf.mxu0
  %v458 = vadd.f32 0.0, %v457
  %v459 = vpop.f32.mrf.mxu0
  %v460 = vadd.f32 0.0, %v459
  %461 = vmatmul.bf16.gmra.mxu0 %v436
  %v462 = vpop.f32.mrf.mxu0
  %v463 = vadd.f32 0.0, %v462
  %v464 = vpop.f32.mrf.mxu0
  %v465 = vadd.f32 0.0, %v464
  %466 = vdwg.mxu0
  %v467 = vadd.f32 %v354, %v448
  %v468 = vadd.f32 %v355, %v450
  %v469 = vadd.f32 %v356, %v453
  %v470 = vadd.f32 %v357, %v455
  %v471 = vadd.f32 %v358, %v458
  %v472 = vadd.f32 %v359, %v460
  %v473 = vadd.f32 %v360, %v463
  %v474 = vadd.f32 %v361, %v465
  %s475 = scalar_lea.vmem %s1, 128
  %v476 = vld [vmem:[%s475] sm:$0xf]
  %v477 = vld [vmem:[%s475 + $0x4] sm:$0xf]
  %v478 = vld [vmem:[%s475 + $0x8] sm:$0xf]
  %v479 = vld [vmem:[%s475 + $0xc] sm:$0xf]
  %v480 = vld [vmem:[%s475 + $0x10] sm:$0xf]
  %v481 = vld [vmem:[%s475 + $0x14] sm:$0xf]
  %v482 = vld [vmem:[%s475 + $0x18] sm:$0xf]
  %v483 = vld [vmem:[%s475 + $0x1c] sm:$0xf]
  %v492 = vunpack.c.l.b16 %v476
  %v493 = vunpack.c.l.b16 %v477
  %v494 = vunpack.c.l.b16 %v478
  %v495 = vunpack.c.l.b16 %v479
  %v496 = vunpack.c.l.b16 %v480
  %v497 = vunpack.c.l.b16 %v481
  %v498 = vunpack.c.l.b16 %v482
  %v499 = vunpack.c.l.b16 %v483
  %v500 = vpack.c.b16 %v493, %v492
  %v501 = vpack.c.b16 %v495, %v494
  %v502 = vpack.c.b16 %v497, %v496
  %v503 = vpack.c.b16 %v499, %v498
  %508 = vrot.lane.b32.xlu0 %v41, 119
  %v509 = vpop.permute.xlu0 %508
  %510 = vrot.lane.b32.xlu0 %v46, 119
  %v511 = vpop.permute.xlu0 %510
  %512 = vrot.lane.b32.xlu0 %v44, 119
  %v513 = vpop.permute.xlu0 %512
  %514 = vrot.lane.b32.xlu0 %v48, 119
  %v515 = vpop.permute.xlu0 %514
  %vm516 = vcmask 973824
  %v517 = vsel %vm516, %v509, %v511
  %v518 = vsel %vm516, %v513, %v515
  %v522 = vsel %vm144, %v500, 0
  %v525 = vsel %vm144, %v501, 0
  %v528 = vsel %vm144, %v502, 0
  %v531 = vsel %vm144, %v503, 0
  %533 = vmatpush.bf16.msra.mxu0 0
  %534 = vmatpush.bf16.msra.mxu0 0
  %535 = vmatpush.bf16.msra.mxu0 0
  %536 = vmatpush.bf16.msra.mxu0 0
  %537 = vmatpush.bf16.msra.mxu0 0
  %538 = vmatpush.bf16.msra.mxu0 0
  %539 = vmatpush.bf16.msra.mxu0 %v518
  %540 = vmatpush.bf16.msra.mxu0 %v517
  %541 = vmatmul.bf16.gmra.mxu0 %v522
  %v542 = vpop.f32.mrf.mxu0
  %v543 = vadd.f32 0.0, %v542
  %v544 = vpop.f32.mrf.mxu0
  %v545 = vadd.f32 0.0, %v544
  %546 = vmatmul.bf16.gmra.mxu0 %v525
  %v547 = vpop.f32.mrf.mxu0
  %v548 = vadd.f32 0.0, %v547
  %v549 = vpop.f32.mrf.mxu0
  %v550 = vadd.f32 0.0, %v549
  %551 = vmatmul.bf16.gmra.mxu0 %v528
  %v552 = vpop.f32.mrf.mxu0
  %v553 = vadd.f32 0.0, %v552
  %v554 = vpop.f32.mrf.mxu0
  %v555 = vadd.f32 0.0, %v554
  %556 = vmatmul.bf16.gmra.mxu0 %v531
  %v557 = vpop.f32.mrf.mxu0
  %v558 = vadd.f32 0.0, %v557
  %v559 = vpop.f32.mrf.mxu0
  %v560 = vadd.f32 0.0, %v559
  %561 = vdwg.mxu0
  %v562 = vadd.f32 %v467, %v543
  %v563 = vadd.f32 %v468, %v545
  %v564 = vadd.f32 %v469, %v548
  %v565 = vadd.f32 %v470, %v550
  %v566 = vadd.f32 %v471, %v553
  %v567 = vadd.f32 %v472, %v555
  %v568 = vadd.f32 %v473, %v558
  %v569 = vadd.f32 %v474, %v560
  %v570 = vsel %vm247, 1, 0
  %vm571 = vcmp.eq.s32.totalorder %v570, 1
  %vm572 = vmpackc.low %vm571, %vm571
  %v573 = vsel %vm572, 65537, 0
  %v574 = vperm.slane %v573, 0
  %575 = vrot.lane.b32.xlu0 %v574, 10
  %v576 = vpop.permute.xlu0 %575
  %v577 = vunpack.c.l.b16 %v576
  %v578 = vunpack.c.h.b16 %v576
  %v579 = vunpack.c.l.b16 0
  %v580 = vunpack.c.h.b16 0
  %vm581 = vcmp.ne.s32.totalorder %v577, %v579
  %vm582 = vcmp.ne.s32.totalorder %v578, %v580
  %vm583 = vmpackc.low %vm582, %vm581
  %v584 = vsel %vm583, %v41, 0
  %v585 = vsel %vm583, %v46, 0
  %v586 = vsel %vm583, %v44, 0
  %v587 = vsel %vm583, %v48, 0
  %s588 = scalar_lea.vmem %s1, 160
  %v589 = vld [vmem:[%s588] sm:$0xf]
  %v590 = vld [vmem:[%s588 + $0x4] sm:$0xf]
  %v591 = vld [vmem:[%s588 + $0x8] sm:$0xf]
  %v592 = vld [vmem:[%s588 + $0xc] sm:$0xf]
  %v593 = vld [vmem:[%s588 + $0x10] sm:$0xf]
  %v594 = vld [vmem:[%s588 + $0x14] sm:$0xf]
  %v595 = vld [vmem:[%s588 + $0x18] sm:$0xf]
  %v596 = vld [vmem:[%s588 + $0x1c] sm:$0xf]
  %v605 = vunpack.c.l.b16 %v589
  %v606 = vunpack.c.l.b16 %v590
  %v607 = vunpack.c.l.b16 %v591
  %v608 = vunpack.c.l.b16 %v592
  %v609 = vunpack.c.l.b16 %v593
  %v610 = vunpack.c.l.b16 %v594
  %v611 = vunpack.c.l.b16 %v595
  %v612 = vunpack.c.l.b16 %v596
  %v613 = vpack.c.b16 %v606, %v605
  %v614 = vpack.c.b16 %v608, %v607
  %v615 = vpack.c.b16 %v610, %v609
  %v616 = vpack.c.b16 %v612, %v611
  %621 = vrot.lane.b32.xlu0 %v584, 118
  %v622 = vpop.permute.xlu0 %621
  %623 = vrot.lane.b32.xlu0 %v585, 118
  %v624 = vpop.permute.xlu0 %623
  %625 = vrot.lane.b32.xlu0 %v586, 118
  %v626 = vpop.permute.xlu0 %625
  %627 = vrot.lane.b32.xlu0 %v587, 118
  %v628 = vpop.permute.xlu0 %627
  %vm629 = vcmask 965632
  %v630 = vsel %vm629, %v622, %v624
  %v631 = vsel %vm629, %v626, %v628
  %v635 = vsel %vm144, %v613, 0
  %v638 = vsel %vm144, %v614, 0
  %v641 = vsel %vm144, %v615, 0
  %v644 = vsel %vm144, %v616, 0
  %646 = vmatpush.bf16.msra.mxu0 0
  %647 = vmatpush.bf16.msra.mxu0 0
  %648 = vmatpush.bf16.msra.mxu0 0
  %649 = vmatpush.bf16.msra.mxu0 0
  %650 = vmatpush.bf16.msra.mxu0 0
  %651 = vmatpush.bf16.msra.mxu0 0
  %652 = vmatpush.bf16.msra.mxu0 %v631
  %653 = vmatpush.bf16.msra.mxu0 %v630
  %654 = vmatmul.bf16.gmra.mxu0 %v635
  %v655 = vpop.f32.mrf.mxu0
  %v656 = vadd.f32 0.0, %v655
  %v657 = vpop.f32.mrf.mxu0
  %v658 = vadd.f32 0.0, %v657
  %659 = vmatmul.bf16.gmra.mxu0 %v638
  %v660 = vpop.f32.mrf.mxu0
  %v661 = vadd.f32 0.0, %v660
  %v662 = vpop.f32.mrf.mxu0
  %v663 = vadd.f32 0.0, %v662
  %664 = vmatmul.bf16.gmra.mxu0 %v641
  %v665 = vpop.f32.mrf.mxu0
  %v666 = vadd.f32 0.0, %v665
  %v667 = vpop.f32.mrf.mxu0
  %v668 = vadd.f32 0.0, %v667
  %669 = vmatmul.bf16.gmra.mxu0 %v644
  %v670 = vpop.f32.mrf.mxu0
  %v671 = vadd.f32 0.0, %v670
  %v672 = vpop.f32.mrf.mxu0
  %v673 = vadd.f32 0.0, %v672
  %674 = vdwg.mxu0
  %v675 = vadd.f32 %v562, %v656
  %v676 = vadd.f32 %v563, %v658
  %v677 = vadd.f32 %v564, %v661
  %v678 = vadd.f32 %v565, %v663
  %v679 = vadd.f32 %v566, %v666
  %v680 = vadd.f32 %v567, %v668
  %v681 = vadd.f32 %v568, %v671
  %v682 = vadd.f32 %v569, %v673
  %vm683 = vcmp.le.s32.totalorder %v54, 6
  %vm684 = vmand %vm683, %vm56
  %v685 = vsel %vm684, 1, 0
  %vm686 = vcmp.eq.s32.totalorder %v685, 1
  %vm687 = vmpackc.low %vm686, %vm686
  %v688 = vsel %vm687, 65537, 0
  %v689 = vperm.slane %v688, 0
  %690 = vrot.lane.b32.xlu0 %v689, 16
  %v691 = vpop.permute.xlu0 %690
  %v692 = vunpack.c.l.b16 %v691
  %v693 = vunpack.c.h.b16 %v691
  %v694 = vunpack.c.l.b16 0
  %v695 = vunpack.c.h.b16 0
  %vm696 = vcmp.ne.s32.totalorder %v692, %v694
  %vm697 = vcmp.ne.s32.totalorder %v693, %v695
  %vm698 = vmpackc.low %vm697, %vm696
  %v699 = vsel %vm698, %v41, 0
  %v700 = vsel %vm698, %v46, 0
  %v701 = vsel %vm698, %v44, 0
  %v702 = vsel %vm698, %v48, 0
  %s703 = scalar_lea.vmem %s1, 192
  %v704 = vld [vmem:[%s703] sm:$0xf]
  %v705 = vld [vmem:[%s703 + $0x4] sm:$0xf]
  %v706 = vld [vmem:[%s703 + $0x8] sm:$0xf]
  %v707 = vld [vmem:[%s703 + $0xc] sm:$0xf]
  %v708 = vld [vmem:[%s703 + $0x10] sm:$0xf]
  %v709 = vld [vmem:[%s703 + $0x14] sm:$0xf]
  %v710 = vld [vmem:[%s703 + $0x18] sm:$0xf]
  %v711 = vld [vmem:[%s703 + $0x1c] sm:$0xf]
  %v720 = vunpack.c.l.b16 %v704
  %v721 = vunpack.c.l.b16 %v705
  %v722 = vunpack.c.l.b16 %v706
  %v723 = vunpack.c.l.b16 %v707
  %v724 = vunpack.c.l.b16 %v708
  %v725 = vunpack.c.l.b16 %v709
  %v726 = vunpack.c.l.b16 %v710
  %v727 = vunpack.c.l.b16 %v711
  %v728 = vpack.c.b16 %v721, %v720
  %v729 = vpack.c.b16 %v723, %v722
  %v730 = vpack.c.b16 %v725, %v724
  %v731 = vpack.c.b16 %v727, %v726
  %736 = vrot.lane.b32.xlu0 %v699, 112
  %v737 = vpop.permute.xlu0 %736
  %738 = vrot.lane.b32.xlu0 %v700, 112
  %v739 = vpop.permute.xlu0 %738
  %740 = vrot.lane.b32.xlu0 %v701, 112
  %v741 = vpop.permute.xlu0 %740
  %742 = vrot.lane.b32.xlu0 %v702, 112
  %v743 = vpop.permute.xlu0 %742
  %vm744 = vcmask 916480
  %v745 = vsel %vm744, %v737, %v739
  %v746 = vsel %vm744, %v741, %v743
  %v750 = vsel %vm144, %v728, 0
  %v753 = vsel %vm144, %v729, 0
  %v756 = vsel %vm144, %v730, 0
  %v759 = vsel %vm144, %v731, 0
  %761 = vmatpush.bf16.msra.mxu0 0
  %762 = vmatpush.bf16.msra.mxu0 0
  %763 = vmatpush.bf16.msra.mxu0 0
  %764 = vmatpush.bf16.msra.mxu0 0
  %765 = vmatpush.bf16.msra.mxu0 0
  %766 = vmatpush.bf16.msra.mxu0 0
  %767 = vmatpush.bf16.msra.mxu0 %v746
  %768 = vmatpush.bf16.msra.mxu0 %v745
  %769 = vmatmul.bf16.gmra.mxu0 %v750
  %v770 = vpop.f32.mrf.mxu0
  %v771 = vadd.f32 0.0, %v770
  %v772 = vpop.f32.mrf.mxu0
  %v773 = vadd.f32 0.0, %v772
  %774 = vmatmul.bf16.gmra.mxu0 %v753
  %v775 = vpop.f32.mrf.mxu0
  %v776 = vadd.f32 0.0, %v775
  %v777 = vpop.f32.mrf.mxu0
  %v778 = vadd.f32 0.0, %v777
  %779 = vmatmul.bf16.gmra.mxu0 %v756
  %v780 = vpop.f32.mrf.mxu0
  %v781 = vadd.f32 0.0, %v780
  %v782 = vpop.f32.mrf.mxu0
  %v783 = vadd.f32 0.0, %v782
  %784 = vmatmul.bf16.gmra.mxu0 %v759
  %v785 = vpop.f32.mrf.mxu0
  %v786 = vadd.f32 0.0, %v785
  %v787 = vpop.f32.mrf.mxu0
  %v788 = vadd.f32 0.0, %v787
  %789 = vdwg.mxu0
  %v790 = vadd.f32 %v675, %v771
  %v791 = vadd.f32 %v676, %v773
  %v792 = vadd.f32 %v677, %v776
  %v793 = vadd.f32 %v678, %v778
  %v794 = vadd.f32 %v679, %v781
  %v795 = vadd.f32 %v680, %v783
  %v796 = vadd.f32 %v681, %v786
  %v797 = vadd.f32 %v682, %v788
  %v798 = vsel %vm683, 1, 0
  %vm799 = vcmp.eq.s32.totalorder %v798, 1
  %vm800 = vmpackc.low %vm799, %vm799
  %v801 = vsel %vm800, 65537, 0
  %v802 = vperm.slane %v801, 0
  %803 = vrot.lane.b32.xlu0 %v802, 17
  %v804 = vpop.permute.xlu0 %803
  %v805 = vunpack.c.l.b16 %v804
  %v806 = vunpack.c.h.b16 %v804
  %v807 = vunpack.c.l.b16 0
  %v808 = vunpack.c.h.b16 0
  %vm809 = vcmp.ne.s32.totalorder %v805, %v807
  %vm810 = vcmp.ne.s32.totalorder %v806, %v808
  %vm811 = vmpackc.low %vm810, %vm809
  %v812 = vsel %vm811, %v41, 0
  %v813 = vsel %vm811, %v46, 0
  %v814 = vsel %vm811, %v44, 0
  %v815 = vsel %vm811, %v48, 0
  %s816 = scalar_lea.vmem %s1, 224
  %v817 = vld [vmem:[%s816] sm:$0xf]
  %v818 = vld [vmem:[%s816 + $0x4] sm:$0xf]
  %v819 = vld [vmem:[%s816 + $0x8] sm:$0xf]
  %v820 = vld [vmem:[%s816 + $0xc] sm:$0xf]
  %v821 = vld [vmem:[%s816 + $0x10] sm:$0xf]
  %v822 = vld [vmem:[%s816 + $0x14] sm:$0xf]
  %v823 = vld [vmem:[%s816 + $0x18] sm:$0xf]
  %v824 = vld [vmem:[%s816 + $0x1c] sm:$0xf]
  %v833 = vunpack.c.l.b16 %v817
  %v834 = vunpack.c.l.b16 %v818
  %v835 = vunpack.c.l.b16 %v819
  %v836 = vunpack.c.l.b16 %v820
  %v837 = vunpack.c.l.b16 %v821
  %v838 = vunpack.c.l.b16 %v822
  %v839 = vunpack.c.l.b16 %v823
  %v840 = vunpack.c.l.b16 %v824
  %v841 = vpack.c.b16 %v834, %v833
  %v842 = vpack.c.b16 %v836, %v835
  %v843 = vpack.c.b16 %v838, %v837
  %v844 = vpack.c.b16 %v840, %v839
  %849 = vrot.lane.b32.xlu0 %v812, 111
  %v850 = vpop.permute.xlu0 %849
  %851 = vrot.lane.b32.xlu0 %v813, 111
  %v852 = vpop.permute.xlu0 %851
  %853 = vrot.lane.b32.xlu0 %v814, 111
  %v854 = vpop.permute.xlu0 %853
  %855 = vrot.lane.b32.xlu0 %v815, 111
  %v856 = vpop.permute.xlu0 %855
  %vm857 = vcmask 908288
  %v858 = vsel %vm857, %v850, %v852
  %v859 = vsel %vm857, %v854, %v856
  %v863 = vsel %vm144, %v841, 0
  %v866 = vsel %vm144, %v842, 0
  %v869 = vsel %vm144, %v843, 0
  %v872 = vsel %vm144, %v844, 0
  %874 = vmatpush.bf16.msra.mxu0 0
  %875 = vmatpush.bf16.msra.mxu0 0
  %876 = vmatpush.bf16.msra.mxu0 0
  %877 = vmatpush.bf16.msra.mxu0 0
  %878 = vmatpush.bf16.msra.mxu0 0
  %879 = vmatpush.bf16.msra.mxu0 0
  %880 = vmatpush.bf16.msra.mxu0 %v859
  %881 = vmatpush.bf16.msra.mxu0 %v858
  %882 = vmatmul.bf16.gmra.mxu0 %v863
  %v883 = vpop.f32.mrf.mxu0
  %v884 = vadd.f32 0.0, %v883
  %v885 = vpop.f32.mrf.mxu0
  %v886 = vadd.f32 0.0, %v885
  %887 = vmatmul.bf16.gmra.mxu0 %v866
  %v888 = vpop.f32.mrf.mxu0
  %v889 = vadd.f32 0.0, %v888
  %v890 = vpop.f32.mrf.mxu0
  %v891 = vadd.f32 0.0, %v890
  %892 = vmatmul.bf16.gmra.mxu0 %v869
  %v893 = vpop.f32.mrf.mxu0
  %v894 = vadd.f32 0.0, %v893
  %v895 = vpop.f32.mrf.mxu0
  %v896 = vadd.f32 0.0, %v895
  %897 = vmatmul.bf16.gmra.mxu0 %v872
  %v898 = vpop.f32.mrf.mxu0
  %v899 = vadd.f32 0.0, %v898
  %v900 = vpop.f32.mrf.mxu0
  %v901 = vadd.f32 0.0, %v900
  %902 = vdwg.mxu0
  %v903 = vadd.f32 %v790, %v884
  %v904 = vadd.f32 %v791, %v886
  %v905 = vadd.f32 %v792, %v889
  %v906 = vadd.f32 %v793, %v891
  %v907 = vadd.f32 %v794, %v894
  %v908 = vadd.f32 %v795, %v896
  %v909 = vadd.f32 %v796, %v899
  %v910 = vadd.f32 %v797, %v901
  %vm911 = vmand %vm683, %vm247
  %v912 = vsel %vm911, 1, 0
  %vm913 = vcmp.eq.s32.totalorder %v912, 1
  %vm914 = vmpackc.low %vm913, %vm913
  %v915 = vsel %vm914, 65537, 0
  %v916 = vperm.slane %v915, 0
  %917 = vrot.lane.b32.xlu0 %v916, 18
  %v918 = vpop.permute.xlu0 %917
  %v919 = vunpack.c.l.b16 %v918
  %v920 = vunpack.c.h.b16 %v918
  %v921 = vunpack.c.l.b16 0
  %v922 = vunpack.c.h.b16 0
  %vm923 = vcmp.ne.s32.totalorder %v919, %v921
  %vm924 = vcmp.ne.s32.totalorder %v920, %v922
  %vm925 = vmpackc.low %vm924, %vm923
  %v926 = vsel %vm925, %v41, 0
  %v927 = vsel %vm925, %v46, 0
  %v928 = vsel %vm925, %v44, 0
  %v929 = vsel %vm925, %v48, 0
  %s930 = scalar_lea.vmem %s1, 256
  %v931 = vld [vmem:[%s930] sm:$0xf]
  %v932 = vld [vmem:[%s930 + $0x4] sm:$0xf]
  %v933 = vld [vmem:[%s930 + $0x8] sm:$0xf]
  %v934 = vld [vmem:[%s930 + $0xc] sm:$0xf]
  %v935 = vld [vmem:[%s930 + $0x10] sm:$0xf]
  %v936 = vld [vmem:[%s930 + $0x14] sm:$0xf]
  %v937 = vld [vmem:[%s930 + $0x18] sm:$0xf]
  %v938 = vld [vmem:[%s930 + $0x1c] sm:$0xf]
  %v947 = vunpack.c.l.b16 %v931
  %v948 = vunpack.c.l.b16 %v932
  %v949 = vunpack.c.l.b16 %v933
  %v950 = vunpack.c.l.b16 %v934
  %v951 = vunpack.c.l.b16 %v935
  %v952 = vunpack.c.l.b16 %v936
  %v953 = vunpack.c.l.b16 %v937
  %v954 = vunpack.c.l.b16 %v938
  %v955 = vpack.c.b16 %v948, %v947
  %v956 = vpack.c.b16 %v950, %v949
  %v957 = vpack.c.b16 %v952, %v951
  %v958 = vpack.c.b16 %v954, %v953
  %963 = vrot.lane.b32.xlu0 %v926, 110
  %v964 = vpop.permute.xlu0 %963
  %965 = vrot.lane.b32.xlu0 %v927, 110
  %v966 = vpop.permute.xlu0 %965
  %967 = vrot.lane.b32.xlu0 %v928, 110
  %v968 = vpop.permute.xlu0 %967
  %969 = vrot.lane.b32.xlu0 %v929, 110
  %v970 = vpop.permute.xlu0 %969
  %vm971 = vcmask 900096
  %v972 = vsel %vm971, %v964, %v966
  %v973 = vsel %vm971, %v968, %v970
  %v977 = vsel %vm144, %v955, 0
  %v980 = vsel %vm144, %v956, 0
  %v983 = vsel %vm144, %v957, 0
  %v986 = vsel %vm144, %v958, 0
  %988 = vmatpush.bf16.msra.mxu0 0
  %989 = vmatpush.bf16.msra.mxu0 0
  %990 = vmatpush.bf16.msra.mxu0 0
  %991 = vmatpush.bf16.msra.mxu0 0
  %992 = vmatpush.bf16.msra.mxu0 0
  %993 = vmatpush.bf16.msra.mxu0 0
  %994 = vmatpush.bf16.msra.mxu0 %v973
  %995 = vmatpush.bf16.msra.mxu0 %v972
  %996 = vmatmul.bf16.gmra.mxu0 %v977
  %v997 = vpop.f32.mrf.mxu0
  %v998 = vadd.f32 0.0, %v997
  %v999 = vpop.f32.mrf.mxu0
  %v1000 = vadd.f32 0.0, %v999
  %1001 = vmatmul.bf16.gmra.mxu0 %v980
  %v1002 = vpop.f32.mrf.mxu0
  %v1003 = vadd.f32 0.0, %v1002
  %v1004 = vpop.f32.mrf.mxu0
  %v1005 = vadd.f32 0.0, %v1004
  %1006 = vmatmul.bf16.gmra.mxu0 %v983
  %v1007 = vpop.f32.mrf.mxu0
  %v1008 = vadd.f32 0.0, %v1007
  %v1009 = vpop.f32.mrf.mxu0
  %v1010 = vadd.f32 0.0, %v1009
  %1011 = vmatmul.bf16.gmra.mxu0 %v986
  %v1012 = vpop.f32.mrf.mxu0
  %v1013 = vadd.f32 0.0, %v1012
  %v1014 = vpop.f32.mrf.mxu0
  %v1015 = vadd.f32 0.0, %v1014
  %1016 = vdwg.mxu0
  %v1017 = vadd.f32 %v903, %v998
  %v1018 = vadd.f32 %v904, %v1000
  %v1019 = vadd.f32 %v905, %v1003
  %v1020 = vadd.f32 %v906, %v1005
  %v1021 = vadd.f32 %v907, %v1008
  %v1022 = vadd.f32 %v908, %v1010
  %v1023 = vadd.f32 %v909, %v1013
  %v1024 = vadd.f32 %v910, %v1015
  %1025 = vadd.xlane.f32.xlu0 %v1017
  %v1026 = vpop.xlane.xlu0 %1025
  %1027 = vadd.xlane.f32.xlu0 %v1018
  %v1028 = vpop.xlane.xlu0 %1027
  %1029 = vadd.xlane.f32.xlu0 %v1019
  %v1030 = vpop.xlane.xlu0 %1029
  %1031 = vadd.xlane.f32.xlu0 %v1020
  %v1032 = vpop.xlane.xlu0 %1031
  %1033 = vadd.xlane.f32.xlu0 %v1021
  %v1034 = vpop.xlane.xlu0 %1033
  %1035 = vadd.xlane.f32.xlu0 %v1022
  %v1036 = vpop.xlane.xlu0 %1035
  %1037 = vadd.xlane.f32.xlu0 %v1023
  %v1038 = vpop.xlane.xlu0 %1037
  %1039 = vadd.xlane.f32.xlu0 %v1024
  %v1040 = vpop.xlane.xlu0 %1039
  %v1041 = vmul.f32 %v1017, %v1017
  %v1042 = vmul.f32 %v1018, %v1018
  %v1043 = vmul.f32 %v1019, %v1019
  %v1044 = vmul.f32 %v1020, %v1020
  %v1045 = vmul.f32 %v1021, %v1021
  %v1046 = vmul.f32 %v1022, %v1022
  %v1047 = vmul.f32 %v1023, %v1023
  %v1048 = vmul.f32 %v1024, %v1024
  %1049 = vadd.xlane.f32.xlu0 %v1041
  %v1050 = vpop.xlane.xlu0 %1049
  %1051 = vadd.xlane.f32.xlu0 %v1042
  %v1052 = vpop.xlane.xlu0 %1051
  %1053 = vadd.xlane.f32.xlu0 %v1043
  %v1054 = vpop.xlane.xlu0 %1053
  %1055 = vadd.xlane.f32.xlu0 %v1044
  %v1056 = vpop.xlane.xlu0 %1055
  %1057 = vadd.xlane.f32.xlu0 %v1045
  %v1058 = vpop.xlane.xlu0 %1057
  %1059 = vadd.xlane.f32.xlu0 %v1046
  %v1060 = vpop.xlane.xlu0 %1059
  %1061 = vadd.xlane.f32.xlu0 %v1047
  %v1062 = vpop.xlane.xlu0 %1061
  %1063 = vadd.xlane.f32.xlu0 %v1048
  %v1064 = vpop.xlane.xlu0 %1063
  %v1065 = vadd.f32 %v1026, %v1030
  %v1066 = vadd.f32 %v1028, %v1032
  %v1067 = vadd.f32 %v1065, %v1034
  %v1068 = vadd.f32 %v1066, %v1036
  %v1069 = vadd.f32 %v1067, %v1038
  %v1070 = vadd.f32 %v1068, %v1040
  %v1071 = vadd.f32 %v1050, %v1054
  %v1072 = vadd.f32 %v1052, %v1056
  %v1073 = vadd.f32 %v1071, %v1058
  %v1074 = vadd.f32 %v1072, %v1060
  %v1075 = vadd.f32 %v1073, %v1062
  %v1076 = vadd.f32 %v1074, %v1064
  %v1077 = vmul.f32 %v1069, 0.001953125
  %v1078 = vmul.f32 %v1070, 0.001953125
  %v1079 = vmul.f32 %v1075, 0.001953125
  %v1080 = vmul.f32 %v1076, 0.001953125
  %v1081 = vmul.f32 %v1077, %v1077
  %v1082 = vmul.f32 %v1078, %v1078
  %v1083 = vsub.f32 %v1079, %v1081
  %v1084 = vsub.f32 %v1080, %v1082
  %v1085 = vmax.f32 %v1083, 0.0
  %v1086 = vmax.f32 %v1084, 0.0
  %v1087 = vld [vmem:[%s2] sm:$0xff]
  %v1088 = vld [vmem:[%s2 + $0x8] sm:$0xff]
  %v1089 = vadd.f32 %v1085, 1e-05
  %v1090 = vadd.f32 %v1086, 1e-05
  %v1091 = vrsqrt.pop %v1089
  %v1092 = vmul.f32 %v1091, %v1089
  %v1093 = vmul.f32 %v1092, %v1091
  %v1094 = vmul.f32 0.5, %v1093
  %v1095 = vsub.f32 1.5, %v1094
  %v1096 = vmul.f32 %v1091, %v1095
  %vm1097 = vweird.f32 %v1089
  %vm1098 = vweird.f32 %v1091
  %vm1099 = vmor %vm1097, %vm1098
  %v1100 = vsel %vm1099, %v1091, %v1096
  %v1101 = vrsqrt.pop %v1090
  %v1102 = vmul.f32 %v1101, %v1090
  %v1103 = vmul.f32 %v1102, %v1101
  %v1104 = vmul.f32 0.5, %v1103
  %v1105 = vsub.f32 1.5, %v1104
  %v1106 = vmul.f32 %v1101, %v1105
  %vm1107 = vweird.f32 %v1090
  %vm1108 = vweird.f32 %v1101
  %vm1109 = vmor %vm1107, %vm1108
  %v1110 = vsel %vm1109, %v1101, %v1106
  %v1111 = vmul.f32 %v1087, %v1100
  %v1112 = vmul.f32 %v1088, %v1110
  %v1113 = vld [vmem:[%s3] sm:$0xff]
  %v1114 = vld [vmem:[%s3 + $0x8] sm:$0xff]
  %v1115 = vmul.f32 %v1077, %v1111
  %v1116 = vmul.f32 %v1078, %v1112
  %v1117 = vsub.f32 %v1113, %v1115
  %v1118 = vsub.f32 %v1114, %v1116
  %1120 = vset.pattern.permute.xlu0 0
  %1121 = vperm.xlu0 %1120, %v1111
  %v1122 = vpop.permute.xlu0 %1121
  %1125 = vset.pattern.permute.xlu0 0
  %1126 = vperm.xlu0 %1125, %v1112
  %v1127 = vpop.permute.xlu0 %1126
  %v1129 = vmul.f32 %v1017, %v1122
  %v1130 = vmul.f32 %v1018, %v1127
  %v1131 = vmul.f32 %v1019, %v1122
  %v1132 = vmul.f32 %v1020, %v1127
  %v1133 = vmul.f32 %v1021, %v1122
  %v1134 = vmul.f32 %v1022, %v1127
  %v1135 = vmul.f32 %v1023, %v1122
  %v1136 = vmul.f32 %v1024, %v1127
  %1138 = vset.pattern.permute.xlu0 0
  %1139 = vperm.xlu0 %1138, %v1117
  %v1140 = vpop.permute.xlu0 %1139
  %1143 = vset.pattern.permute.xlu0 0
  %1144 = vperm.xlu0 %1143, %v1118
  %v1145 = vpop.permute.xlu0 %1144
  %v1147 = vadd.f32 %v1129, %v1140
  %v1148 = vadd.f32 %v1130, %v1145
  %v1149 = vadd.f32 %v1131, %v1140
  %v1150 = vadd.f32 %v1132, %v1145
  %v1151 = vadd.f32 %v1133, %v1140
  %v1152 = vadd.f32 %v1134, %v1145
  %v1153 = vadd.f32 %v1135, %v1140
  %v1154 = vadd.f32 %v1136, %v1145
  %v1155 = vmax.f32 %v1147, 0.0
  %v1156 = vmax.f32 %v1148, 0.0
  %v1157 = vmax.f32 %v1149, 0.0
  %v1158 = vmax.f32 %v1150, 0.0
  %v1159 = vmax.f32 %v1151, 0.0
  %v1160 = vmax.f32 %v1152, 0.0
  %v1161 = vmax.f32 %v1153, 0.0
  %v1162 = vmax.f32 %v1154, 0.0
  %v1163 = vpack.c.bf16 %v1155, %v1155
  %v1164 = vpack.c.bf16 %v1156, %v1156
  %v1165 = vpack.c.bf16 %v1157, %v1157
  %v1166 = vpack.c.bf16 %v1158, %v1158
  %v1167 = vpack.c.bf16 %v1159, %v1159
  %v1168 = vpack.c.bf16 %v1160, %v1160
  %v1169 = vpack.c.bf16 %v1161, %v1161
  %v1170 = vpack.c.bf16 %v1162, %v1162
  %1171 = vst [vmem:[%s4] sm:$0xf] %v1163
  %1172 = vst [vmem:[%s4 + $0x4] sm:$0xf] %v1164
  %1173 = vst [vmem:[%s4 + $0x8] sm:$0xf] %v1165
  %1174 = vst [vmem:[%s4 + $0xc] sm:$0xf] %v1166
  %1175 = vst [vmem:[%s4 + $0x10] sm:$0xf] %v1167
  %1176 = vst [vmem:[%s4 + $0x14] sm:$0xf] %v1168
  %1177 = vst [vmem:[%s4 + $0x18] sm:$0xf] %v1169
  %1178 = vst [vmem:[%s4 + $0x1c] sm:$0xf] %v1170
  // Predicated region
  $region18: #{decoder_forward.5} parent=0 // pred_check
    _
  $region19: #{decoder_forward.5} parent=0 // pred_check_branch
    %1180 = sbr.rel (0) target = $region21
  $region20: #{decoder_forward.5} parent=0 // pred_region
    _
  $region21: #{decoder_forward.5} parent=0 // pred_fallthru
    _
  // Predicated region
  $region22: #{decoder_forward.5} parent=0 // pred_check
    _
  $region23: #{decoder_forward.5} parent=0 // pred_check_branch
    %1182 = sbr.rel (0) target = $region25
  $region24: #{decoder_forward.5} parent=0 // pred_region
    _
  $region25: #{decoder_forward.5} parent=0 // pred_fallthru
    _

// kernel: decoder_forward.6
$region0: #{decoder_forward.6}
  #allocation0 [shape = 'u32[]', space=smem, size = 0x4, offset = 0x4, fixed_abs, tag = 'smem constant byte address 0x4 - core index']
  #allocation1 [shape = 'u32[72,128]{1,0:T(1,128)}', space=vmem, size = 0x9000, scoped, tag = 'internal scratch']
  %s0 = inlined_call_operand.vmem [shape: bf16[16,512], index: 0, kind: input, shape index: {}]
  %s1 = inlined_call_operand.vmem [shape: bf16[9,32,16], index: 1, kind: input, shape index: {}]
  %s2 = inlined_call_operand.vmem [shape: f32[8,1], index: 2, kind: input, shape index: {}]
  %s3 = inlined_call_operand.vmem [shape: f32[8,1], index: 3, kind: input, shape index: {}]
  %s4 = inlined_call_operand.vmem [shape: bf16[32,512], index: 4, kind: output, shape index: {}]
  %s5 = sld [smem:[#allocation0]]
  $region26: #{decoder_forward.6} parent=0
    _
  %s7 = ssub.s32 1, %s5
  %s8 = scalar_select 0, %s7, %s5
  // Predicated region
  $region2: #{decoder_forward.6} parent=0 // pred_check
    _
  $region3: #{decoder_forward.6} parent=0 // pred_check_branch
    %10 = sbr.rel (0) target = $region5
  $region4: #{decoder_forward.6} parent=0 // pred_region
    _
  $region5: #{decoder_forward.6} parent=0 // pred_fallthru
    _
  // Predicated region
  $region6: #{decoder_forward.6} parent=0 // pred_check
    _
  $region7: #{decoder_forward.6} parent=0 // pred_check_branch
    %12 = sbr.rel (0) target = $region9
  $region8: #{decoder_forward.6} parent=0 // pred_region
    _
  $region9: #{decoder_forward.6} parent=0 // pred_fallthru
    _
  // Predicated region
  $region10: #{decoder_forward.6} parent=0 // pred_check
    _
  $region11: #{decoder_forward.6} parent=0 // pred_check_branch
    %14 = sbr.rel (0) target = $region13
  $region12: #{decoder_forward.6} parent=0 // pred_region
    _
  $region13: #{decoder_forward.6} parent=0 // pred_fallthru
    _
  // Predicated region
  $region14: #{decoder_forward.6} parent=0 // pred_check
    _
  $region15: #{decoder_forward.6} parent=0 // pred_check_branch
    %16 = sbr.rel (0) target = $region17
  $region16: #{decoder_forward.6} parent=0 // pred_region
    _
  $region17: #{decoder_forward.6} parent=0 // pred_fallthru
    _
  %v20 = vld [vmem:[%s0] sm:$0xff]
  %v21 = vld [vmem:[%s0 + $0x8] sm:$0xff]
  %v22 = vld [vmem:[%s0 + $0x10] sm:$0xff]
  %v23 = vld [vmem:[%s0 + $0x18] sm:$0xff]
  %v28 = vunpack.c.l.b16 %v20
  %v29 = vunpack.c.h.b16 %v20
  %v30 = vunpack.c.l.b16 %v21
  %v31 = vunpack.c.h.b16 %v21
  %v32 = vunpack.c.l.b16 %v22
  %v33 = vunpack.c.h.b16 %v22
  %v34 = vunpack.c.l.b16 %v23
  %v35 = vunpack.c.h.b16 %v23
  %v36 = vpack.c.b16 %v32, %v28
  %v37 = vpack.c.b16 %v33, %v29
  %v38 = vpack.c.b16 %v34, %v30
  %v39 = vpack.c.b16 %v35, %v31
  %40 = vrot.lane.b32.xlu0 %v36, 17
  %v41 = vpop.permute.xlu0 %40
  %42 = vrot.lane.b32.xlu0 %v37, 17
  %v43 = vpop.permute.xlu0 %42
  %44 = vrot.lane.b32.xlu0 %v38, 17
  %v45 = vpop.permute.xlu0 %44
  %46 = vrot.lane.b32.xlu0 %v39, 17
  %v47 = vpop.permute.xlu0 %46
  %vm48 = vcmask 138240
  %v49 = vsel %vm48, %v41, %v43
  %v50 = vsel %vm48, %v43, %v45
  %v51 = vsel %vm48, %v45, %v47
  %vm55 = vcmask 138240
  %v58 = vsel %vm55, 0, %v41
  %v61 = vsel %vm55, %v47, 0
  %v63 = vlaneseq
  %v64 = vand.u32 %v63, 127
  %v65 = vadd.s32 %v64, 128
  %v66 = vadd.s32 %v64, 256
  %v67 = vadd.s32 %v64, 384
  %v68 = vand.u32 %v64, 15
  %v69 = vand.u32 %v65, 15
  %v70 = vand.u32 %v66, 15
  %v71 = vand.u32 %v67, 15
  %v72 = vshra.s32 %v64, 4
  %v73 = vshra.s32 %v65, 4
  %v74 = vshra.s32 %v66, 4
  %v75 = vshra.s32 %v67, 4
  %v76 = vand.u32 %v72, 15
  %v77 = vand.u32 %v73, 15
  %v78 = vand.u32 %v74, 15
  %v79 = vand.u32 %v75, 15
  %vm80 = vcmp.ge.s32.totalorder %v76, 1
  %vm81 = vcmp.ge.s32.totalorder %v77, 1
  %vm82 = vcmp.ge.s32.totalorder %v78, 1
  %vm83 = vcmp.ge.s32.totalorder %v79, 1
  %vm84 = vcmp.ge.s32.totalorder %v68, 1
  %vm85 = vcmp.ge.s32.totalorder %v69, 1
  %vm86 = vcmp.ge.s32.totalorder %v70, 1
  %vm87 = vcmp.ge.s32.totalorder %v71, 1
  %vm88 = vmand %vm80, %vm84
  %vm89 = vmand %vm81, %vm85
  %vm90 = vmand %vm82, %vm86
  %vm91 = vmand %vm83, %vm87
  %v92 = vsel %vm88, 1, 0
  %v93 = vsel %vm89, 1, 0
  %v94 = vsel %vm90, 1, 0
  %v95 = vsel %vm91, 1, 0
  %vm96 = vcmp.eq.s32.totalorder %v92, 1
  %vm97 = vcmp.eq.s32.totalorder %v93, 1
  %vm98 = vcmp.eq.s32.totalorder %v94, 1
  %vm99 = vcmp.eq.s32.totalorder %v95, 1
  %vm100 = vmpackc.low %vm97, %vm96
  %vm101 = vmpackc.low %vm99, %vm98
  %v102 = vsel %vm100, 65537, 0
  %v103 = vsel %vm101, 65537, 0
  %v104 = vperm.slane %v102, 0
  %v105 = vperm.slane %v102, 4
  %v106 = vperm.slane %v103, 0
  %v107 = vperm.slane %v103, 4
  %v108 = vunpack.c.l.b16 %v104
  %v109 = vunpack.c.h.b16 %v104
  %v110 = vunpack.c.l.b16 0
  %v111 = vunpack.c.h.b16 0
  %vm112 = vcmp.ne.s32.totalorder %v108, %v110
  %vm113 = vcmp.ne.s32.totalorder %v109, %v111
  %vm114 = vmpackc.low %vm113, %vm112
  %v115 = vunpack.c.l.b16 %v105
  %v116 = vunpack.c.h.b16 %v105
  %v117 = vunpack.c.l.b16 0
  %v118 = vunpack.c.h.b16 0
  %vm119 = vcmp.ne.s32.totalorder %v115, %v117
  %vm120 = vcmp.ne.s32.totalorder %v116, %v118
  %vm121 = vmpackc.low %vm120, %vm119
  %v122 = vunpack.c.l.b16 %v106
  %v123 = vunpack.c.h.b16 %v106
  %v124 = vunpack.c.l.b16 0
  %v125 = vunpack.c.h.b16 0
  %vm126 = vcmp.ne.s32.totalorder %v122, %v124
  %vm127 = vcmp.ne.s32.totalorder %v123, %v125
  %vm128 = vmpackc.low %vm127, %vm126
  %v129 = vunpack.c.l.b16 %v107
  %v130 = vunpack.c.h.b16 %v107
  %v131 = vunpack.c.l.b16 0
  %v132 = vunpack.c.h.b16 0
  %vm133 = vcmp.ne.s32.totalorder %v129, %v131
  %vm134 = vcmp.ne.s32.totalorder %v130, %v132
  %vm135 = vmpackc.low %vm134, %vm133
  %v136 = vsel %vm114, %v58, 0
  %v137 = vsel %vm121, %v49, 0
  %v138 = vsel %vm128, %v50, 0
  %v139 = vsel %vm135, %v51, 0
  %v140 = vld [vmem:[%s1] sm:$0xf]
  %v141 = vld [vmem:[%s1 + $0x4] sm:$0xf]
  %v142 = vld [vmem:[%s1 + $0x8] sm:$0xf]
  %v143 = vld [vmem:[%s1 + $0xc] sm:$0xf]
  %v144 = vsel %vm80, 1, 0
  %v145 = vsel %vm81, 1, 0
  %v146 = vsel %vm82, 1, 0
  %v147 = vsel %vm83, 1, 0
  %vm148 = vcmp.eq.s32.totalorder %v144, 1
  %vm149 = vcmp.eq.s32.totalorder %v145, 1
  %vm150 = vcmp.eq.s32.totalorder %v146, 1
  %vm151 = vcmp.eq.s32.totalorder %v147, 1
  %vm152 = vmpackc.low %vm149, %vm148
  %vm153 = vmpackc.low %vm151, %vm150
  %v154 = vsel %vm152, 65537, 0
  %v155 = vsel %vm153, 65537, 0
  %v156 = vperm.slane %v154, 0
  %v157 = vperm.slane %v154, 4
  %v158 = vperm.slane %v155, 0
  %v159 = vperm.slane %v155, 4
  %160 = vrot.lane.b32.xlu0 %v156, 1
  %v161 = vpop.permute.xlu0 %160
  %162 = vrot.lane.b32.xlu0 %v157, 1
  %v163 = vpop.permute.xlu0 %162
  %164 = vrot.lane.b32.xlu0 %v158, 1
  %v165 = vpop.permute.xlu0 %164
  %166 = vrot.lane.b32.xlu0 %v159, 1
  %v167 = vpop.permute.xlu0 %166
  %vm168 = vcmask 7168
  %v169 = vsel %vm168, %v161, %v163
  %v170 = vsel %vm168, %v163, %v165
  %v171 = vsel %vm168, %v165, %v167
  %v172 = vunpack.c.l.b16 %v161
  %v173 = vunpack.c.h.b16 %v161
  %v174 = vunpack.c.l.b16 0
  %v175 = vunpack.c.h.b16 0
  %vm176 = vcmp.ne.s32.totalorder %v172, %v174
  %vm177 = vcmp.ne.s32.totalorder %v173, %v175
  %vm178 = vmpackc.low %vm177, %vm176
  %v179 = vunpack.c.l.b16 %v169
  %v180 = vunpack.c.h.b16 %v169
  %v181 = vunpack.c.l.b16 0
  %v182 = vunpack.c.h.b16 0
  %vm183 = vcmp.ne.s32.totalorder %v179, %v181
  %vm184 = vcmp.ne.s32.totalorder %v180, %v182
  %vm185 = vmpackc.low %vm184, %vm183
  %v186 = vunpack.c.l.b16 %v170
  %v187 = vunpack.c.h.b16 %v170
  %v188 = vunpack.c.l.b16 0
  %v189 = vunpack.c.h.b16 0
  %vm190 = vcmp.ne.s32.totalorder %v186, %v188
  %vm191 = vcmp.ne.s32.totalorder %v187, %v189
  %vm192 = vmpackc.low %vm191, %vm190
  %v193 = vunpack.c.l.b16 %v171
  %v194 = vunpack.c.h.b16 %v171
  %v195 = vunpack.c.l.b16 0
  %v196 = vunpack.c.h.b16 0
  %vm197 = vcmp.ne.s32.totalorder %v193, %v195
  %vm198 = vcmp.ne.s32.totalorder %v194, %v196
  %vm199 = vmpackc.low %vm198, %vm197
  %v200 = vunpack.c.l.b16 %v167
  %v201 = vunpack.c.h.b16 %v167
  %v202 = vunpack.c.l.b16 0
  %v203 = vunpack.c.h.b16 0
  %vm204 = vcmp.ne.s32.totalorder %v200, %v202
  %vm205 = vcmp.ne.s32.totalorder %v201, %v203
  %vm206 = vmpackc.low %vm205, %vm204
  %v207 = vsel %vm178, %v58, 0
  %v208 = vsel %vm185, %v49, 0
  %v209 = vsel %vm192, %v50, 0
  %v210 = vsel %vm199, %v51, 0
  %v211 = vsel %vm206, %v61, 0
  %s212 = scalar_lea.vmem %s1, 16
  %v213 = vld [vmem:[%s212] sm:$0xf]
  %v214 = vld [vmem:[%s212 + $0x4] sm:$0xf]
  %v215 = vld [vmem:[%s212 + $0x8] sm:$0xf]
  %v216 = vld [vmem:[%s212 + $0xc] sm:$0xf]
  %v221 = vunpack.c.l.b16 %v213
  %v222 = vunpack.c.l.b16 %v214
  %v223 = vunpack.c.l.b16 %v215
  %v224 = vunpack.c.l.b16 %v216
  %v225 = vpack.c.b16 %v222, %v221
  %v226 = vpack.c.b16 %v224, %v223
  %232 = vrot.lane.b32.xlu0 %v207, 127
  %v233 = vpop.permute.xlu0 %232
  %234 = vrot.lane.b32.xlu0 %v208, 127
  %v235 = vpop.permute.xlu0 %234
  %236 = vrot.lane.b32.xlu0 %v209, 127
  %v237 = vpop.permute.xlu0 %236
  %238 = vrot.lane.b32.xlu0 %v210, 127
  %v239 = vpop.permute.xlu0 %238
  %240 = vrot.lane.b32.xlu0 %v211, 127
  %v241 = vpop.permute.xlu0 %240
  %vm242 = vcmask 1039360
  %v243 = vsel %vm242, %v233, %v235
  %v244 = vsel %vm242, %v235, %v237
  %v245 = vsel %vm242, %v237, %v239
  %v246 = vsel %vm242, %v239, %v241
  %vm251 = vcmask 130048
  %v253 = vsel %vm251, %v225, 0
  %v256 = vsel %vm251, %v226, 0
  %258 = vmatpush.bf16.msra.mxu0 0
  %259 = vmatpush.bf16.msra.mxu0 0
  %260 = vmatpush.bf16.msra.mxu0 0
  %261 = vmatpush.bf16.msra.mxu0 0
  %262 = vmatpush.bf16.msra.mxu0 0
  %263 = vmatpush.bf16.msra.mxu0 0
  %264 = vmatpush.bf16.msra.mxu0 0
  %265 = vmatpush.bf16.msra.mxu0 %v243
  %266 = vmatmul.bf16.gmra.mxu0 %v253
  %v267 = vpop.f32.mrf.mxu0
  %v268 = vadd.f32 0.0, %v267
  %v269 = vpop.f32.mrf.mxu0
  %v270 = vadd.f32 0.0, %v269
  %271 = vmatmul.bf16.gmra.mxu0 %v256
  %v272 = vpop.f32.mrf.mxu0
  %v273 = vadd.f32 0.0, %v272
  %v274 = vpop.f32.mrf.mxu0
  %v275 = vadd.f32 0.0, %v274
  %276 = vdwg.mxu0
  %277 = vmatpush.bf16.msra.mxu0 0
  %278 = vmatpush.bf16.msra.mxu0 0
  %279 = vmatpush.bf16.msra.mxu0 0
  %280 = vmatpush.bf16.msra.mxu0 0
  %281 = vmatpush.bf16.msra.mxu0 0
  %282 = vmatpush.bf16.msra.mxu0 0
  %283 = vmatpush.bf16.msra.mxu0 0
  %284 = vmatpush.bf16.msra.mxu0 %v244
  %285 = vmatmul.bf16.gmra.mxu0 %v253
  %v286 = vpop.f32.mrf.mxu0
  %v287 = vadd.f32 0.0, %v286
  %v288 = vpop.f32.mrf.mxu0
  %v289 = vadd.f32 0.0, %v288
  %290 = vmatmul.bf16.gmra.mxu0 %v256
  %v291 = vpop.f32.mrf.mxu0
  %v292 = vadd.f32 0.0, %v291
  %v293 = vpop.f32.mrf.mxu0
  %v294 = vadd.f32 0.0, %v293
  %295 = vdwg.mxu0
  %296 = vmatpush.bf16.msra.mxu0 0
  %297 = vmatpush.bf16.msra.mxu0 0
  %298 = vmatpush.bf16.msra.mxu0 0
  %299 = vmatpush.bf16.msra.mxu0 0
  %300 = vmatpush.bf16.msra.mxu0 0
  %301 = vmatpush.bf16.msra.mxu0 0
  %302 = vmatpush.bf16.msra.mxu0 0
  %303 = vmatpush.bf16.msra.mxu0 %v245
  %304 = vmatmul.bf16.gmra.mxu0 %v253
  %v305 = vpop.f32.mrf.mxu0
  %v306 = vadd.f32 0.0, %v305
  %v307 = vpop.f32.mrf.mxu0
  %v308 = vadd.f32 0.0, %v307
  %309 = vmatmul.bf16.gmra.mxu0 %v256
  %v310 = vpop.f32.mrf.mxu0
  %v311 = vadd.f32 0.0, %v310
  %v312 = vpop.f32.mrf.mxu0
  %v313 = vadd.f32 0.0, %v312
  %314 = vdwg.mxu0
  %315 = vmatpush.bf16.msra.mxu0 0
  %316 = vmatpush.bf16.msra.mxu0 0
  %317 = vmatpush.bf16.msra.mxu0 0
  %318 = vmatpush.bf16.msra.mxu0 0
  %319 = vmatpush.bf16.msra.mxu0 0
  %320 = vmatpush.bf16.msra.mxu0 0
  %321 = vmatpush.bf16.msra.mxu0 0
  %322 = vmatpush.bf16.msra.mxu0 %v246
  %323 = vmatmul.bf16.gmra.mxu0 %v253
  %v324 = vpop.f32.mrf.mxu0
  %v325 = vadd.f32 0.0, %v324
  %v326 = vpop.f32.mrf.mxu0
  %v327 = vadd.f32 0.0, %v326
  %328 = vmatmul.bf16.gmra.mxu0 %v256
  %v329 = vpop.f32.mrf.mxu0
  %v330 = vadd.f32 0.0, %v329
  %v331 = vpop.f32.mrf.mxu0
  %v332 = vadd.f32 0.0, %v331
  %333 = vdwg.mxu0
  %v338 = vunpack.c.l.b16 %v140
  %v339 = vunpack.c.l.b16 %v141
  %v340 = vunpack.c.l.b16 %v142
  %v341 = vunpack.c.l.b16 %v143
  %v342 = vpack.c.b16 %v339, %v338
  %v343 = vpack.c.b16 %v341, %v340
  %v345 = vsel %vm251, %v342, 0
  %v348 = vsel %vm251, %v343, 0
  %350 = vmatpush.bf16.msra.mxu0 0
  %351 = vmatpush.bf16.msra.mxu0 0
  %352 = vmatpush.bf16.msra.mxu0 0
  %353 = vmatpush.bf16.msra.mxu0 0
  %354 = vmatpush.bf16.msra.mxu0 0
  %355 = vmatpush.bf16.msra.mxu0 0
  %356 = vmatpush.bf16.msra.mxu0 0
  %357 = vmatpush.bf16.msra.mxu0 %v136
  %358 = vmatmul.bf16.gmra.mxu0 %v345
  %v359 = vpop.f32.mrf.mxu0
  %v360 = vadd.f32 %v268, %v359
  %v361 = vpop.f32.mrf.mxu0
  %v362 = vadd.f32 %v270, %v361
  %363 = vmatmul.bf16.gmra.mxu0 %v348
  %v364 = vpop.f32.mrf.mxu0
  %v365 = vadd.f32 %v273, %v364
  %v366 = vpop.f32.mrf.mxu0
  %v367 = vadd.f32 %v275, %v366
  %368 = vdwg.mxu0
  %369 = vmatpush.bf16.msra.mxu0 0
  %370 = vmatpush.bf16.msra.mxu0 0
  %371 = vmatpush.bf16.msra.mxu0 0
  %372 = vmatpush.bf16.msra.mxu0 0
  %373 = vmatpush.bf16.msra.mxu0 0
  %374 = vmatpush.bf16.msra.mxu0 0
  %375 = vmatpush.bf16.msra.mxu0 0
  %376 = vmatpush.bf16.msra.mxu0 %v137
  %377 = vmatmul.bf16.gmra.mxu0 %v345
  %v378 = vpop.f32.mrf.mxu0
  %v379 = vadd.f32 %v287, %v378
  %v380 = vpop.f32.mrf.mxu0
  %v381 = vadd.f32 %v289, %v380
  %382 = vmatmul.bf16.gmra.mxu0 %v348
  %v383 = vpop.f32.mrf.mxu0
  %v384 = vadd.f32 %v292, %v383
  %v385 = vpop.f32.mrf.mxu0
  %v386 = vadd.f32 %v294, %v385
  %387 = vdwg.mxu0
  %388 = vmatpush.bf16.msra.mxu0 0
  %389 = vmatpush.bf16.msra.mxu0 0
  %390 = vmatpush.bf16.msra.mxu0 0
  %391 = vmatpush.bf16.msra.mxu0 0
  %392 = vmatpush.bf16.msra.mxu0 0
  %393 = vmatpush.bf16.msra.mxu0 0
  %394 = vmatpush.bf16.msra.mxu0 0
  %395 = vmatpush.bf16.msra.mxu0 %v138
  %396 = vmatmul.bf16.gmra.mxu0 %v345
  %v397 = vpop.f32.mrf.mxu0
  %v398 = vadd.f32 %v306, %v397
  %v399 = vpop.f32.mrf.mxu0
  %v400 = vadd.f32 %v308, %v399
  %401 = vmatmul.bf16.gmra.mxu0 %v348
  %v402 = vpop.f32.mrf.mxu0
  %v403 = vadd.f32 %v311, %v402
  %v404 = vpop.f32.mrf.mxu0
  %v405 = vadd.f32 %v313, %v404
  %406 = vdwg.mxu0
  %407 = vmatpush.bf16.msra.mxu0 0
  %408 = vmatpush.bf16.msra.mxu0 0
  %409 = vmatpush.bf16.msra.mxu0 0
  %410 = vmatpush.bf16.msra.mxu0 0
  %411 = vmatpush.bf16.msra.mxu0 0
  %412 = vmatpush.bf16.msra.mxu0 0
  %413 = vmatpush.bf16.msra.mxu0 0
  %414 = vmatpush.bf16.msra.mxu0 %v139
  %415 = vmatmul.bf16.gmra.mxu0 %v345
  %v416 = vpop.f32.mrf.mxu0
  %v417 = vadd.f32 %v325, %v416
  %v418 = vpop.f32.mrf.mxu0
  %v419 = vadd.f32 %v327, %v418
  %420 = vmatmul.bf16.gmra.mxu0 %v348
  %v421 = vpop.f32.mrf.mxu0
  %v422 = vadd.f32 %v330, %v421
  %v423 = vpop.f32.mrf.mxu0
  %v424 = vadd.f32 %v332, %v423
  %425 = vdwg.mxu0
  %vm426 = vcmp.le.s32.totalorder %v68, 14
  %vm427 = vcmp.le.s32.totalorder %v69, 14
  %vm428 = vcmp.le.s32.totalorder %v70, 14
  %vm429 = vcmp.le.s32.totalorder %v71, 14
  %vm430 = vmand %vm80, %vm426
  %vm431 = vmand %vm81, %vm427
  %vm432 = vmand %vm82, %vm428
  %vm433 = vmand %vm83, %vm429
  %v434 = vsel %vm430, 1, 0
  %v435 = vsel %vm431, 1, 0
  %v436 = vsel %vm432, 1, 0
  %v437 = vsel %vm433, 1, 0
  %vm438 = vcmp.eq.s32.totalorder %v434, 1
  %vm439 = vcmp.eq.s32.totalorder %v435, 1
  %vm440 = vcmp.eq.s32.totalorder %v436, 1
  %vm441 = vcmp.eq.s32.totalorder %v437, 1
  %vm442 = vmpackc.low %vm439, %vm438
  %vm443 = vmpackc.low %vm441, %vm440
  %v444 = vsel %vm442, 65537, 0
  %v445 = vsel %vm443, 65537, 0
  %v446 = vperm.slane %v444, 0
  %v447 = vperm.slane %v444, 4
  %v448 = vperm.slane %v445, 0
  %v449 = vperm.slane %v445, 4
  %450 = vrot.lane.b32.xlu0 %v446, 2
  %v451 = vpop.permute.xlu0 %450
  %452 = vrot.lane.b32.xlu0 %v447, 2
  %v453 = vpop.permute.xlu0 %452
  %454 = vrot.lane.b32.xlu0 %v448, 2
  %v455 = vpop.permute.xlu0 %454
  %456 = vrot.lane.b32.xlu0 %v449, 2
  %v457 = vpop.permute.xlu0 %456
  %vm458 = vcmask 15360
  %v459 = vsel %vm458, %v451, %v453
  %v460 = vsel %vm458, %v453, %v455
  %v461 = vsel %vm458, %v455, %v457
  %v462 = vunpack.c.l.b16 %v451
  %v463 = vunpack.c.h.b16 %v451
  %v464 = vunpack.c.l.b16 0
  %v465 = vunpack.c.h.b16 0
  %vm466 = vcmp.ne.s32.totalorder %v462, %v464
  %vm467 = vcmp.ne.s32.totalorder %v463, %v465
  %vm468 = vmpackc.low %vm467, %vm466
  %v469 = vunpack.c.l.b16 %v459
  %v470 = vunpack.c.h.b16 %v459
  %v471 = vunpack.c.l.b16 0
  %v472 = vunpack.c.h.b16 0
  %vm473 = vcmp.ne.s32.totalorder %v469, %v471
  %vm474 = vcmp.ne.s32.totalorder %v470, %v472
  %vm475 = vmpackc.low %vm474, %vm473
  %v476 = vunpack.c.l.b16 %v460
  %v477 = vunpack.c.h.b16 %v460
  %v478 = vunpack.c.l.b16 0
  %v479 = vunpack.c.h.b16 0
  %vm480 = vcmp.ne.s32.totalorder %v476, %v478
  %vm481 = vcmp.ne.s32.totalorder %v477, %v479
  %vm482 = vmpackc.low %vm481, %vm480
  %v483 = vunpack.c.l.b16 %v461
  %v484 = vunpack.c.h.b16 %v461
  %v485 = vunpack.c.l.b16 0
  %v486 = vunpack.c.h.b16 0
  %vm487 = vcmp.ne.s32.totalorder %v483, %v485
  %vm488 = vcmp.ne.s32.totalorder %v484, %v486
  %vm489 = vmpackc.low %vm488, %vm487
  %v490 = vunpack.c.l.b16 %v457
  %v491 = vunpack.c.h.b16 %v457
  %v492 = vunpack.c.l.b16 0
  %v493 = vunpack.c.h.b16 0
  %vm494 = vcmp.ne.s32.totalorder %v490, %v492
  %vm495 = vcmp.ne.s32.totalorder %v491, %v493
  %vm496 = vmpackc.low %vm495, %vm494
  %v497 = vsel %vm468, %v58, 0
  %v498 = vsel %vm475, %v49, 0
  %v499 = vsel %vm482, %v50, 0
  %v500 = vsel %vm489, %v51, 0
  %v501 = vsel %vm496, %v61, 0
  %s502 = scalar_lea.vmem %s1, 32
  %v503 = vld [vmem:[%s502] sm:$0xf]
  %v504 = vld [vmem:[%s502 + $0x4] sm:$0xf]
  %v505 = vld [vmem:[%s502 + $0x8] sm:$0xf]
  %v506 = vld [vmem:[%s502 + $0xc] sm:$0xf]
  %v511 = vunpack.c.l.b16 %v503
  %v512 = vunpack.c.l.b16 %v504
  %v513 = vunpack.c.l.b16 %v505
  %v514 = vunpack.c.l.b16 %v506
  %v515 = vpack.c.b16 %v512, %v511
  %v516 = vpack.c.b16 %v514, %v513
  %522 = vrot.lane.b32.xlu0 %v497, 126
  %v523 = vpop.permute.xlu0 %522
  %524 = vrot.lane.b32.xlu0 %v498, 126
  %v525 = vpop.permute.xlu0 %524
  %526 = vrot.lane.b32.xlu0 %v499, 126
  %v527 = vpop.permute.xlu0 %526
  %528 = vrot.lane.b32.xlu0 %v500, 126
  %v529 = vpop.permute.xlu0 %528
  %530 = vrot.lane.b32.xlu0 %v501, 126
  %v531 = vpop.permute.xlu0 %530
  %vm532 = vcmask 1031168
  %v533 = vsel %vm532, %v523, %v525
  %v534 = vsel %vm532, %v525, %v527
  %v535 = vsel %vm532, %v527, %v529
  %v536 = vsel %vm532, %v529, %v531
  %v542 = vsel %vm251, %v515, 0
  %v545 = vsel %vm251, %v516, 0
  %547 = vmatpush.bf16.msra.mxu0 0
  %548 = vmatpush.bf16.msra.mxu0 0
  %549 = vmatpush.bf16.msra.mxu0 0
  %550 = vmatpush.bf16.msra.mxu0 0
  %551 = vmatpush.bf16.msra.mxu0 0
  %552 = vmatpush.bf16.msra.mxu0 0
  %553 = vmatpush.bf16.msra.mxu0 0
  %554 = vmatpush.bf16.msra.mxu0 %v533
  %555 = vmatmul.bf16.gmra.mxu0 %v542
  %v556 = vpop.f32.mrf.mxu0
  %v557 = vadd.f32 0.0, %v556
  %v558 = vpop.f32.mrf.mxu0
  %v559 = vadd.f32 0.0, %v558
  %560 = vmatmul.bf16.gmra.mxu0 %v545
  %v561 = vpop.f32.mrf.mxu0
  %v562 = vadd.f32 0.0, %v561
  %v563 = vpop.f32.mrf.mxu0
  %v564 = vadd.f32 0.0, %v563
  %565 = vdwg.mxu0
  %566 = vmatpush.bf16.msra.mxu0 0
  %567 = vmatpush.bf16.msra.mxu0 0
  %568 = vmatpush.bf16.msra.mxu0 0
  %569 = vmatpush.bf16.msra.mxu0 0
  %570 = vmatpush.bf16.msra.mxu0 0
  %571 = vmatpush.bf16.msra.mxu0 0
  %572 = vmatpush.bf16.msra.mxu0 0
  %573 = vmatpush.bf16.msra.mxu0 %v534
  %574 = vmatmul.bf16.gmra.mxu0 %v542
  %v575 = vpop.f32.mrf.mxu0
  %v576 = vadd.f32 0.0, %v575
  %v577 = vpop.f32.mrf.mxu0
  %v578 = vadd.f32 0.0, %v577
  %579 = vmatmul.bf16.gmra.mxu0 %v545
  %v580 = vpop.f32.mrf.mxu0
  %v581 = vadd.f32 0.0, %v580
  %v582 = vpop.f32.mrf.mxu0
  %v583 = vadd.f32 0.0, %v582
  %584 = vdwg.mxu0
  %585 = vmatpush.bf16.msra.mxu0 0
  %586 = vmatpush.bf16.msra.mxu0 0
  %587 = vmatpush.bf16.msra.mxu0 0
  %588 = vmatpush.bf16.msra.mxu0 0
  %589 = vmatpush.bf16.msra.mxu0 0
  %590 = vmatpush.bf16.msra.mxu0 0
  %591 = vmatpush.bf16.msra.mxu0 0
  %592 = vmatpush.bf16.msra.mxu0 %v535
  %593 = vmatmul.bf16.gmra.mxu0 %v542
  %v594 = vpop.f32.mrf.mxu0
  %v595 = vadd.f32 0.0, %v594
  %v596 = vpop.f32.mrf.mxu0
  %v597 = vadd.f32 0.0, %v596
  %598 = vmatmul.bf16.gmra.mxu0 %v545
  %v599 = vpop.f32.mrf.mxu0
  %v600 = vadd.f32 0.0, %v599
  %v601 = vpop.f32.mrf.mxu0
  %v602 = vadd.f32 0.0, %v601
  %603 = vdwg.mxu0
  %604 = vmatpush.bf16.msra.mxu0 0
  %605 = vmatpush.bf16.msra.mxu0 0
  %606 = vmatpush.bf16.msra.mxu0 0
  %607 = vmatpush.bf16.msra.mxu0 0
  %608 = vmatpush.bf16.msra.mxu0 0
  %609 = vmatpush.bf16.msra.mxu0 0
  %610 = vmatpush.bf16.msra.mxu0 0
  %611 = vmatpush.bf16.msra.mxu0 %v536
  %612 = vmatmul.bf16.gmra.mxu0 %v542
  %v613 = vpop.f32.mrf.mxu0
  %v614 = vadd.f32 0.0, %v613
  %v615 = vpop.f32.mrf.mxu0
  %v616 = vadd.f32 0.0, %v615
  %617 = vmatmul.bf16.gmra.mxu0 %v545
  %v618 = vpop.f32.mrf.mxu0
  %v619 = vadd.f32 0.0, %v618
  %v620 = vpop.f32.mrf.mxu0
  %v621 = vadd.f32 0.0, %v620
  %622 = vdwg.mxu0
  %v623 = vadd.f32 %v360, %v557
  %v624 = vadd.f32 %v379, %v576
  %v625 = vadd.f32 %v398, %v595
  %v626 = vadd.f32 %v417, %v614
  %v627 = vadd.f32 %v362, %v559
  %v628 = vadd.f32 %v381, %v578
  %v629 = vadd.f32 %v400, %v597
  %v630 = vadd.f32 %v419, %v616
  %v631 = vadd.f32 %v365, %v562
  %v632 = vadd.f32 %v384, %v581
  %v633 = vadd.f32 %v403, %v600
  %v634 = vadd.f32 %v422, %v619
  %v635 = vadd.f32 %v367, %v564
  %v636 = vadd.f32 %v386, %v583
  %v637 = vadd.f32 %v405, %v602
  %v638 = vadd.f32 %v424, %v621
  %v639 = vsel %vm84, 1, 0
  %v640 = vsel %vm85, 1, 0
  %v641 = vsel %vm86, 1, 0
  %v642 = vsel %vm87, 1, 0
  %vm643 = vcmp.eq.s32.totalorder %v639, 1
  %vm644 = vcmp.eq.s32.totalorder %v640, 1
  %vm645 = vcmp.eq.s32.totalorder %v641, 1
  %vm646 = vcmp.eq.s32.totalorder %v642, 1
  %vm647 = vmpackc.low %vm644, %vm643
  %vm648 = vmpackc.low %vm646, %vm645
  %v649 = vsel %vm647, 65537, 0
  %v650 = vsel %vm648, 65537, 0
  %v651 = vperm.slane %v649, 0
  %v652 = vperm.slane %v649, 4
  %v653 = vperm.slane %v650, 0
  %v654 = vperm.slane %v650, 4
  %655 = vrot.lane.b32.xlu0 %v651, 16
  %v656 = vpop.permute.xlu0 %655
  %657 = vrot.lane.b32.xlu0 %v652, 16
  %v658 = vpop.permute.xlu0 %657
  %659 = vrot.lane.b32.xlu0 %v653, 16
  %v660 = vpop.permute.xlu0 %659
  %661 = vrot.lane.b32.xlu0 %v654, 16
  %v662 = vpop.permute.xlu0 %661
  %vm663 = vcmask 130048
  %v664 = vsel %vm663, %v656, %v658
  %v665 = vsel %vm663, %v658, %v660
  %v666 = vsel %vm663, %v660, %v662
  %v667 = vunpack.c.l.b16 %v656
  %v668 = vunpack.c.h.b16 %v656
  %v669 = vunpack.c.l.b16 0
  %v670 = vunpack.c.h.b16 0
  %vm671 = vcmp.ne.s32.totalorder %v667, %v669
  %vm672 = vcmp.ne.s32.totalorder %v668, %v670
  %vm673 = vmpackc.low %vm672, %vm671
  %v674 = vunpack.c.l.b16 %v664
  %v675 = vunpack.c.h.b16 %v664
  %v676 = vunpack.c.l.b16 0
  %v677 = vunpack.c.h.b16 0
  %vm678 = vcmp.ne.s32.totalorder %v674, %v676
  %vm679 = vcmp.ne.s32.totalorder %v675, %v677
  %vm680 = vmpackc.low %vm679, %vm678
  %v681 = vunpack.c.l.b16 %v665
  %v682 = vunpack.c.h.b16 %v665
  %v683 = vunpack.c.l.b16 0
  %v684 = vunpack.c.h.b16 0
  %vm685 = vcmp.ne.s32.totalorder %v681, %v683
  %vm686 = vcmp.ne.s32.totalorder %v682, %v684
  %vm687 = vmpackc.low %vm686, %vm685
  %v688 = vunpack.c.l.b16 %v666
  %v689 = vunpack.c.h.b16 %v666
  %v690 = vunpack.c.l.b16 0
  %v691 = vunpack.c.h.b16 0
  %vm692 = vcmp.ne.s32.totalorder %v688, %v690
  %vm693 = vcmp.ne.s32.totalorder %v689, %v691
  %vm694 = vmpackc.low %vm693, %vm692
  %v695 = vunpack.c.l.b16 %v662
  %v696 = vunpack.c.h.b16 %v662
  %v697 = vunpack.c.l.b16 0
  %v698 = vunpack.c.h.b16 0
  %vm699 = vcmp.ne.s32.totalorder %v695, %v697
  %vm700 = vcmp.ne.s32.totalorder %v696, %v698
  %vm701 = vmpackc.low %vm700, %vm699
  %v702 = vsel %vm673, %v58, 0
  %v703 = vsel %vm680, %v49, 0
  %v704 = vsel %vm687, %v50, 0
  %v705 = vsel %vm694, %v51, 0
  %v706 = vsel %vm701, %v61, 0
  %s707 = scalar_lea.vmem %s1, 48
  %v708 = vld [vmem:[%s707] sm:$0xf]
  %v709 = vld [vmem:[%s707 + $0x4] sm:$0xf]
  %v710 = vld [vmem:[%s707 + $0x8] sm:$0xf]
  %v711 = vld [vmem:[%s707 + $0xc] sm:$0xf]
  %v716 = vunpack.c.l.b16 %v708
  %v717 = vunpack.c.l.b16 %v709
  %v718 = vunpack.c.l.b16 %v710
  %v719 = vunpack.c.l.b16 %v711
  %v720 = vpack.c.b16 %v717, %v716
  %v721 = vpack.c.b16 %v719, %v718
  %727 = vrot.lane.b32.xlu0 %v702, 112
  %v728 = vpop.permute.xlu0 %727
  %729 = vrot.lane.b32.xlu0 %v703, 112
  %v730 = vpop.permute.xlu0 %729
  %731 = vrot.lane.b32.xlu0 %v704, 112
  %v732 = vpop.permute.xlu0 %731
  %733 = vrot.lane.b32.xlu0 %v705, 112
  %v734 = vpop.permute.xlu0 %733
  %735 = vrot.lane.b32.xlu0 %v706, 112
  %v736 = vpop.permute.xlu0 %735
  %vm737 = vcmask 916480
  %v738 = vsel %vm737, %v728, %v730
  %v739 = vsel %vm737, %v730, %v732
  %v740 = vsel %vm737, %v732, %v734
  %v741 = vsel %vm737, %v734, %v736
  %v747 = vsel %vm251, %v720, 0
  %v750 = vsel %vm251, %v721, 0
  %752 = vmatpush.bf16.msra.mxu0 0
  %753 = vmatpush.bf16.msra.mxu0 0
  %754 = vmatpush.bf16.msra.mxu0 0
  %755 = vmatpush.bf16.msra.mxu0 0
  %756 = vmatpush.bf16.msra.mxu0 0
  %757 = vmatpush.bf16.msra.mxu0 0
  %758 = vmatpush.bf16.msra.mxu0 0
  %759 = vmatpush.bf16.msra.mxu0 %v738
  %760 = vmatmul.bf16.gmra.mxu0 %v747
  %v761 = vpop.f32.mrf.mxu0
  %v762 = vadd.f32 0.0, %v761
  %v763 = vpop.f32.mrf.mxu0
  %v764 = vadd.f32 0.0, %v763
  %765 = vmatmul.bf16.gmra.mxu0 %v750
  %v766 = vpop.f32.mrf.mxu0
  %v767 = vadd.f32 0.0, %v766
  %v768 = vpop.f32.mrf.mxu0
  %v769 = vadd.f32 0.0, %v768
  %770 = vdwg.mxu0
  %771 = vmatpush.bf16.msra.mxu0 0
  %772 = vmatpush.bf16.msra.mxu0 0
  %773 = vmatpush.bf16.msra.mxu0 0
  %774 = vmatpush.bf16.msra.mxu0 0
  %775 = vmatpush.bf16.msra.mxu0 0
  %776 = vmatpush.bf16.msra.mxu0 0
  %777 = vmatpush.bf16.msra.mxu0 0
  %778 = vmatpush.bf16.msra.mxu0 %v739
  %779 = vmatmul.bf16.gmra.mxu0 %v747
  %v780 = vpop.f32.mrf.mxu0
  %v781 = vadd.f32 0.0, %v780
  %v782 = vpop.f32.mrf.mxu0
  %v783 = vadd.f32 0.0, %v782
  %784 = vmatmul.bf16.gmra.mxu0 %v750
  %v785 = vpop.f32.mrf.mxu0
  %v786 = vadd.f32 0.0, %v785
  %v787 = vpop.f32.mrf.mxu0
  %v788 = vadd.f32 0.0, %v787
  %789 = vdwg.mxu0
  %790 = vmatpush.bf16.msra.mxu0 0
  %791 = vmatpush.bf16.msra.mxu0 0
  %792 = vmatpush.bf16.msra.mxu0 0
  %793 = vmatpush.bf16.msra.mxu0 0
  %794 = vmatpush.bf16.msra.mxu0 0
  %795 = vmatpush.bf16.msra.mxu0 0
  %796 = vmatpush.bf16.msra.mxu0 0
  %797 = vmatpush.bf16.msra.mxu0 %v740
  %798 = vmatmul.bf16.gmra.mxu0 %v747
  %v799 = vpop.f32.mrf.mxu0
  %v800 = vadd.f32 0.0, %v799
  %v801 = vpop.f32.mrf.mxu0
  %v802 = vadd.f32 0.0, %v801
  %803 = vmatmul.bf16.gmra.mxu0 %v750
  %v804 = vpop.f32.mrf.mxu0
  %v805 = vadd.f32 0.0, %v804
  %v806 = vpop.f32.mrf.mxu0
  %v807 = vadd.f32 0.0, %v806
  %808 = vdwg.mxu0
  %809 = vmatpush.bf16.msra.mxu0 0
  %810 = vmatpush.bf16.msra.mxu0 0
  %811 = vmatpush.bf16.msra.mxu0 0
  %812 = vmatpush.bf16.msra.mxu0 0
  %813 = vmatpush.bf16.msra.mxu0 0
  %814 = vmatpush.bf16.msra.mxu0 0
  %815 = vmatpush.bf16.msra.mxu0 0
  %816 = vmatpush.bf16.msra.mxu0 %v741
  %817 = vmatmul.bf16.gmra.mxu0 %v747
  %v818 = vpop.f32.mrf.mxu0
  %v819 = vadd.f32 0.0, %v818
  %v820 = vpop.f32.mrf.mxu0
  %v821 = vadd.f32 0.0, %v820
  %822 = vmatmul.bf16.gmra.mxu0 %v750
  %v823 = vpop.f32.mrf.mxu0
  %v824 = vadd.f32 0.0, %v823
  %v825 = vpop.f32.mrf.mxu0
  %v826 = vadd.f32 0.0, %v825
  %827 = vdwg.mxu0
  %v828 = vadd.f32 %v623, %v762
  %v829 = vadd.f32 %v624, %v781
  %v830 = vadd.f32 %v625, %v800
  %v831 = vadd.f32 %v626, %v819
  %v832 = vadd.f32 %v627, %v764
  %v833 = vadd.f32 %v628, %v783
  %v834 = vadd.f32 %v629, %v802
  %v835 = vadd.f32 %v630, %v821
  %v836 = vadd.f32 %v631, %v767
  %v837 = vadd.f32 %v632, %v786
  %v838 = vadd.f32 %v633, %v805
  %v839 = vadd.f32 %v634, %v824
  %v840 = vadd.f32 %v635, %v769
  %v841 = vadd.f32 %v636, %v788
  %v842 = vadd.f32 %v637, %v807
  %v843 = vadd.f32 %v638, %v826
  %s844 = scalar_lea.vmem %s1, 64
  %v845 = vld [vmem:[%s844] sm:$0xf]
  %v846 = vld [vmem:[%s844 + $0x4] sm:$0xf]
  %v847 = vld [vmem:[%s844 + $0x8] sm:$0xf]
  %v848 = vld [vmem:[%s844 + $0xc] sm:$0xf]
  %v853 = vunpack.c.l.b16 %v845
  %v854 = vunpack.c.l.b16 %v846
  %v855 = vunpack.c.l.b16 %v847
  %v856 = vunpack.c.l.b16 %v848
  %v857 = vpack.c.b16 %v854, %v853
  %v858 = vpack.c.b16 %v856, %v855
  %861 = vrot.lane.b32.xlu0 %v58, 111
  %v862 = vpop.permute.xlu0 %861
  %863 = vrot.lane.b32.xlu0 %v49, 111
  %v864 = vpop.permute.xlu0 %863
  %865 = vrot.lane.b32.xlu0 %v50, 111
  %v866 = vpop.permute.xlu0 %865
  %867 = vrot.lane.b32.xlu0 %v51, 111
  %v868 = vpop.permute.xlu0 %867
  %869 = vrot.lane.b32.xlu0 %v61, 111
  %v870 = vpop.permute.xlu0 %869
  %vm871 = vcmask 908288
  %v872 = vsel %vm871, %v862, %v864
  %v873 = vsel %vm871, %v864, %v866
  %v874 = vsel %vm871, %v866, %v868
  %v875 = vsel %vm871, %v868, %v870
  %v881 = vsel %vm251, %v857, 0
  %v884 = vsel %vm251, %v858, 0
  %886 = vmatpush.bf16.msra.mxu0 0
  %887 = vmatpush.bf16.msra.mxu0 0
  %888 = vmatpush.bf16.msra.mxu0 0
  %889 = vmatpush.bf16.msra.mxu0 0
  %890 = vmatpush.bf16.msra.mxu0 0
  %891 = vmatpush.bf16.msra.mxu0 0
  %892 = vmatpush.bf16.msra.mxu0 0
  %893 = vmatpush.bf16.msra.mxu0 %v872
  %894 = vmatmul.bf16.gmra.mxu0 %v881
  %v895 = vpop.f32.mrf.mxu0
  %v896 = vadd.f32 0.0, %v895
  %v897 = vpop.f32.mrf.mxu0
  %v898 = vadd.f32 0.0, %v897
  %899 = vmatmul.bf16.gmra.mxu0 %v884
  %v900 = vpop.f32.mrf.mxu0
  %v901 = vadd.f32 0.0, %v900
  %v902 = vpop.f32.mrf.mxu0
  %v903 = vadd.f32 0.0, %v902
  %904 = vdwg.mxu0
  %905 = vmatpush.bf16.msra.mxu0 0
  %906 = vmatpush.bf16.msra.mxu0 0
  %907 = vmatpush.bf16.msra.mxu0 0
  %908 = vmatpush.bf16.msra.mxu0 0
  %909 = vmatpush.bf16.msra.mxu0 0
  %910 = vmatpush.bf16.msra.mxu0 0
  %911 = vmatpush.bf16.msra.mxu0 0
  %912 = vmatpush.bf16.msra.mxu0 %v873
  %913 = vmatmul.bf16.gmra.mxu0 %v881
  %v914 = vpop.f32.mrf.mxu0
  %v915 = vadd.f32 0.0, %v914
  %v916 = vpop.f32.mrf.mxu0
  %v917 = vadd.f32 0.0, %v916
  %918 = vmatmul.bf16.gmra.mxu0 %v884
  %v919 = vpop.f32.mrf.mxu0
  %v920 = vadd.f32 0.0, %v919
  %v921 = vpop.f32.mrf.mxu0
  %v922 = vadd.f32 0.0, %v921
  %923 = vdwg.mxu0
  %924 = vmatpush.bf16.msra.mxu0 0
  %925 = vmatpush.bf16.msra.mxu0 0
  %926 = vmatpush.bf16.msra.mxu0 0
  %927 = vmatpush.bf16.msra.mxu0 0
  %928 = vmatpush.bf16.msra.mxu0 0
  %929 = vmatpush.bf16.msra.mxu0 0
  %930 = vmatpush.bf16.msra.mxu0 0
  %931 = vmatpush.bf16.msra.mxu0 %v874
  %932 = vmatmul.bf16.gmra.mxu0 %v881
  %v933 = vpop.f32.mrf.mxu0
  %v934 = vadd.f32 0.0, %v933
  %v935 = vpop.f32.mrf.mxu0
  %v936 = vadd.f32 0.0, %v935
  %937 = vmatmul.bf16.gmra.mxu0 %v884
  %v938 = vpop.f32.mrf.mxu0
  %v939 = vadd.f32 0.0, %v938
  %v940 = vpop.f32.mrf.mxu0
  %v941 = vadd.f32 0.0, %v940
  %942 = vdwg.mxu0
  %943 = vmatpush.bf16.msra.mxu0 0
  %944 = vmatpush.bf16.msra.mxu0 0
  %945 = vmatpush.bf16.msra.mxu0 0
  %946 = vmatpush.bf16.msra.mxu0 0
  %947 = vmatpush.bf16.msra.mxu0 0
  %948 = vmatpush.bf16.msra.mxu0 0
  %949 = vmatpush.bf16.msra.mxu0 0
  %950 = vmatpush.bf16.msra.mxu0 %v875
  %951 = vmatmul.bf16.gmra.mxu0 %v881
  %v952 = vpop.f32.mrf.mxu0
  %v953 = vadd.f32 0.0, %v952
  %v954 = vpop.f32.mrf.mxu0
  %v955 = vadd.f32 0.0, %v954
  %956 = vmatmul.bf16.gmra.mxu0 %v884
  %v957 = vpop.f32.mrf.mxu0
  %v958 = vadd.f32 0.0, %v957
  %v959 = vpop.f32.mrf.mxu0
  %v960 = vadd.f32 0.0, %v959
  %961 = vdwg.mxu0
  %v962 = vadd.f32 %v828, %v896
  %v963 = vadd.f32 %v829, %v915
  %v964 = vadd.f32 %v830, %v934
  %v965 = vadd.f32 %v831, %v953
  %v966 = vadd.f32 %v832, %v898
  %v967 = vadd.f32 %v833, %v917
  %v968 = vadd.f32 %v834, %v936
  %v969 = vadd.f32 %v835, %v955
  %v970 = vadd.f32 %v836, %v901
  %v971 = vadd.f32 %v837, %v920
  %v972 = vadd.f32 %v838, %v939
  %v973 = vadd.f32 %v839, %v958
  %v974 = vadd.f32 %v840, %v903
  %v975 = vadd.f32 %v841, %v922
  %v976 = vadd.f32 %v842, %v941
  %v977 = vadd.f32 %v843, %v960
  %v978 = vsel %vm426, 1, 0
  %v979 = vsel %vm427, 1, 0
  %v980 = vsel %vm428, 1, 0
  %v981 = vsel %vm429, 1, 0
  %vm982 = vcmp.eq.s32.totalorder %v978, 1
  %vm983 = vcmp.eq.s32.totalorder %v979, 1
  %vm984 = vcmp.eq.s32.totalorder %v980, 1
  %vm985 = vcmp.eq.s32.totalorder %v981, 1
  %vm986 = vmpackc.low %vm983, %vm982
  %vm987 = vmpackc.low %vm985, %vm984
  %v988 = vsel %vm986, 65537, 0
  %v989 = vsel %vm987, 65537, 0
  %v990 = vperm.slane %v988, 0
  %v991 = vperm.slane %v988, 4
  %v992 = vperm.slane %v989, 0
  %v993 = vperm.slane %v989, 4
  %994 = vrot.lane.b32.xlu0 %v990, 18
  %v995 = vpop.permute.xlu0 %994
  %996 = vrot.lane.b32.xlu0 %v991, 18
  %v997 = vpop.permute.xlu0 %996
  %998 = vrot.lane.b32.xlu0 %v992, 18
  %v999 = vpop.permute.xlu0 %998
  %1000 = vrot.lane.b32.xlu0 %v993, 18
  %v1001 = vpop.permute.xlu0 %1000
  %vm1002 = vcmask 146432
  %v1003 = vsel %vm1002, %v995, %v997
  %v1004 = vsel %vm1002, %v997, %v999
  %v1005 = vsel %vm1002, %v999, %v1001
  %v1006 = vunpack.c.l.b16 %v995
  %v1007 = vunpack.c.h.b16 %v995
  %v1008 = vunpack.c.l.b16 0
  %v1009 = vunpack.c.h.b16 0
  %vm1010 = vcmp.ne.s32.totalorder %v1006, %v1008
  %vm1011 = vcmp.ne.s32.totalorder %v1007, %v1009
  %vm1012 = vmpackc.low %vm1011, %vm1010
  %v1013 = vunpack.c.l.b16 %v1003
  %v1014 = vunpack.c.h.b16 %v1003
  %v1015 = vunpack.c.l.b16 0
  %v1016 = vunpack.c.h.b16 0
  %vm1017 = vcmp.ne.s32.totalorder %v1013, %v1015
  %vm1018 = vcmp.ne.s32.totalorder %v1014, %v1016
  %vm1019 = vmpackc.low %vm1018, %vm1017
  %v1020 = vunpack.c.l.b16 %v1004
  %v1021 = vunpack.c.h.b16 %v1004
  %v1022 = vunpack.c.l.b16 0
  %v1023 = vunpack.c.h.b16 0
  %vm1024 = vcmp.ne.s32.totalorder %v1020, %v1022
  %vm1025 = vcmp.ne.s32.totalorder %v1021, %v1023
  %vm1026 = vmpackc.low %vm1025, %vm1024
  %v1027 = vunpack.c.l.b16 %v1005
  %v1028 = vunpack.c.h.b16 %v1005
  %v1029 = vunpack.c.l.b16 0
  %v1030 = vunpack.c.h.b16 0
  %vm1031 = vcmp.ne.s32.totalorder %v1027, %v1029
  %vm1032 = vcmp.ne.s32.totalorder %v1028, %v1030
  %vm1033 = vmpackc.low %vm1032, %vm1031
  %v1034 = vunpack.c.l.b16 %v1001
  %v1035 = vunpack.c.h.b16 %v1001
  %v1036 = vunpack.c.l.b16 0
  %v1037 = vunpack.c.h.b16 0
  %vm1038 = vcmp.ne.s32.totalorder %v1034, %v1036
  %vm1039 = vcmp.ne.s32.totalorder %v1035, %v1037
  %vm1040 = vmpackc.low %vm1039, %vm1038
  %v1041 = vsel %vm1012, %v58, 0
  %v1042 = vsel %vm1019, %v49, 0
  %v1043 = vsel %vm1026, %v50, 0
  %v1044 = vsel %vm1033, %v51, 0
  %v1045 = vsel %vm1040, %v61, 0
  %s1046 = scalar_lea.vmem %s1, 80
  %v1047 = vld [vmem:[%s1046] sm:$0xf]
  %v1048 = vld [vmem:[%s1046 + $0x4] sm:$0xf]
  %v1049 = vld [vmem:[%s1046 + $0x8] sm:$0xf]
  %v1050 = vld [vmem:[%s1046 + $0xc] sm:$0xf]
  %v1055 = vunpack.c.l.b16 %v1047
  %v1056 = vunpack.c.l.b16 %v1048
  %v1057 = vunpack.c.l.b16 %v1049
  %v1058 = vunpack.c.l.b16 %v1050
  %v1059 = vpack.c.b16 %v1056, %v1055
  %v1060 = vpack.c.b16 %v1058, %v1057
  %1066 = vrot.lane.b32.xlu0 %v1041, 110
  %v1067 = vpop.permute.xlu0 %1066
  %1068 = vrot.lane.b32.xlu0 %v1042, 110
  %v1069 = vpop.permute.xlu0 %1068
  %1070 = vrot.lane.b32.xlu0 %v1043, 110
  %v1071 = vpop.permute.xlu0 %1070
  %1072 = vrot.lane.b32.xlu0 %v1044, 110
  %v1073 = vpop.permute.xlu0 %1072
  %1074 = vrot.lane.b32.xlu0 %v1045, 110
  %v1075 = vpop.permute.xlu0 %1074
  %vm1076 = vcmask 900096
  %v1077 = vsel %vm1076, %v1067, %v1069
  %v1078 = vsel %vm1076, %v1069, %v1071
  %v1079 = vsel %vm1076, %v1071, %v1073
  %v1080 = vsel %vm1076, %v1073, %v1075
  %v1086 = vsel %vm251, %v1059, 0
  %v1089 = vsel %vm251, %v1060, 0
  %1091 = vmatpush.bf16.msra.mxu0 0
  %1092 = vmatpush.bf16.msra.mxu0 0
  %1093 = vmatpush.bf16.msra.mxu0 0
  %1094 = vmatpush.bf16.msra.mxu0 0
  %1095 = vmatpush.bf16.msra.mxu0 0
  %1096 = vmatpush.bf16.msra.mxu0 0
  %1097 = vmatpush.bf16.msra.mxu0 0
  %1098 = vmatpush.bf16.msra.mxu0 %v1077
  %1099 = vmatmul.bf16.gmra.mxu0 %v1086
  %v1100 = vpop.f32.mrf.mxu0
  %v1101 = vadd.f32 0.0, %v1100
  %v1102 = vpop.f32.mrf.mxu0
  %v1103 = vadd.f32 0.0, %v1102
  %1104 = vmatmul.bf16.gmra.mxu0 %v1089
  %v1105 = vpop.f32.mrf.mxu0
  %v1106 = vadd.f32 0.0, %v1105
  %v1107 = vpop.f32.mrf.mxu0
  %v1108 = vadd.f32 0.0, %v1107
  %1109 = vdwg.mxu0
  %1110 = vmatpush.bf16.msra.mxu0 0
  %1111 = vmatpush.bf16.msra.mxu0 0
  %1112 = vmatpush.bf16.msra.mxu0 0
  %1113 = vmatpush.bf16.msra.mxu0 0
  %1114 = vmatpush.bf16.msra.mxu0 0
  %1115 = vmatpush.bf16.msra.mxu0 0
  %1116 = vmatpush.bf16.msra.mxu0 0
  %1117 = vmatpush.bf16.msra.mxu0 %v1078
  %1118 = vmatmul.bf16.gmra.mxu0 %v1086
  %v1119 = vpop.f32.mrf.mxu0
  %v1120 = vadd.f32 0.0, %v1119
  %v1121 = vpop.f32.mrf.mxu0
  %v1122 = vadd.f32 0.0, %v1121
  %1123 = vmatmul.bf16.gmra.mxu0 %v1089
  %v1124 = vpop.f32.mrf.mxu0
  %v1125 = vadd.f32 0.0, %v1124
  %v1126 = vpop.f32.mrf.mxu0
  %v1127 = vadd.f32 0.0, %v1126
  %1128 = vdwg.mxu0
  %1129 = vmatpush.bf16.msra.mxu0 0
  %1130 = vmatpush.bf16.msra.mxu0 0
  %1131 = vmatpush.bf16.msra.mxu0 0
  %1132 = vmatpush.bf16.msra.mxu0 0
  %1133 = vmatpush.bf16.msra.mxu0 0
  %1134 = vmatpush.bf16.msra.mxu0 0
  %1135 = vmatpush.bf16.msra.mxu0 0
  %1136 = vmatpush.bf16.msra.mxu0 %v1079
  %1137 = vmatmul.bf16.gmra.mxu0 %v1086
  %v1138 = vpop.f32.mrf.mxu0
  %v1139 = vadd.f32 0.0, %v1138
  %v1140 = vpop.f32.mrf.mxu0
  %v1141 = vadd.f32 0.0, %v1140
  %1142 = vmatmul.bf16.gmra.mxu0 %v1089
  %v1143 = vpop.f32.mrf.mxu0
  %v1144 = vadd.f32 0.0, %v1143
  %v1145 = vpop.f32.mrf.mxu0
  %v1146 = vadd.f32 0.0, %v1145
  %1147 = vdwg.mxu0
  %1148 = vmatpush.bf16.msra.mxu0 0
  %1149 = vmatpush.bf16.msra.mxu0 0
  %1150 = vmatpush.bf16.msra.mxu0 0
  %1151 = vmatpush.bf16.msra.mxu0 0
  %1152 = vmatpush.bf16.msra.mxu0 0
  %1153 = vmatpush.bf16.msra.mxu0 0
  %1154 = vmatpush.bf16.msra.mxu0 0
  %1155 = vmatpush.bf16.msra.mxu0 %v1080
  %1156 = vmatmul.bf16.gmra.mxu0 %v1086
  %v1157 = vpop.f32.mrf.mxu0
  %v1158 = vadd.f32 0.0, %v1157
  %v1159 = vpop.f32.mrf.mxu0
  %v1160 = vadd.f32 0.0, %v1159
  %1161 = vmatmul.bf16.gmra.mxu0 %v1089
  %v1162 = vpop.f32.mrf.mxu0
  %v1163 = vadd.f32 0.0, %v1162
  %v1164 = vpop.f32.mrf.mxu0
  %v1165 = vadd.f32 0.0, %v1164
  %1166 = vdwg.mxu0
  %v1167 = vadd.f32 %v962, %v1101
  %v1168 = vadd.f32 %v963, %v1120
  %v1169 = vadd.f32 %v964, %v1139
  %v1170 = vadd.f32 %v965, %v1158
  %v1171 = vadd.f32 %v966, %v1103
  %v1172 = vadd.f32 %v967, %v1122
  %v1173 = vadd.f32 %v968, %v1141
  %v1174 = vadd.f32 %v969, %v1160
  %v1175 = vadd.f32 %v970, %v1106
  %v1176 = vadd.f32 %v971, %v1125
  %v1177 = vadd.f32 %v972, %v1144
  %v1178 = vadd.f32 %v973, %v1163
  %v1179 = vadd.f32 %v974, %v1108
  %v1180 = vadd.f32 %v975, %v1127
  %v1181 = vadd.f32 %v976, %v1146
  %v1182 = vadd.f32 %v977, %v1165
  %vm1183 = vcmp.le.s32.totalorder %v76, 14
  %vm1184 = vcmp.le.s32.totalorder %v77, 14
  %vm1185 = vcmp.le.s32.totalorder %v78, 14
  %vm1186 = vcmp.le.s32.totalorder %v79, 14
  %vm1187 = vmand %vm1183, %vm84
  %vm1188 = vmand %vm1184, %vm85
  %vm1189 = vmand %vm1185, %vm86
  %vm1190 = vmand %vm1186, %vm87
  %v1191 = vsel %vm1187, 1, 0
  %v1192 = vsel %vm1188, 1, 0
  %v1193 = vsel %vm1189, 1, 0
  %v1194 = vsel %vm1190, 1, 0
  %vm1195 = vcmp.eq.s32.totalorder %v1191, 1
  %vm1196 = vcmp.eq.s32.totalorder %v1192, 1
  %vm1197 = vcmp.eq.s32.totalorder %v1193, 1
  %vm1198 = vcmp.eq.s32.totalorder %v1194, 1
  %vm1199 = vmpackc.low %vm1196, %vm1195
  %vm1200 = vmpackc.low %vm1198, %vm1197
  %v1201 = vsel %vm1199, 65537, 0
  %v1202 = vsel %vm1200, 65537, 0
  %v1203 = vperm.slane %v1201, 0
  %v1204 = vperm.slane %v1201, 4
  %v1205 = vperm.slane %v1202, 0
  %v1206 = vperm.slane %v1202, 4
  %1207 = vrot.lane.b32.xlu0 %v1203, 32
  %v1208 = vpop.permute.xlu0 %1207
  %1209 = vrot.lane.b32.xlu0 %v1204, 32
  %v1210 = vpop.permute.xlu0 %1209
  %1211 = vrot.lane.b32.xlu0 %v1205, 32
  %v1212 = vpop.permute.xlu0 %1211
  %1213 = vrot.lane.b32.xlu0 %v1206, 32
  %v1214 = vpop.permute.xlu0 %1213
  %vm1215 = vcmask 261120
  %v1216 = vsel %vm1215, %v1208, %v1210
  %v1217 = vsel %vm1215, %v1210, %v1212
  %v1218 = vsel %vm1215, %v1212, %v1214
  %v1219 = vunpack.c.l.b16 %v1208
  %v1220 = vunpack.c.h.b16 %v1208
  %v1221 = vunpack.c.l.b16 0
  %v1222 = vunpack.c.h.b16 0
  %vm1223 = vcmp.ne.s32.totalorder %v1219, %v1221
  %vm1224 = vcmp.ne.s32.totalorder %v1220, %v1222
  %vm1225 = vmpackc.low %vm1224, %vm1223
  %v1226 = vunpack.c.l.b16 %v1216
  %v1227 = vunpack.c.h.b16 %v1216
  %v1228 = vunpack.c.l.b16 0
  %v1229 = vunpack.c.h.b16 0
  %vm1230 = vcmp.ne.s32.totalorder %v1226, %v1228
  %vm1231 = vcmp.ne.s32.totalorder %v1227, %v1229
  %vm1232 = vmpackc.low %vm1231, %vm1230
  %v1233 = vunpack.c.l.b16 %v1217
  %v1234 = vunpack.c.h.b16 %v1217
  %v1235 = vunpack.c.l.b16 0
  %v1236 = vunpack.c.h.b16 0
  %vm1237 = vcmp.ne.s32.totalorder %v1233, %v1235
  %vm1238 = vcmp.ne.s32.totalorder %v1234, %v1236
  %vm1239 = vmpackc.low %vm1238, %vm1237
  %v1240 = vunpack.c.l.b16 %v1218
  %v1241 = vunpack.c.h.b16 %v1218
  %v1242 = vunpack.c.l.b16 0
  %v1243 = vunpack.c.h.b16 0
  %vm1244 = vcmp.ne.s32.totalorder %v1240, %v1242
  %vm1245 = vcmp.ne.s32.totalorder %v1241, %v1243
  %vm1246 = vmpackc.low %vm1245, %vm1244
  %v1247 = vunpack.c.l.b16 %v1214
  %v1248 = vunpack.c.h.b16 %v1214
  %v1249 = vunpack.c.l.b16 0
  %v1250 = vunpack.c.h.b16 0
  %vm1251 = vcmp.ne.s32.totalorder %v1247, %v1249
  %vm1252 = vcmp.ne.s32.totalorder %v1248, %v1250
  %vm1253 = vmpackc.low %vm1252, %vm1251
  %v1254 = vsel %vm1225, %v58, 0
  %v1255 = vsel %vm1232, %v49, 0
  %v1256 = vsel %vm1239, %v50, 0
  %v1257 = vsel %vm1246, %v51, 0
  %v1258 = vsel %vm1253, %v61, 0
  %s1259 = scalar_lea.vmem %s1, 96
  %v1260 = vld [vmem:[%s1259] sm:$0xf]
  %v1261 = vld [vmem:[%s1259 + $0x4] sm:$0xf]
  %v1262 = vld [vmem:[%s1259 + $0x8] sm:$0xf]
  %v1263 = vld [vmem:[%s1259 + $0xc] sm:$0xf]
  %v1268 = vunpack.c.l.b16 %v1260
  %v1269 = vunpack.c.l.b16 %v1261
  %v1270 = vunpack.c.l.b16 %v1262
  %v1271 = vunpack.c.l.b16 %v1263
  %v1272 = vpack.c.b16 %v1269, %v1268
  %v1273 = vpack.c.b16 %v1271, %v1270
  %1279 = vrot.lane.b32.xlu0 %v1254, 96
  %v1280 = vpop.permute.xlu0 %1279
  %1281 = vrot.lane.b32.xlu0 %v1255, 96
  %v1282 = vpop.permute.xlu0 %1281
  %1283 = vrot.lane.b32.xlu0 %v1256, 96
  %v1284 = vpop.permute.xlu0 %1283
  %1285 = vrot.lane.b32.xlu0 %v1257, 96
  %v1286 = vpop.permute.xlu0 %1285
  %1287 = vrot.lane.b32.xlu0 %v1258, 96
  %v1288 = vpop.permute.xlu0 %1287
  %vm1289 = vcmask 785408
  %v1290 = vsel %vm1289, %v1280, %v1282
  %v1291 = vsel %vm1289, %v1282, %v1284
  %v1292 = vsel %vm1289, %v1284, %v1286
  %v1293 = vsel %vm1289, %v1286, %v1288
  %v1299 = vsel %vm251, %v1272, 0
  %v1302 = vsel %vm251, %v1273, 0
  %1304 = vmatpush.bf16.msra.mxu0 0
  %1305 = vmatpush.bf16.msra.mxu0 0
  %1306 = vmatpush.bf16.msra.mxu0 0
  %1307 = vmatpush.bf16.msra.mxu0 0
  %1308 = vmatpush.bf16.msra.mxu0 0
  %1309 = vmatpush.bf16.msra.mxu0 0
  %1310 = vmatpush.bf16.msra.mxu0 0
  %1311 = vmatpush.bf16.msra.mxu0 %v1290
  %1312 = vmatmul.bf16.gmra.mxu0 %v1299
  %v1313 = vpop.f32.mrf.mxu0
  %v1314 = vadd.f32 0.0, %v1313
  %v1315 = vpop.f32.mrf.mxu0
  %v1316 = vadd.f32 0.0, %v1315
  %1317 = vmatmul.bf16.gmra.mxu0 %v1302
  %v1318 = vpop.f32.mrf.mxu0
  %v1319 = vadd.f32 0.0, %v1318
  %v1320 = vpop.f32.mrf.mxu0
  %v1321 = vadd.f32 0.0, %v1320
  %1322 = vdwg.mxu0
  %1323 = vmatpush.bf16.msra.mxu0 0
  %1324 = vmatpush.bf16.msra.mxu0 0
  %1325 = vmatpush.bf16.msra.mxu0 0
  %1326 = vmatpush.bf16.msra.mxu0 0
  %1327 = vmatpush.bf16.msra.mxu0 0
  %1328 = vmatpush.bf16.msra.mxu0 0
  %1329 = vmatpush.bf16.msra.mxu0 0
  %1330 = vmatpush.bf16.msra.mxu0 %v1291
  %1331 = vmatmul.bf16.gmra.mxu0 %v1299
  %v1332 = vpop.f32.mrf.mxu0
  %v1333 = vadd.f32 0.0, %v1332
  %v1334 = vpop.f32.mrf.mxu0
  %v1335 = vadd.f32 0.0, %v1334
  %1336 = vmatmul.bf16.gmra.mxu0 %v1302
  %v1337 = vpop.f32.mrf.mxu0
  %v1338 = vadd.f32 0.0, %v1337
  %v1339 = vpop.f32.mrf.mxu0
  %v1340 = vadd.f32 0.0, %v1339
  %1341 = vdwg.mxu0
  %1342 = vmatpush.bf16.msra.mxu0 0
  %1343 = vmatpush.bf16.msra.mxu0 0
  %1344 = vmatpush.bf16.msra.mxu0 0
  %1345 = vmatpush.bf16.msra.mxu0 0
  %1346 = vmatpush.bf16.msra.mxu0 0
  %1347 = vmatpush.bf16.msra.mxu0 0
  %1348 = vmatpush.bf16.msra.mxu0 0
  %1349 = vmatpush.bf16.msra.mxu0 %v1292
  %1350 = vmatmul.bf16.gmra.mxu0 %v1299
  %v1351 = vpop.f32.mrf.mxu0
  %v1352 = vadd.f32 0.0, %v1351
  %v1353 = vpop.f32.mrf.mxu0
  %v1354 = vadd.f32 0.0, %v1353
  %1355 = vmatmul.bf16.gmra.mxu0 %v1302
  %v1356 = vpop.f32.mrf.mxu0
  %v1357 = vadd.f32 0.0, %v1356
  %v1358 = vpop.f32.mrf.mxu0
  %v1359 = vadd.f32 0.0, %v1358
  %1360 = vdwg.mxu0
  %1361 = vmatpush.bf16.msra.mxu0 0
  %1362 = vmatpush.bf16.msra.mxu0 0
  %1363 = vmatpush.bf16.msra.mxu0 0
  %1364 = vmatpush.bf16.msra.mxu0 0
  %1365 = vmatpush.bf16.msra.mxu0 0
  %1366 = vmatpush.bf16.msra.mxu0 0
  %1367 = vmatpush.bf16.msra.mxu0 0
  %1368 = vmatpush.bf16.msra.mxu0 %v1293
  %1369 = vmatmul.bf16.gmra.mxu0 %v1299
  %v1370 = vpop.f32.mrf.mxu0
  %v1371 = vadd.f32 0.0, %v1370
  %v1372 = vpop.f32.mrf.mxu0
  %v1373 = vadd.f32 0.0, %v1372
  %1374 = vmatmul.bf16.gmra.mxu0 %v1302
  %v1375 = vpop.f32.mrf.mxu0
  %v1376 = vadd.f32 0.0, %v1375
  %v1377 = vpop.f32.mrf.mxu0
  %v1378 = vadd.f32 0.0, %v1377
  %1379 = vdwg.mxu0
  %v1380 = vadd.f32 %v1167, %v1314
  %v1381 = vadd.f32 %v1168, %v1333
  %v1382 = vadd.f32 %v1169, %v1352
  %v1383 = vadd.f32 %v1170, %v1371
  %v1384 = vadd.f32 %v1171, %v1316
  %v1385 = vadd.f32 %v1172, %v1335
  %v1386 = vadd.f32 %v1173, %v1354
  %v1387 = vadd.f32 %v1174, %v1373
  %v1388 = vadd.f32 %v1175, %v1319
  %v1389 = vadd.f32 %v1176, %v1338
  %v1390 = vadd.f32 %v1177, %v1357
  %v1391 = vadd.f32 %v1178, %v1376
  %v1392 = vadd.f32 %v1179, %v1321
  %v1393 = vadd.f32 %v1180, %v1340
  %v1394 = vadd.f32 %v1181, %v1359
  %v1395 = vadd.f32 %v1182, %v1378
  %v1396 = vsel %vm1183, 1, 0
  %v1397 = vsel %vm1184, 1, 0
  %v1398 = vsel %vm1185, 1, 0
  %v1399 = vsel %vm1186, 1, 0
  %vm1400 = vcmp.eq.s32.totalorder %v1396, 1
  %vm1401 = vcmp.eq.s32.totalorder %v1397, 1
  %vm1402 = vcmp.eq.s32.totalorder %v1398, 1
  %vm1403 = vcmp.eq.s32.totalorder %v1399, 1
  %vm1404 = vmpackc.low %vm1401, %vm1400
  %vm1405 = vmpackc.low %vm1403, %vm1402
  %v1406 = vsel %vm1404, 65537, 0
  %v1407 = vsel %vm1405, 65537, 0
  %v1408 = vperm.slane %v1406, 0
  %v1409 = vperm.slane %v1406, 4
  %v1410 = vperm.slane %v1407, 0
  %v1411 = vperm.slane %v1407, 4
  %1412 = vrot.lane.b32.xlu0 %v1408, 33
  %v1413 = vpop.permute.xlu0 %1412
  %1414 = vrot.lane.b32.xlu0 %v1409, 33
  %v1415 = vpop.permute.xlu0 %1414
  %1416 = vrot.lane.b32.xlu0 %v1410, 33
  %v1417 = vpop.permute.xlu0 %1416
  %1418 = vrot.lane.b32.xlu0 %v1411, 33
  %v1419 = vpop.permute.xlu0 %1418
  %vm1420 = vcmask 269312
  %v1421 = vsel %vm1420, %v1413, %v1415
  %v1422 = vsel %vm1420, %v1415, %v1417
  %v1423 = vsel %vm1420, %v1417, %v1419
  %v1424 = vunpack.c.l.b16 %v1413
  %v1425 = vunpack.c.h.b16 %v1413
  %v1426 = vunpack.c.l.b16 0
  %v1427 = vunpack.c.h.b16 0
  %vm1428 = vcmp.ne.s32.totalorder %v1424, %v1426
  %vm1429 = vcmp.ne.s32.totalorder %v1425, %v1427
  %vm1430 = vmpackc.low %vm1429, %vm1428
  %v1431 = vunpack.c.l.b16 %v1421
  %v1432 = vunpack.c.h.b16 %v1421
  %v1433 = vunpack.c.l.b16 0
  %v1434 = vunpack.c.h.b16 0
  %vm1435 = vcmp.ne.s32.totalorder %v1431, %v1433
  %vm1436 = vcmp.ne.s32.totalorder %v1432, %v1434
  %vm1437 = vmpackc.low %vm1436, %vm1435
  %v1438 = vunpack.c.l.b16 %v1422
  %v1439 = vunpack.c.h.b16 %v1422
  %v1440 = vunpack.c.l.b16 0
  %v1441 = vunpack.c.h.b16 0
  %vm1442 = vcmp.ne.s32.totalorder %v1438, %v1440
  %vm1443 = vcmp.ne.s32.totalorder %v1439, %v1441
  %vm1444 = vmpackc.low %vm1443, %vm1442
  %v1445 = vunpack.c.l.b16 %v1423
  %v1446 = vunpack.c.h.b16 %v1423
  %v1447 = vunpack.c.l.b16 0
  %v1448 = vunpack.c.h.b16 0
  %vm1449 = vcmp.ne.s32.totalorder %v1445, %v1447
  %vm1450 = vcmp.ne.s32.totalorder %v1446, %v1448
  %vm1451 = vmpackc.low %vm1450, %vm1449
  %v1452 = vunpack.c.l.b16 %v1419
  %v1453 = vunpack.c.h.b16 %v1419
  %v1454 = vunpack.c.l.b16 0
  %v1455 = vunpack.c.h.b16 0
  %vm1456 = vcmp.ne.s32.totalorder %v1452, %v1454
  %vm1457 = vcmp.ne.s32.totalorder %v1453, %v1455
  %vm1458 = vmpackc.low %vm1457, %vm1456
  %v1459 = vsel %vm1430, %v58, 0
  %v1460 = vsel %vm1437, %v49, 0
  %v1461 = vsel %vm1444, %v50, 0
  %v1462 = vsel %vm1451, %v51, 0
  %v1463 = vsel %vm1458, %v61, 0
  %s1464 = scalar_lea.vmem %s1, 112
  %v1465 = vld [vmem:[%s1464] sm:$0xf]
  %v1466 = vld [vmem:[%s1464 + $0x4] sm:$0xf]
  %v1467 = vld [vmem:[%s1464 + $0x8] sm:$0xf]
  %v1468 = vld [vmem:[%s1464 + $0xc] sm:$0xf]
  %v1473 = vunpack.c.l.b16 %v1465
  %v1474 = vunpack.c.l.b16 %v1466
  %v1475 = vunpack.c.l.b16 %v1467
  %v1476 = vunpack.c.l.b16 %v1468
  %v1477 = vpack.c.b16 %v1474, %v1473
  %v1478 = vpack.c.b16 %v1476, %v1475
  %1484 = vrot.lane.b32.xlu0 %v1459, 95
  %v1485 = vpop.permute.xlu0 %1484
  %1486 = vrot.lane.b32.xlu0 %v1460, 95
  %v1487 = vpop.permute.xlu0 %1486
  %1488 = vrot.lane.b32.xlu0 %v1461, 95
  %v1489 = vpop.permute.xlu0 %1488
  %1490 = vrot.lane.b32.xlu0 %v1462, 95
  %v1491 = vpop.permute.xlu0 %1490
  %1492 = vrot.lane.b32.xlu0 %v1463, 95
  %v1493 = vpop.permute.xlu0 %1492
  %vm1494 = vcmask 777216
  %v1495 = vsel %vm1494, %v1485, %v1487
  %v1496 = vsel %vm1494, %v1487, %v1489
  %v1497 = vsel %vm1494, %v1489, %v1491
  %v1498 = vsel %vm1494, %v1491, %v1493
  %v1504 = vsel %vm251, %v1477, 0
  %v1507 = vsel %vm251, %v1478, 0
  %1509 = vmatpush.bf16.msra.mxu0 0
  %1510 = vmatpush.bf16.msra.mxu0 0
  %1511 = vmatpush.bf16.msra.mxu0 0
  %1512 = vmatpush.bf16.msra.mxu0 0
  %1513 = vmatpush.bf16.msra.mxu0 0
  %1514 = vmatpush.bf16.msra.mxu0 0
  %1515 = vmatpush.bf16.msra.mxu0 0
  %1516 = vmatpush.bf16.msra.mxu0 %v1495
  %1517 = vmatmul.bf16.gmra.mxu0 %v1504
  %v1518 = vpop.f32.mrf.mxu0
  %v1519 = vadd.f32 0.0, %v1518
  %v1520 = vpop.f32.mrf.mxu0
  %v1521 = vadd.f32 0.0, %v1520
  %1522 = vmatmul.bf16.gmra.mxu0 %v1507
  %v1523 = vpop.f32.mrf.mxu0
  %v1524 = vadd.f32 0.0, %v1523
  %v1525 = vpop.f32.mrf.mxu0
  %v1526 = vadd.f32 0.0, %v1525
  %1527 = vdwg.mxu0
  %1528 = vmatpush.bf16.msra.mxu0 0
  %1529 = vmatpush.bf16.msra.mxu0 0
  %1530 = vmatpush.bf16.msra.mxu0 0
  %1531 = vmatpush.bf16.msra.mxu0 0
  %1532 = vmatpush.bf16.msra.mxu0 0
  %1533 = vmatpush.bf16.msra.mxu0 0
  %1534 = vmatpush.bf16.msra.mxu0 0
  %1535 = vmatpush.bf16.msra.mxu0 %v1496
  %1536 = vmatmul.bf16.gmra.mxu0 %v1504
  %v1537 = vpop.f32.mrf.mxu0
  %v1538 = vadd.f32 0.0, %v1537
  %v1539 = vpop.f32.mrf.mxu0
  %v1540 = vadd.f32 0.0, %v1539
  %1541 = vmatmul.bf16.gmra.mxu0 %v1507
  %v1542 = vpop.f32.mrf.mxu0
  %v1543 = vadd.f32 0.0, %v1542
  %v1544 = vpop.f32.mrf.mxu0
  %v1545 = vadd.f32 0.0, %v1544
  %1546 = vdwg.mxu0
  %1547 = vmatpush.bf16.msra.mxu0 0
  %1548 = vmatpush.bf16.msra.mxu0 0
  %1549 = vmatpush.bf16.msra.mxu0 0
  %1550 = vmatpush.bf16.msra.mxu0 0
  %1551 = vmatpush.bf16.msra.mxu0 0
  %1552 = vmatpush.bf16.msra.mxu0 0
  %1553 = vmatpush.bf16.msra.mxu0 0
  %1554 = vmatpush.bf16.msra.mxu0 %v1497
  %1555 = vmatmul.bf16.gmra.mxu0 %v1504
  %v1556 = vpop.f32.mrf.mxu0
  %v1557 = vadd.f32 0.0, %v1556
  %v1558 = vpop.f32.mrf.mxu0
  %v1559 = vadd.f32 0.0, %v1558
  %1560 = vmatmul.bf16.gmra.mxu0 %v1507
  %v1561 = vpop.f32.mrf.mxu0
  %v1562 = vadd.f32 0.0, %v1561
  %v1563 = vpop.f32.mrf.mxu0
  %v1564 = vadd.f32 0.0, %v1563
  %1565 = vdwg.mxu0
  %1566 = vmatpush.bf16.msra.mxu0 0
  %1567 = vmatpush.bf16.msra.mxu0 0
  %1568 = vmatpush.bf16.msra.mxu0 0
  %1569 = vmatpush.bf16.msra.mxu0 0
  %1570 = vmatpush.bf16.msra.mxu0 0
  %1571 = vmatpush.bf16.msra.mxu0 0
  %1572 = vmatpush.bf16.msra.mxu0 0
  %1573 = vmatpush.bf16.msra.mxu0 %v1498
  %1574 = vmatmul.bf16.gmra.mxu0 %v1504
  %v1575 = vpop.f32.mrf.mxu0
  %v1576 = vadd.f32 0.0, %v1575
  %v1577 = vpop.f32.mrf.mxu0
  %v1578 = vadd.f32 0.0, %v1577
  %1579 = vmatmul.bf16.gmra.mxu0 %v1507
  %v1580 = vpop.f32.mrf.mxu0
  %v1581 = vadd.f32 0.0, %v1580
  %v1582 = vpop.f32.mrf.mxu0
  %v1583 = vadd.f32 0.0, %v1582
  %1584 = vdwg.mxu0
  %v1585 = vadd.f32 %v1380, %v1519
  %v1586 = vadd.f32 %v1381, %v1538
  %v1587 = vadd.f32 %v1382, %v1557
  %v1588 = vadd.f32 %v1383, %v1576
  %v1589 = vadd.f32 %v1384, %v1521
  %v1590 = vadd.f32 %v1385, %v1540
  %v1591 = vadd.f32 %v1386, %v1559
  %v1592 = vadd.f32 %v1387, %v1578
  %v1593 = vadd.f32 %v1388, %v1524
  %v1594 = vadd.f32 %v1389, %v1543
  %v1595 = vadd.f32 %v1390, %v1562
  %v1596 = vadd.f32 %v1391, %v1581
  %v1597 = vadd.f32 %v1392, %v1526
  %v1598 = vadd.f32 %v1393, %v1545
  %v1599 = vadd.f32 %v1394, %v1564
  %v1600 = vadd.f32 %v1395, %v1583
  %vm1601 = vmand %vm1183, %vm426
  %vm1602 = vmand %vm1184, %vm427
  %vm1603 = vmand %vm1185, %vm428
  %vm1604 = vmand %vm1186, %vm429
  %v1605 = vsel %vm1601, 1, 0
  %v1606 = vsel %vm1602, 1, 0
  %v1607 = vsel %vm1603, 1, 0
  %v1608 = vsel %vm1604, 1, 0
  %vm1609 = vcmp.eq.s32.totalorder %v1605, 1
  %vm1610 = vcmp.eq.s32.totalorder %v1606, 1
  %vm1611 = vcmp.eq.s32.totalorder %v1607, 1
  %vm1612 = vcmp.eq.s32.totalorder %v1608, 1
  %vm1613 = vmpackc.low %vm1610, %vm1609
  %vm1614 = vmpackc.low %vm1612, %vm1611
  %v1615 = vsel %vm1613, 65537, 0
  %v1616 = vsel %vm1614, 65537, 0
  %v1617 = vperm.slane %v1615, 0
  %v1618 = vperm.slane %v1615, 4
  %v1619 = vperm.slane %v1616, 0
  %v1620 = vperm.slane %v1616, 4
  %1621 = vrot.lane.b32.xlu0 %v1617, 34
  %v1622 = vpop.permute.xlu0 %1621
  %1623 = vrot.lane.b32.xlu0 %v1618, 34
  %v1624 = vpop.permute.xlu0 %1623
  %1625 = vrot.lane.b32.xlu0 %v1619, 34
  %v1626 = vpop.permute.xlu0 %1625
  %1627 = vrot.lane.b32.xlu0 %v1620, 34
  %v1628 = vpop.permute.xlu0 %1627
  %vm1629 = vcmask 277504
  %v1630 = vsel %vm1629, %v1622, %v1624
  %v1631 = vsel %vm1629, %v1624, %v1626
  %v1632 = vsel %vm1629, %v1626, %v1628
  %v1633 = vunpack.c.l.b16 %v1622
  %v1634 = vunpack.c.h.b16 %v1622
  %v1635 = vunpack.c.l.b16 0
  %v1636 = vunpack.c.h.b16 0
  %vm1637 = vcmp.ne.s32.totalorder %v1633, %v1635
  %vm1638 = vcmp.ne.s32.totalorder %v1634, %v1636
  %vm1639 = vmpackc.low %vm1638, %vm1637
  %v1640 = vunpack.c.l.b16 %v1630
  %v1641 = vunpack.c.h.b16 %v1630
  %v1642 = vunpack.c.l.b16 0
  %v1643 = vunpack.c.h.b16 0
  %vm1644 = vcmp.ne.s32.totalorder %v1640, %v1642
  %vm1645 = vcmp.ne.s32.totalorder %v1641, %v1643
  %vm1646 = vmpackc.low %vm1645, %vm1644
  %v1647 = vunpack.c.l.b16 %v1631
  %v1648 = vunpack.c.h.b16 %v1631
  %v1649 = vunpack.c.l.b16 0
  %v1650 = vunpack.c.h.b16 0
  %vm1651 = vcmp.ne.s32.totalorder %v1647, %v1649
  %vm1652 = vcmp.ne.s32.totalorder %v1648, %v1650
  %vm1653 = vmpackc.low %vm1652, %vm1651
  %v1654 = vunpack.c.l.b16 %v1632
  %v1655 = vunpack.c.h.b16 %v1632
  %v1656 = vunpack.c.l.b16 0
  %v1657 = vunpack.c.h.b16 0
  %vm1658 = vcmp.ne.s32.totalorder %v1654, %v1656
  %vm1659 = vcmp.ne.s32.totalorder %v1655, %v1657
  %vm1660 = vmpackc.low %vm1659, %vm1658
  %v1661 = vunpack.c.l.b16 %v1628
  %v1662 = vunpack.c.h.b16 %v1628
  %v1663 = vunpack.c.l.b16 0
  %v1664 = vunpack.c.h.b16 0
  %vm1665 = vcmp.ne.s32.totalorder %v1661, %v1663
  %vm1666 = vcmp.ne.s32.totalorder %v1662, %v1664
  %vm1667 = vmpackc.low %vm1666, %vm1665
  %v1668 = vsel %vm1639, %v58, 0
  %v1669 = vsel %vm1646, %v49, 0
  %v1670 = vsel %vm1653, %v50, 0
  %v1671 = vsel %vm1660, %v51, 0
  %v1672 = vsel %vm1667, %v61, 0
  %s1673 = scalar_lea.vmem %s1, 128
  %v1674 = vld [vmem:[%s1673] sm:$0xf]
  %v1675 = vld [vmem:[%s1673 + $0x4] sm:$0xf]
  %v1676 = vld [vmem:[%s1673 + $0x8] sm:$0xf]
  %v1677 = vld [vmem:[%s1673 + $0xc] sm:$0xf]
  %v1682 = vunpack.c.l.b16 %v1674
  %v1683 = vunpack.c.l.b16 %v1675
  %v1684 = vunpack.c.l.b16 %v1676
  %v1685 = vunpack.c.l.b16 %v1677
  %v1686 = vpack.c.b16 %v1683, %v1682
  %v1687 = vpack.c.b16 %v1685, %v1684
  %1693 = vrot.lane.b32.xlu0 %v1668, 94
  %v1694 = vpop.permute.xlu0 %1693
  %1695 = vrot.lane.b32.xlu0 %v1669, 94
  %v1696 = vpop.permute.xlu0 %1695
  %1697 = vrot.lane.b32.xlu0 %v1670, 94
  %v1698 = vpop.permute.xlu0 %1697
  %1699 = vrot.lane.b32.xlu0 %v1671, 94
  %v1700 = vpop.permute.xlu0 %1699
  %1701 = vrot.lane.b32.xlu0 %v1672, 94
  %v1702 = vpop.permute.xlu0 %1701
  %vm1703 = vcmask 769024
  %v1704 = vsel %vm1703, %v1694, %v1696
  %v1705 = vsel %vm1703, %v1696, %v1698
  %v1706 = vsel %vm1703, %v1698, %v1700
  %v1707 = vsel %vm1703, %v1700, %v1702
  %v1713 = vsel %vm251, %v1686, 0
  %v1716 = vsel %vm251, %v1687, 0
  %1718 = vmatpush.bf16.msra.mxu0 0
  %1719 = vmatpush.bf16.msra.mxu0 0
  %1720 = vmatpush.bf16.msra.mxu0 0
  %1721 = vmatpush.bf16.msra.mxu0 0
  %1722 = vmatpush.bf16.msra.mxu0 0
  %1723 = vmatpush.bf16.msra.mxu0 0
  %1724 = vmatpush.bf16.msra.mxu0 0
  %1725 = vmatpush.bf16.msra.mxu0 %v1704
  %1726 = vmatmul.bf16.gmra.mxu0 %v1713
  %v1727 = vpop.f32.mrf.mxu0
  %v1728 = vadd.f32 0.0, %v1727
  %v1729 = vpop.f32.mrf.mxu0
  %v1730 = vadd.f32 0.0, %v1729
  %1731 = vmatmul.bf16.gmra.mxu0 %v1716
  %v1732 = vpop.f32.mrf.mxu0
  %v1733 = vadd.f32 0.0, %v1732
  %v1734 = vpop.f32.mrf.mxu0
  %v1735 = vadd.f32 0.0, %v1734
  %1736 = vdwg.mxu0
  %1737 = vmatpush.bf16.msra.mxu0 0
  %1738 = vmatpush.bf16.msra.mxu0 0
  %1739 = vmatpush.bf16.msra.mxu0 0
  %1740 = vmatpush.bf16.msra.mxu0 0
  %1741 = vmatpush.bf16.msra.mxu0 0
  %1742 = vmatpush.bf16.msra.mxu0 0
  %1743 = vmatpush.bf16.msra.mxu0 0
  %1744 = vmatpush.bf16.msra.mxu0 %v1705
  %1745 = vmatmul.bf16.gmra.mxu0 %v1713
  %v1746 = vpop.f32.mrf.mxu0
  %v1747 = vadd.f32 0.0, %v1746
  %v1748 = vpop.f32.mrf.mxu0
  %v1749 = vadd.f32 0.0, %v1748
  %1750 = vmatmul.bf16.gmra.mxu0 %v1716
  %v1751 = vpop.f32.mrf.mxu0
  %v1752 = vadd.f32 0.0, %v1751
  %v1753 = vpop.f32.mrf.mxu0
  %v1754 = vadd.f32 0.0, %v1753
  %1755 = vdwg.mxu0
  %1756 = vmatpush.bf16.msra.mxu0 0
  %1757 = vmatpush.bf16.msra.mxu0 0
  %1758 = vmatpush.bf16.msra.mxu0 0
  %1759 = vmatpush.bf16.msra.mxu0 0
  %1760 = vmatpush.bf16.msra.mxu0 0
  %1761 = vmatpush.bf16.msra.mxu0 0
  %1762 = vmatpush.bf16.msra.mxu0 0
  %1763 = vmatpush.bf16.msra.mxu0 %v1706
  %1764 = vmatmul.bf16.gmra.mxu0 %v1713
  %v1765 = vpop.f32.mrf.mxu0
  %v1766 = vadd.f32 0.0, %v1765
  %v1767 = vpop.f32.mrf.mxu0
  %v1768 = vadd.f32 0.0, %v1767
  %1769 = vmatmul.bf16.gmra.mxu0 %v1716
  %v1770 = vpop.f32.mrf.mxu0
  %v1771 = vadd.f32 0.0, %v1770
  %v1772 = vpop.f32.mrf.mxu0
  %v1773 = vadd.f32 0.0, %v1772
  %1774 = vdwg.mxu0
  %1775 = vmatpush.bf16.msra.mxu0 0
  %1776 = vmatpush.bf16.msra.mxu0 0
  %1777 = vmatpush.bf16.msra.mxu0 0
  %1778 = vmatpush.bf16.msra.mxu0 0
  %1779 = vmatpush.bf16.msra.mxu0 0
  %1780 = vmatpush.bf16.msra.mxu0 0
  %1781 = vmatpush.bf16.msra.mxu0 0
  %1782 = vmatpush.bf16.msra.mxu0 %v1707
  %1783 = vmatmul.bf16.gmra.mxu0 %v1713
  %v1784 = vpop.f32.mrf.mxu0
  %v1785 = vadd.f32 0.0, %v1784
  %v1786 = vpop.f32.mrf.mxu0
  %v1787 = vadd.f32 0.0, %v1786
  %1788 = vmatmul.bf16.gmra.mxu0 %v1716
  %v1789 = vpop.f32.mrf.mxu0
  %v1790 = vadd.f32 0.0, %v1789
  %v1791 = vpop.f32.mrf.mxu0
  %v1792 = vadd.f32 0.0, %v1791
  %1793 = vdwg.mxu0
  %v1794 = vadd.f32 %v1585, %v1728
  %v1795 = vadd.f32 %v1586, %v1747
  %v1796 = vadd.f32 %v1587, %v1766
  %v1797 = vadd.f32 %v1588, %v1785
  %v1798 = vadd.f32 %v1589, %v1730
  %v1799 = vadd.f32 %v1590, %v1749
  %v1800 = vadd.f32 %v1591, %v1768
  %v1801 = vadd.f32 %v1592, %v1787
  %v1802 = vadd.f32 %v1593, %v1733
  %v1803 = vadd.f32 %v1594, %v1752
  %v1804 = vadd.f32 %v1595, %v1771
  %v1805 = vadd.f32 %v1596, %v1790
  %v1806 = vadd.f32 %v1597, %v1735
  %v1807 = vadd.f32 %v1598, %v1754
  %v1808 = vadd.f32 %v1599, %v1773
  %v1809 = vadd.f32 %v1600, %v1792
  %v1810 = vadd.f32 %v1794, %v1795
  %v1811 = vadd.f32 %v1810, %v1796
  %v1812 = vadd.f32 %v1811, %v1797
  %1813 = vadd.xlane.f32.xlu0 %v1812
  %v1814 = vpop.xlane.xlu0 %1813
  %v1815 = vadd.f32 %v1798, %v1799
  %v1816 = vadd.f32 %v1815, %v1800
  %v1817 = vadd.f32 %v1816, %v1801
  %1818 = vadd.xlane.f32.xlu0 %v1817
  %v1819 = vpop.xlane.xlu0 %1818
  %v1820 = vadd.f32 %v1802, %v1803
  %v1821 = vadd.f32 %v1820, %v1804
  %v1822 = vadd.f32 %v1821, %v1805
  %1823 = vadd.xlane.f32.xlu0 %v1822
  %v1824 = vpop.xlane.xlu0 %1823
  %v1825 = vadd.f32 %v1806, %v1807
  %v1826 = vadd.f32 %v1825, %v1808
  %v1827 = vadd.f32 %v1826, %v1809
  %1828 = vadd.xlane.f32.xlu0 %v1827
  %v1829 = vpop.xlane.xlu0 %1828
  %v1830 = vmul.f32 %v1794, %v1794
  %v1831 = vmul.f32 %v1795, %v1795
  %v1832 = vmul.f32 %v1796, %v1796
  %v1833 = vmul.f32 %v1797, %v1797
  %v1834 = vmul.f32 %v1798, %v1798
  %v1835 = vmul.f32 %v1799, %v1799
  %v1836 = vmul.f32 %v1800, %v1800
  %v1837 = vmul.f32 %v1801, %v1801
  %v1838 = vmul.f32 %v1802, %v1802
  %v1839 = vmul.f32 %v1803, %v1803
  %v1840 = vmul.f32 %v1804, %v1804
  %v1841 = vmul.f32 %v1805, %v1805
  %v1842 = vmul.f32 %v1806, %v1806
  %v1843 = vmul.f32 %v1807, %v1807
  %v1844 = vmul.f32 %v1808, %v1808
  %v1845 = vmul.f32 %v1809, %v1809
  %v1846 = vadd.f32 %v1830, %v1831
  %v1847 = vadd.f32 %v1846, %v1832
  %v1848 = vadd.f32 %v1847, %v1833
  %1849 = vadd.xlane.f32.xlu0 %v1848
  %v1850 = vpop.xlane.xlu0 %1849
  %v1851 = vadd.f32 %v1834, %v1835
  %v1852 = vadd.f32 %v1851, %v1836
  %v1853 = vadd.f32 %v1852, %v1837
  %1854 = vadd.xlane.f32.xlu0 %v1853
  %v1855 = vpop.xlane.xlu0 %1854
  %v1856 = vadd.f32 %v1838, %v1839
  %v1857 = vadd.f32 %v1856, %v1840
  %v1858 = vadd.f32 %v1857, %v1841
  %1859 = vadd.xlane.f32.xlu0 %v1858
  %v1860 = vpop.xlane.xlu0 %1859
  %v1861 = vadd.f32 %v1842, %v1843
  %v1862 = vadd.f32 %v1861, %v1844
  %v1863 = vadd.f32 %v1862, %v1845
  %1864 = vadd.xlane.f32.xlu0 %v1863
  %v1865 = vpop.xlane.xlu0 %1864
  %v1866 = vadd.f32 %v1814, %v1819
  %v1867 = vadd.f32 %v1866, %v1824
  %v1868 = vadd.f32 %v1867, %v1829
  %v1869 = vadd.f32 %v1850, %v1855
  %v1870 = vadd.f32 %v1869, %v1860
  %v1871 = vadd.f32 %v1870, %v1865
  %v1872 = vmul.f32 %v1868, 0.00048828125
  %v1873 = vmul.f32 %v1871, 0.00048828125
  %v1874 = vmul.f32 %v1872, %v1872
  %v1875 = vsub.f32 %v1873, %v1874
  %v1876 = vmax.f32 %v1875, 0.0
  %v1877 = vld [vmem:[%s2] sm:$0xff]
  %v1878 = vadd.f32 %v1876, 1e-05
  %v1879 = vrsqrt.pop %v1878
  %v1880 = vmul.f32 %v1879, %v1878
  %v1881 = vmul.f32 %v1880, %v1879
  %v1882 = vmul.f32 0.5, %v1881
  %v1883 = vsub.f32 1.5, %v1882
  %v1884 = vmul.f32 %v1879, %v1883
  %vm1885 = vweird.f32 %v1878
  %vm1886 = vweird.f32 %v1879
  %vm1887 = vmor %vm1885, %vm1886
  %v1888 = vsel %vm1887, %v1879, %v1884
  %v1889 = vmul.f32 %v1877, %v1888
  %v1890 = vld [vmem:[%s3] sm:$0xff]
  %v1891 = vmul.f32 %v1872, %v1889
  %v1892 = vsub.f32 %v1890, %v1891
  %1894 = vset.pattern.permute.xlu0 0
  %1895 = vperm.xlu0 %1894, %v1889
  %v1896 = vpop.permute.xlu0 %1895
  %v1898 = vmul.f32 %v1794, %v1896
  %v1899 = vmul.f32 %v1795, %v1896
  %v1900 = vmul.f32 %v1796, %v1896
  %v1901 = vmul.f32 %v1797, %v1896
  %v1902 = vmul.f32 %v1798, %v1896
  %v1903 = vmul.f32 %v1799, %v1896
  %v1904 = vmul.f32 %v1800, %v1896
  %v1905 = vmul.f32 %v1801, %v1896
  %v1906 = vmul.f32 %v1802, %v1896
  %v1907 = vmul.f32 %v1803, %v1896
  %v1908 = vmul.f32 %v1804, %v1896
  %v1909 = vmul.f32 %v1805, %v1896
  %v1910 = vmul.f32 %v1806, %v1896
  %v1911 = vmul.f32 %v1807, %v1896
  %v1912 = vmul.f32 %v1808, %v1896
  %v1913 = vmul.f32 %v1809, %v1896
  %1915 = vset.pattern.permute.xlu0 0
  %1916 = vperm.xlu0 %1915, %v1892
  %v1917 = vpop.permute.xlu0 %1916
  %v1919 = vadd.f32 %v1898, %v1917
  %v1920 = vadd.f32 %v1899, %v1917
  %v1921 = vadd.f32 %v1900, %v1917
  %v1922 = vadd.f32 %v1901, %v1917
  %v1923 = vadd.f32 %v1902, %v1917
  %v1924 = vadd.f32 %v1903, %v1917
  %v1925 = vadd.f32 %v1904, %v1917
  %v1926 = vadd.f32 %v1905, %v1917
  %v1927 = vadd.f32 %v1906, %v1917
  %v1928 = vadd.f32 %v1907, %v1917
  %v1929 = vadd.f32 %v1908, %v1917
  %v1930 = vadd.f32 %v1909, %v1917
  %v1931 = vadd.f32 %v1910, %v1917
  %v1932 = vadd.f32 %v1911, %v1917
  %v1933 = vadd.f32 %v1912, %v1917
  %v1934 = vadd.f32 %v1913, %v1917
  %v1935 = vmax.f32 %v1919, 0.0
  %v1936 = vmax.f32 %v1920, 0.0
  %v1937 = vmax.f32 %v1921, 0.0
  %v1938 = vmax.f32 %v1922, 0.0
  %v1939 = vmax.f32 %v1923, 0.0
  %v1940 = vmax.f32 %v1924, 0.0
  %v1941 = vmax.f32 %v1925, 0.0
  %v1942 = vmax.f32 %v1926, 0.0
  %v1943 = vmax.f32 %v1927, 0.0
  %v1944 = vmax.f32 %v1928, 0.0
  %v1945 = vmax.f32 %v1929, 0.0
  %v1946 = vmax.f32 %v1930, 0.0
  %v1947 = vmax.f32 %v1931, 0.0
  %v1948 = vmax.f32 %v1932, 0.0
  %v1949 = vmax.f32 %v1933, 0.0
  %v1950 = vmax.f32 %v1934, 0.0
  %v1951 = vpack.c.bf16 %v1936, %v1935
  %v1952 = vpack.c.bf16 %v1938, %v1937
  %v1953 = vpack.c.bf16 %v1940, %v1939
  %v1954 = vpack.c.bf16 %v1942, %v1941
  %v1955 = vpack.c.bf16 %v1944, %v1943
  %v1956 = vpack.c.bf16 %v1946, %v1945
  %v1957 = vpack.c.bf16 %v1948, %v1947
  %v1958 = vpack.c.bf16 %v1950, %v1949
  %1959 = vst [vmem:[%s4] sm:$0xff] %v1951
  %1960 = vst [vmem:[%s4 + $0x8] sm:$0xff] %v1952
  %1961 = vst [vmem:[%s4 + $0x10] sm:$0xff] %v1953
  %1962 = vst [vmem:[%s4 + $0x18] sm:$0xff] %v1954
  %1963 = vst [vmem:[%s4 + $0x20] sm:$0xff] %v1955
  %1964 = vst [vmem:[%s4 + $0x28] sm:$0xff] %v1956
  %1965 = vst [vmem:[%s4 + $0x30] sm:$0xff] %v1957
  %1966 = vst [vmem:[%s4 + $0x38] sm:$0xff] %v1958
  // Predicated region
  $region18: #{decoder_forward.6} parent=0 // pred_check
    _
  $region19: #{decoder_forward.6} parent=0 // pred_check_branch
    %1968 = sbr.rel (0) target = $region21
  $region20: #{decoder_forward.6} parent=0 // pred_region
    _
  $region21: #{decoder_forward.6} parent=0 // pred_fallthru
    _
  // Predicated region
  $region22: #{decoder_forward.6} parent=0 // pred_check
    _
  $region23: #{decoder_forward.6} parent=0 // pred_check_branch
    %1970 = sbr.rel (0) target = $region25
  $region24: #{decoder_forward.6} parent=0 // pred_region
    _
  $region25: #{decoder_forward.6} parent=0 // pred_fallthru
    _

// kernel: decoder_forward.7
$region0: #{decoder_forward.7}
  #allocation0 [shape = 'u32[]', space=smem, size = 0x4, offset = 0x4, fixed_abs, tag = 'smem constant byte address 0x4 - core index']
  #allocation1 [shape = 'u32[72,128]{1,0:T(1,128)}', space=vmem, size = 0x9000, scoped, tag = 'internal scratch']
  %s0 = inlined_call_operand.vmem [shape: bf16[8,2048], index: 0, kind: input, shape index: {}]
  %s1 = inlined_call_operand.vmem [shape: bf16[9,12,8], index: 1, kind: input, shape index: {}]
  %s2 = inlined_call_operand.vmem [shape: f32[12,2048], index: 2, kind: output, shape index: {}]
  %s3 = sld [smem:[#allocation0]]
  $region18: #{decoder_forward.7} parent=0
    _
  %s5 = ssub.s32 1, %s3
  %s6 = scalar_select 0, %s5, %s3
  // Predicated region
  $region2: #{decoder_forward.7} parent=0 // pred_check
    _
  $region3: #{decoder_forward.7} parent=0 // pred_check_branch
    %8 = sbr.rel (0) target = $region5
  $region4: #{decoder_forward.7} parent=0 // pred_region
    _
  $region5: #{decoder_forward.7} parent=0 // pred_fallthru
    _
  // Predicated region
  $region6: #{decoder_forward.7} parent=0 // pred_check
    _
  $region7: #{decoder_forward.7} parent=0 // pred_check_branch
    %10 = sbr.rel (0) target = $region9
  $region8: #{decoder_forward.7} parent=0 // pred_region
    _
  $region9: #{decoder_forward.7} parent=0 // pred_fallthru
    _
  %v14 = vld [vmem:[%s0] sm:$0xff]
  %v15 = vld [vmem:[%s0 + $0x8] sm:$0xff]
  %v16 = vld [vmem:[%s0 + $0x10] sm:$0xff]
  %v17 = vld [vmem:[%s0 + $0x18] sm:$0xff]
  %v18 = vld [vmem:[%s0 + $0x20] sm:$0xff]
  %v19 = vld [vmem:[%s0 + $0x28] sm:$0xff]
  %v20 = vld [vmem:[%s0 + $0x30] sm:$0xff]
  %v21 = vld [vmem:[%s0 + $0x38] sm:$0xff]
  %v30 = vunpack.c.l.b16 %v14
  %v31 = vunpack.c.h.b16 %v14
  %v32 = vunpack.c.l.b16 %v15
  %v33 = vunpack.c.h.b16 %v15
  %v34 = vunpack.c.l.b16 %v16
  %v35 = vunpack.c.h.b16 %v16
  %v36 = vunpack.c.l.b16 %v17
  %v37 = vunpack.c.h.b16 %v17
  %v38 = vunpack.c.l.b16 %v18
  %v39 = vunpack.c.h.b16 %v18
  %v40 = vunpack.c.l.b16 %v19
  %v41 = vunpack.c.h.b16 %v19
  %v42 = vunpack.c.l.b16 %v20
  %v43 = vunpack.c.h.b16 %v20
  %v44 = vunpack.c.l.b16 %v21
  %v45 = vunpack.c.h.b16 %v21
  %v46 = vpack.c.b16 %v30, %v30
  %v47 = vpack.c.b16 %v31, %v31
  %v48 = vpack.c.b16 %v32, %v32
  %v49 = vpack.c.b16 %v33, %v33
  %v50 = vpack.c.b16 %v34, %v34
  %v51 = vpack.c.b16 %v35, %v35
  %v52 = vpack.c.b16 %v36, %v36
  %v53 = vpack.c.b16 %v37, %v37
  %v54 = vpack.c.b16 %v38, %v38
  %v55 = vpack.c.b16 %v39, %v39
  %v56 = vpack.c.b16 %v40, %v40
  %v57 = vpack.c.b16 %v41, %v41
  %v58 = vpack.c.b16 %v42, %v42
  %v59 = vpack.c.b16 %v43, %v43
  %v60 = vpack.c.b16 %v44, %v44
  %v61 = vpack.c.b16 %v45, %v45
  %62 = vrot.lane.b32.xlu0 %v46, 33
  %v63 = vpop.permute.xlu0 %62
  %64 = vrot.lane.b32.xlu0 %v47, 33
  %v65 = vpop.permute.xlu0 %64
  %66 = vrot.lane.b32.xlu0 %v48, 33
  %v67 = vpop.permute.xlu0 %66
  %68 = vrot.lane.b32.xlu0 %v49, 33
  %v69 = vpop.permute.xlu0 %68
  %70 = vrot.lane.b32.xlu0 %v50, 33
  %v71 = vpop.permute.xlu0 %70
  %72 = vrot.lane.b32.xlu0 %v51, 33
  %v73 = vpop.permute.xlu0 %72
  %74 = vrot.lane.b32.xlu0 %v52, 33
  %v75 = vpop.permute.xlu0 %74
  %76 = vrot.lane.b32.xlu0 %v53, 33
  %v77 = vpop.permute.xlu0 %76
  %78 = vrot.lane.b32.xlu0 %v54, 33
  %v79 = vpop.permute.xlu0 %78
  %80 = vrot.lane.b32.xlu0 %v55, 33
  %v81 = vpop.permute.xlu0 %80
  %82 = vrot.lane.b32.xlu0 %v56, 33
  %v83 = vpop.permute.xlu0 %82
  %84 = vrot.lane.b32.xlu0 %v57, 33
  %v85 = vpop.permute.xlu0 %84
  %86 = vrot.lane.b32.xlu0 %v58, 33
  %v87 = vpop.permute.xlu0 %86
  %88 = vrot.lane.b32.xlu0 %v59, 33
  %v89 = vpop.permute.xlu0 %88
  %90 = vrot.lane.b32.xlu0 %v60, 33
  %v91 = vpop.permute.xlu0 %90
  %92 = vrot.lane.b32.xlu0 %v61, 33
  %v93 = vpop.permute.xlu0 %92
  %vm94 = vcmask 269312
  %v95 = vsel %vm94, %v63, %v65
  %v96 = vsel %vm94, %v65, %v67
  %v97 = vsel %vm94, %v67, %v69
  %v98 = vsel %vm94, %v69, %v71
  %v99 = vsel %vm94, %v71, %v73
  %v100 = vsel %vm94, %v73, %v75
  %v101 = vsel %vm94, %v75, %v77
  %v102 = vsel %vm94, %v77, %v79
  %v103 = vsel %vm94, %v79, %v81
  %v104 = vsel %vm94, %v81, %v83
  %v105 = vsel %vm94, %v83, %v85
  %v106 = vsel %vm94, %v85, %v87
  %v107 = vsel %vm94, %v87, %v89
  %v108 = vsel %vm94, %v89, %v91
  %v109 = vsel %vm94, %v91, %v93
  %vm125 = vcmask 269312
  %v128 = vsel %vm125, 0, %v63
  %v131 = vsel %vm125, %v93, 0
  %v133 = vlaneseq
  %v134 = vand.u32 %v133, 127
  %v135 = vadd.s32 %v134, 128
  %v136 = vadd.s32 %v134, 256
  %v137 = vadd.s32 %v134, 384
  %v138 = vadd.s32 %v134, 512
  %v139 = vadd.s32 %v134, 640
  %v140 = vadd.s32 %v134, 768
  %v141 = vadd.s32 %v134, 896
  %v142 = vadd.s32 %v134, 1024
  %v143 = vadd.s32 %v134, 1152
  %v144 = vadd.s32 %v134, 1280
  %v145 = vadd.s32 %v134, 1408
  %v146 = vadd.s32 %v134, 1536
  %v147 = vadd.s32 %v134, 1664
  %v148 = vadd.s32 %v134, 1792
  %v149 = vadd.s32 %v134, 1920
  %v150 = vand.u32 %v134, 31
  %v151 = vand.u32 %v135, 31
  %v152 = vand.u32 %v136, 31
  %v153 = vand.u32 %v137, 31
  %v154 = vand.u32 %v138, 31
  %v155 = vand.u32 %v139, 31
  %v156 = vand.u32 %v140, 31
  %v157 = vand.u32 %v141, 31
  %v158 = vand.u32 %v142, 31
  %v159 = vand.u32 %v143, 31
  %v160 = vand.u32 %v144, 31
  %v161 = vand.u32 %v145, 31
  %v162 = vand.u32 %v146, 31
  %v163 = vand.u32 %v147, 31
  %v164 = vand.u32 %v148, 31
  %v165 = vand.u32 %v149, 31
  %v166 = vshra.s32 %v134, 5
  %v167 = vshra.s32 %v135, 5
  %v168 = vshra.s32 %v136, 5
  %v169 = vshra.s32 %v137, 5
  %v170 = vshra.s32 %v138, 5
  %v171 = vshra.s32 %v139, 5
  %v172 = vshra.s32 %v140, 5
  %v173 = vshra.s32 %v141, 5
  %v174 = vshra.s32 %v142, 5
  %v175 = vshra.s32 %v143, 5
  %v176 = vshra.s32 %v144, 5
  %v177 = vshra.s32 %v145, 5
  %v178 = vshra.s32 %v146, 5
  %v179 = vshra.s32 %v147, 5
  %v180 = vshra.s32 %v148, 5
  %v181 = vshra.s32 %v149, 5
  %v182 = vand.u32 %v166, 31
  %v183 = vand.u32 %v167, 31
  %v184 = vand.u32 %v168, 31
  %v185 = vand.u32 %v169, 31
  %v186 = vand.u32 %v170, 31
  %v187 = vand.u32 %v171, 31
  %v188 = vand.u32 %v172, 31
  %v189 = vand.u32 %v173, 31
  %v190 = vand.u32 %v174, 31
  %v191 = vand.u32 %v175, 31
  %v192 = vand.u32 %v176, 31
  %v193 = vand.u32 %v177, 31
  %v194 = vand.u32 %v178, 31
  %v195 = vand.u32 %v179, 31
  %v196 = vand.u32 %v180, 31
  %v197 = vand.u32 %v181, 31
  %vm198 = vcmp.ge.s32.totalorder %v182, 1
  %vm199 = vcmp.ge.s32.totalorder %v183, 1
  %vm200 = vcmp.ge.s32.totalorder %v184, 1
  %vm201 = vcmp.ge.s32.totalorder %v185, 1
  %vm202 = vcmp.ge.s32.totalorder %v186, 1
  %vm203 = vcmp.ge.s32.totalorder %v187, 1
  %vm204 = vcmp.ge.s32.totalorder %v188, 1
  %vm205 = vcmp.ge.s32.totalorder %v189, 1
  %vm206 = vcmp.ge.s32.totalorder %v190, 1
  %vm207 = vcmp.ge.s32.totalorder %v191, 1
  %vm208 = vcmp.ge.s32.totalorder %v192, 1
  %vm209 = vcmp.ge.s32.totalorder %v193, 1
  %vm210 = vcmp.ge.s32.totalorder %v194, 1
  %vm211 = vcmp.ge.s32.totalorder %v195, 1
  %vm212 = vcmp.ge.s32.totalorder %v196, 1
  %vm213 = vcmp.ge.s32.totalorder %v197, 1
  %vm214 = vcmp.ge.s32.totalorder %v150, 1
  %vm215 = vcmp.ge.s32.totalorder %v151, 1
  %vm216 = vcmp.ge.s32.totalorder %v152, 1
  %vm217 = vcmp.ge.s32.totalorder %v153, 1
  %vm218 = vcmp.ge.s32.totalorder %v154, 1
  %vm219 = vcmp.ge.s32.totalorder %v155, 1
  %vm220 = vcmp.ge.s32.totalorder %v156, 1
  %vm221 = vcmp.ge.s32.totalorder %v157, 1
  %vm222 = vcmp.ge.s32.totalorder %v158, 1
  %vm223 = vcmp.ge.s32.totalorder %v159, 1
  %vm224 = vcmp.ge.s32.totalorder %v160, 1
  %vm225 = vcmp.ge.s32.totalorder %v161, 1
  %vm226 = vcmp.ge.s32.totalorder %v162, 1
  %vm227 = vcmp.ge.s32.totalorder %v163, 1
  %vm228 = vcmp.ge.s32.totalorder %v164, 1
  %vm229 = vcmp.ge.s32.totalorder %v165, 1
  %vm230 = vmand %vm198, %vm214
  %vm231 = vmand %vm199, %vm215
  %vm232 = vmand %vm200, %vm216
  %vm233 = vmand %vm201, %vm217
  %vm234 = vmand %vm202, %vm218
  %vm235 = vmand %vm203, %vm219
  %vm236 = vmand %vm204, %vm220
  %vm237 = vmand %vm205, %vm221
  %vm238 = vmand %vm206, %vm222
  %vm239 = vmand %vm207, %vm223
  %vm240 = vmand %vm208, %vm224
  %vm241 = vmand %vm209, %vm225
  %vm242 = vmand %vm210, %vm226
  %vm243 = vmand %vm211, %vm227
  %vm244 = vmand %vm212, %vm228
  %vm245 = vmand %vm213, %vm229
  %v246 = vsel %vm230, 1, 0
  %v247 = vsel %vm231, 1, 0
  %v248 = vsel %vm232, 1, 0
  %v249 = vsel %vm233, 1, 0
  %v250 = vsel %vm234, 1, 0
  %v251 = vsel %vm235, 1, 0
  %v252 = vsel %vm236, 1, 0
  %v253 = vsel %vm237, 1, 0
  %v254 = vsel %vm238, 1, 0
  %v255 = vsel %vm239, 1, 0
  %v256 = vsel %vm240, 1, 0
  %v257 = vsel %vm241, 1, 0
  %v258 = vsel %vm242, 1, 0
  %v259 = vsel %vm243, 1, 0
  %v260 = vsel %vm244, 1, 0
  %v261 = vsel %vm245, 1, 0
  %vm262 = vcmp.eq.s32.totalorder %v246, 1
  %vm263 = vcmp.eq.s32.totalorder %v247, 1
  %vm264 = vcmp.eq.s32.totalorder %v248, 1
  %vm265 = vcmp.eq.s32.totalorder %v249, 1
  %vm266 = vcmp.eq.s32.totalorder %v250, 1
  %vm267 = vcmp.eq.s32.totalorder %v251, 1
  %vm268 = vcmp.eq.s32.totalorder %v252, 1
  %vm269 = vcmp.eq.s32.totalorder %v253, 1
  %vm270 = vcmp.eq.s32.totalorder %v254, 1
  %vm271 = vcmp.eq.s32.totalorder %v255, 1
  %vm272 = vcmp.eq.s32.totalorder %v256, 1
  %vm273 = vcmp.eq.s32.totalorder %v257, 1
  %vm274 = vcmp.eq.s32.totalorder %v258, 1
  %vm275 = vcmp.eq.s32.totalorder %v259, 1
  %vm276 = vcmp.eq.s32.totalorder %v260, 1
  %vm277 = vcmp.eq.s32.totalorder %v261, 1
  %vm278 = vmpackc.low %vm263, %vm262
  %vm279 = vmpackc.low %vm265, %vm264
  %vm280 = vmpackc.low %vm267, %vm266
  %vm281 = vmpackc.low %vm269, %vm268
  %vm282 = vmpackc.low %vm271, %vm270
  %vm283 = vmpackc.low %vm273, %vm272
  %vm284 = vmpackc.low %vm275, %vm274
  %vm285 = vmpackc.low %vm277, %vm276
  %v286 = vsel %vm278, 65537, 0
  %v287 = vsel %vm279, 65537, 0
  %v288 = vsel %vm280, 65537, 0
  %v289 = vsel %vm281, 65537, 0
  %v290 = vsel %vm282, 65537, 0
  %v291 = vsel %vm283, 65537, 0
  %v292 = vsel %vm284, 65537, 0
  %v293 = vsel %vm285, 65537, 0
  %v294 = vperm.slane %v286, 0
  %v295 = vperm.slane %v286, 4
  %v296 = vperm.slane %v287, 0
  %v297 = vperm.slane %v287, 4
  %v298 = vperm.slane %v288, 0
  %v299 = vperm.slane %v288, 4
  %v300 = vperm.slane %v289, 0
  %v301 = vperm.slane %v289, 4
  %v302 = vperm.slane %v290, 0
  %v303 = vperm.slane %v290, 4
  %v304 = vperm.slane %v291, 0
  %v305 = vperm.slane %v291, 4
  %v306 = vperm.slane %v292, 0
  %v307 = vperm.slane %v292, 4
  %v308 = vperm.slane %v293, 0
  %v309 = vperm.slane %v293, 4
  %v310 = vunpack.c.l.b16 %v294
  %v311 = vunpack.c.h.b16 %v294
  %v312 = vunpack.c.l.b16 0
  %v313 = vunpack.c.h.b16 0
  %vm314 = vcmp.ne.s32.totalorder %v310, %v312
  %vm315 = vcmp.ne.s32.totalorder %v311, %v313
  %vm316 = vmpackc.low %vm315, %vm314
  %v317 = vunpack.c.l.b16 %v295
  %v318 = vunpack.c.h.b16 %v295
  %v319 = vunpack.c.l.b16 0
  %v320 = vunpack.c.h.b16 0
  %vm321 = vcmp.ne.s32.totalorder %v317, %v319
  %vm322 = vcmp.ne.s32.totalorder %v318, %v320
  %vm323 = vmpackc.low %vm322, %vm321
  %v324 = vunpack.c.l.b16 %v296
  %v325 = vunpack.c.h.b16 %v296
  %v326 = vunpack.c.l.b16 0
  %v327 = vunpack.c.h.b16 0
  %vm328 = vcmp.ne.s32.totalorder %v324, %v326
  %vm329 = vcmp.ne.s32.totalorder %v325, %v327
  %vm330 = vmpackc.low %vm329, %vm328
  %v331 = vunpack.c.l.b16 %v297
  %v332 = vunpack.c.h.b16 %v297
  %v333 = vunpack.c.l.b16 0
  %v334 = vunpack.c.h.b16 0
  %vm335 = vcmp.ne.s32.totalorder %v331, %v333
  %vm336 = vcmp.ne.s32.totalorder %v332, %v334
  %vm337 = vmpackc.low %vm336, %vm335
  %v338 = vunpack.c.l.b16 %v298
  %v339 = vunpack.c.h.b16 %v298
  %v340 = vunpack.c.l.b16 0
  %v341 = vunpack.c.h.b16 0
  %vm342 = vcmp.ne.s32.totalorder %v338, %v340
  %vm343 = vcmp.ne.s32.totalorder %v339, %v341
  %vm344 = vmpackc.low %vm343, %vm342
  %v345 = vunpack.c.l.b16 %v299
  %v346 = vunpack.c.h.b16 %v299
  %v347 = vunpack.c.l.b16 0
  %v348 = vunpack.c.h.b16 0
  %vm349 = vcmp.ne.s32.totalorder %v345, %v347
  %vm350 = vcmp.ne.s32.totalorder %v346, %v348
  %vm351 = vmpackc.low %vm350, %vm349
  %v352 = vunpack.c.l.b16 %v300
  %v353 = vunpack.c.h.b16 %v300
  %v354 = vunpack.c.l.b16 0
  %v355 = vunpack.c.h.b16 0
  %vm356 = vcmp.ne.s32.totalorder %v352, %v354
  %vm357 = vcmp.ne.s32.totalorder %v353, %v355
  %vm358 = vmpackc.low %vm357, %vm356
  %v359 = vunpack.c.l.b16 %v301
  %v360 = vunpack.c.h.b16 %v301
  %v361 = vunpack.c.l.b16 0
  %v362 = vunpack.c.h.b16 0
  %vm363 = vcmp.ne.s32.totalorder %v359, %v361
  %vm364 = vcmp.ne.s32.totalorder %v360, %v362
  %vm365 = vmpackc.low %vm364, %vm363
  %v366 = vunpack.c.l.b16 %v302
  %v367 = vunpack.c.h.b16 %v302
  %v368 = vunpack.c.l.b16 0
  %v369 = vunpack.c.h.b16 0
  %vm370 = vcmp.ne.s32.totalorder %v366, %v368
  %vm371 = vcmp.ne.s32.totalorder %v367, %v369
  %vm372 = vmpackc.low %vm371, %vm370
  %v373 = vunpack.c.l.b16 %v303
  %v374 = vunpack.c.h.b16 %v303
  %v375 = vunpack.c.l.b16 0
  %v376 = vunpack.c.h.b16 0
  %vm377 = vcmp.ne.s32.totalorder %v373, %v375
  %vm378 = vcmp.ne.s32.totalorder %v374, %v376
  %vm379 = vmpackc.low %vm378, %vm377
  %v380 = vunpack.c.l.b16 %v304
  %v381 = vunpack.c.h.b16 %v304
  %v382 = vunpack.c.l.b16 0
  %v383 = vunpack.c.h.b16 0
  %vm384 = vcmp.ne.s32.totalorder %v380, %v382
  %vm385 = vcmp.ne.s32.totalorder %v381, %v383
  %vm386 = vmpackc.low %vm385, %vm384
  %v387 = vunpack.c.l.b16 %v305
  %v388 = vunpack.c.h.b16 %v305
  %v389 = vunpack.c.l.b16 0
  %v390 = vunpack.c.h.b16 0
  %vm391 = vcmp.ne.s32.totalorder %v387, %v389
  %vm392 = vcmp.ne.s32.totalorder %v388, %v390
  %vm393 = vmpackc.low %vm392, %vm391
  %v394 = vunpack.c.l.b16 %v306
  %v395 = vunpack.c.h.b16 %v306
  %v396 = vunpack.c.l.b16 0
  %v397 = vunpack.c.h.b16 0
  %vm398 = vcmp.ne.s32.totalorder %v394, %v396
  %vm399 = vcmp.ne.s32.totalorder %v395, %v397
  %vm400 = vmpackc.low %vm399, %vm398
  %v401 = vunpack.c.l.b16 %v307
  %v402 = vunpack.c.h.b16 %v307
  %v403 = vunpack.c.l.b16 0
  %v404 = vunpack.c.h.b16 0
  %vm405 = vcmp.ne.s32.totalorder %v401, %v403
  %vm406 = vcmp.ne.s32.totalorder %v402, %v404
  %vm407 = vmpackc.low %vm406, %vm405
  %v408 = vunpack.c.l.b16 %v308
  %v409 = vunpack.c.h.b16 %v308
  %v410 = vunpack.c.l.b16 0
  %v411 = vunpack.c.h.b16 0
  %vm412 = vcmp.ne.s32.totalorder %v408, %v410
  %vm413 = vcmp.ne.s32.totalorder %v409, %v411
  %vm414 = vmpackc.low %vm413, %vm412
  %v415 = vunpack.c.l.b16 %v309
  %v416 = vunpack.c.h.b16 %v309
  %v417 = vunpack.c.l.b16 0
  %v418 = vunpack.c.h.b16 0
  %vm419 = vcmp.ne.s32.totalorder %v415, %v417
  %vm420 = vcmp.ne.s32.totalorder %v416, %v418
  %vm421 = vmpackc.low %vm420, %vm419
  %v422 = vsel %vm316, %v128, 0
  %v423 = vsel %vm323, %v95, 0
  %v424 = vsel %vm330, %v96, 0
  %v425 = vsel %vm337, %v97, 0
  %v426 = vsel %vm344, %v98, 0
  %v427 = vsel %vm351, %v99, 0
  %v428 = vsel %vm358, %v100, 0
  %v429 = vsel %vm365, %v101, 0
  %v430 = vsel %vm372, %v102, 0
  %v431 = vsel %vm379, %v103, 0
  %v432 = vsel %vm386, %v104, 0
  %v433 = vsel %vm393, %v105, 0
  %v434 = vsel %vm400, %v106, 0
  %v435 = vsel %vm407, %v107, 0
  %v436 = vsel %vm414, %v108, 0
  %v437 = vsel %vm421, %v109, 0
  %v438 = vld [vmem:[%s1] sm:$0xf]
  %v439 = vld [vmem:[%s1 + $0x4] sm:$0x3]
  %v440 = vsel %vm198, 1, 0
  %v441 = vsel %vm199, 1, 0
  %v442 = vsel %vm200, 1, 0
  %v443 = vsel %vm201, 1, 0
  %v444 = vsel %vm202, 1, 0
  %v445 = vsel %vm203, 1, 0
  %v446 = vsel %vm204, 1, 0
  %v447 = vsel %vm205, 1, 0
  %v448 = vsel %vm206, 1, 0
  %v449 = vsel %vm207, 1, 0
  %v450 = vsel %vm208, 1, 0
  %v451 = vsel %vm209, 1, 0
  %v452 = vsel %vm210, 1, 0
  %v453 = vsel %vm211, 1, 0
  %v454 = vsel %vm212, 1, 0
  %v455 = vsel %vm213, 1, 0
  %vm456 = vcmp.eq.s32.totalorder %v440, 1
  %vm457 = vcmp.eq.s32.totalorder %v441, 1
  %vm458 = vcmp.eq.s32.totalorder %v442, 1
  %vm459 = vcmp.eq.s32.totalorder %v443, 1
  %vm460 = vcmp.eq.s32.totalorder %v444, 1
  %vm461 = vcmp.eq.s32.totalorder %v445, 1
  %vm462 = vcmp.eq.s32.totalorder %v446, 1
  %vm463 = vcmp.eq.s32.totalorder %v447, 1
  %vm464 = vcmp.eq.s32.totalorder %v448, 1
  %vm465 = vcmp.eq.s32.totalorder %v449, 1
  %vm466 = vcmp.eq.s32.totalorder %v450, 1
  %vm467 = vcmp.eq.s32.totalorder %v451, 1
  %vm468 = vcmp.eq.s32.totalorder %v452, 1
  %vm469 = vcmp.eq.s32.totalorder %v453, 1
  %vm470 = vcmp.eq.s32.totalorder %v454, 1
  %vm471 = vcmp.eq.s32.totalorder %v455, 1
  %vm472 = vmpackc.low %vm457, %vm456
  %vm473 = vmpackc.low %vm459, %vm458
  %vm474 = vmpackc.low %vm461, %vm460
  %vm475 = vmpackc.low %vm463, %vm462
  %vm476 = vmpackc.low %vm465, %vm464
  %vm477 = vmpackc.low %vm467, %vm466
  %vm478 = vmpackc.low %vm469, %vm468
  %vm479 = vmpackc.low %vm471, %vm470
  %v480 = vsel %vm472, 65537, 0
  %v481 = vsel %vm473, 65537, 0
  %v482 = vsel %vm474, 65537, 0
  %v483 = vsel %vm475, 65537, 0
  %v484 = vsel %vm476, 65537, 0
  %v485 = vsel %vm477, 65537, 0
  %v486 = vsel %vm478, 65537, 0
  %v487 = vsel %vm479, 65537, 0
  %v488 = vperm.slane %v480, 0
  %v489 = vperm.slane %v480, 4
  %v490 = vperm.slane %v481, 0
  %v491 = vperm.slane %v481, 4
  %v492 = vperm.slane %v482, 0
  %v493 = vperm.slane %v482, 4
  %v494 = vperm.slane %v483, 0
  %v495 = vperm.slane %v483, 4
  %v496 = vperm.slane %v484, 0
  %v497 = vperm.slane %v484, 4
  %v498 = vperm.slane %v485, 0
  %v499 = vperm.slane %v485, 4
  %v500 = vperm.slane %v486, 0
  %v501 = vperm.slane %v486, 4
  %v502 = vperm.slane %v487, 0
  %v503 = vperm.slane %v487, 4
  %504 = vrot.lane.b32.xlu0 %v488, 1
  %v505 = vpop.permute.xlu0 %504
  %506 = vrot.lane.b32.xlu0 %v489, 1
  %v507 = vpop.permute.xlu0 %506
  %508 = vrot.lane.b32.xlu0 %v490, 1
  %v509 = vpop.permute.xlu0 %508
  %510 = vrot.lane.b32.xlu0 %v491, 1
  %v511 = vpop.permute.xlu0 %510
  %512 = vrot.lane.b32.xlu0 %v492, 1
  %v513 = vpop.permute.xlu0 %512
  %514 = vrot.lane.b32.xlu0 %v493, 1
  %v515 = vpop.permute.xlu0 %514
  %516 = vrot.lane.b32.xlu0 %v494, 1
  %v517 = vpop.permute.xlu0 %516
  %518 = vrot.lane.b32.xlu0 %v495, 1
  %v519 = vpop.permute.xlu0 %518
  %520 = vrot.lane.b32.xlu0 %v496, 1
  %v521 = vpop.permute.xlu0 %520
  %522 = vrot.lane.b32.xlu0 %v497, 1
  %v523 = vpop.permute.xlu0 %522
  %524 = vrot.lane.b32.xlu0 %v498, 1
  %v525 = vpop.permute.xlu0 %524
  %526 = vrot.lane.b32.xlu0 %v499, 1
  %v527 = vpop.permute.xlu0 %526
  %528 = vrot.lane.b32.xlu0 %v500, 1
  %v529 = vpop.permute.xlu0 %528
  %530 = vrot.lane.b32.xlu0 %v501, 1
  %v531 = vpop.permute.xlu0 %530
  %532 = vrot.lane.b32.xlu0 %v502, 1
  %v533 = vpop.permute.xlu0 %532
  %534 = vrot.lane.b32.xlu0 %v503, 1
  %v535 = vpop.permute.xlu0 %534
  %vm536 = vcmask 7168
  %v537 = vsel %vm536, %v505, %v507
  %v538 = vsel %vm536, %v507, %v509
  %v539 = vsel %vm536, %v509, %v511
  %v540 = vsel %vm536, %v511, %v513
  %v541 = vsel %vm536, %v513, %v515
  %v542 = vsel %vm536, %v515, %v517
  %v543 = vsel %vm536, %v517, %v519
  %v544 = vsel %vm536, %v519, %v521
  %v545 = vsel %vm536, %v521, %v523
  %v546 = vsel %vm536, %v523, %v525
  %v547 = vsel %vm536, %v525, %v527
  %v548 = vsel %vm536, %v527, %v529
  %v549 = vsel %vm536, %v529, %v531
  %v550 = vsel %vm536, %v531, %v533
  %v551 = vsel %vm536, %v533, %v535
  %v552 = vunpack.c.l.b16 %v505
  %v553 = vunpack.c.h.b16 %v505
  %v554 = vunpack.c.l.b16 0
  %v555 = vunpack.c.h.b16 0
  %vm556 = vcmp.ne.s32.totalorder %v552, %v554
  %vm557 = vcmp.ne.s32.totalorder %v553, %v555
  %vm558 = vmpackc.low %vm557, %vm556
  %v559 = vunpack.c.l.b16 %v537
  %v560 = vunpack.c.h.b16 %v537
  %v561 = vunpack.c.l.b16 0
  %v562 = vunpack.c.h.b16 0
  %vm563 = vcmp.ne.s32.totalorder %v559, %v561
  %vm564 = vcmp.ne.s32.totalorder %v560, %v562
  %vm565 = vmpackc.low %vm564, %vm563
  %v566 = vunpack.c.l.b16 %v538
  %v567 = vunpack.c.h.b16 %v538
  %v568 = vunpack.c.l.b16 0
  %v569 = vunpack.c.h.b16 0
  %vm570 = vcmp.ne.s32.totalorder %v566, %v568
  %vm571 = vcmp.ne.s32.totalorder %v567, %v569
  %vm572 = vmpackc.low %vm571, %vm570
  %v573 = vunpack.c.l.b16 %v539
  %v574 = vunpack.c.h.b16 %v539
  %v575 = vunpack.c.l.b16 0
  %v576 = vunpack.c.h.b16 0
  %vm577 = vcmp.ne.s32.totalorder %v573, %v575
  %vm578 = vcmp.ne.s32.totalorder %v574, %v576
  %vm579 = vmpackc.low %vm578, %vm577
  %v580 = vunpack.c.l.b16 %v540
  %v581 = vunpack.c.h.b16 %v540
  %v582 = vunpack.c.l.b16 0
  %v583 = vunpack.c.h.b16 0
  %vm584 = vcmp.ne.s32.totalorder %v580, %v582
  %vm585 = vcmp.ne.s32.totalorder %v581, %v583
  %vm586 = vmpackc.low %vm585, %vm584
  %v587 = vunpack.c.l.b16 %v541
  %v588 = vunpack.c.h.b16 %v541
  %v589 = vunpack.c.l.b16 0
  %v590 = vunpack.c.h.b16 0
  %vm591 = vcmp.ne.s32.totalorder %v587, %v589
  %vm592 = vcmp.ne.s32.totalorder %v588, %v590
  %vm593 = vmpackc.low %vm592, %vm591
  %v594 = vunpack.c.l.b16 %v542
  %v595 = vunpack.c.h.b16 %v542
  %v596 = vunpack.c.l.b16 0
  %v597 = vunpack.c.h.b16 0
  %vm598 = vcmp.ne.s32.totalorder %v594, %v596
  %vm599 = vcmp.ne.s32.totalorder %v595, %v597
  %vm600 = vmpackc.low %vm599, %vm598
  %v601 = vunpack.c.l.b16 %v543
  %v602 = vunpack.c.h.b16 %v543
  %v603 = vunpack.c.l.b16 0
  %v604 = vunpack.c.h.b16 0
  %vm605 = vcmp.ne.s32.totalorder %v601, %v603
  %vm606 = vcmp.ne.s32.totalorder %v602, %v604
  %vm607 = vmpackc.low %vm606, %vm605
  %v608 = vunpack.c.l.b16 %v544
  %v609 = vunpack.c.h.b16 %v544
  %v610 = vunpack.c.l.b16 0
  %v611 = vunpack.c.h.b16 0
  %vm612 = vcmp.ne.s32.totalorder %v608, %v610
  %vm613 = vcmp.ne.s32.totalorder %v609, %v611
  %vm614 = vmpackc.low %vm613, %vm612
  %v615 = vunpack.c.l.b16 %v545
  %v616 = vunpack.c.h.b16 %v545
  %v617 = vunpack.c.l.b16 0
  %v618 = vunpack.c.h.b16 0
  %vm619 = vcmp.ne.s32.totalorder %v615, %v617
  %vm620 = vcmp.ne.s32.totalorder %v616, %v618
  %vm621 = vmpackc.low %vm620, %vm619
  %v622 = vunpack.c.l.b16 %v546
  %v623 = vunpack.c.h.b16 %v546
  %v624 = vunpack.c.l.b16 0
  %v625 = vunpack.c.h.b16 0
  %vm626 = vcmp.ne.s32.totalorder %v622, %v624
  %vm627 = vcmp.ne.s32.totalorder %v623, %v625
  %vm628 = vmpackc.low %vm627, %vm626
  %v629 = vunpack.c.l.b16 %v547
  %v630 = vunpack.c.h.b16 %v547
  %v631 = vunpack.c.l.b16 0
  %v632 = vunpack.c.h.b16 0
  %vm633 = vcmp.ne.s32.totalorder %v629, %v631
  %vm634 = vcmp.ne.s32.totalorder %v630, %v632
  %vm635 = vmpackc.low %vm634, %vm633
  %v636 = vunpack.c.l.b16 %v548
  %v637 = vunpack.c.h.b16 %v548
  %v638 = vunpack.c.l.b16 0
  %v639 = vunpack.c.h.b16 0
  %vm640 = vcmp.ne.s32.totalorder %v636, %v638
  %vm641 = vcmp.ne.s32.totalorder %v637, %v639
  %vm642 = vmpackc.low %vm641, %vm640
  %v643 = vunpack.c.l.b16 %v549
  %v644 = vunpack.c.h.b16 %v549
  %v645 = vunpack.c.l.b16 0
  %v646 = vunpack.c.h.b16 0
  %vm647 = vcmp.ne.s32.totalorder %v643, %v645
  %vm648 = vcmp.ne.s32.totalorder %v644, %v646
  %vm649 = vmpackc.low %vm648, %vm647
  %v650 = vunpack.c.l.b16 %v550
  %v651 = vunpack.c.h.b16 %v550
  %v652 = vunpack.c.l.b16 0
  %v653 = vunpack.c.h.b16 0
  %vm654 = vcmp.ne.s32.totalorder %v650, %v652
  %vm655 = vcmp.ne.s32.totalorder %v651, %v653
  %vm656 = vmpackc.low %vm655, %vm654
  %v657 = vunpack.c.l.b16 %v551
  %v658 = vunpack.c.h.b16 %v551
  %v659 = vunpack.c.l.b16 0
  %v660 = vunpack.c.h.b16 0
  %vm661 = vcmp.ne.s32.totalorder %v657, %v659
  %vm662 = vcmp.ne.s32.totalorder %v658, %v660
  %vm663 = vmpackc.low %vm662, %vm661
  %v664 = vunpack.c.l.b16 %v535
  %v665 = vunpack.c.h.b16 %v535
  %v666 = vunpack.c.l.b16 0
  %v667 = vunpack.c.h.b16 0
  %vm668 = vcmp.ne.s32.totalorder %v664, %v666
  %vm669 = vcmp.ne.s32.totalorder %v665, %v667
  %vm670 = vmpackc.low %vm669, %vm668
  %v671 = vsel %vm558, %v128, 0
  %v672 = vsel %vm565, %v95, 0
  %v673 = vsel %vm572, %v96, 0
  %v674 = vsel %vm579, %v97, 0
  %v675 = vsel %vm586, %v98, 0
  %v676 = vsel %vm593, %v99, 0
  %v677 = vsel %vm600, %v100, 0
  %v678 = vsel %vm607, %v101, 0
  %v679 = vsel %vm614, %v102, 0
  %v680 = vsel %vm621, %v103, 0
  %v681 = vsel %vm628, %v104, 0
  %v682 = vsel %vm635, %v105, 0
  %v683 = vsel %vm642, %v106, 0
  %v684 = vsel %vm649, %v107, 0
  %v685 = vsel %vm656, %v108, 0
  %v686 = vsel %vm663, %v109, 0
  %v687 = vsel %vm670, %v131, 0
  %s688 = scalar_lea.vmem %s1, 8
  %v689 = vld [vmem:[%s688] sm:$0xf]
  %v690 = vld [vmem:[%s688 + $0x4] sm:$0x3]
  %v693 = vunpack.c.l.b16 %v689
  %v694 = vunpack.c.l.b16 %v690
  %v695 = vpack.c.b16 %v694, %v693
  %713 = vrot.lane.b32.xlu0 %v671, 127
  %v714 = vpop.permute.xlu0 %713
  %715 = vrot.lane.b32.xlu0 %v672, 127
  %v716 = vpop.permute.xlu0 %715
  %717 = vrot.lane.b32.xlu0 %v673, 127
  %v718 = vpop.permute.xlu0 %717
  %719 = vrot.lane.b32.xlu0 %v674, 127
  %v720 = vpop.permute.xlu0 %719
  %721 = vrot.lane.b32.xlu0 %v675, 127
  %v722 = vpop.permute.xlu0 %721
  %723 = vrot.lane.b32.xlu0 %v676, 127
  %v724 = vpop.permute.xlu0 %723
  %725 = vrot.lane.b32.xlu0 %v677, 127
  %v726 = vpop.permute.xlu0 %725
  %727 = vrot.lane.b32.xlu0 %v678, 127
  %v728 = vpop.permute.xlu0 %727
  %729 = vrot.lane.b32.xlu0 %v679, 127
  %v730 = vpop.permute.xlu0 %729
  %731 = vrot.lane.b32.xlu0 %v680, 127
  %v732 = vpop.permute.xlu0 %731
  %733 = vrot.lane.b32.xlu0 %v681, 127
  %v734 = vpop.permute.xlu0 %733
  %735 = vrot.lane.b32.xlu0 %v682, 127
  %v736 = vpop.permute.xlu0 %735
  %737 = vrot.lane.b32.xlu0 %v683, 127
  %v738 = vpop.permute.xlu0 %737
  %739 = vrot.lane.b32.xlu0 %v684, 127
  %v740 = vpop.permute.xlu0 %739
  %741 = vrot.lane.b32.xlu0 %v685, 127
  %v742 = vpop.permute.xlu0 %741
  %743 = vrot.lane.b32.xlu0 %v686, 127
  %v744 = vpop.permute.xlu0 %743
  %745 = vrot.lane.b32.xlu0 %v687, 127
  %v746 = vpop.permute.xlu0 %745
  %vm747 = vcmask 1039360
  %v748 = vsel %vm747, %v714, %v716
  %v749 = vsel %vm747, %v716, %v718
  %v750 = vsel %vm747, %v718, %v720
  %v751 = vsel %vm747, %v720, %v722
  %v752 = vsel %vm747, %v722, %v724
  %v753 = vsel %vm747, %v724, %v726
  %v754 = vsel %vm747, %v726, %v728
  %v755 = vsel %vm747, %v728, %v730
  %v756 = vsel %vm747, %v730, %v732
  %v757 = vsel %vm747, %v732, %v734
  %v758 = vsel %vm747, %v734, %v736
  %v759 = vsel %vm747, %v736, %v738
  %v760 = vsel %vm747, %v738, %v740
  %v761 = vsel %vm747, %v740, %v742
  %v762 = vsel %vm747, %v742, %v744
  %v763 = vsel %vm747, %v744, %v746
  %vm764 = vcmask 64512
  %v766 = vsel %vm764, %v695, 0
  %vm768 = vcmask 1043456
  %v770 = vsel %vm768, %v748, 0
  %v773 = vsel %vm768, %v749, 0
  %v776 = vsel %vm768, %v750, 0
  %v779 = vsel %vm768, %v751, 0
  %v782 = vsel %vm768, %v752, 0
  %v785 = vsel %vm768, %v753, 0
  %v788 = vsel %vm768, %v754, 0
  %v791 = vsel %vm768, %v755, 0
  %v794 = vsel %vm768, %v756, 0
  %v797 = vsel %vm768, %v757, 0
  %v800 = vsel %vm768, %v758, 0
  %v803 = vsel %vm768, %v759, 0
  %v806 = vsel %vm768, %v760, 0
  %v809 = vsel %vm768, %v761, 0
  %v812 = vsel %vm768, %v762, 0
  %v815 = vsel %vm768, %v763, 0
  %817 = vmatpush.bf16.msra.mxu0 0
  %818 = vmatpush.bf16.msra.mxu0 0
  %819 = vmatpush.bf16.msra.mxu0 0
  %820 = vmatpush.bf16.msra.mxu0 0
  %821 = vmatpush.bf16.msra.mxu0 0
  %822 = vmatpush.bf16.msra.mxu0 0
  %823 = vmatpush.bf16.msra.mxu0 0
  %824 = vmatpush.bf16.msra.mxu0 %v770
  %825 = vmatmul.bf16.gmra.mxu0 %v766
  %v826 = vpop.f32.mrf.mxu0
  %v827 = vadd.f32 0.0, %v826
  %v828 = vpop.f32.mrf.mxu0
  %v829 = vadd.f32 0.0, %v828
  %830 = vdwg.mxu0
  %831 = vmatpush.bf16.msra.mxu0 0
  %832 = vmatpush.bf16.msra.mxu0 0
  %833 = vmatpush.bf16.msra.mxu0 0
  %834 = vmatpush.bf16.msra.mxu0 0
  %835 = vmatpush.bf16.msra.mxu0 0
  %836 = vmatpush.bf16.msra.mxu0 0
  %837 = vmatpush.bf16.msra.mxu0 0
  %838 = vmatpush.bf16.msra.mxu0 %v773
  %839 = vmatmul.bf16.gmra.mxu0 %v766
  %v840 = vpop.f32.mrf.mxu0
  %v841 = vadd.f32 0.0, %v840
  %v842 = vpop.f32.mrf.mxu0
  %v843 = vadd.f32 0.0, %v842
  %844 = vdwg.mxu0
  %845 = vmatpush.bf16.msra.mxu0 0
  %846 = vmatpush.bf16.msra.mxu0 0
  %847 = vmatpush.bf16.msra.mxu0 0
  %848 = vmatpush.bf16.msra.mxu0 0
  %849 = vmatpush.bf16.msra.mxu0 0
  %850 = vmatpush.bf16.msra.mxu0 0
  %851 = vmatpush.bf16.msra.mxu0 0
  %852 = vmatpush.bf16.msra.mxu0 %v776
  %853 = vmatmul.bf16.gmra.mxu0 %v766
  %v854 = vpop.f32.mrf.mxu0
  %v855 = vadd.f32 0.0, %v854
  %v856 = vpop.f32.mrf.mxu0
  %v857 = vadd.f32 0.0, %v856
  %858 = vdwg.mxu0
  %859 = vmatpush.bf16.msra.mxu0 0
  %860 = vmatpush.bf16.msra.mxu0 0
  %861 = vmatpush.bf16.msra.mxu0 0
  %862 = vmatpush.bf16.msra.mxu0 0
  %863 = vmatpush.bf16.msra.mxu0 0
  %864 = vmatpush.bf16.msra.mxu0 0
  %865 = vmatpush.bf16.msra.mxu0 0
  %866 = vmatpush.bf16.msra.mxu0 %v779
  %867 = vmatmul.bf16.gmra.mxu0 %v766
  %v868 = vpop.f32.mrf.mxu0
  %v869 = vadd.f32 0.0, %v868
  %v870 = vpop.f32.mrf.mxu0
  %v871 = vadd.f32 0.0, %v870
  %872 = vdwg.mxu0
  %873 = vmatpush.bf16.msra.mxu0 0
  %874 = vmatpush.bf16.msra.mxu0 0
  %875 = vmatpush.bf16.msra.mxu0 0
  %876 = vmatpush.bf16.msra.mxu0 0
  %877 = vmatpush.bf16.msra.mxu0 0
  %878 = vmatpush.bf16.msra.mxu0 0
  %879 = vmatpush.bf16.msra.mxu0 0
  %880 = vmatpush.bf16.msra.mxu0 %v782
  %881 = vmatmul.bf16.gmra.mxu0 %v766
  %v882 = vpop.f32.mrf.mxu0
  %v883 = vadd.f32 0.0, %v882
  %v884 = vpop.f32.mrf.mxu0
  %v885 = vadd.f32 0.0, %v884
  %886 = vdwg.mxu0
  %887 = vmatpush.bf16.msra.mxu0 0
  %888 = vmatpush.bf16.msra.mxu0 0
  %889 = vmatpush.bf16.msra.mxu0 0
  %890 = vmatpush.bf16.msra.mxu0 0
  %891 = vmatpush.bf16.msra.mxu0 0
  %892 = vmatpush.bf16.msra.mxu0 0
  %893 = vmatpush.bf16.msra.mxu0 0
  %894 = vmatpush.bf16.msra.mxu0 %v785
  %895 = vmatmul.bf16.gmra.mxu0 %v766
  %v896 = vpop.f32.mrf.mxu0
  %v897 = vadd.f32 0.0, %v896
  %v898 = vpop.f32.mrf.mxu0
  %v899 = vadd.f32 0.0, %v898
  %900 = vdwg.mxu0
  %901 = vmatpush.bf16.msra.mxu0 0
  %902 = vmatpush.bf16.msra.mxu0 0
  %903 = vmatpush.bf16.msra.mxu0 0
  %904 = vmatpush.bf16.msra.mxu0 0
  %905 = vmatpush.bf16.msra.mxu0 0
  %906 = vmatpush.bf16.msra.mxu0 0
  %907 = vmatpush.bf16.msra.mxu0 0
  %908 = vmatpush.bf16.msra.mxu0 %v788
  %909 = vmatmul.bf16.gmra.mxu0 %v766
  %v910 = vpop.f32.mrf.mxu0
  %v911 = vadd.f32 0.0, %v910
  %v912 = vpop.f32.mrf.mxu0
  %v913 = vadd.f32 0.0, %v912
  %914 = vdwg.mxu0
  %915 = vmatpush.bf16.msra.mxu0 0
  %916 = vmatpush.bf16.msra.mxu0 0
  %917 = vmatpush.bf16.msra.mxu0 0
  %918 = vmatpush.bf16.msra.mxu0 0
  %919 = vmatpush.bf16.msra.mxu0 0
  %920 = vmatpush.bf16.msra.mxu0 0
  %921 = vmatpush.bf16.msra.mxu0 0
  %922 = vmatpush.bf16.msra.mxu0 %v791
  %923 = vmatmul.bf16.gmra.mxu0 %v766
  %v924 = vpop.f32.mrf.mxu0
  %v925 = vadd.f32 0.0, %v924
  %v926 = vpop.f32.mrf.mxu0
  %v927 = vadd.f32 0.0, %v926
  %928 = vdwg.mxu0
  %929 = vmatpush.bf16.msra.mxu0 0
  %930 = vmatpush.bf16.msra.mxu0 0
  %931 = vmatpush.bf16.msra.mxu0 0
  %932 = vmatpush.bf16.msra.mxu0 0
  %933 = vmatpush.bf16.msra.mxu0 0
  %934 = vmatpush.bf16.msra.mxu0 0
  %935 = vmatpush.bf16.msra.mxu0 0
  %936 = vmatpush.bf16.msra.mxu0 %v794
  %937 = vmatmul.bf16.gmra.mxu0 %v766
  %v938 = vpop.f32.mrf.mxu0
  %v939 = vadd.f32 0.0, %v938
  %v940 = vpop.f32.mrf.mxu0
  %v941 = vadd.f32 0.0, %v940
  %942 = vdwg.mxu0
  %943 = vmatpush.bf16.msra.mxu0 0
  %944 = vmatpush.bf16.msra.mxu0 0
  %945 = vmatpush.bf16.msra.mxu0 0
  %946 = vmatpush.bf16.msra.mxu0 0
  %947 = vmatpush.bf16.msra.mxu0 0
  %948 = vmatpush.bf16.msra.mxu0 0
  %949 = vmatpush.bf16.msra.mxu0 0
  %950 = vmatpush.bf16.msra.mxu0 %v797
  %951 = vmatmul.bf16.gmra.mxu0 %v766
  %v952 = vpop.f32.mrf.mxu0
  %v953 = vadd.f32 0.0, %v952
  %v954 = vpop.f32.mrf.mxu0
  %v955 = vadd.f32 0.0, %v954
  %956 = vdwg.mxu0
  %957 = vmatpush.bf16.msra.mxu0 0
  %958 = vmatpush.bf16.msra.mxu0 0
  %959 = vmatpush.bf16.msra.mxu0 0
  %960 = vmatpush.bf16.msra.mxu0 0
  %961 = vmatpush.bf16.msra.mxu0 0
  %962 = vmatpush.bf16.msra.mxu0 0
  %963 = vmatpush.bf16.msra.mxu0 0
  %964 = vmatpush.bf16.msra.mxu0 %v800
  %965 = vmatmul.bf16.gmra.mxu0 %v766
  %v966 = vpop.f32.mrf.mxu0
  %v967 = vadd.f32 0.0, %v966
  %v968 = vpop.f32.mrf.mxu0
  %v969 = vadd.f32 0.0, %v968
  %970 = vdwg.mxu0
  %971 = vmatpush.bf16.msra.mxu0 0
  %972 = vmatpush.bf16.msra.mxu0 0
  %973 = vmatpush.bf16.msra.mxu0 0
  %974 = vmatpush.bf16.msra.mxu0 0
  %975 = vmatpush.bf16.msra.mxu0 0
  %976 = vmatpush.bf16.msra.mxu0 0
  %977 = vmatpush.bf16.msra.mxu0 0
  %978 = vmatpush.bf16.msra.mxu0 %v803
  %979 = vmatmul.bf16.gmra.mxu0 %v766
  %v980 = vpop.f32.mrf.mxu0
  %v981 = vadd.f32 0.0, %v980
  %v982 = vpop.f32.mrf.mxu0
  %v983 = vadd.f32 0.0, %v982
  %984 = vdwg.mxu0
  %985 = vmatpush.bf16.msra.mxu0 0
  %986 = vmatpush.bf16.msra.mxu0 0
  %987 = vmatpush.bf16.msra.mxu0 0
  %988 = vmatpush.bf16.msra.mxu0 0
  %989 = vmatpush.bf16.msra.mxu0 0
  %990 = vmatpush.bf16.msra.mxu0 0
  %991 = vmatpush.bf16.msra.mxu0 0
  %992 = vmatpush.bf16.msra.mxu0 %v806
  %993 = vmatmul.bf16.gmra.mxu0 %v766
  %v994 = vpop.f32.mrf.mxu0
  %v995 = vadd.f32 0.0, %v994
  %v996 = vpop.f32.mrf.mxu0
  %v997 = vadd.f32 0.0, %v996
  %998 = vdwg.mxu0
  %999 = vmatpush.bf16.msra.mxu0 0
  %1000 = vmatpush.bf16.msra.mxu0 0
  %1001 = vmatpush.bf16.msra.mxu0 0
  %1002 = vmatpush.bf16.msra.mxu0 0
  %1003 = vmatpush.bf16.msra.mxu0 0
  %1004 = vmatpush.bf16.msra.mxu0 0
  %1005 = vmatpush.bf16.msra.mxu0 0
  %1006 = vmatpush.bf16.msra.mxu0 %v809
  %1007 = vmatmul.bf16.gmra.mxu0 %v766
  %v1008 = vpop.f32.mrf.mxu0
  %v1009 = vadd.f32 0.0, %v1008
  %v1010 = vpop.f32.mrf.mxu0
  %v1011 = vadd.f32 0.0, %v1010
  %1012 = vdwg.mxu0
  %1013 = vmatpush.bf16.msra.mxu0 0
  %1014 = vmatpush.bf16.msra.mxu0 0
  %1015 = vmatpush.bf16.msra.mxu0 0
  %1016 = vmatpush.bf16.msra.mxu0 0
  %1017 = vmatpush.bf16.msra.mxu0 0
  %1018 = vmatpush.bf16.msra.mxu0 0
  %1019 = vmatpush.bf16.msra.mxu0 0
  %1020 = vmatpush.bf16.msra.mxu0 %v812
  %1021 = vmatmul.bf16.gmra.mxu0 %v766
  %v1022 = vpop.f32.mrf.mxu0
  %v1023 = vadd.f32 0.0, %v1022
  %v1024 = vpop.f32.mrf.mxu0
  %v1025 = vadd.f32 0.0, %v1024
  %1026 = vdwg.mxu0
  %1027 = vmatpush.bf16.msra.mxu0 0
  %1028 = vmatpush.bf16.msra.mxu0 0
  %1029 = vmatpush.bf16.msra.mxu0 0
  %1030 = vmatpush.bf16.msra.mxu0 0
  %1031 = vmatpush.bf16.msra.mxu0 0
  %1032 = vmatpush.bf16.msra.mxu0 0
  %1033 = vmatpush.bf16.msra.mxu0 0
  %1034 = vmatpush.bf16.msra.mxu0 %v815
  %1035 = vmatmul.bf16.gmra.mxu0 %v766
  %v1036 = vpop.f32.mrf.mxu0
  %v1037 = vadd.f32 0.0, %v1036
  %v1038 = vpop.f32.mrf.mxu0
  %v1039 = vadd.f32 0.0, %v1038
  %1040 = vdwg.mxu0
  %v1043 = vunpack.c.l.b16 %v438
  %v1044 = vunpack.c.l.b16 %v439
  %v1045 = vpack.c.b16 %v1044, %v1043
  %v1047 = vsel %vm764, %v1045, 0
  %v1050 = vsel %vm768, %v422, 0
  %v1053 = vsel %vm768, %v423, 0
  %v1056 = vsel %vm768, %v424, 0
  %v1059 = vsel %vm768, %v425, 0
  %v1062 = vsel %vm768, %v426, 0
  %v1065 = vsel %vm768, %v427, 0
  %v1068 = vsel %vm768, %v428, 0
  %v1071 = vsel %vm768, %v429, 0
  %v1074 = vsel %vm768, %v430, 0
  %v1077 = vsel %vm768, %v431, 0
  %v1080 = vsel %vm768, %v432, 0
  %v1083 = vsel %vm768, %v433, 0
  %v1086 = vsel %vm768, %v434, 0
  %v1089 = vsel %vm768, %v435, 0
  %v1092 = vsel %vm768, %v436, 0
  %v1095 = vsel %vm768, %v437, 0
  %1097 = vmatpush.bf16.msra.mxu0 0
  %1098 = vmatpush.bf16.msra.mxu0 0
  %1099 = vmatpush.bf16.msra.mxu0 0
  %1100 = vmatpush.bf16.msra.mxu0 0
  %1101 = vmatpush.bf16.msra.mxu0 0
  %1102 = vmatpush.bf16.msra.mxu0 0
  %1103 = vmatpush.bf16.msra.mxu0 0
  %1104 = vmatpush.bf16.msra.mxu0 %v1050
  %1105 = vmatmul.bf16.gmra.mxu0 %v1047
  %v1106 = vpop.f32.mrf.mxu0
  %v1107 = vadd.f32 %v827, %v1106
  %v1108 = vpop.f32.mrf.mxu0
  %v1109 = vadd.f32 %v829, %v1108
  %1110 = vdwg.mxu0
  %1111 = vmatpush.bf16.msra.mxu0 0
  %1112 = vmatpush.bf16.msra.mxu0 0
  %1113 = vmatpush.bf16.msra.mxu0 0
  %1114 = vmatpush.bf16.msra.mxu0 0
  %1115 = vmatpush.bf16.msra.mxu0 0
  %1116 = vmatpush.bf16.msra.mxu0 0
  %1117 = vmatpush.bf16.msra.mxu0 0
  %1118 = vmatpush.bf16.msra.mxu0 %v1053
  %1119 = vmatmul.bf16.gmra.mxu0 %v1047
  %v1120 = vpop.f32.mrf.mxu0
  %v1121 = vadd.f32 %v841, %v1120
  %v1122 = vpop.f32.mrf.mxu0
  %v1123 = vadd.f32 %v843, %v1122
  %1124 = vdwg.mxu0
  %1125 = vmatpush.bf16.msra.mxu0 0
  %1126 = vmatpush.bf16.msra.mxu0 0
  %1127 = vmatpush.bf16.msra.mxu0 0
  %1128 = vmatpush.bf16.msra.mxu0 0
  %1129 = vmatpush.bf16.msra.mxu0 0
  %1130 = vmatpush.bf16.msra.mxu0 0
  %1131 = vmatpush.bf16.msra.mxu0 0
  %1132 = vmatpush.bf16.msra.mxu0 %v1056
  %1133 = vmatmul.bf16.gmra.mxu0 %v1047
  %v1134 = vpop.f32.mrf.mxu0
  %v1135 = vadd.f32 %v855, %v1134
  %v1136 = vpop.f32.mrf.mxu0
  %v1137 = vadd.f32 %v857, %v1136
  %1138 = vdwg.mxu0
  %1139 = vmatpush.bf16.msra.mxu0 0
  %1140 = vmatpush.bf16.msra.mxu0 0
  %1141 = vmatpush.bf16.msra.mxu0 0
  %1142 = vmatpush.bf16.msra.mxu0 0
  %1143 = vmatpush.bf16.msra.mxu0 0
  %1144 = vmatpush.bf16.msra.mxu0 0
  %1145 = vmatpush.bf16.msra.mxu0 0
  %1146 = vmatpush.bf16.msra.mxu0 %v1059
  %1147 = vmatmul.bf16.gmra.mxu0 %v1047
  %v1148 = vpop.f32.mrf.mxu0
  %v1149 = vadd.f32 %v869, %v1148
  %v1150 = vpop.f32.mrf.mxu0
  %v1151 = vadd.f32 %v871, %v1150
  %1152 = vdwg.mxu0
  %1153 = vmatpush.bf16.msra.mxu0 0
  %1154 = vmatpush.bf16.msra.mxu0 0
  %1155 = vmatpush.bf16.msra.mxu0 0
  %1156 = vmatpush.bf16.msra.mxu0 0
  %1157 = vmatpush.bf16.msra.mxu0 0
  %1158 = vmatpush.bf16.msra.mxu0 0
  %1159 = vmatpush.bf16.msra.mxu0 0
  %1160 = vmatpush.bf16.msra.mxu0 %v1062
  %1161 = vmatmul.bf16.gmra.mxu0 %v1047
  %v1162 = vpop.f32.mrf.mxu0
  %v1163 = vadd.f32 %v883, %v1162
  %v1164 = vpop.f32.mrf.mxu0
  %v1165 = vadd.f32 %v885, %v1164
  %1166 = vdwg.mxu0
  %1167 = vmatpush.bf16.msra.mxu0 0
  %1168 = vmatpush.bf16.msra.mxu0 0
  %1169 = vmatpush.bf16.msra.mxu0 0
  %1170 = vmatpush.bf16.msra.mxu0 0
  %1171 = vmatpush.bf16.msra.mxu0 0
  %1172 = vmatpush.bf16.msra.mxu0 0
  %1173 = vmatpush.bf16.msra.mxu0 0
  %1174 = vmatpush.bf16.msra.mxu0 %v1065
  %1175 = vmatmul.bf16.gmra.mxu0 %v1047
  %v1176 = vpop.f32.mrf.mxu0
  %v1177 = vadd.f32 %v897, %v1176
  %v1178 = vpop.f32.mrf.mxu0
  %v1179 = vadd.f32 %v899, %v1178
  %1180 = vdwg.mxu0
  %1181 = vmatpush.bf16.msra.mxu0 0
  %1182 = vmatpush.bf16.msra.mxu0 0
  %1183 = vmatpush.bf16.msra.mxu0 0
  %1184 = vmatpush.bf16.msra.mxu0 0
  %1185 = vmatpush.bf16.msra.mxu0 0
  %1186 = vmatpush.bf16.msra.mxu0 0
  %1187 = vmatpush.bf16.msra.mxu0 0
  %1188 = vmatpush.bf16.msra.mxu0 %v1068
  %1189 = vmatmul.bf16.gmra.mxu0 %v1047
  %v1190 = vpop.f32.mrf.mxu0
  %v1191 = vadd.f32 %v911, %v1190
  %v1192 = vpop.f32.mrf.mxu0
  %v1193 = vadd.f32 %v913, %v1192
  %1194 = vdwg.mxu0
  %1195 = vmatpush.bf16.msra.mxu0 0
  %1196 = vmatpush.bf16.msra.mxu0 0
  %1197 = vmatpush.bf16.msra.mxu0 0
  %1198 = vmatpush.bf16.msra.mxu0 0
  %1199 = vmatpush.bf16.msra.mxu0 0
  %1200 = vmatpush.bf16.msra.mxu0 0
  %1201 = vmatpush.bf16.msra.mxu0 0
  %1202 = vmatpush.bf16.msra.mxu0 %v1071
  %1203 = vmatmul.bf16.gmra.mxu0 %v1047
  %v1204 = vpop.f32.mrf.mxu0
  %v1205 = vadd.f32 %v925, %v1204
  %v1206 = vpop.f32.mrf.mxu0
  %v1207 = vadd.f32 %v927, %v1206
  %1208 = vdwg.mxu0
  %1209 = vmatpush.bf16.msra.mxu0 0
  %1210 = vmatpush.bf16.msra.mxu0 0
  %1211 = vmatpush.bf16.msra.mxu0 0
  %1212 = vmatpush.bf16.msra.mxu0 0
  %1213 = vmatpush.bf16.msra.mxu0 0
  %1214 = vmatpush.bf16.msra.mxu0 0
  %1215 = vmatpush.bf16.msra.mxu0 0
  %1216 = vmatpush.bf16.msra.mxu0 %v1074
  %1217 = vmatmul.bf16.gmra.mxu0 %v1047
  %v1218 = vpop.f32.mrf.mxu0
  %v1219 = vadd.f32 %v939, %v1218
  %v1220 = vpop.f32.mrf.mxu0
  %v1221 = vadd.f32 %v941, %v1220
  %1222 = vdwg.mxu0
  %1223 = vmatpush.bf16.msra.mxu0 0
  %1224 = vmatpush.bf16.msra.mxu0 0
  %1225 = vmatpush.bf16.msra.mxu0 0
  %1226 = vmatpush.bf16.msra.mxu0 0
  %1227 = vmatpush.bf16.msra.mxu0 0
  %1228 = vmatpush.bf16.msra.mxu0 0
  %1229 = vmatpush.bf16.msra.mxu0 0
  %1230 = vmatpush.bf16.msra.mxu0 %v1077
  %1231 = vmatmul.bf16.gmra.mxu0 %v1047
  %v1232 = vpop.f32.mrf.mxu0
  %v1233 = vadd.f32 %v953, %v1232
  %v1234 = vpop.f32.mrf.mxu0
  %v1235 = vadd.f32 %v955, %v1234
  %1236 = vdwg.mxu0
  %1237 = vmatpush.bf16.msra.mxu0 0
  %1238 = vmatpush.bf16.msra.mxu0 0
  %1239 = vmatpush.bf16.msra.mxu0 0
  %1240 = vmatpush.bf16.msra.mxu0 0
  %1241 = vmatpush.bf16.msra.mxu0 0
  %1242 = vmatpush.bf16.msra.mxu0 0
  %1243 = vmatpush.bf16.msra.mxu0 0
  %1244 = vmatpush.bf16.msra.mxu0 %v1080
  %1245 = vmatmul.bf16.gmra.mxu0 %v1047
  %v1246 = vpop.f32.mrf.mxu0
  %v1247 = vadd.f32 %v967, %v1246
  %v1248 = vpop.f32.mrf.mxu0
  %v1249 = vadd.f32 %v969, %v1248
  %1250 = vdwg.mxu0
  %1251 = vmatpush.bf16.msra.mxu0 0
  %1252 = vmatpush.bf16.msra.mxu0 0
  %1253 = vmatpush.bf16.msra.mxu0 0
  %1254 = vmatpush.bf16.msra.mxu0 0
  %1255 = vmatpush.bf16.msra.mxu0 0
  %1256 = vmatpush.bf16.msra.mxu0 0
  %1257 = vmatpush.bf16.msra.mxu0 0
  %1258 = vmatpush.bf16.msra.mxu0 %v1083
  %1259 = vmatmul.bf16.gmra.mxu0 %v1047
  %v1260 = vpop.f32.mrf.mxu0
  %v1261 = vadd.f32 %v981, %v1260
  %v1262 = vpop.f32.mrf.mxu0
  %v1263 = vadd.f32 %v983, %v1262
  %1264 = vdwg.mxu0
  %1265 = vmatpush.bf16.msra.mxu0 0
  %1266 = vmatpush.bf16.msra.mxu0 0
  %1267 = vmatpush.bf16.msra.mxu0 0
  %1268 = vmatpush.bf16.msra.mxu0 0
  %1269 = vmatpush.bf16.msra.mxu0 0
  %1270 = vmatpush.bf16.msra.mxu0 0
  %1271 = vmatpush.bf16.msra.mxu0 0
  %1272 = vmatpush.bf16.msra.mxu0 %v1086
  %1273 = vmatmul.bf16.gmra.mxu0 %v1047
  %v1274 = vpop.f32.mrf.mxu0
  %v1275 = vadd.f32 %v995, %v1274
  %v1276 = vpop.f32.mrf.mxu0
  %v1277 = vadd.f32 %v997, %v1276
  %1278 = vdwg.mxu0
  %1279 = vmatpush.bf16.msra.mxu0 0
  %1280 = vmatpush.bf16.msra.mxu0 0
  %1281 = vmatpush.bf16.msra.mxu0 0
  %1282 = vmatpush.bf16.msra.mxu0 0
  %1283 = vmatpush.bf16.msra.mxu0 0
  %1284 = vmatpush.bf16.msra.mxu0 0
  %1285 = vmatpush.bf16.msra.mxu0 0
  %1286 = vmatpush.bf16.msra.mxu0 %v1089
  %1287 = vmatmul.bf16.gmra.mxu0 %v1047
  %v1288 = vpop.f32.mrf.mxu0
  %v1289 = vadd.f32 %v1009, %v1288
  %v1290 = vpop.f32.mrf.mxu0
  %v1291 = vadd.f32 %v1011, %v1290
  %1292 = vdwg.mxu0
  %1293 = vmatpush.bf16.msra.mxu0 0
  %1294 = vmatpush.bf16.msra.mxu0 0
  %1295 = vmatpush.bf16.msra.mxu0 0
  %1296 = vmatpush.bf16.msra.mxu0 0
  %1297 = vmatpush.bf16.msra.mxu0 0
  %1298 = vmatpush.bf16.msra.mxu0 0
  %1299 = vmatpush.bf16.msra.mxu0 0
  %1300 = vmatpush.bf16.msra.mxu0 %v1092
  %1301 = vmatmul.bf16.gmra.mxu0 %v1047
  %v1302 = vpop.f32.mrf.mxu0
  %v1303 = vadd.f32 %v1023, %v1302
  %v1304 = vpop.f32.mrf.mxu0
  %v1305 = vadd.f32 %v1025, %v1304
  %1306 = vdwg.mxu0
  %1307 = vmatpush.bf16.msra.mxu0 0
  %1308 = vmatpush.bf16.msra.mxu0 0
  %1309 = vmatpush.bf16.msra.mxu0 0
  %1310 = vmatpush.bf16.msra.mxu0 0
  %1311 = vmatpush.bf16.msra.mxu0 0
  %1312 = vmatpush.bf16.msra.mxu0 0
  %1313 = vmatpush.bf16.msra.mxu0 0
  %1314 = vmatpush.bf16.msra.mxu0 %v1095
  %1315 = vmatmul.bf16.gmra.mxu0 %v1047
  %v1316 = vpop.f32.mrf.mxu0
  %v1317 = vadd.f32 %v1037, %v1316
  %v1318 = vpop.f32.mrf.mxu0
  %v1319 = vadd.f32 %v1039, %v1318
  %1320 = vdwg.mxu0
  %vm1321 = vcmp.le.s32.totalorder %v150, 30
  %vm1322 = vcmp.le.s32.totalorder %v151, 30
  %vm1323 = vcmp.le.s32.totalorder %v152, 30
  %vm1324 = vcmp.le.s32.totalorder %v153, 30
  %vm1325 = vcmp.le.s32.totalorder %v154, 30
  %vm1326 = vcmp.le.s32.totalorder %v155, 30
  %vm1327 = vcmp.le.s32.totalorder %v156, 30
  %vm1328 = vcmp.le.s32.totalorder %v157, 30
  %vm1329 = vcmp.le.s32.totalorder %v158, 30
  %vm1330 = vcmp.le.s32.totalorder %v159, 30
  %vm1331 = vcmp.le.s32.totalorder %v160, 30
  %vm1332 = vcmp.le.s32.totalorder %v161, 30
  %vm1333 = vcmp.le.s32.totalorder %v162, 30
  %vm1334 = vcmp.le.s32.totalorder %v163, 30
  %vm1335 = vcmp.le.s32.totalorder %v164, 30
  %vm1336 = vcmp.le.s32.totalorder %v165, 30
  %vm1337 = vmand %vm198, %vm1321
  %vm1338 = vmand %vm199, %vm1322
  %vm1339 = vmand %vm200, %vm1323
  %vm1340 = vmand %vm201, %vm1324
  %vm1341 = vmand %vm202, %vm1325
  %vm1342 = vmand %vm203, %vm1326
  %vm1343 = vmand %vm204, %vm1327
  %vm1344 = vmand %vm205, %vm1328
  %vm1345 = vmand %vm206, %vm1329
  %vm1346 = vmand %vm207, %vm1330
  %vm1347 = vmand %vm208, %vm1331
  %vm1348 = vmand %vm209, %vm1332
  %vm1349 = vmand %vm210, %vm1333
  %vm1350 = vmand %vm211, %vm1334
  %vm1351 = vmand %vm212, %vm1335
  %vm1352 = vmand %vm213, %vm1336
  %v1353 = vsel %vm1337, 1, 0
  %v1354 = vsel %vm1338, 1, 0
  %v1355 = vsel %vm1339, 1, 0
  %v1356 = vsel %vm1340, 1, 0
  %v1357 = vsel %vm1341, 1, 0
  %v1358 = vsel %vm1342, 1, 0
  %v1359 = vsel %vm1343, 1, 0
  %v1360 = vsel %vm1344, 1, 0
  %v1361 = vsel %vm1345, 1, 0
  %v1362 = vsel %vm1346, 1, 0
  %v1363 = vsel %vm1347, 1, 0
  %v1364 = vsel %vm1348, 1, 0
  %v1365 = vsel %vm1349, 1, 0
  %v1366 = vsel %vm1350, 1, 0
  %v1367 = vsel %vm1351, 1, 0
  %v1368 = vsel %vm1352, 1, 0
  %vm1369 = vcmp.eq.s32.totalorder %v1353, 1
  %vm1370 = vcmp.eq.s32.totalorder %v1354, 1
  %vm1371 = vcmp.eq.s32.totalorder %v1355, 1
  %vm1372 = vcmp.eq.s32.totalorder %v1356, 1
  %vm1373 = vcmp.eq.s32.totalorder %v1357, 1
  %vm1374 = vcmp.eq.s32.totalorder %v1358, 1
  %vm1375 = vcmp.eq.s32.totalorder %v1359, 1
  %vm1376 = vcmp.eq.s32.totalorder %v1360, 1
  %vm1377 = vcmp.eq.s32.totalorder %v1361, 1
  %vm1378 = vcmp.eq.s32.totalorder %v1362, 1
  %vm1379 = vcmp.eq.s32.totalorder %v1363, 1
  %vm1380 = vcmp.eq.s32.totalorder %v1364, 1
  %vm1381 = vcmp.eq.s32.totalorder %v1365, 1
  %vm1382 = vcmp.eq.s32.totalorder %v1366, 1
  %vm1383 = vcmp.eq.s32.totalorder %v1367, 1
  %vm1384 = vcmp.eq.s32.totalorder %v1368, 1
  %vm1385 = vmpackc.low %vm1370, %vm1369
  %vm1386 = vmpackc.low %vm1372, %vm1371
  %vm1387 = vmpackc.low %vm1374, %vm1373
  %vm1388 = vmpackc.low %vm1376, %vm1375
  %vm1389 = vmpackc.low %vm1378, %vm1377
  %vm1390 = vmpackc.low %vm1380, %vm1379
  %vm1391 = vmpackc.low %vm1382, %vm1381
  %vm1392 = vmpackc.low %vm1384, %vm1383
  %v1393 = vsel %vm1385, 65537, 0
  %v1394 = vsel %vm1386, 65537, 0
  %v1395 = vsel %vm1387, 65537, 0
  %v1396 = vsel %vm1388, 65537, 0
  %v1397 = vsel %vm1389, 65537, 0
  %v1398 = vsel %vm1390, 65537, 0
  %v1399 = vsel %vm1391, 65537, 0
  %v1400 = vsel %vm1392, 65537, 0
  %v1401 = vperm.slane %v1393, 0
  %v1402 = vperm.slane %v1393, 4
  %v1403 = vperm.slane %v1394, 0
  %v1404 = vperm.slane %v1394, 4
  %v1405 = vperm.slane %v1395, 0
  %v1406 = vperm.slane %v1395, 4
  %v1407 = vperm.slane %v1396, 0
  %v1408 = vperm.slane %v1396, 4
  %v1409 = vperm.slane %v1397, 0
  %v1410 = vperm.slane %v1397, 4
  %v1411 = vperm.slane %v1398, 0
  %v1412 = vperm.slane %v1398, 4
  %v1413 = vperm.slane %v1399, 0
  %v1414 = vperm.slane %v1399, 4
  %v1415 = vperm.slane %v1400, 0
  %v1416 = vperm.slane %v1400, 4
  %1417 = vrot.lane.b32.xlu0 %v1401, 2
  %v1418 = vpop.permute.xlu0 %1417
  %1419 = vrot.lane.b32.xlu0 %v1402, 2
  %v1420 = vpop.permute.xlu0 %1419
  %1421 = vrot.lane.b32.xlu0 %v1403, 2
  %v1422 = vpop.permute.xlu0 %1421
  %1423 = vrot.lane.b32.xlu0 %v1404, 2
  %v1424 = vpop.permute.xlu0 %1423
  %1425 = vrot.lane.b32.xlu0 %v1405, 2
  %v1426 = vpop.permute.xlu0 %1425
  %1427 = vrot.lane.b32.xlu0 %v1406, 2
  %v1428 = vpop.permute.xlu0 %1427
  %1429 = vrot.lane.b32.xlu0 %v1407, 2
  %v1430 = vpop.permute.xlu0 %1429
  %1431 = vrot.lane.b32.xlu0 %v1408, 2
  %v1432 = vpop.permute.xlu0 %1431
  %1433 = vrot.lane.b32.xlu0 %v1409, 2
  %v1434 = vpop.permute.xlu0 %1433
  %1435 = vrot.lane.b32.xlu0 %v1410, 2
  %v1436 = vpop.permute.xlu0 %1435
  %1437 = vrot.lane.b32.xlu0 %v1411, 2
  %v1438 = vpop.permute.xlu0 %1437
  %1439 = vrot.lane.b32.xlu0 %v1412, 2
  %v1440 = vpop.permute.xlu0 %1439
  %1441 = vrot.lane.b32.xlu0 %v1413, 2
  %v1442 = vpop.permute.xlu0 %1441
  %1443 = vrot.lane.b32.xlu0 %v1414, 2
  %v1444 = vpop.permute.xlu0 %1443
  %1445 = vrot.lane.b32.xlu0 %v1415, 2
  %v1446 = vpop.permute.xlu0 %1445
  %1447 = vrot.lane.b32.xlu0 %v1416, 2
  %v1448 = vpop.permute.xlu0 %1447
  %vm1449 = vcmask 15360
  %v1450 = vsel %vm1449, %v1418, %v1420
  %v1451 = vsel %vm1449, %v1420, %v1422
  %v1452 = vsel %vm1449, %v1422, %v1424
  %v1453 = vsel %vm1449, %v1424, %v1426
  %v1454 = vsel %vm1449, %v1426, %v1428
  %v1455 = vsel %vm1449, %v1428, %v1430
  %v1456 = vsel %vm1449, %v1430, %v1432
  %v1457 = vsel %vm1449, %v1432, %v1434
  %v1458 = vsel %vm1449, %v1434, %v1436
  %v1459 = vsel %vm1449, %v1436, %v1438
  %v1460 = vsel %vm1449, %v1438, %v1440
  %v1461 = vsel %vm1449, %v1440, %v1442
  %v1462 = vsel %vm1449, %v1442, %v1444
  %v1463 = vsel %vm1449, %v1444, %v1446
  %v1464 = vsel %vm1449, %v1446, %v1448
  %v1465 = vunpack.c.l.b16 %v1418
  %v1466 = vunpack.c.h.b16 %v1418
  %v1467 = vunpack.c.l.b16 0
  %v1468 = vunpack.c.h.b16 0
  %vm1469 = vcmp.ne.s32.totalorder %v1465, %v1467
  %vm1470 = vcmp.ne.s32.totalorder %v1466, %v1468
  %vm1471 = vmpackc.low %vm1470, %vm1469
  %v1472 = vunpack.c.l.b16 %v1450
  %v1473 = vunpack.c.h.b16 %v1450
  %v1474 = vunpack.c.l.b16 0
  %v1475 = vunpack.c.h.b16 0
  %vm1476 = vcmp.ne.s32.totalorder %v1472, %v1474
  %vm1477 = vcmp.ne.s32.totalorder %v1473, %v1475
  %vm1478 = vmpackc.low %vm1477, %vm1476
  %v1479 = vunpack.c.l.b16 %v1451
  %v1480 = vunpack.c.h.b16 %v1451
  %v1481 = vunpack.c.l.b16 0
  %v1482 = vunpack.c.h.b16 0
  %vm1483 = vcmp.ne.s32.totalorder %v1479, %v1481
  %vm1484 = vcmp.ne.s32.totalorder %v1480, %v1482
  %vm1485 = vmpackc.low %vm1484, %vm1483
  %v1486 = vunpack.c.l.b16 %v1452
  %v1487 = vunpack.c.h.b16 %v1452
  %v1488 = vunpack.c.l.b16 0
  %v1489 = vunpack.c.h.b16 0
  %vm1490 = vcmp.ne.s32.totalorder %v1486, %v1488
  %vm1491 = vcmp.ne.s32.totalorder %v1487, %v1489
  %vm1492 = vmpackc.low %vm1491, %vm1490
  %v1493 = vunpack.c.l.b16 %v1453
  %v1494 = vunpack.c.h.b16 %v1453
  %v1495 = vunpack.c.l.b16 0
  %v1496 = vunpack.c.h.b16 0
  %vm1497 = vcmp.ne.s32.totalorder %v1493, %v1495
  %vm1498 = vcmp.ne.s32.totalorder %v1494, %v1496
  %vm1499 = vmpackc.low %vm1498, %vm1497
  %v1500 = vunpack.c.l.b16 %v1454
  %v1501 = vunpack.c.h.b16 %v1454
  %v1502 = vunpack.c.l.b16 0
  %v1503 = vunpack.c.h.b16 0
  %vm1504 = vcmp.ne.s32.totalorder %v1500, %v1502
  %vm1505 = vcmp.ne.s32.totalorder %v1501, %v1503
  %vm1506 = vmpackc.low %vm1505, %vm1504
  %v1507 = vunpack.c.l.b16 %v1455
  %v1508 = vunpack.c.h.b16 %v1455
  %v1509 = vunpack.c.l.b16 0
  %v1510 = vunpack.c.h.b16 0
  %vm1511 = vcmp.ne.s32.totalorder %v1507, %v1509
  %vm1512 = vcmp.ne.s32.totalorder %v1508, %v1510
  %vm1513 = vmpackc.low %vm1512, %vm1511
  %v1514 = vunpack.c.l.b16 %v1456
  %v1515 = vunpack.c.h.b16 %v1456
  %v1516 = vunpack.c.l.b16 0
  %v1517 = vunpack.c.h.b16 0
  %vm1518 = vcmp.ne.s32.totalorder %v1514, %v1516
  %vm1519 = vcmp.ne.s32.totalorder %v1515, %v1517
  %vm1520 = vmpackc.low %vm1519, %vm1518
  %v1521 = vunpack.c.l.b16 %v1457
  %v1522 = vunpack.c.h.b16 %v1457
  %v1523 = vunpack.c.l.b16 0
  %v1524 = vunpack.c.h.b16 0
  %vm1525 = vcmp.ne.s32.totalorder %v1521, %v1523
  %vm1526 = vcmp.ne.s32.totalorder %v1522, %v1524
  %vm1527 = vmpackc.low %vm1526, %vm1525
  %v1528 = vunpack.c.l.b16 %v1458
  %v1529 = vunpack.c.h.b16 %v1458
  %v1530 = vunpack.c.l.b16 0
  %v1531 = vunpack.c.h.b16 0
  %vm1532 = vcmp.ne.s32.totalorder %v1528, %v1530
  %vm1533 = vcmp.ne.s32.totalorder %v1529, %v1531
  %vm1534 = vmpackc.low %vm1533, %vm1532
  %v1535 = vunpack.c.l.b16 %v1459
  %v1536 = vunpack.c.h.b16 %v1459
  %v1537 = vunpack.c.l.b16 0
  %v1538 = vunpack.c.h.b16 0
  %vm1539 = vcmp.ne.s32.totalorder %v1535, %v1537
  %vm1540 = vcmp.ne.s32.totalorder %v1536, %v1538
  %vm1541 = vmpackc.low %vm1540, %vm1539
  %v1542 = vunpack.c.l.b16 %v1460
  %v1543 = vunpack.c.h.b16 %v1460
  %v1544 = vunpack.c.l.b16 0
  %v1545 = vunpack.c.h.b16 0
  %vm1546 = vcmp.ne.s32.totalorder %v1542, %v1544
  %vm1547 = vcmp.ne.s32.totalorder %v1543, %v1545
  %vm1548 = vmpackc.low %vm1547, %vm1546
  %v1549 = vunpack.c.l.b16 %v1461
  %v1550 = vunpack.c.h.b16 %v1461
  %v1551 = vunpack.c.l.b16 0
  %v1552 = vunpack.c.h.b16 0
  %vm1553 = vcmp.ne.s32.totalorder %v1549, %v1551
  %vm1554 = vcmp.ne.s32.totalorder %v1550, %v1552
  %vm1555 = vmpackc.low %vm1554, %vm1553
  %v1556 = vunpack.c.l.b16 %v1462
  %v1557 = vunpack.c.h.b16 %v1462
  %v1558 = vunpack.c.l.b16 0
  %v1559 = vunpack.c.h.b16 0
  %vm1560 = vcmp.ne.s32.totalorder %v1556, %v1558
  %vm1561 = vcmp.ne.s32.totalorder %v1557, %v1559
  %vm1562 = vmpackc.low %vm1561, %vm1560
  %v1563 = vunpack.c.l.b16 %v1463
  %v1564 = vunpack.c.h.b16 %v1463
  %v1565 = vunpack.c.l.b16 0
  %v1566 = vunpack.c.h.b16 0
  %vm1567 = vcmp.ne.s32.totalorder %v1563, %v1565
  %vm1568 = vcmp.ne.s32.totalorder %v1564, %v1566
  %vm1569 = vmpackc.low %vm1568, %vm1567
  %v1570 = vunpack.c.l.b16 %v1464
  %v1571 = vunpack.c.h.b16 %v1464
  %v1572 = vunpack.c.l.b16 0
  %v1573 = vunpack.c.h.b16 0
  %vm1574 = vcmp.ne.s32.totalorder %v1570, %v1572
  %vm1575 = vcmp.ne.s32.totalorder %v1571, %v1573
  %vm1576 = vmpackc.low %vm1575, %vm1574
  %v1577 = vunpack.c.l.b16 %v1448
  %v1578 = vunpack.c.h.b16 %v1448
  %v1579 = vunpack.c.l.b16 0
  %v1580 = vunpack.c.h.b16 0
  %vm1581 = vcmp.ne.s32.totalorder %v1577, %v1579
  %vm1582 = vcmp.ne.s32.totalorder %v1578, %v1580
  %vm1583 = vmpackc.low %vm1582, %vm1581
  %v1584 = vsel %vm1471, %v128, 0
  %v1585 = vsel %vm1478, %v95, 0
  %v1586 = vsel %vm1485, %v96, 0
  %v1587 = vsel %vm1492, %v97, 0
  %v1588 = vsel %vm1499, %v98, 0
  %v1589 = vsel %vm1506, %v99, 0
  %v1590 = vsel %vm1513, %v100, 0
  %v1591 = vsel %vm1520, %v101, 0
  %v1592 = vsel %vm1527, %v102, 0
  %v1593 = vsel %vm1534, %v103, 0
  %v1594 = vsel %vm1541, %v104, 0
  %v1595 = vsel %vm1548, %v105, 0
  %v1596 = vsel %vm1555, %v106, 0
  %v1597 = vsel %vm1562, %v107, 0
  %v1598 = vsel %vm1569, %v108, 0
  %v1599 = vsel %vm1576, %v109, 0
  %v1600 = vsel %vm1583, %v131, 0
  %s1601 = scalar_lea.vmem %s1, 16
  %v1602 = vld [vmem:[%s1601] sm:$0xf]
  %v1603 = vld [vmem:[%s1601 + $0x4] sm:$0x3]
  %v1606 = vunpack.c.l.b16 %v1602
  %v1607 = vunpack.c.l.b16 %v1603
  %v1608 = vpack.c.b16 %v1607, %v1606
  %1626 = vrot.lane.b32.xlu0 %v1584, 126
  %v1627 = vpop.permute.xlu0 %1626
  %1628 = vrot.lane.b32.xlu0 %v1585, 126
  %v1629 = vpop.permute.xlu0 %1628
  %1630 = vrot.lane.b32.xlu0 %v1586, 126
  %v1631 = vpop.permute.xlu0 %1630
  %1632 = vrot.lane.b32.xlu0 %v1587, 126
  %v1633 = vpop.permute.xlu0 %1632
  %1634 = vrot.lane.b32.xlu0 %v1588, 126
  %v1635 = vpop.permute.xlu0 %1634
  %1636 = vrot.lane.b32.xlu0 %v1589, 126
  %v1637 = vpop.permute.xlu0 %1636
  %1638 = vrot.lane.b32.xlu0 %v1590, 126
  %v1639 = vpop.permute.xlu0 %1638
  %1640 = vrot.lane.b32.xlu0 %v1591, 126
  %v1641 = vpop.permute.xlu0 %1640
  %1642 = vrot.lane.b32.xlu0 %v1592, 126
  %v1643 = vpop.permute.xlu0 %1642
  %1644 = vrot.lane.b32.xlu0 %v1593, 126
  %v1645 = vpop.permute.xlu0 %1644
  %1646 = vrot.lane.b32.xlu0 %v1594, 126
  %v1647 = vpop.permute.xlu0 %1646
  %1648 = vrot.lane.b32.xlu0 %v1595, 126
  %v1649 = vpop.permute.xlu0 %1648
  %1650 = vrot.lane.b32.xlu0 %v1596, 126
  %v1651 = vpop.permute.xlu0 %1650
  %1652 = vrot.lane.b32.xlu0 %v1597, 126
  %v1653 = vpop.permute.xlu0 %1652
  %1654 = vrot.lane.b32.xlu0 %v1598, 126
  %v1655 = vpop.permute.xlu0 %1654
  %1656 = vrot.lane.b32.xlu0 %v1599, 126
  %v1657 = vpop.permute.xlu0 %1656
  %1658 = vrot.lane.b32.xlu0 %v1600, 126
  %v1659 = vpop.permute.xlu0 %1658
  %vm1660 = vcmask 1031168
  %v1661 = vsel %vm1660, %v1627, %v1629
  %v1662 = vsel %vm1660, %v1629, %v1631
  %v1663 = vsel %vm1660, %v1631, %v1633
  %v1664 = vsel %vm1660, %v1633, %v1635
  %v1665 = vsel %vm1660, %v1635, %v1637
  %v1666 = vsel %vm1660, %v1637, %v1639
  %v1667 = vsel %vm1660, %v1639, %v1641
  %v1668 = vsel %vm1660, %v1641, %v1643
  %v1669 = vsel %vm1660, %v1643, %v1645
  %v1670 = vsel %vm1660, %v1645, %v1647
  %v1671 = vsel %vm1660, %v1647, %v1649
  %v1672 = vsel %vm1660, %v1649, %v1651
  %v1673 = vsel %vm1660, %v1651, %v1653
  %v1674 = vsel %vm1660, %v1653, %v1655
  %v1675 = vsel %vm1660, %v1655, %v1657
  %v1676 = vsel %vm1660, %v1657, %v1659
  %v1678 = vsel %vm764, %v1608, 0
  %v1681 = vsel %vm768, %v1661, 0
  %v1684 = vsel %vm768, %v1662, 0
  %v1687 = vsel %vm768, %v1663, 0
  %v1690 = vsel %vm768, %v1664, 0
  %v1693 = vsel %vm768, %v1665, 0
  %v1696 = vsel %vm768, %v1666, 0
  %v1699 = vsel %vm768, %v1667, 0
  %v1702 = vsel %vm768, %v1668, 0
  %v1705 = vsel %vm768, %v1669, 0
  %v1708 = vsel %vm768, %v1670, 0
  %v1711 = vsel %vm768, %v1671, 0
  %v1714 = vsel %vm768, %v1672, 0
  %v1717 = vsel %vm768, %v1673, 0
  %v1720 = vsel %vm768, %v1674, 0
  %v1723 = vsel %vm768, %v1675, 0
  %v1726 = vsel %vm768, %v1676, 0
  %1728 = vmatpush.bf16.msra.mxu0 0
  %1729 = vmatpush.bf16.msra.mxu0 0
  %1730 = vmatpush.bf16.msra.mxu0 0
  %1731 = vmatpush.bf16.msra.mxu0 0
  %1732 = vmatpush.bf16.msra.mxu0 0
  %1733 = vmatpush.bf16.msra.mxu0 0
  %1734 = vmatpush.bf16.msra.mxu0 0
  %1735 = vmatpush.bf16.msra.mxu0 %v1681
  %1736 = vmatmul.bf16.gmra.mxu0 %v1678
  %v1737 = vpop.f32.mrf.mxu0
  %v1738 = vadd.f32 0.0, %v1737
  %v1739 = vpop.f32.mrf.mxu0
  %v1740 = vadd.f32 0.0, %v1739
  %1741 = vdwg.mxu0
  %1742 = vmatpush.bf16.msra.mxu0 0
  %1743 = vmatpush.bf16.msra.mxu0 0
  %1744 = vmatpush.bf16.msra.mxu0 0
  %1745 = vmatpush.bf16.msra.mxu0 0
  %1746 = vmatpush.bf16.msra.mxu0 0
  %1747 = vmatpush.bf16.msra.mxu0 0
  %1748 = vmatpush.bf16.msra.mxu0 0
  %1749 = vmatpush.bf16.msra.mxu0 %v1684
  %1750 = vmatmul.bf16.gmra.mxu0 %v1678
  %v1751 = vpop.f32.mrf.mxu0
  %v1752 = vadd.f32 0.0, %v1751
  %v1753 = vpop.f32.mrf.mxu0
  %v1754 = vadd.f32 0.0, %v1753
  %1755 = vdwg.mxu0
  %1756 = vmatpush.bf16.msra.mxu0 0
  %1757 = vmatpush.bf16.msra.mxu0 0
  %1758 = vmatpush.bf16.msra.mxu0 0
  %1759 = vmatpush.bf16.msra.mxu0 0
  %1760 = vmatpush.bf16.msra.mxu0 0
  %1761 = vmatpush.bf16.msra.mxu0 0
  %1762 = vmatpush.bf16.msra.mxu0 0
  %1763 = vmatpush.bf16.msra.mxu0 %v1687
  %1764 = vmatmul.bf16.gmra.mxu0 %v1678
  %v1765 = vpop.f32.mrf.mxu0
  %v1766 = vadd.f32 0.0, %v1765
  %v1767 = vpop.f32.mrf.mxu0
  %v1768 = vadd.f32 0.0, %v1767
  %1769 = vdwg.mxu0
  %1770 = vmatpush.bf16.msra.mxu0 0
  %1771 = vmatpush.bf16.msra.mxu0 0
  %1772 = vmatpush.bf16.msra.mxu0 0
  %1773 = vmatpush.bf16.msra.mxu0 0
  %1774 = vmatpush.bf16.msra.mxu0 0
  %1775 = vmatpush.bf16.msra.mxu0 0
  %1776 = vmatpush.bf16.msra.mxu0 0
  %1777 = vmatpush.bf16.msra.mxu0 %v1690
  %1778 = vmatmul.bf16.gmra.mxu0 %v1678
  %v1779 = vpop.f32.mrf.mxu0
  %v1780 = vadd.f32 0.0, %v1779
  %v1781 = vpop.f32.mrf.mxu0
  %v1782 = vadd.f32 0.0, %v1781
  %1783 = vdwg.mxu0
  %1784 = vmatpush.bf16.msra.mxu0 0
  %1785 = vmatpush.bf16.msra.mxu0 0
  %1786 = vmatpush.bf16.msra.mxu0 0
  %1787 = vmatpush.bf16.msra.mxu0 0
  %1788 = vmatpush.bf16.msra.mxu0 0
  %1789 = vmatpush.bf16.msra.mxu0 0
  %1790 = vmatpush.bf16.msra.mxu0 0
  %1791 = vmatpush.bf16.msra.mxu0 %v1693
  %1792 = vmatmul.bf16.gmra.mxu0 %v1678
  %v1793 = vpop.f32.mrf.mxu0
  %v1794 = vadd.f32 0.0, %v1793
  %v1795 = vpop.f32.mrf.mxu0
  %v1796 = vadd.f32 0.0, %v1795
  %1797 = vdwg.mxu0
  %1798 = vmatpush.bf16.msra.mxu0 0
  %1799 = vmatpush.bf16.msra.mxu0 0
  %1800 = vmatpush.bf16.msra.mxu0 0
  %1801 = vmatpush.bf16.msra.mxu0 0
  %1802 = vmatpush.bf16.msra.mxu0 0
  %1803 = vmatpush.bf16.msra.mxu0 0
  %1804 = vmatpush.bf16.msra.mxu0 0
  %1805 = vmatpush.bf16.msra.mxu0 %v1696
  %1806 = vmatmul.bf16.gmra.mxu0 %v1678
  %v1807 = vpop.f32.mrf.mxu0
  %v1808 = vadd.f32 0.0, %v1807
  %v1809 = vpop.f32.mrf.mxu0
  %v1810 = vadd.f32 0.0, %v1809
  %1811 = vdwg.mxu0
  %1812 = vmatpush.bf16.msra.mxu0 0
  %1813 = vmatpush.bf16.msra.mxu0 0
  %1814 = vmatpush.bf16.msra.mxu0 0
  %1815 = vmatpush.bf16.msra.mxu0 0
  %1816 = vmatpush.bf16.msra.mxu0 0
  %1817 = vmatpush.bf16.msra.mxu0 0
  %1818 = vmatpush.bf16.msra.mxu0 0
  %1819 = vmatpush.bf16.msra.mxu0 %v1699
  %1820 = vmatmul.bf16.gmra.mxu0 %v1678
  %v1821 = vpop.f32.mrf.mxu0
  %v1822 = vadd.f32 0.0, %v1821
  %v1823 = vpop.f32.mrf.mxu0
  %v1824 = vadd.f32 0.0, %v1823
  %1825 = vdwg.mxu0
  %1826 = vmatpush.bf16.msra.mxu0 0
  %1827 = vmatpush.bf16.msra.mxu0 0
  %1828 = vmatpush.bf16.msra.mxu0 0
  %1829 = vmatpush.bf16.msra.mxu0 0
  %1830 = vmatpush.bf16.msra.mxu0 0
  %1831 = vmatpush.bf16.msra.mxu0 0
  %1832 = vmatpush.bf16.msra.mxu0 0
  %1833 = vmatpush.bf16.msra.mxu0 %v1702
  %1834 = vmatmul.bf16.gmra.mxu0 %v1678
  %v1835 = vpop.f32.mrf.mxu0
  %v1836 = vadd.f32 0.0, %v1835
  %v1837 = vpop.f32.mrf.mxu0
  %v1838 = vadd.f32 0.0, %v1837
  %1839 = vdwg.mxu0
  %1840 = vmatpush.bf16.msra.mxu0 0
  %1841 = vmatpush.bf16.msra.mxu0 0
  %1842 = vmatpush.bf16.msra.mxu0 0
  %1843 = vmatpush.bf16.msra.mxu0 0
  %1844 = vmatpush.bf16.msra.mxu0 0
  %1845 = vmatpush.bf16.msra.mxu0 0
  %1846 = vmatpush.bf16.msra.mxu0 0
  %1847 = vmatpush.bf16.msra.mxu0 %v1705
  %1848 = vmatmul.bf16.gmra.mxu0 %v1678
  %v1849 = vpop.f32.mrf.mxu0
  %v1850 = vadd.f32 0.0, %v1849
  %v1851 = vpop.f32.mrf.mxu0
  %v1852 = vadd.f32 0.0, %v1851
  %1853 = vdwg.mxu0
  %1854 = vmatpush.bf16.msra.mxu0 0
  %1855 = vmatpush.bf16.msra.mxu0 0
  %1856 = vmatpush.bf16.msra.mxu0 0
  %1857 = vmatpush.bf16.msra.mxu0 0
  %1858 = vmatpush.bf16.msra.mxu0 0
  %1859 = vmatpush.bf16.msra.mxu0 0
  %1860 = vmatpush.bf16.msra.mxu0 0
  %1861 = vmatpush.bf16.msra.mxu0 %v1708
  %1862 = vmatmul.bf16.gmra.mxu0 %v1678
  %v1863 = vpop.f32.mrf.mxu0
  %v1864 = vadd.f32 0.0, %v1863
  %v1865 = vpop.f32.mrf.mxu0
  %v1866 = vadd.f32 0.0, %v1865
  %1867 = vdwg.mxu0
  %1868 = vmatpush.bf16.msra.mxu0 0
  %1869 = vmatpush.bf16.msra.mxu0 0
  %1870 = vmatpush.bf16.msra.mxu0 0
  %1871 = vmatpush.bf16.msra.mxu0 0
  %1872 = vmatpush.bf16.msra.mxu0 0
  %1873 = vmatpush.bf16.msra.mxu0 0
  %1874 = vmatpush.bf16.msra.mxu0 0
  %1875 = vmatpush.bf16.msra.mxu0 %v1711
  %1876 = vmatmul.bf16.gmra.mxu0 %v1678
  %v1877 = vpop.f32.mrf.mxu0
  %v1878 = vadd.f32 0.0, %v1877
  %v1879 = vpop.f32.mrf.mxu0
  %v1880 = vadd.f32 0.0, %v1879
  %1881 = vdwg.mxu0
  %1882 = vmatpush.bf16.msra.mxu0 0
  %1883 = vmatpush.bf16.msra.mxu0 0
  %1884 = vmatpush.bf16.msra.mxu0 0
  %1885 = vmatpush.bf16.msra.mxu0 0
  %1886 = vmatpush.bf16.msra.mxu0 0
  %1887 = vmatpush.bf16.msra.mxu0 0
  %1888 = vmatpush.bf16.msra.mxu0 0
  %1889 = vmatpush.bf16.msra.mxu0 %v1714
  %1890 = vmatmul.bf16.gmra.mxu0 %v1678
  %v1891 = vpop.f32.mrf.mxu0
  %v1892 = vadd.f32 0.0, %v1891
  %v1893 = vpop.f32.mrf.mxu0
  %v1894 = vadd.f32 0.0, %v1893
  %1895 = vdwg.mxu0
  %1896 = vmatpush.bf16.msra.mxu0 0
  %1897 = vmatpush.bf16.msra.mxu0 0
  %1898 = vmatpush.bf16.msra.mxu0 0
  %1899 = vmatpush.bf16.msra.mxu0 0
  %1900 = vmatpush.bf16.msra.mxu0 0
  %1901 = vmatpush.bf16.msra.mxu0 0
  %1902 = vmatpush.bf16.msra.mxu0 0
  %1903 = vmatpush.bf16.msra.mxu0 %v1717
  %1904 = vmatmul.bf16.gmra.mxu0 %v1678
  %v1905 = vpop.f32.mrf.mxu0
  %v1906 = vadd.f32 0.0, %v1905
  %v1907 = vpop.f32.mrf.mxu0
  %v1908 = vadd.f32 0.0, %v1907
  %1909 = vdwg.mxu0
  %1910 = vmatpush.bf16.msra.mxu0 0
  %1911 = vmatpush.bf16.msra.mxu0 0
  %1912 = vmatpush.bf16.msra.mxu0 0
  %1913 = vmatpush.bf16.msra.mxu0 0
  %1914 = vmatpush.bf16.msra.mxu0 0
  %1915 = vmatpush.bf16.msra.mxu0 0
  %1916 = vmatpush.bf16.msra.mxu0 0
  %1917 = vmatpush.bf16.msra.mxu0 %v1720
  %1918 = vmatmul.bf16.gmra.mxu0 %v1678
  %v1919 = vpop.f32.mrf.mxu0
  %v1920 = vadd.f32 0.0, %v1919
  %v1921 = vpop.f32.mrf.mxu0
  %v1922 = vadd.f32 0.0, %v1921
  %1923 = vdwg.mxu0
  %1924 = vmatpush.bf16.msra.mxu0 0
  %1925 = vmatpush.bf16.msra.mxu0 0
  %1926 = vmatpush.bf16.msra.mxu0 0
  %1927 = vmatpush.bf16.msra.mxu0 0
  %1928 = vmatpush.bf16.msra.mxu0 0
  %1929 = vmatpush.bf16.msra.mxu0 0
  %1930 = vmatpush.bf16.msra.mxu0 0
  %1931 = vmatpush.bf16.msra.mxu0 %v1723
  %1932 = vmatmul.bf16.gmra.mxu0 %v1678
  %v1933 = vpop.f32.mrf.mxu0
  %v1934 = vadd.f32 0.0, %v1933
  %v1935 = vpop.f32.mrf.mxu0
  %v1936 = vadd.f32 0.0, %v1935
  %1937 = vdwg.mxu0
  %1938 = vmatpush.bf16.msra.mxu0 0
  %1939 = vmatpush.bf16.msra.mxu0 0
  %1940 = vmatpush.bf16.msra.mxu0 0
  %1941 = vmatpush.bf16.msra.mxu0 0
  %1942 = vmatpush.bf16.msra.mxu0 0
  %1943 = vmatpush.bf16.msra.mxu0 0
  %1944 = vmatpush.bf16.msra.mxu0 0
  %1945 = vmatpush.bf16.msra.mxu0 %v1726
  %1946 = vmatmul.bf16.gmra.mxu0 %v1678
  %v1947 = vpop.f32.mrf.mxu0
  %v1948 = vadd.f32 0.0, %v1947
  %v1949 = vpop.f32.mrf.mxu0
  %v1950 = vadd.f32 0.0, %v1949
  %1951 = vdwg.mxu0
  %v1952 = vadd.f32 %v1107, %v1738
  %v1953 = vadd.f32 %v1121, %v1752
  %v1954 = vadd.f32 %v1135, %v1766
  %v1955 = vadd.f32 %v1149, %v1780
  %v1956 = vadd.f32 %v1163, %v1794
  %v1957 = vadd.f32 %v1177, %v1808
  %v1958 = vadd.f32 %v1191, %v1822
  %v1959 = vadd.f32 %v1205, %v1836
  %v1960 = vadd.f32 %v1219, %v1850
  %v1961 = vadd.f32 %v1233, %v1864
  %v1962 = vadd.f32 %v1247, %v1878
  %v1963 = vadd.f32 %v1261, %v1892
  %v1964 = vadd.f32 %v1275, %v1906
  %v1965 = vadd.f32 %v1289, %v1920
  %v1966 = vadd.f32 %v1303, %v1934
  %v1967 = vadd.f32 %v1317, %v1948
  %v1968 = vadd.f32 %v1109, %v1740
  %v1969 = vadd.f32 %v1123, %v1754
  %v1970 = vadd.f32 %v1137, %v1768
  %v1971 = vadd.f32 %v1151, %v1782
  %v1972 = vadd.f32 %v1165, %v1796
  %v1973 = vadd.f32 %v1179, %v1810
  %v1974 = vadd.f32 %v1193, %v1824
  %v1975 = vadd.f32 %v1207, %v1838
  %v1976 = vadd.f32 %v1221, %v1852
  %v1977 = vadd.f32 %v1235, %v1866
  %v1978 = vadd.f32 %v1249, %v1880
  %v1979 = vadd.f32 %v1263, %v1894
  %v1980 = vadd.f32 %v1277, %v1908
  %v1981 = vadd.f32 %v1291, %v1922
  %v1982 = vadd.f32 %v1305, %v1936
  %v1983 = vadd.f32 %v1319, %v1950
  %v1984 = vsel %vm214, 1, 0
  %v1985 = vsel %vm215, 1, 0
  %v1986 = vsel %vm216, 1, 0
  %v1987 = vsel %vm217, 1, 0
  %v1988 = vsel %vm218, 1, 0
  %v1989 = vsel %vm219, 1, 0
  %v1990 = vsel %vm220, 1, 0
  %v1991 = vsel %vm221, 1, 0
  %v1992 = vsel %vm222, 1, 0
  %v1993 = vsel %vm223, 1, 0
  %v1994 = vsel %vm224, 1, 0
  %v1995 = vsel %vm225, 1, 0
  %v1996 = vsel %vm226, 1, 0
  %v1997 = vsel %vm227, 1, 0
  %v1998 = vsel %vm228, 1, 0
  %v1999 = vsel %vm229, 1, 0
  %vm2000 = vcmp.eq.s32.totalorder %v1984, 1
  %vm2001 = vcmp.eq.s32.totalorder %v1985, 1
  %vm2002 = vcmp.eq.s32.totalorder %v1986, 1
  %vm2003 = vcmp.eq.s32.totalorder %v1987, 1
  %vm2004 = vcmp.eq.s32.totalorder %v1988, 1
  %vm2005 = vcmp.eq.s32.totalorder %v1989, 1
  %vm2006 = vcmp.eq.s32.totalorder %v1990, 1
  %vm2007 = vcmp.eq.s32.totalorder %v1991, 1
  %vm2008 = vcmp.eq.s32.totalorder %v1992, 1
  %vm2009 = vcmp.eq.s32.totalorder %v1993, 1
  %vm2010 = vcmp.eq.s32.totalorder %v1994, 1
  %vm2011 = vcmp.eq.s32.totalorder %v1995, 1
  %vm2012 = vcmp.eq.s32.totalorder %v1996, 1
  %vm2013 = vcmp.eq.s32.totalorder %v1997, 1
  %vm2014 = vcmp.eq.s32.totalorder %v1998, 1
  %vm2015 = vcmp.eq.s32.totalorder %v1999, 1
  %vm2016 = vmpackc.low %vm2001, %vm2000
  %vm2017 = vmpackc.low %vm2003, %vm2002
  %vm2018 = vmpackc.low %vm2005, %vm2004
  %vm2019 = vmpackc.low %vm2007, %vm2006
  %vm2020 = vmpackc.low %vm2009, %vm2008
  %vm2021 = vmpackc.low %vm2011, %vm2010
  %vm2022 = vmpackc.low %vm2013, %vm2012
  %vm2023 = vmpackc.low %vm2015, %vm2014
  %v2024 = vsel %vm2016, 65537, 0
  %v2025 = vsel %vm2017, 65537, 0
  %v2026 = vsel %vm2018, 65537, 0
  %v2027 = vsel %vm2019, 65537, 0
  %v2028 = vsel %vm2020, 65537, 0
  %v2029 = vsel %vm2021, 65537, 0
  %v2030 = vsel %vm2022, 65537, 0
  %v2031 = vsel %vm2023, 65537, 0
  %v2032 = vperm.slane %v2024, 0
  %v2033 = vperm.slane %v2024, 4
  %v2034 = vperm.slane %v2025, 0
  %v2035 = vperm.slane %v2025, 4
  %v2036 = vperm.slane %v2026, 0
  %v2037 = vperm.slane %v2026, 4
  %v2038 = vperm.slane %v2027, 0
  %v2039 = vperm.slane %v2027, 4
  %v2040 = vperm.slane %v2028, 0
  %v2041 = vperm.slane %v2028, 4
  %v2042 = vperm.slane %v2029, 0
  %v2043 = vperm.slane %v2029, 4
  %v2044 = vperm.slane %v2030, 0
  %v2045 = vperm.slane %v2030, 4
  %v2046 = vperm.slane %v2031, 0
  %v2047 = vperm.slane %v2031, 4
  %2048 = vrot.lane.b32.xlu0 %v2032, 32
  %v2049 = vpop.permute.xlu0 %2048
  %2050 = vrot.lane.b32.xlu0 %v2033, 32
  %v2051 = vpop.permute.xlu0 %2050
  %2052 = vrot.lane.b32.xlu0 %v2034, 32
  %v2053 = vpop.permute.xlu0 %2052
  %2054 = vrot.lane.b32.xlu0 %v2035, 32
  %v2055 = vpop.permute.xlu0 %2054
  %2056 = vrot.lane.b32.xlu0 %v2036, 32
  %v2057 = vpop.permute.xlu0 %2056
  %2058 = vrot.lane.b32.xlu0 %v2037, 32
  %v2059 = vpop.permute.xlu0 %2058
  %2060 = vrot.lane.b32.xlu0 %v2038, 32
  %v2061 = vpop.permute.xlu0 %2060
  %2062 = vrot.lane.b32.xlu0 %v2039, 32
  %v2063 = vpop.permute.xlu0 %2062
  %2064 = vrot.lane.b32.xlu0 %v2040, 32
  %v2065 = vpop.permute.xlu0 %2064
  %2066 = vrot.lane.b32.xlu0 %v2041, 32
  %v2067 = vpop.permute.xlu0 %2066
  %2068 = vrot.lane.b32.xlu0 %v2042, 32
  %v2069 = vpop.permute.xlu0 %2068
  %2070 = vrot.lane.b32.xlu0 %v2043, 32
  %v2071 = vpop.permute.xlu0 %2070
  %2072 = vrot.lane.b32.xlu0 %v2044, 32
  %v2073 = vpop.permute.xlu0 %2072
  %2074 = vrot.lane.b32.xlu0 %v2045, 32
  %v2075 = vpop.permute.xlu0 %2074
  %2076 = vrot.lane.b32.xlu0 %v2046, 32
  %v2077 = vpop.permute.xlu0 %2076
  %2078 = vrot.lane.b32.xlu0 %v2047, 32
  %v2079 = vpop.permute.xlu0 %2078
  %vm2080 = vcmask 261120
  %v2081 = vsel %vm2080, %v2049, %v2051
  %v2082 = vsel %vm2080, %v2051, %v2053
  %v2083 = vsel %vm2080, %v2053, %v2055
  %v2084 = vsel %vm2080, %v2055, %v2057
  %v2085 = vsel %vm2080, %v2057, %v2059
  %v2086 = vsel %vm2080, %v2059, %v2061
  %v2087 = vsel %vm2080, %v2061, %v2063
  %v2088 = vsel %vm2080, %v2063, %v2065
  %v2089 = vsel %vm2080, %v2065, %v2067
  %v2090 = vsel %vm2080, %v2067, %v2069
  %v2091 = vsel %vm2080, %v2069, %v2071
  %v2092 = vsel %vm2080, %v2071, %v2073
  %v2093 = vsel %vm2080, %v2073, %v2075
  %v2094 = vsel %vm2080, %v2075, %v2077
  %v2095 = vsel %vm2080, %v2077, %v2079
  %v2096 = vunpack.c.l.b16 %v2049
  %v2097 = vunpack.c.h.b16 %v2049
  %v2098 = vunpack.c.l.b16 0
  %v2099 = vunpack.c.h.b16 0
  %vm2100 = vcmp.ne.s32.totalorder %v2096, %v2098
  %vm2101 = vcmp.ne.s32.totalorder %v2097, %v2099
  %vm2102 = vmpackc.low %vm2101, %vm2100
  %v2103 = vunpack.c.l.b16 %v2081
  %v2104 = vunpack.c.h.b16 %v2081
  %v2105 = vunpack.c.l.b16 0
  %v2106 = vunpack.c.h.b16 0
  %vm2107 = vcmp.ne.s32.totalorder %v2103, %v2105
  %vm2108 = vcmp.ne.s32.totalorder %v2104, %v2106
  %vm2109 = vmpackc.low %vm2108, %vm2107
  %v2110 = vunpack.c.l.b16 %v2082
  %v2111 = vunpack.c.h.b16 %v2082
  %v2112 = vunpack.c.l.b16 0
  %v2113 = vunpack.c.h.b16 0
  %vm2114 = vcmp.ne.s32.totalorder %v2110, %v2112
  %vm2115 = vcmp.ne.s32.totalorder %v2111, %v2113
  %vm2116 = vmpackc.low %vm2115, %vm2114
  %v2117 = vunpack.c.l.b16 %v2083
  %v2118 = vunpack.c.h.b16 %v2083
  %v2119 = vunpack.c.l.b16 0
  %v2120 = vunpack.c.h.b16 0
  %vm2121 = vcmp.ne.s32.totalorder %v2117, %v2119
  %vm2122 = vcmp.ne.s32.totalorder %v2118, %v2120
  %vm2123 = vmpackc.low %vm2122, %vm2121
  %v2124 = vunpack.c.l.b16 %v2084
  %v2125 = vunpack.c.h.b16 %v2084
  %v2126 = vunpack.c.l.b16 0
  %v2127 = vunpack.c.h.b16 0
  %vm2128 = vcmp.ne.s32.totalorder %v2124, %v2126
  %vm2129 = vcmp.ne.s32.totalorder %v2125, %v2127
  %vm2130 = vmpackc.low %vm2129, %vm2128
  %v2131 = vunpack.c.l.b16 %v2085
  %v2132 = vunpack.c.h.b16 %v2085
  %v2133 = vunpack.c.l.b16 0
  %v2134 = vunpack.c.h.b16 0
  %vm2135 = vcmp.ne.s32.totalorder %v2131, %v2133
  %vm2136 = vcmp.ne.s32.totalorder %v2132, %v2134
  %vm2137 = vmpackc.low %vm2136, %vm2135
  %v2138 = vunpack.c.l.b16 %v2086
  %v2139 = vunpack.c.h.b16 %v2086
  %v2140 = vunpack.c.l.b16 0
  %v2141 = vunpack.c.h.b16 0
  %vm2142 = vcmp.ne.s32.totalorder %v2138, %v2140
  %vm2143 = vcmp.ne.s32.totalorder %v2139, %v2141
  %vm2144 = vmpackc.low %vm2143, %vm2142
  %v2145 = vunpack.c.l.b16 %v2087
  %v2146 = vunpack.c.h.b16 %v2087
  %v2147 = vunpack.c.l.b16 0
  %v2148 = vunpack.c.h.b16 0
  %vm2149 = vcmp.ne.s32.totalorder %v2145, %v2147
  %vm2150 = vcmp.ne.s32.totalorder %v2146, %v2148
  %vm2151 = vmpackc.low %vm2150, %vm2149
  %v2152 = vunpack.c.l.b16 %v2088
  %v2153 = vunpack.c.h.b16 %v2088
  %v2154 = vunpack.c.l.b16 0
  %v2155 = vunpack.c.h.b16 0
  %vm2156 = vcmp.ne.s32.totalorder %v2152, %v2154
  %vm2157 = vcmp.ne.s32.totalorder %v2153, %v2155
  %vm2158 = vmpackc.low %vm2157, %vm2156
  %v2159 = vunpack.c.l.b16 %v2089
  %v2160 = vunpack.c.h.b16 %v2089
  %v2161 = vunpack.c.l.b16 0
  %v2162 = vunpack.c.h.b16 0
  %vm2163 = vcmp.ne.s32.totalorder %v2159, %v2161
  %vm2164 = vcmp.ne.s32.totalorder %v2160, %v2162
  %vm2165 = vmpackc.low %vm2164, %vm2163
  %v2166 = vunpack.c.l.b16 %v2090
  %v2167 = vunpack.c.h.b16 %v2090
  %v2168 = vunpack.c.l.b16 0
  %v2169 = vunpack.c.h.b16 0
  %vm2170 = vcmp.ne.s32.totalorder %v2166, %v2168
  %vm2171 = vcmp.ne.s32.totalorder %v2167, %v2169
  %vm2172 = vmpackc.low %vm2171, %vm2170
  %v2173 = vunpack.c.l.b16 %v2091
  %v2174 = vunpack.c.h.b16 %v2091
  %v2175 = vunpack.c.l.b16 0
  %v2176 = vunpack.c.h.b16 0
  %vm2177 = vcmp.ne.s32.totalorder %v2173, %v2175
  %vm2178 = vcmp.ne.s32.totalorder %v2174, %v2176
  %vm2179 = vmpackc.low %vm2178, %vm2177
  %v2180 = vunpack.c.l.b16 %v2092
  %v2181 = vunpack.c.h.b16 %v2092
  %v2182 = vunpack.c.l.b16 0
  %v2183 = vunpack.c.h.b16 0
  %vm2184 = vcmp.ne.s32.totalorder %v2180, %v2182
  %vm2185 = vcmp.ne.s32.totalorder %v2181, %v2183
  %vm2186 = vmpackc.low %vm2185, %vm2184
  %v2187 = vunpack.c.l.b16 %v2093
  %v2188 = vunpack.c.h.b16 %v2093
  %v2189 = vunpack.c.l.b16 0
  %v2190 = vunpack.c.h.b16 0
  %vm2191 = vcmp.ne.s32.totalorder %v2187, %v2189
  %vm2192 = vcmp.ne.s32.totalorder %v2188, %v2190
  %vm2193 = vmpackc.low %vm2192, %vm2191
  %v2194 = vunpack.c.l.b16 %v2094
  %v2195 = vunpack.c.h.b16 %v2094
  %v2196 = vunpack.c.l.b16 0
  %v2197 = vunpack.c.h.b16 0
  %vm2198 = vcmp.ne.s32.totalorder %v2194, %v2196
  %vm2199 = vcmp.ne.s32.totalorder %v2195, %v2197
  %vm2200 = vmpackc.low %vm2199, %vm2198
  %v2201 = vunpack.c.l.b16 %v2095
  %v2202 = vunpack.c.h.b16 %v2095
  %v2203 = vunpack.c.l.b16 0
  %v2204 = vunpack.c.h.b16 0
  %vm2205 = vcmp.ne.s32.totalorder %v2201, %v2203
  %vm2206 = vcmp.ne.s32.totalorder %v2202, %v2204
  %vm2207 = vmpackc.low %vm2206, %vm2205
  %v2208 = vunpack.c.l.b16 %v2079
  %v2209 = vunpack.c.h.b16 %v2079
  %v2210 = vunpack.c.l.b16 0
  %v2211 = vunpack.c.h.b16 0
  %vm2212 = vcmp.ne.s32.totalorder %v2208, %v2210
  %vm2213 = vcmp.ne.s32.totalorder %v2209, %v2211
  %vm2214 = vmpackc.low %vm2213, %vm2212
  %v2215 = vsel %vm2102, %v128, 0
  %v2216 = vsel %vm2109, %v95, 0
  %v2217 = vsel %vm2116, %v96, 0
  %v2218 = vsel %vm2123, %v97, 0
  %v2219 = vsel %vm2130, %v98, 0
  %v2220 = vsel %vm2137, %v99, 0
  %v2221 = vsel %vm2144, %v100, 0
  %v2222 = vsel %vm2151, %v101, 0
  %v2223 = vsel %vm2158, %v102, 0
  %v2224 = vsel %vm2165, %v103, 0
  %v2225 = vsel %vm2172, %v104, 0
  %v2226 = vsel %vm2179, %v105, 0
  %v2227 = vsel %vm2186, %v106, 0
  %v2228 = vsel %vm2193, %v107, 0
  %v2229 = vsel %vm2200, %v108, 0
  %v2230 = vsel %vm2207, %v109, 0
  %v2231 = vsel %vm2214, %v131, 0
  %s2232 = scalar_lea.vmem %s1, 24
  %v2233 = vld [vmem:[%s2232] sm:$0xf]
  %v2234 = vld [vmem:[%s2232 + $0x4] sm:$0x3]
  %v2237 = vunpack.c.l.b16 %v2233
  %v2238 = vunpack.c.l.b16 %v2234
  %v2239 = vpack.c.b16 %v2238, %v2237
  %2257 = vrot.lane.b32.xlu0 %v2215, 96
  %v2258 = vpop.permute.xlu0 %2257
  %2259 = vrot.lane.b32.xlu0 %v2216, 96
  %v2260 = vpop.permute.xlu0 %2259
  %2261 = vrot.lane.b32.xlu0 %v2217, 96
  %v2262 = vpop.permute.xlu0 %2261
  %2263 = vrot.lane.b32.xlu0 %v2218, 96
  %v2264 = vpop.permute.xlu0 %2263
  %2265 = vrot.lane.b32.xlu0 %v2219, 96
  %v2266 = vpop.permute.xlu0 %2265
  %2267 = vrot.lane.b32.xlu0 %v2220, 96
  %v2268 = vpop.permute.xlu0 %2267
  %2269 = vrot.lane.b32.xlu0 %v2221, 96
  %v2270 = vpop.permute.xlu0 %2269
  %2271 = vrot.lane.b32.xlu0 %v2222, 96
  %v2272 = vpop.permute.xlu0 %2271
  %2273 = vrot.lane.b32.xlu0 %v2223, 96
  %v2274 = vpop.permute.xlu0 %2273
  %2275 = vrot.lane.b32.xlu0 %v2224, 96
  %v2276 = vpop.permute.xlu0 %2275
  %2277 = vrot.lane.b32.xlu0 %v2225, 96
  %v2278 = vpop.permute.xlu0 %2277
  %2279 = vrot.lane.b32.xlu0 %v2226, 96
  %v2280 = vpop.permute.xlu0 %2279
  %2281 = vrot.lane.b32.xlu0 %v2227, 96
  %v2282 = vpop.permute.xlu0 %2281
  %2283 = vrot.lane.b32.xlu0 %v2228, 96
  %v2284 = vpop.permute.xlu0 %2283
  %2285 = vrot.lane.b32.xlu0 %v2229, 96
  %v2286 = vpop.permute.xlu0 %2285
  %2287 = vrot.lane.b32.xlu0 %v2230, 96
  %v2288 = vpop.permute.xlu0 %2287
  %2289 = vrot.lane.b32.xlu0 %v2231, 96
  %v2290 = vpop.permute.xlu0 %2289
  %vm2291 = vcmask 785408
  %v2292 = vsel %vm2291, %v2258, %v2260
  %v2293 = vsel %vm2291, %v2260, %v2262
  %v2294 = vsel %vm2291, %v2262, %v2264
  %v2295 = vsel %vm2291, %v2264, %v2266
  %v2296 = vsel %vm2291, %v2266, %v2268
  %v2297 = vsel %vm2291, %v2268, %v2270
  %v2298 = vsel %vm2291, %v2270, %v2272
  %v2299 = vsel %vm2291, %v2272, %v2274
  %v2300 = vsel %vm2291, %v2274, %v2276
  %v2301 = vsel %vm2291, %v2276, %v2278
  %v2302 = vsel %vm2291, %v2278, %v2280
  %v2303 = vsel %vm2291, %v2280, %v2282
  %v2304 = vsel %vm2291, %v2282, %v2284
  %v2305 = vsel %vm2291, %v2284, %v2286
  %v2306 = vsel %vm2291, %v2286, %v2288
  %v2307 = vsel %vm2291, %v2288, %v2290
  %v2309 = vsel %vm764, %v2239, 0
  %v2312 = vsel %vm768, %v2292, 0
  %v2315 = vsel %vm768, %v2293, 0
  %v2318 = vsel %vm768, %v2294, 0
  %v2321 = vsel %vm768, %v2295, 0
  %v2324 = vsel %vm768, %v2296, 0
  %v2327 = vsel %vm768, %v2297, 0
  %v2330 = vsel %vm768, %v2298, 0
  %v2333 = vsel %vm768, %v2299, 0
  %v2336 = vsel %vm768, %v2300, 0
  %v2339 = vsel %vm768, %v2301, 0
  %v2342 = vsel %vm768, %v2302, 0
  %v2345 = vsel %vm768, %v2303, 0
  %v2348 = vsel %vm768, %v2304, 0
  %v2351 = vsel %vm768, %v2305, 0
  %v2354 = vsel %vm768, %v2306, 0
  %v2357 = vsel %vm768, %v2307, 0
  %2359 = vmatpush.bf16.msra.mxu0 0
  %2360 = vmatpush.bf16.msra.mxu0 0
  %2361 = vmatpush.bf16.msra.mxu0 0
  %2362 = vmatpush.bf16.msra.mxu0 0
  %2363 = vmatpush.bf16.msra.mxu0 0
  %2364 = vmatpush.bf16.msra.mxu0 0
  %2365 = vmatpush.bf16.msra.mxu0 0
  %2366 = vmatpush.bf16.msra.mxu0 %v2312
  %2367 = vmatmul.bf16.gmra.mxu0 %v2309
  %v2368 = vpop.f32.mrf.mxu0
  %v2369 = vadd.f32 0.0, %v2368
  %v2370 = vpop.f32.mrf.mxu0
  %v2371 = vadd.f32 0.0, %v2370
  %2372 = vdwg.mxu0
  %2373 = vmatpush.bf16.msra.mxu0 0
  %2374 = vmatpush.bf16.msra.mxu0 0
  %2375 = vmatpush.bf16.msra.mxu0 0
  %2376 = vmatpush.bf16.msra.mxu0 0
  %2377 = vmatpush.bf16.msra.mxu0 0
  %2378 = vmatpush.bf16.msra.mxu0 0
  %2379 = vmatpush.bf16.msra.mxu0 0
  %2380 = vmatpush.bf16.msra.mxu0 %v2315
  %2381 = vmatmul.bf16.gmra.mxu0 %v2309
  %v2382 = vpop.f32.mrf.mxu0
  %v2383 = vadd.f32 0.0, %v2382
  %v2384 = vpop.f32.mrf.mxu0
  %v2385 = vadd.f32 0.0, %v2384
  %2386 = vdwg.mxu0
  %2387 = vmatpush.bf16.msra.mxu0 0
  %2388 = vmatpush.bf16.msra.mxu0 0
  %2389 = vmatpush.bf16.msra.mxu0 0
  %2390 = vmatpush.bf16.msra.mxu0 0
  %2391 = vmatpush.bf16.msra.mxu0 0
  %2392 = vmatpush.bf16.msra.mxu0 0
  %2393 = vmatpush.bf16.msra.mxu0 0
  %2394 = vmatpush.bf16.msra.mxu0 %v2318
  %2395 = vmatmul.bf16.gmra.mxu0 %v2309
  %v2396 = vpop.f32.mrf.mxu0
  %v2397 = vadd.f32 0.0, %v2396
  %v2398 = vpop.f32.mrf.mxu0
  %v2399 = vadd.f32 0.0, %v2398
  %2400 = vdwg.mxu0
  %2401 = vmatpush.bf16.msra.mxu0 0
  %2402 = vmatpush.bf16.msra.mxu0 0
  %2403 = vmatpush.bf16.msra.mxu0 0
  %2404 = vmatpush.bf16.msra.mxu0 0
  %2405 = vmatpush.bf16.msra.mxu0 0
  %2406 = vmatpush.bf16.msra.mxu0 0
  %2407 = vmatpush.bf16.msra.mxu0 0
  %2408 = vmatpush.bf16.msra.mxu0 %v2321
  %2409 = vmatmul.bf16.gmra.mxu0 %v2309
  %v2410 = vpop.f32.mrf.mxu0
  %v2411 = vadd.f32 0.0, %v2410
  %v2412 = vpop.f32.mrf.mxu0
  %v2413 = vadd.f32 0.0, %v2412
  %2414 = vdwg.mxu0
  %2415 = vmatpush.bf16.msra.mxu0 0
  %2416 = vmatpush.bf16.msra.mxu0 0
  %2417 = vmatpush.bf16.msra.mxu0 0
  %2418 = vmatpush.bf16.msra.mxu0 0
  %2419 = vmatpush.bf16.msra.mxu0 0
  %2420 = vmatpush.bf16.msra.mxu0 0
  %2421 = vmatpush.bf16.msra.mxu0 0
  %2422 = vmatpush.bf16.msra.mxu0 %v2324
  %2423 = vmatmul.bf16.gmra.mxu0 %v2309
  %v2424 = vpop.f32.mrf.mxu0
  %v2425 = vadd.f32 0.0, %v2424
  %v2426 = vpop.f32.mrf.mxu0
  %v2427 = vadd.f32 0.0, %v2426
  %2428 = vdwg.mxu0
  %2429 = vmatpush.bf16.msra.mxu0 0
  %2430 = vmatpush.bf16.msra.mxu0 0
  %2431 = vmatpush.bf16.msra.mxu0 0
  %2432 = vmatpush.bf16.msra.mxu0 0
  %2433 = vmatpush.bf16.msra.mxu0 0
  %2434 = vmatpush.bf16.msra.mxu0 0
  %2435 = vmatpush.bf16.msra.mxu0 0
  %2436 = vmatpush.bf16.msra.mxu0 %v2327
  %2437 = vmatmul.bf16.gmra.mxu0 %v2309
  %v2438 = vpop.f32.mrf.mxu0
  %v2439 = vadd.f32 0.0, %v2438
  %v2440 = vpop.f32.mrf.mxu0
  %v2441 = vadd.f32 0.0, %v2440
  %2442 = vdwg.mxu0
  %2443 = vmatpush.bf16.msra.mxu0 0
  %2444 = vmatpush.bf16.msra.mxu0 0
  %2445 = vmatpush.bf16.msra.mxu0 0
  %2446 = vmatpush.bf16.msra.mxu0 0
  %2447 = vmatpush.bf16.msra.mxu0 0
  %2448 = vmatpush.bf16.msra.mxu0 0
  %2449 = vmatpush.bf16.msra.mxu0 0
  %2450 = vmatpush.bf16.msra.mxu0 %v2330
  %2451 = vmatmul.bf16.gmra.mxu0 %v2309
  %v2452 = vpop.f32.mrf.mxu0
  %v2453 = vadd.f32 0.0, %v2452
  %v2454 = vpop.f32.mrf.mxu0
  %v2455 = vadd.f32 0.0, %v2454
  %2456 = vdwg.mxu0
  %2457 = vmatpush.bf16.msra.mxu0 0
  %2458 = vmatpush.bf16.msra.mxu0 0
  %2459 = vmatpush.bf16.msra.mxu0 0
  %2460 = vmatpush.bf16.msra.mxu0 0
  %2461 = vmatpush.bf16.msra.mxu0 0
  %2462 = vmatpush.bf16.msra.mxu0 0
  %2463 = vmatpush.bf16.msra.mxu0 0
  %2464 = vmatpush.bf16.msra.mxu0 %v2333
  %2465 = vmatmul.bf16.gmra.mxu0 %v2309
  %v2466 = vpop.f32.mrf.mxu0
  %v2467 = vadd.f32 0.0, %v2466
  %v2468 = vpop.f32.mrf.mxu0
  %v2469 = vadd.f32 0.0, %v2468
  %2470 = vdwg.mxu0
  %2471 = vmatpush.bf16.msra.mxu0 0
  %2472 = vmatpush.bf16.msra.mxu0 0
  %2473 = vmatpush.bf16.msra.mxu0 0
  %2474 = vmatpush.bf16.msra.mxu0 0
  %2475 = vmatpush.bf16.msra.mxu0 0
  %2476 = vmatpush.bf16.msra.mxu0 0
  %2477 = vmatpush.bf16.msra.mxu0 0
  %2478 = vmatpush.bf16.msra.mxu0 %v2336
  %2479 = vmatmul.bf16.gmra.mxu0 %v2309
  %v2480 = vpop.f32.mrf.mxu0
  %v2481 = vadd.f32 0.0, %v2480
  %v2482 = vpop.f32.mrf.mxu0
  %v2483 = vadd.f32 0.0, %v2482
  %2484 = vdwg.mxu0
  %2485 = vmatpush.bf16.msra.mxu0 0
  %2486 = vmatpush.bf16.msra.mxu0 0
  %2487 = vmatpush.bf16.msra.mxu0 0
  %2488 = vmatpush.bf16.msra.mxu0 0
  %2489 = vmatpush.bf16.msra.mxu0 0
  %2490 = vmatpush.bf16.msra.mxu0 0
  %2491 = vmatpush.bf16.msra.mxu0 0
  %2492 = vmatpush.bf16.msra.mxu0 %v2339
  %2493 = vmatmul.bf16.gmra.mxu0 %v2309
  %v2494 = vpop.f32.mrf.mxu0
  %v2495 = vadd.f32 0.0, %v2494
  %v2496 = vpop.f32.mrf.mxu0
  %v2497 = vadd.f32 0.0, %v2496
  %2498 = vdwg.mxu0
  %2499 = vmatpush.bf16.msra.mxu0 0
  %2500 = vmatpush.bf16.msra.mxu0 0
  %2501 = vmatpush.bf16.msra.mxu0 0
  %2502 = vmatpush.bf16.msra.mxu0 0
  %2503 = vmatpush.bf16.msra.mxu0 0
  %2504 = vmatpush.bf16.msra.mxu0 0
  %2505 = vmatpush.bf16.msra.mxu0 0
  %2506 = vmatpush.bf16.msra.mxu0 %v2342
  %2507 = vmatmul.bf16.gmra.mxu0 %v2309
  %v2508 = vpop.f32.mrf.mxu0
  %v2509 = vadd.f32 0.0, %v2508
  %v2510 = vpop.f32.mrf.mxu0
  %v2511 = vadd.f32 0.0, %v2510
  %2512 = vdwg.mxu0
  %2513 = vmatpush.bf16.msra.mxu0 0
  %2514 = vmatpush.bf16.msra.mxu0 0
  %2515 = vmatpush.bf16.msra.mxu0 0
  %2516 = vmatpush.bf16.msra.mxu0 0
  %2517 = vmatpush.bf16.msra.mxu0 0
  %2518 = vmatpush.bf16.msra.mxu0 0
  %2519 = vmatpush.bf16.msra.mxu0 0
  %2520 = vmatpush.bf16.msra.mxu0 %v2345
  %2521 = vmatmul.bf16.gmra.mxu0 %v2309
  %v2522 = vpop.f32.mrf.mxu0
  %v2523 = vadd.f32 0.0, %v2522
  %v2524 = vpop.f32.mrf.mxu0
  %v2525 = vadd.f32 0.0, %v2524
  %2526 = vdwg.mxu0
  %2527 = vmatpush.bf16.msra.mxu0 0
  %2528 = vmatpush.bf16.msra.mxu0 0
  %2529 = vmatpush.bf16.msra.mxu0 0
  %2530 = vmatpush.bf16.msra.mxu0 0
  %2531 = vmatpush.bf16.msra.mxu0 0
  %2532 = vmatpush.bf16.msra.mxu0 0
  %2533 = vmatpush.bf16.msra.mxu0 0
  %2534 = vmatpush.bf16.msra.mxu0 %v2348
  %2535 = vmatmul.bf16.gmra.mxu0 %v2309
  %v2536 = vpop.f32.mrf.mxu0
  %v2537 = vadd.f32 0.0, %v2536
  %v2538 = vpop.f32.mrf.mxu0
  %v2539 = vadd.f32 0.0, %v2538
  %2540 = vdwg.mxu0
  %2541 = vmatpush.bf16.msra.mxu0 0
  %2542 = vmatpush.bf16.msra.mxu0 0
  %2543 = vmatpush.bf16.msra.mxu0 0
  %2544 = vmatpush.bf16.msra.mxu0 0
  %2545 = vmatpush.bf16.msra.mxu0 0
  %2546 = vmatpush.bf16.msra.mxu0 0
  %2547 = vmatpush.bf16.msra.mxu0 0
  %2548 = vmatpush.bf16.msra.mxu0 %v2351
  %2549 = vmatmul.bf16.gmra.mxu0 %v2309
  %v2550 = vpop.f32.mrf.mxu0
  %v2551 = vadd.f32 0.0, %v2550
  %v2552 = vpop.f32.mrf.mxu0
  %v2553 = vadd.f32 0.0, %v2552
  %2554 = vdwg.mxu0
  %2555 = vmatpush.bf16.msra.mxu0 0
  %2556 = vmatpush.bf16.msra.mxu0 0
  %2557 = vmatpush.bf16.msra.mxu0 0
  %2558 = vmatpush.bf16.msra.mxu0 0
  %2559 = vmatpush.bf16.msra.mxu0 0
  %2560 = vmatpush.bf16.msra.mxu0 0
  %2561 = vmatpush.bf16.msra.mxu0 0
  %2562 = vmatpush.bf16.msra.mxu0 %v2354
  %2563 = vmatmul.bf16.gmra.mxu0 %v2309
  %v2564 = vpop.f32.mrf.mxu0
  %v2565 = vadd.f32 0.0, %v2564
  %v2566 = vpop.f32.mrf.mxu0
  %v2567 = vadd.f32 0.0, %v2566
  %2568 = vdwg.mxu0
  %2569 = vmatpush.bf16.msra.mxu0 0
  %2570 = vmatpush.bf16.msra.mxu0 0
  %2571 = vmatpush.bf16.msra.mxu0 0
  %2572 = vmatpush.bf16.msra.mxu0 0
  %2573 = vmatpush.bf16.msra.mxu0 0
  %2574 = vmatpush.bf16.msra.mxu0 0
  %2575 = vmatpush.bf16.msra.mxu0 0
  %2576 = vmatpush.bf16.msra.mxu0 %v2357
  %2577 = vmatmul.bf16.gmra.mxu0 %v2309
  %v2578 = vpop.f32.mrf.mxu0
  %v2579 = vadd.f32 0.0, %v2578
  %v2580 = vpop.f32.mrf.mxu0
  %v2581 = vadd.f32 0.0, %v2580
  %2582 = vdwg.mxu0
  %v2583 = vadd.f32 %v1952, %v2369
  %v2584 = vadd.f32 %v1953, %v2383
  %v2585 = vadd.f32 %v1954, %v2397
  %v2586 = vadd.f32 %v1955, %v2411
  %v2587 = vadd.f32 %v1956, %v2425
  %v2588 = vadd.f32 %v1957, %v2439
  %v2589 = vadd.f32 %v1958, %v2453
  %v2590 = vadd.f32 %v1959, %v2467
  %v2591 = vadd.f32 %v1960, %v2481
  %v2592 = vadd.f32 %v1961, %v2495
  %v2593 = vadd.f32 %v1962, %v2509
  %v2594 = vadd.f32 %v1963, %v2523
  %v2595 = vadd.f32 %v1964, %v2537
  %v2596 = vadd.f32 %v1965, %v2551
  %v2597 = vadd.f32 %v1966, %v2565
  %v2598 = vadd.f32 %v1967, %v2579
  %v2599 = vadd.f32 %v1968, %v2371
  %v2600 = vadd.f32 %v1969, %v2385
  %v2601 = vadd.f32 %v1970, %v2399
  %v2602 = vadd.f32 %v1971, %v2413
  %v2603 = vadd.f32 %v1972, %v2427
  %v2604 = vadd.f32 %v1973, %v2441
  %v2605 = vadd.f32 %v1974, %v2455
  %v2606 = vadd.f32 %v1975, %v2469
  %v2607 = vadd.f32 %v1976, %v2483
  %v2608 = vadd.f32 %v1977, %v2497
  %v2609 = vadd.f32 %v1978, %v2511
  %v2610 = vadd.f32 %v1979, %v2525
  %v2611 = vadd.f32 %v1980, %v2539
  %v2612 = vadd.f32 %v1981, %v2553
  %v2613 = vadd.f32 %v1982, %v2567
  %v2614 = vadd.f32 %v1983, %v2581
  %s2615 = scalar_lea.vmem %s1, 32
  %v2616 = vld [vmem:[%s2615] sm:$0xf]
  %v2617 = vld [vmem:[%s2615 + $0x4] sm:$0x3]
  %v2620 = vunpack.c.l.b16 %v2616
  %v2621 = vunpack.c.l.b16 %v2617
  %v2622 = vpack.c.b16 %v2621, %v2620
  %2625 = vrot.lane.b32.xlu0 %v128, 95
  %v2626 = vpop.permute.xlu0 %2625
  %2627 = vrot.lane.b32.xlu0 %v95, 95
  %v2628 = vpop.permute.xlu0 %2627
  %2629 = vrot.lane.b32.xlu0 %v96, 95
  %v2630 = vpop.permute.xlu0 %2629
  %2631 = vrot.lane.b32.xlu0 %v97, 95
  %v2632 = vpop.permute.xlu0 %2631
  %2633 = vrot.lane.b32.xlu0 %v98, 95
  %v2634 = vpop.permute.xlu0 %2633
  %2635 = vrot.lane.b32.xlu0 %v99, 95
  %v2636 = vpop.permute.xlu0 %2635
  %2637 = vrot.lane.b32.xlu0 %v100, 95
  %v2638 = vpop.permute.xlu0 %2637
  %2639 = vrot.lane.b32.xlu0 %v101, 95
  %v2640 = vpop.permute.xlu0 %2639
  %2641 = vrot.lane.b32.xlu0 %v102, 95
  %v2642 = vpop.permute.xlu0 %2641
  %2643 = vrot.lane.b32.xlu0 %v103, 95
  %v2644 = vpop.permute.xlu0 %2643
  %2645 = vrot.lane.b32.xlu0 %v104, 95
  %v2646 = vpop.permute.xlu0 %2645
  %2647 = vrot.lane.b32.xlu0 %v105, 95
  %v2648 = vpop.permute.xlu0 %2647
  %2649 = vrot.lane.b32.xlu0 %v106, 95
  %v2650 = vpop.permute.xlu0 %2649
  %2651 = vrot.lane.b32.xlu0 %v107, 95
  %v2652 = vpop.permute.xlu0 %2651
  %2653 = vrot.lane.b32.xlu0 %v108, 95
  %v2654 = vpop.permute.xlu0 %2653
  %2655 = vrot.lane.b32.xlu0 %v109, 95
  %v2656 = vpop.permute.xlu0 %2655
  %2657 = vrot.lane.b32.xlu0 %v131, 95
  %v2658 = vpop.permute.xlu0 %2657
  %vm2659 = vcmask 777216
  %v2660 = vsel %vm2659, %v2626, %v2628
  %v2661 = vsel %vm2659, %v2628, %v2630
  %v2662 = vsel %vm2659, %v2630, %v2632
  %v2663 = vsel %vm2659, %v2632, %v2634
  %v2664 = vsel %vm2659, %v2634, %v2636
  %v2665 = vsel %vm2659, %v2636, %v2638
  %v2666 = vsel %vm2659, %v2638, %v2640
  %v2667 = vsel %vm2659, %v2640, %v2642
  %v2668 = vsel %vm2659, %v2642, %v2644
  %v2669 = vsel %vm2659, %v2644, %v2646
  %v2670 = vsel %vm2659, %v2646, %v2648
  %v2671 = vsel %vm2659, %v2648, %v2650
  %v2672 = vsel %vm2659, %v2650, %v2652
  %v2673 = vsel %vm2659, %v2652, %v2654
  %v2674 = vsel %vm2659, %v2654, %v2656
  %v2675 = vsel %vm2659, %v2656, %v2658
  %v2677 = vsel %vm764, %v2622, 0
  %v2680 = vsel %vm768, %v2660, 0
  %v2683 = vsel %vm768, %v2661, 0
  %v2686 = vsel %vm768, %v2662, 0
  %v2689 = vsel %vm768, %v2663, 0
  %v2692 = vsel %vm768, %v2664, 0
  %v2695 = vsel %vm768, %v2665, 0
  %v2698 = vsel %vm768, %v2666, 0
  %v2701 = vsel %vm768, %v2667, 0
  %v2704 = vsel %vm768, %v2668, 0
  %v2707 = vsel %vm768, %v2669, 0
  %v2710 = vsel %vm768, %v2670, 0
  %v2713 = vsel %vm768, %v2671, 0
  %v2716 = vsel %vm768, %v2672, 0
  %v2719 = vsel %vm768, %v2673, 0
  %v2722 = vsel %vm768, %v2674, 0
  %v2725 = vsel %vm768, %v2675, 0
  %2727 = vmatpush.bf16.msra.mxu0 0
  %2728 = vmatpush.bf16.msra.mxu0 0
  %2729 = vmatpush.bf16.msra.mxu0 0
  %2730 = vmatpush.bf16.msra.mxu0 0
  %2731 = vmatpush.bf16.msra.mxu0 0
  %2732 = vmatpush.bf16.msra.mxu0 0
  %2733 = vmatpush.bf16.msra.mxu0 0
  %2734 = vmatpush.bf16.msra.mxu0 %v2680
  %2735 = vmatmul.bf16.gmra.mxu0 %v2677
  %v2736 = vpop.f32.mrf.mxu0
  %v2737 = vadd.f32 0.0, %v2736
  %v2738 = vpop.f32.mrf.mxu0
  %v2739 = vadd.f32 0.0, %v2738
  %2740 = vdwg.mxu0
  %2741 = vmatpush.bf16.msra.mxu0 0
  %2742 = vmatpush.bf16.msra.mxu0 0
  %2743 = vmatpush.bf16.msra.mxu0 0
  %2744 = vmatpush.bf16.msra.mxu0 0
  %2745 = vmatpush.bf16.msra.mxu0 0
  %2746 = vmatpush.bf16.msra.mxu0 0
  %2747 = vmatpush.bf16.msra.mxu0 0
  %2748 = vmatpush.bf16.msra.mxu0 %v2683
  %2749 = vmatmul.bf16.gmra.mxu0 %v2677
  %v2750 = vpop.f32.mrf.mxu0
  %v2751 = vadd.f32 0.0, %v2750
  %v2752 = vpop.f32.mrf.mxu0
  %v2753 = vadd.f32 0.0, %v2752
  %2754 = vdwg.mxu0
  %2755 = vmatpush.bf16.msra.mxu0 0
  %2756 = vmatpush.bf16.msra.mxu0 0
  %2757 = vmatpush.bf16.msra.mxu0 0
  %2758 = vmatpush.bf16.msra.mxu0 0
  %2759 = vmatpush.bf16.msra.mxu0 0
  %2760 = vmatpush.bf16.msra.mxu0 0
  %2761 = vmatpush.bf16.msra.mxu0 0
  %2762 = vmatpush.bf16.msra.mxu0 %v2686
  %2763 = vmatmul.bf16.gmra.mxu0 %v2677
  %v2764 = vpop.f32.mrf.mxu0
  %v2765 = vadd.f32 0.0, %v2764
  %v2766 = vpop.f32.mrf.mxu0
  %v2767 = vadd.f32 0.0, %v2766
  %2768 = vdwg.mxu0
  %2769 = vmatpush.bf16.msra.mxu0 0
  %2770 = vmatpush.bf16.msra.mxu0 0
  %2771 = vmatpush.bf16.msra.mxu0 0
  %2772 = vmatpush.bf16.msra.mxu0 0
  %2773 = vmatpush.bf16.msra.mxu0 0
  %2774 = vmatpush.bf16.msra.mxu0 0
  %2775 = vmatpush.bf16.msra.mxu0 0
  %2776 = vmatpush.bf16.msra.mxu0 %v2689
  %2777 = vmatmul.bf16.gmra.mxu0 %v2677
  %v2778 = vpop.f32.mrf.mxu0
  %v2779 = vadd.f32 0.0, %v2778
  %v2780 = vpop.f32.mrf.mxu0
  %v2781 = vadd.f32 0.0, %v2780
  %2782 = vdwg.mxu0
  %2783 = vmatpush.bf16.msra.mxu0 0
  %2784 = vmatpush.bf16.msra.mxu0 0
  %2785 = vmatpush.bf16.msra.mxu0 0
  %2786 = vmatpush.bf16.msra.mxu0 0
  %2787 = vmatpush.bf16.msra.mxu0 0
  %2788 = vmatpush.bf16.msra.mxu0 0
  %2789 = vmatpush.bf16.msra.mxu0 0
  %2790 = vmatpush.bf16.msra.mxu0 %v2692
  %2791 = vmatmul.bf16.gmra.mxu0 %v2677
  %v2792 = vpop.f32.mrf.mxu0
  %v2793 = vadd.f32 0.0, %v2792
  %v2794 = vpop.f32.mrf.mxu0
  %v2795 = vadd.f32 0.0, %v2794
  %2796 = vdwg.mxu0
  %2797 = vmatpush.bf16.msra.mxu0 0
  %2798 = vmatpush.bf16.msra.mxu0 0
  %2799 = vmatpush.bf16.msra.mxu0 0
  %2800 = vmatpush.bf16.msra.mxu0 0
  %2801 = vmatpush.bf16.msra.mxu0 0
  %2802 = vmatpush.bf16.msra.mxu0 0
  %2803 = vmatpush.bf16.msra.mxu0 0
  %2804 = vmatpush.bf16.msra.mxu0 %v2695
  %2805 = vmatmul.bf16.gmra.mxu0 %v2677
  %v2806 = vpop.f32.mrf.mxu0
  %v2807 = vadd.f32 0.0, %v2806
  %v2808 = vpop.f32.mrf.mxu0
  %v2809 = vadd.f32 0.0, %v2808
  %2810 = vdwg.mxu0
  %2811 = vmatpush.bf16.msra.mxu0 0
  %2812 = vmatpush.bf16.msra.mxu0 0
  %2813 = vmatpush.bf16.msra.mxu0 0
  %2814 = vmatpush.bf16.msra.mxu0 0
  %2815 = vmatpush.bf16.msra.mxu0 0
  %2816 = vmatpush.bf16.msra.mxu0 0
  %2817 = vmatpush.bf16.msra.mxu0 0
  %2818 = vmatpush.bf16.msra.mxu0 %v2698
  %2819 = vmatmul.bf16.gmra.mxu0 %v2677
  %v2820 = vpop.f32.mrf.mxu0
  %v2821 = vadd.f32 0.0, %v2820
  %v2822 = vpop.f32.mrf.mxu0
  %v2823 = vadd.f32 0.0, %v2822
  %2824 = vdwg.mxu0
  %2825 = vmatpush.bf16.msra.mxu0 0
  %2826 = vmatpush.bf16.msra.mxu0 0
  %2827 = vmatpush.bf16.msra.mxu0 0
  %2828 = vmatpush.bf16.msra.mxu0 0
  %2829 = vmatpush.bf16.msra.mxu0 0
  %2830 = vmatpush.bf16.msra.mxu0 0
  %2831 = vmatpush.bf16.msra.mxu0 0
  %2832 = vmatpush.bf16.msra.mxu0 %v2701
  %2833 = vmatmul.bf16.gmra.mxu0 %v2677
  %v2834 = vpop.f32.mrf.mxu0
  %v2835 = vadd.f32 0.0, %v2834
  %v2836 = vpop.f32.mrf.mxu0
  %v2837 = vadd.f32 0.0, %v2836
  %2838 = vdwg.mxu0
  %2839 = vmatpush.bf16.msra.mxu0 0
  %2840 = vmatpush.bf16.msra.mxu0 0
  %2841 = vmatpush.bf16.msra.mxu0 0
  %2842 = vmatpush.bf16.msra.mxu0 0
  %2843 = vmatpush.bf16.msra.mxu0 0
  %2844 = vmatpush.bf16.msra.mxu0 0
  %2845 = vmatpush.bf16.msra.mxu0 0
  %2846 = vmatpush.bf16.msra.mxu0 %v2704
  %2847 = vmatmul.bf16.gmra.mxu0 %v2677
  %v2848 = vpop.f32.mrf.mxu0
  %v2849 = vadd.f32 0.0, %v2848
  %v2850 = vpop.f32.mrf.mxu0
  %v2851 = vadd.f32 0.0, %v2850
  %2852 = vdwg.mxu0
  %2853 = vmatpush.bf16.msra.mxu0 0
  %2854 = vmatpush.bf16.msra.mxu0 0
  %2855 = vmatpush.bf16.msra.mxu0 0
  %2856 = vmatpush.bf16.msra.mxu0 0
  %2857 = vmatpush.bf16.msra.mxu0 0
  %2858 = vmatpush.bf16.msra.mxu0 0
  %2859 = vmatpush.bf16.msra.mxu0 0
  %2860 = vmatpush.bf16.msra.mxu0 %v2707
  %2861 = vmatmul.bf16.gmra.mxu0 %v2677
  %v2862 = vpop.f32.mrf.mxu0
  %v2863 = vadd.f32 0.0, %v2862
  %v2864 = vpop.f32.mrf.mxu0
  %v2865 = vadd.f32 0.0, %v2864
  %2866 = vdwg.mxu0
  %2867 = vmatpush.bf16.msra.mxu0 0
  %2868 = vmatpush.bf16.msra.mxu0 0
  %2869 = vmatpush.bf16.msra.mxu0 0
  %2870 = vmatpush.bf16.msra.mxu0 0
  %2871 = vmatpush.bf16.msra.mxu0 0
  %2872 = vmatpush.bf16.msra.mxu0 0
  %2873 = vmatpush.bf16.msra.mxu0 0
  %2874 = vmatpush.bf16.msra.mxu0 %v2710
  %2875 = vmatmul.bf16.gmra.mxu0 %v2677
  %v2876 = vpop.f32.mrf.mxu0
  %v2877 = vadd.f32 0.0, %v2876
  %v2878 = vpop.f32.mrf.mxu0
  %v2879 = vadd.f32 0.0, %v2878
  %2880 = vdwg.mxu0
  %2881 = vmatpush.bf16.msra.mxu0 0
  %2882 = vmatpush.bf16.msra.mxu0 0
  %2883 = vmatpush.bf16.msra.mxu0 0
  %2884 = vmatpush.bf16.msra.mxu0 0
  %2885 = vmatpush.bf16.msra.mxu0 0
  %2886 = vmatpush.bf16.msra.mxu0 0
  %2887 = vmatpush.bf16.msra.mxu0 0
  %2888 = vmatpush.bf16.msra.mxu0 %v2713
  %2889 = vmatmul.bf16.gmra.mxu0 %v2677
  %v2890 = vpop.f32.mrf.mxu0
  %v2891 = vadd.f32 0.0, %v2890
  %v2892 = vpop.f32.mrf.mxu0
  %v2893 = vadd.f32 0.0, %v2892
  %2894 = vdwg.mxu0
  %2895 = vmatpush.bf16.msra.mxu0 0
  %2896 = vmatpush.bf16.msra.mxu0 0
  %2897 = vmatpush.bf16.msra.mxu0 0
  %2898 = vmatpush.bf16.msra.mxu0 0
  %2899 = vmatpush.bf16.msra.mxu0 0
  %2900 = vmatpush.bf16.msra.mxu0 0
  %2901 = vmatpush.bf16.msra.mxu0 0
  %2902 = vmatpush.bf16.msra.mxu0 %v2716
  %2903 = vmatmul.bf16.gmra.mxu0 %v2677
  %v2904 = vpop.f32.mrf.mxu0
  %v2905 = vadd.f32 0.0, %v2904
  %v2906 = vpop.f32.mrf.mxu0
  %v2907 = vadd.f32 0.0, %v2906
  %2908 = vdwg.mxu0
  %2909 = vmatpush.bf16.msra.mxu0 0
  %2910 = vmatpush.bf16.msra.mxu0 0
  %2911 = vmatpush.bf16.msra.mxu0 0
  %2912 = vmatpush.bf16.msra.mxu0 0
  %2913 = vmatpush.bf16.msra.mxu0 0
  %2914 = vmatpush.bf16.msra.mxu0 0
  %2915 = vmatpush.bf16.msra.mxu0 0
  %2916 = vmatpush.bf16.msra.mxu0 %v2719
  %2917 = vmatmul.bf16.gmra.mxu0 %v2677
  %v2918 = vpop.f32.mrf.mxu0
  %v2919 = vadd.f32 0.0, %v2918
  %v2920 = vpop.f32.mrf.mxu0
  %v2921 = vadd.f32 0.0, %v2920
  %2922 = vdwg.mxu0
  %2923 = vmatpush.bf16.msra.mxu0 0
  %2924 = vmatpush.bf16.msra.mxu0 0
  %2925 = vmatpush.bf16.msra.mxu0 0
  %2926 = vmatpush.bf16.msra.mxu0 0
  %2927 = vmatpush.bf16.msra.mxu0 0
  %2928 = vmatpush.bf16.msra.mxu0 0
  %2929 = vmatpush.bf16.msra.mxu0 0
  %2930 = vmatpush.bf16.msra.mxu0 %v2722
  %2931 = vmatmul.bf16.gmra.mxu0 %v2677
  %v2932 = vpop.f32.mrf.mxu0
  %v2933 = vadd.f32 0.0, %v2932
  %v2934 = vpop.f32.mrf.mxu0
  %v2935 = vadd.f32 0.0, %v2934
  %2936 = vdwg.mxu0
  %2937 = vmatpush.bf16.msra.mxu0 0
  %2938 = vmatpush.bf16.msra.mxu0 0
  %2939 = vmatpush.bf16.msra.mxu0 0
  %2940 = vmatpush.bf16.msra.mxu0 0
  %2941 = vmatpush.bf16.msra.mxu0 0
  %2942 = vmatpush.bf16.msra.mxu0 0
  %2943 = vmatpush.bf16.msra.mxu0 0
  %2944 = vmatpush.bf16.msra.mxu0 %v2725
  %2945 = vmatmul.bf16.gmra.mxu0 %v2677
  %v2946 = vpop.f32.mrf.mxu0
  %v2947 = vadd.f32 0.0, %v2946
  %v2948 = vpop.f32.mrf.mxu0
  %v2949 = vadd.f32 0.0, %v2948
  %2950 = vdwg.mxu0
  %v2951 = vadd.f32 %v2583, %v2737
  %v2952 = vadd.f32 %v2584, %v2751
  %v2953 = vadd.f32 %v2585, %v2765
  %v2954 = vadd.f32 %v2586, %v2779
  %v2955 = vadd.f32 %v2587, %v2793
  %v2956 = vadd.f32 %v2588, %v2807
  %v2957 = vadd.f32 %v2589, %v2821
  %v2958 = vadd.f32 %v2590, %v2835
  %v2959 = vadd.f32 %v2591, %v2849
  %v2960 = vadd.f32 %v2592, %v2863
  %v2961 = vadd.f32 %v2593, %v2877
  %v2962 = vadd.f32 %v2594, %v2891
  %v2963 = vadd.f32 %v2595, %v2905
  %v2964 = vadd.f32 %v2596, %v2919
  %v2965 = vadd.f32 %v2597, %v2933
  %v2966 = vadd.f32 %v2598, %v2947
  %v2967 = vadd.f32 %v2599, %v2739
  %v2968 = vadd.f32 %v2600, %v2753
  %v2969 = vadd.f32 %v2601, %v2767
  %v2970 = vadd.f32 %v2602, %v2781
  %v2971 = vadd.f32 %v2603, %v2795
  %v2972 = vadd.f32 %v2604, %v2809
  %v2973 = vadd.f32 %v2605, %v2823
  %v2974 = vadd.f32 %v2606, %v2837
  %v2975 = vadd.f32 %v2607, %v2851
  %v2976 = vadd.f32 %v2608, %v2865
  %v2977 = vadd.f32 %v2609, %v2879
  %v2978 = vadd.f32 %v2610, %v2893
  %v2979 = vadd.f32 %v2611, %v2907
  %v2980 = vadd.f32 %v2612, %v2921
  %v2981 = vadd.f32 %v2613, %v2935
  %v2982 = vadd.f32 %v2614, %v2949
  %v2983 = vsel %vm1321, 1, 0
  %v2984 = vsel %vm1322, 1, 0
  %v2985 = vsel %vm1323, 1, 0
  %v2986 = vsel %vm1324, 1, 0
  %v2987 = vsel %vm1325, 1, 0
  %v2988 = vsel %vm1326, 1, 0
  %v2989 = vsel %vm1327, 1, 0
  %v2990 = vsel %vm1328, 1, 0
  %v2991 = vsel %vm1329, 1, 0
  %v2992 = vsel %vm1330, 1, 0
  %v2993 = vsel %vm1331, 1, 0
  %v2994 = vsel %vm1332, 1, 0
  %v2995 = vsel %vm1333, 1, 0
  %v2996 = vsel %vm1334, 1, 0
  %v2997 = vsel %vm1335, 1, 0
  %v2998 = vsel %vm1336, 1, 0
  %vm2999 = vcmp.eq.s32.totalorder %v2983, 1
  %vm3000 = vcmp.eq.s32.totalorder %v2984, 1
  %vm3001 = vcmp.eq.s32.totalorder %v2985, 1
  %vm3002 = vcmp.eq.s32.totalorder %v2986, 1
  %vm3003 = vcmp.eq.s32.totalorder %v2987, 1
  %vm3004 = vcmp.eq.s32.totalorder %v2988, 1
  %vm3005 = vcmp.eq.s32.totalorder %v2989, 1
  %vm3006 = vcmp.eq.s32.totalorder %v2990, 1
  %vm3007 = vcmp.eq.s32.totalorder %v2991, 1
  %vm3008 = vcmp.eq.s32.totalorder %v2992, 1
  %vm3009 = vcmp.eq.s32.totalorder %v2993, 1
  %vm3010 = vcmp.eq.s32.totalorder %v2994, 1
  %vm3011 = vcmp.eq.s32.totalorder %v2995, 1
  %vm3012 = vcmp.eq.s32.totalorder %v2996, 1
  %vm3013 = vcmp.eq.s32.totalorder %v2997, 1
  %vm3014 = vcmp.eq.s32.totalorder %v2998, 1
  %vm3015 = vmpackc.low %vm3000, %vm2999
  %vm3016 = vmpackc.low %vm3002, %vm3001
  %vm3017 = vmpackc.low %vm3004, %vm3003
  %vm3018 = vmpackc.low %vm3006, %vm3005
  %vm3019 = vmpackc.low %vm3008, %vm3007
  %vm3020 = vmpackc.low %vm3010, %vm3009
  %vm3021 = vmpackc.low %vm3012, %vm3011
  %vm3022 = vmpackc.low %vm3014, %vm3013
  %v3023 = vsel %vm3015, 65537, 0
  %v3024 = vsel %vm3016, 65537, 0
  %v3025 = vsel %vm3017, 65537, 0
  %v3026 = vsel %vm3018, 65537, 0
  %v3027 = vsel %vm3019, 65537, 0
  %v3028 = vsel %vm3020, 65537, 0
  %v3029 = vsel %vm3021, 65537, 0
  %v3030 = vsel %vm3022, 65537, 0
  %v3031 = vperm.slane %v3023, 0
  %v3032 = vperm.slane %v3023, 4
  %v3033 = vperm.slane %v3024, 0
  %v3034 = vperm.slane %v3024, 4
  %v3035 = vperm.slane %v3025, 0
  %v3036 = vperm.slane %v3025, 4
  %v3037 = vperm.slane %v3026, 0
  %v3038 = vperm.slane %v3026, 4
  %v3039 = vperm.slane %v3027, 0
  %v3040 = vperm.slane %v3027, 4
  %v3041 = vperm.slane %v3028, 0
  %v3042 = vperm.slane %v3028, 4
  %v3043 = vperm.slane %v3029, 0
  %v3044 = vperm.slane %v3029, 4
  %v3045 = vperm.slane %v3030, 0
  %v3046 = vperm.slane %v3030, 4
  %3047 = vrot.lane.b32.xlu0 %v3031, 34
  %v3048 = vpop.permute.xlu0 %3047
  %3049 = vrot.lane.b32.xlu0 %v3032, 34
  %v3050 = vpop.permute.xlu0 %3049
  %3051 = vrot.lane.b32.xlu0 %v3033, 34
  %v3052 = vpop.permute.xlu0 %3051
  %3053 = vrot.lane.b32.xlu0 %v3034, 34
  %v3054 = vpop.permute.xlu0 %3053
  %3055 = vrot.lane.b32.xlu0 %v3035, 34
  %v3056 = vpop.permute.xlu0 %3055
  %3057 = vrot.lane.b32.xlu0 %v3036, 34
  %v3058 = vpop.permute.xlu0 %3057
  %3059 = vrot.lane.b32.xlu0 %v3037, 34
  %v3060 = vpop.permute.xlu0 %3059
  %3061 = vrot.lane.b32.xlu0 %v3038, 34
  %v3062 = vpop.permute.xlu0 %3061
  %3063 = vrot.lane.b32.xlu0 %v3039, 34
  %v3064 = vpop.permute.xlu0 %3063
  %3065 = vrot.lane.b32.xlu0 %v3040, 34
  %v3066 = vpop.permute.xlu0 %3065
  %3067 = vrot.lane.b32.xlu0 %v3041, 34
  %v3068 = vpop.permute.xlu0 %3067
  %3069 = vrot.lane.b32.xlu0 %v3042, 34
  %v3070 = vpop.permute.xlu0 %3069
  %3071 = vrot.lane.b32.xlu0 %v3043, 34
  %v3072 = vpop.permute.xlu0 %3071
  %3073 = vrot.lane.b32.xlu0 %v3044, 34
  %v3074 = vpop.permute.xlu0 %3073
  %3075 = vrot.lane.b32.xlu0 %v3045, 34
  %v3076 = vpop.permute.xlu0 %3075
  %3077 = vrot.lane.b32.xlu0 %v3046, 34
  %v3078 = vpop.permute.xlu0 %3077
  %vm3079 = vcmask 277504
  %v3080 = vsel %vm3079, %v3048, %v3050
  %v3081 = vsel %vm3079, %v3050, %v3052
  %v3082 = vsel %vm3079, %v3052, %v3054
  %v3083 = vsel %vm3079, %v3054, %v3056
  %v3084 = vsel %vm3079, %v3056, %v3058
  %v3085 = vsel %vm3079, %v3058, %v3060
  %v3086 = vsel %vm3079, %v3060, %v3062
  %v3087 = vsel %vm3079, %v3062, %v3064
  %v3088 = vsel %vm3079, %v3064, %v3066
  %v3089 = vsel %vm3079, %v3066, %v3068
  %v3090 = vsel %vm3079, %v3068, %v3070
  %v3091 = vsel %vm3079, %v3070, %v3072
  %v3092 = vsel %vm3079, %v3072, %v3074
  %v3093 = vsel %vm3079, %v3074, %v3076
  %v3094 = vsel %vm3079, %v3076, %v3078
  %v3095 = vunpack.c.l.b16 %v3048
  %v3096 = vunpack.c.h.b16 %v3048
  %v3097 = vunpack.c.l.b16 0
  %v3098 = vunpack.c.h.b16 0
  %vm3099 = vcmp.ne.s32.totalorder %v3095, %v3097
  %vm3100 = vcmp.ne.s32.totalorder %v3096, %v3098
  %vm3101 = vmpackc.low %vm3100, %vm3099
  %v3102 = vunpack.c.l.b16 %v3080
  %v3103 = vunpack.c.h.b16 %v3080
  %v3104 = vunpack.c.l.b16 0
  %v3105 = vunpack.c.h.b16 0
  %vm3106 = vcmp.ne.s32.totalorder %v3102, %v3104
  %vm3107 = vcmp.ne.s32.totalorder %v3103, %v3105
  %vm3108 = vmpackc.low %vm3107, %vm3106
  %v3109 = vunpack.c.l.b16 %v3081
  %v3110 = vunpack.c.h.b16 %v3081
  %v3111 = vunpack.c.l.b16 0
  %v3112 = vunpack.c.h.b16 0
  %vm3113 = vcmp.ne.s32.totalorder %v3109, %v3111
  %vm3114 = vcmp.ne.s32.totalorder %v3110, %v3112
  %vm3115 = vmpackc.low %vm3114, %vm3113
  %v3116 = vunpack.c.l.b16 %v3082
  %v3117 = vunpack.c.h.b16 %v3082
  %v3118 = vunpack.c.l.b16 0
  %v3119 = vunpack.c.h.b16 0
  %vm3120 = vcmp.ne.s32.totalorder %v3116, %v3118
  %vm3121 = vcmp.ne.s32.totalorder %v3117, %v3119
  %vm3122 = vmpackc.low %vm3121, %vm3120
  %v3123 = vunpack.c.l.b16 %v3083
  %v3124 = vunpack.c.h.b16 %v3083
  %v3125 = vunpack.c.l.b16 0
  %v3126 = vunpack.c.h.b16 0
  %vm3127 = vcmp.ne.s32.totalorder %v3123, %v3125
  %vm3128 = vcmp.ne.s32.totalorder %v3124, %v3126
  %vm3129 = vmpackc.low %vm3128, %vm3127
  %v3130 = vunpack.c.l.b16 %v3084
  %v3131 = vunpack.c.h.b16 %v3084
  %v3132 = vunpack.c.l.b16 0
  %v3133 = vunpack.c.h.b16 0
  %vm3134 = vcmp.ne.s32.totalorder %v3130, %v3132
  %vm3135 = vcmp.ne.s32.totalorder %v3131, %v3133
  %vm3136 = vmpackc.low %vm3135, %vm3134
  %v3137 = vunpack.c.l.b16 %v3085
  %v3138 = vunpack.c.h.b16 %v3085
  %v3139 = vunpack.c.l.b16 0
  %v3140 = vunpack.c.h.b16 0
  %vm3141 = vcmp.ne.s32.totalorder %v3137, %v3139
  %vm3142 = vcmp.ne.s32.totalorder %v3138, %v3140
  %vm3143 = vmpackc.low %vm3142, %vm3141
  %v3144 = vunpack.c.l.b16 %v3086
  %v3145 = vunpack.c.h.b16 %v3086
  %v3146 = vunpack.c.l.b16 0
  %v3147 = vunpack.c.h.b16 0
  %vm3148 = vcmp.ne.s32.totalorder %v3144, %v3146
  %vm3149 = vcmp.ne.s32.totalorder %v3145, %v3147
  %vm3150 = vmpackc.low %vm3149, %vm3148
  %v3151 = vunpack.c.l.b16 %v3087
  %v3152 = vunpack.c.h.b16 %v3087
  %v3153 = vunpack.c.l.b16 0
  %v3154 = vunpack.c.h.b16 0
  %vm3155 = vcmp.ne.s32.totalorder %v3151, %v3153
  %vm3156 = vcmp.ne.s32.totalorder %v3152, %v3154
  %vm3157 = vmpackc.low %vm3156, %vm3155
  %v3158 = vunpack.c.l.b16 %v3088
  %v3159 = vunpack.c.h.b16 %v3088
  %v3160 = vunpack.c.l.b16 0
  %v3161 = vunpack.c.h.b16 0
  %vm3162 = vcmp.ne.s32.totalorder %v3158, %v3160
  %vm3163 = vcmp.ne.s32.totalorder %v3159, %v3161
  %vm3164 = vmpackc.low %vm3163, %vm3162
  %v3165 = vunpack.c.l.b16 %v3089
  %v3166 = vunpack.c.h.b16 %v3089
  %v3167 = vunpack.c.l.b16 0
  %v3168 = vunpack.c.h.b16 0
  %vm3169 = vcmp.ne.s32.totalorder %v3165, %v3167
  %vm3170 = vcmp.ne.s32.totalorder %v3166, %v3168
  %vm3171 = vmpackc.low %vm3170, %vm3169
  %v3172 = vunpack.c.l.b16 %v3090
  %v3173 = vunpack.c.h.b16 %v3090
  %v3174 = vunpack.c.l.b16 0
  %v3175 = vunpack.c.h.b16 0
  %vm3176 = vcmp.ne.s32.totalorder %v3172, %v3174
  %vm3177 = vcmp.ne.s32.totalorder %v3173, %v3175
  %vm3178 = vmpackc.low %vm3177, %vm3176
  %v3179 = vunpack.c.l.b16 %v3091
  %v3180 = vunpack.c.h.b16 %v3091
  %v3181 = vunpack.c.l.b16 0
  %v3182 = vunpack.c.h.b16 0
  %vm3183 = vcmp.ne.s32.totalorder %v3179, %v3181
  %vm3184 = vcmp.ne.s32.totalorder %v3180, %v3182
  %vm3185 = vmpackc.low %vm3184, %vm3183
  %v3186 = vunpack.c.l.b16 %v3092
  %v3187 = vunpack.c.h.b16 %v3092
  %v3188 = vunpack.c.l.b16 0
  %v3189 = vunpack.c.h.b16 0
  %vm3190 = vcmp.ne.s32.totalorder %v3186, %v3188
  %vm3191 = vcmp.ne.s32.totalorder %v3187, %v3189
  %vm3192 = vmpackc.low %vm3191, %vm3190
  %v3193 = vunpack.c.l.b16 %v3093
  %v3194 = vunpack.c.h.b16 %v3093
  %v3195 = vunpack.c.l.b16 0
  %v3196 = vunpack.c.h.b16 0
  %vm3197 = vcmp.ne.s32.totalorder %v3193, %v3195
  %vm3198 = vcmp.ne.s32.totalorder %v3194, %v3196
  %vm3199 = vmpackc.low %vm3198, %vm3197
  %v3200 = vunpack.c.l.b16 %v3094
  %v3201 = vunpack.c.h.b16 %v3094
  %v3202 = vunpack.c.l.b16 0
  %v3203 = vunpack.c.h.b16 0
  %vm3204 = vcmp.ne.s32.totalorder %v3200, %v3202
  %vm3205 = vcmp.ne.s32.totalorder %v3201, %v3203
  %vm3206 = vmpackc.low %vm3205, %vm3204
  %v3207 = vunpack.c.l.b16 %v3078
  %v3208 = vunpack.c.h.b16 %v3078
  %v3209 = vunpack.c.l.b16 0
  %v3210 = vunpack.c.h.b16 0
  %vm3211 = vcmp.ne.s32.totalorder %v3207, %v3209
  %vm3212 = vcmp.ne.s32.totalorder %v3208, %v3210
  %vm3213 = vmpackc.low %vm3212, %vm3211
  %v3214 = vsel %vm3101, %v128, 0
  %v3215 = vsel %vm3108, %v95, 0
  %v3216 = vsel %vm3115, %v96, 0
  %v3217 = vsel %vm3122, %v97, 0
  %v3218 = vsel %vm3129, %v98, 0
  %v3219 = vsel %vm3136, %v99, 0
  %v3220 = vsel %vm3143, %v100, 0
  %v3221 = vsel %vm3150, %v101, 0
  %v3222 = vsel %vm3157, %v102, 0
  %v3223 = vsel %vm3164, %v103, 0
  %v3224 = vsel %vm3171, %v104, 0
  %v3225 = vsel %vm3178, %v105, 0
  %v3226 = vsel %vm3185, %v106, 0
  %v3227 = vsel %vm3192, %v107, 0
  %v3228 = vsel %vm3199, %v108, 0
  %v3229 = vsel %vm3206, %v109, 0
  %v3230 = vsel %vm3213, %v131, 0
  %s3231 = scalar_lea.vmem %s1, 40
  %v3232 = vld [vmem:[%s3231] sm:$0xf]
  %v3233 = vld [vmem:[%s3231 + $0x4] sm:$0x3]
  %v3236 = vunpack.c.l.b16 %v3232
  %v3237 = vunpack.c.l.b16 %v3233
  %v3238 = vpack.c.b16 %v3237, %v3236
  %3256 = vrot.lane.b32.xlu0 %v3214, 94
  %v3257 = vpop.permute.xlu0 %3256
  %3258 = vrot.lane.b32.xlu0 %v3215, 94
  %v3259 = vpop.permute.xlu0 %3258
  %3260 = vrot.lane.b32.xlu0 %v3216, 94
  %v3261 = vpop.permute.xlu0 %3260
  %3262 = vrot.lane.b32.xlu0 %v3217, 94
  %v3263 = vpop.permute.xlu0 %3262
  %3264 = vrot.lane.b32.xlu0 %v3218, 94
  %v3265 = vpop.permute.xlu0 %3264
  %3266 = vrot.lane.b32.xlu0 %v3219, 94
  %v3267 = vpop.permute.xlu0 %3266
  %3268 = vrot.lane.b32.xlu0 %v3220, 94
  %v3269 = vpop.permute.xlu0 %3268
  %3270 = vrot.lane.b32.xlu0 %v3221, 94
  %v3271 = vpop.permute.xlu0 %3270
  %3272 = vrot.lane.b32.xlu0 %v3222, 94
  %v3273 = vpop.permute.xlu0 %3272
  %3274 = vrot.lane.b32.xlu0 %v3223, 94
  %v3275 = vpop.permute.xlu0 %3274
  %3276 = vrot.lane.b32.xlu0 %v3224, 94
  %v3277 = vpop.permute.xlu0 %3276
  %3278 = vrot.lane.b32.xlu0 %v3225, 94
  %v3279 = vpop.permute.xlu0 %3278
  %3280 = vrot.lane.b32.xlu0 %v3226, 94
  %v3281 = vpop.permute.xlu0 %3280
  %3282 = vrot.lane.b32.xlu0 %v3227, 94
  %v3283 = vpop.permute.xlu0 %3282
  %3284 = vrot.lane.b32.xlu0 %v3228, 94
  %v3285 = vpop.permute.xlu0 %3284
  %3286 = vrot.lane.b32.xlu0 %v3229, 94
  %v3287 = vpop.permute.xlu0 %3286
  %3288 = vrot.lane.b32.xlu0 %v3230, 94
  %v3289 = vpop.permute.xlu0 %3288
  %vm3290 = vcmask 769024
  %v3291 = vsel %vm3290, %v3257, %v3259
  %v3292 = vsel %vm3290, %v3259, %v3261
  %v3293 = vsel %vm3290, %v3261, %v3263
  %v3294 = vsel %vm3290, %v3263, %v3265
  %v3295 = vsel %vm3290, %v3265, %v3267
  %v3296 = vsel %vm3290, %v3267, %v3269
  %v3297 = vsel %vm3290, %v3269, %v3271
  %v3298 = vsel %vm3290, %v3271, %v3273
  %v3299 = vsel %vm3290, %v3273, %v3275
  %v3300 = vsel %vm3290, %v3275, %v3277
  %v3301 = vsel %vm3290, %v3277, %v3279
  %v3302 = vsel %vm3290, %v3279, %v3281
  %v3303 = vsel %vm3290, %v3281, %v3283
  %v3304 = vsel %vm3290, %v3283, %v3285
  %v3305 = vsel %vm3290, %v3285, %v3287
  %v3306 = vsel %vm3290, %v3287, %v3289
  %v3308 = vsel %vm764, %v3238, 0
  %v3311 = vsel %vm768, %v3291, 0
  %v3314 = vsel %vm768, %v3292, 0
  %v3317 = vsel %vm768, %v3293, 0
  %v3320 = vsel %vm768, %v3294, 0
  %v3323 = vsel %vm768, %v3295, 0
  %v3326 = vsel %vm768, %v3296, 0
  %v3329 = vsel %vm768, %v3297, 0
  %v3332 = vsel %vm768, %v3298, 0
  %v3335 = vsel %vm768, %v3299, 0
  %v3338 = vsel %vm768, %v3300, 0
  %v3341 = vsel %vm768, %v3301, 0
  %v3344 = vsel %vm768, %v3302, 0
  %v3347 = vsel %vm768, %v3303, 0
  %v3350 = vsel %vm768, %v3304, 0
  %v3353 = vsel %vm768, %v3305, 0
  %v3356 = vsel %vm768, %v3306, 0
  %3358 = vmatpush.bf16.msra.mxu0 0
  %3359 = vmatpush.bf16.msra.mxu0 0
  %3360 = vmatpush.bf16.msra.mxu0 0
  %3361 = vmatpush.bf16.msra.mxu0 0
  %3362 = vmatpush.bf16.msra.mxu0 0
  %3363 = vmatpush.bf16.msra.mxu0 0
  %3364 = vmatpush.bf16.msra.mxu0 0
  %3365 = vmatpush.bf16.msra.mxu0 %v3311
  %3366 = vmatmul.bf16.gmra.mxu0 %v3308
  %v3367 = vpop.f32.mrf.mxu0
  %v3368 = vadd.f32 0.0, %v3367
  %v3369 = vpop.f32.mrf.mxu0
  %v3370 = vadd.f32 0.0, %v3369
  %3371 = vdwg.mxu0
  %3372 = vmatpush.bf16.msra.mxu0 0
  %3373 = vmatpush.bf16.msra.mxu0 0
  %3374 = vmatpush.bf16.msra.mxu0 0
  %3375 = vmatpush.bf16.msra.mxu0 0
  %3376 = vmatpush.bf16.msra.mxu0 0
  %3377 = vmatpush.bf16.msra.mxu0 0
  %3378 = vmatpush.bf16.msra.mxu0 0
  %3379 = vmatpush.bf16.msra.mxu0 %v3314
  %3380 = vmatmul.bf16.gmra.mxu0 %v3308
  %v3381 = vpop.f32.mrf.mxu0
  %v3382 = vadd.f32 0.0, %v3381
  %v3383 = vpop.f32.mrf.mxu0
  %v3384 = vadd.f32 0.0, %v3383
  %3385 = vdwg.mxu0
  %3386 = vmatpush.bf16.msra.mxu0 0
  %3387 = vmatpush.bf16.msra.mxu0 0
  %3388 = vmatpush.bf16.msra.mxu0 0
  %3389 = vmatpush.bf16.msra.mxu0 0
  %3390 = vmatpush.bf16.msra.mxu0 0
  %3391 = vmatpush.bf16.msra.mxu0 0
  %3392 = vmatpush.bf16.msra.mxu0 0
  %3393 = vmatpush.bf16.msra.mxu0 %v3317
  %3394 = vmatmul.bf16.gmra.mxu0 %v3308
  %v3395 = vpop.f32.mrf.mxu0
  %v3396 = vadd.f32 0.0, %v3395
  %v3397 = vpop.f32.mrf.mxu0
  %v3398 = vadd.f32 0.0, %v3397
  %3399 = vdwg.mxu0
  %3400 = vmatpush.bf16.msra.mxu0 0
  %3401 = vmatpush.bf16.msra.mxu0 0
  %3402 = vmatpush.bf16.msra.mxu0 0
  %3403 = vmatpush.bf16.msra.mxu0 0
  %3404 = vmatpush.bf16.msra.mxu0 0
  %3405 = vmatpush.bf16.msra.mxu0 0
  %3406 = vmatpush.bf16.msra.mxu0 0
  %3407 = vmatpush.bf16.msra.mxu0 %v3320
  %3408 = vmatmul.bf16.gmra.mxu0 %v3308
  %v3409 = vpop.f32.mrf.mxu0
  %v3410 = vadd.f32 0.0, %v3409
  %v3411 = vpop.f32.mrf.mxu0
  %v3412 = vadd.f32 0.0, %v3411
  %3413 = vdwg.mxu0
  %3414 = vmatpush.bf16.msra.mxu0 0
  %3415 = vmatpush.bf16.msra.mxu0 0
  %3416 = vmatpush.bf16.msra.mxu0 0
  %3417 = vmatpush.bf16.msra.mxu0 0
  %3418 = vmatpush.bf16.msra.mxu0 0
  %3419 = vmatpush.bf16.msra.mxu0 0
  %3420 = vmatpush.bf16.msra.mxu0 0
  %3421 = vmatpush.bf16.msra.mxu0 %v3323
  %3422 = vmatmul.bf16.gmra.mxu0 %v3308
  %v3423 = vpop.f32.mrf.mxu0
  %v3424 = vadd.f32 0.0, %v3423
  %v3425 = vpop.f32.mrf.mxu0
  %v3426 = vadd.f32 0.0, %v3425
  %3427 = vdwg.mxu0
  %3428 = vmatpush.bf16.msra.mxu0 0
  %3429 = vmatpush.bf16.msra.mxu0 0
  %3430 = vmatpush.bf16.msra.mxu0 0
  %3431 = vmatpush.bf16.msra.mxu0 0
  %3432 = vmatpush.bf16.msra.mxu0 0
  %3433 = vmatpush.bf16.msra.mxu0 0
  %3434 = vmatpush.bf16.msra.mxu0 0
  %3435 = vmatpush.bf16.msra.mxu0 %v3326
  %3436 = vmatmul.bf16.gmra.mxu0 %v3308
  %v3437 = vpop.f32.mrf.mxu0
  %v3438 = vadd.f32 0.0, %v3437
  %v3439 = vpop.f32.mrf.mxu0
  %v3440 = vadd.f32 0.0, %v3439
  %3441 = vdwg.mxu0
  %3442 = vmatpush.bf16.msra.mxu0 0
  %3443 = vmatpush.bf16.msra.mxu0 0
  %3444 = vmatpush.bf16.msra.mxu0 0
  %3445 = vmatpush.bf16.msra.mxu0 0
  %3446 = vmatpush.bf16.msra.mxu0 0
  %3447 = vmatpush.bf16.msra.mxu0 0
  %3448 = vmatpush.bf16.msra.mxu0 0
  %3449 = vmatpush.bf16.msra.mxu0 %v3329
  %3450 = vmatmul.bf16.gmra.mxu0 %v3308
  %v3451 = vpop.f32.mrf.mxu0
  %v3452 = vadd.f32 0.0, %v3451
  %v3453 = vpop.f32.mrf.mxu0
  %v3454 = vadd.f32 0.0, %v3453
  %3455 = vdwg.mxu0
  %3456 = vmatpush.bf16.msra.mxu0 0
  %3457 = vmatpush.bf16.msra.mxu0 0
  %3458 = vmatpush.bf16.msra.mxu0 0
  %3459 = vmatpush.bf16.msra.mxu0 0
  %3460 = vmatpush.bf16.msra.mxu0 0
  %3461 = vmatpush.bf16.msra.mxu0 0
  %3462 = vmatpush.bf16.msra.mxu0 0
  %3463 = vmatpush.bf16.msra.mxu0 %v3332
  %3464 = vmatmul.bf16.gmra.mxu0 %v3308
  %v3465 = vpop.f32.mrf.mxu0
  %v3466 = vadd.f32 0.0, %v3465
  %v3467 = vpop.f32.mrf.mxu0
  %v3468 = vadd.f32 0.0, %v3467
  %3469 = vdwg.mxu0
  %3470 = vmatpush.bf16.msra.mxu0 0
  %3471 = vmatpush.bf16.msra.mxu0 0
  %3472 = vmatpush.bf16.msra.mxu0 0
  %3473 = vmatpush.bf16.msra.mxu0 0
  %3474 = vmatpush.bf16.msra.mxu0 0
  %3475 = vmatpush.bf16.msra.mxu0 0
  %3476 = vmatpush.bf16.msra.mxu0 0
  %3477 = vmatpush.bf16.msra.mxu0 %v3335
  %3478 = vmatmul.bf16.gmra.mxu0 %v3308
  %v3479 = vpop.f32.mrf.mxu0
  %v3480 = vadd.f32 0.0, %v3479
  %v3481 = vpop.f32.mrf.mxu0
  %v3482 = vadd.f32 0.0, %v3481
  %3483 = vdwg.mxu0
  %3484 = vmatpush.bf16.msra.mxu0 0
  %3485 = vmatpush.bf16.msra.mxu0 0
  %3486 = vmatpush.bf16.msra.mxu0 0
  %3487 = vmatpush.bf16.msra.mxu0 0
  %3488 = vmatpush.bf16.msra.mxu0 0
  %3489 = vmatpush.bf16.msra.mxu0 0
  %3490 = vmatpush.bf16.msra.mxu0 0
  %3491 = vmatpush.bf16.msra.mxu0 %v3338
  %3492 = vmatmul.bf16.gmra.mxu0 %v3308
  %v3493 = vpop.f32.mrf.mxu0
  %v3494 = vadd.f32 0.0, %v3493
  %v3495 = vpop.f32.mrf.mxu0
  %v3496 = vadd.f32 0.0, %v3495
  %3497 = vdwg.mxu0
  %3498 = vmatpush.bf16.msra.mxu0 0
  %3499 = vmatpush.bf16.msra.mxu0 0
  %3500 = vmatpush.bf16.msra.mxu0 0
  %3501 = vmatpush.bf16.msra.mxu0 0
  %3502 = vmatpush.bf16.msra.mxu0 0
  %3503 = vmatpush.bf16.msra.mxu0 0
  %3504 = vmatpush.bf16.msra.mxu0 0
  %3505 = vmatpush.bf16.msra.mxu0 %v3341
  %3506 = vmatmul.bf16.gmra.mxu0 %v3308
  %v3507 = vpop.f32.mrf.mxu0
  %v3508 = vadd.f32 0.0, %v3507
  %v3509 = vpop.f32.mrf.mxu0
  %v3510 = vadd.f32 0.0, %v3509
  %3511 = vdwg.mxu0
  %3512 = vmatpush.bf16.msra.mxu0 0
  %3513 = vmatpush.bf16.msra.mxu0 0
  %3514 = vmatpush.bf16.msra.mxu0 0
  %3515 = vmatpush.bf16.msra.mxu0 0
  %3516 = vmatpush.bf16.msra.mxu0 0
  %3517 = vmatpush.bf16.msra.mxu0 0
  %3518 = vmatpush.bf16.msra.mxu0 0
  %3519 = vmatpush.bf16.msra.mxu0 %v3344
  %3520 = vmatmul.bf16.gmra.mxu0 %v3308
  %v3521 = vpop.f32.mrf.mxu0
  %v3522 = vadd.f32 0.0, %v3521
  %v3523 = vpop.f32.mrf.mxu0
  %v3524 = vadd.f32 0.0, %v3523
  %3525 = vdwg.mxu0
  %3526 = vmatpush.bf16.msra.mxu0 0
  %3527 = vmatpush.bf16.msra.mxu0 0
  %3528 = vmatpush.bf16.msra.mxu0 0
  %3529 = vmatpush.bf16.msra.mxu0 0
  %3530 = vmatpush.bf16.msra.mxu0 0
  %3531 = vmatpush.bf16.msra.mxu0 0
  %3532 = vmatpush.bf16.msra.mxu0 0
  %3533 = vmatpush.bf16.msra.mxu0 %v3347
  %3534 = vmatmul.bf16.gmra.mxu0 %v3308
  %v3535 = vpop.f32.mrf.mxu0
  %v3536 = vadd.f32 0.0, %v3535
  %v3537 = vpop.f32.mrf.mxu0
  %v3538 = vadd.f32 0.0, %v3537
  %3539 = vdwg.mxu0
  %3540 = vmatpush.bf16.msra.mxu0 0
  %3541 = vmatpush.bf16.msra.mxu0 0
  %3542 = vmatpush.bf16.msra.mxu0 0
  %3543 = vmatpush.bf16.msra.mxu0 0
  %3544 = vmatpush.bf16.msra.mxu0 0
  %3545 = vmatpush.bf16.msra.mxu0 0
  %3546 = vmatpush.bf16.msra.mxu0 0
  %3547 = vmatpush.bf16.msra.mxu0 %v3350
  %3548 = vmatmul.bf16.gmra.mxu0 %v3308
  %v3549 = vpop.f32.mrf.mxu0
  %v3550 = vadd.f32 0.0, %v3549
  %v3551 = vpop.f32.mrf.mxu0
  %v3552 = vadd.f32 0.0, %v3551
  %3553 = vdwg.mxu0
  %3554 = vmatpush.bf16.msra.mxu0 0
  %3555 = vmatpush.bf16.msra.mxu0 0
  %3556 = vmatpush.bf16.msra.mxu0 0
  %3557 = vmatpush.bf16.msra.mxu0 0
  %3558 = vmatpush.bf16.msra.mxu0 0
  %3559 = vmatpush.bf16.msra.mxu0 0
  %3560 = vmatpush.bf16.msra.mxu0 0
  %3561 = vmatpush.bf16.msra.mxu0 %v3353
  %3562 = vmatmul.bf16.gmra.mxu0 %v3308
  %v3563 = vpop.f32.mrf.mxu0
  %v3564 = vadd.f32 0.0, %v3563
  %v3565 = vpop.f32.mrf.mxu0
  %v3566 = vadd.f32 0.0, %v3565
  %3567 = vdwg.mxu0
  %3568 = vmatpush.bf16.msra.mxu0 0
  %3569 = vmatpush.bf16.msra.mxu0 0
  %3570 = vmatpush.bf16.msra.mxu0 0
  %3571 = vmatpush.bf16.msra.mxu0 0
  %3572 = vmatpush.bf16.msra.mxu0 0
  %3573 = vmatpush.bf16.msra.mxu0 0
  %3574 = vmatpush.bf16.msra.mxu0 0
  %3575 = vmatpush.bf16.msra.mxu0 %v3356
  %3576 = vmatmul.bf16.gmra.mxu0 %v3308
  %v3577 = vpop.f32.mrf.mxu0
  %v3578 = vadd.f32 0.0, %v3577
  %v3579 = vpop.f32.mrf.mxu0
  %v3580 = vadd.f32 0.0, %v3579
  %3581 = vdwg.mxu0
  %v3582 = vadd.f32 %v2951, %v3368
  %v3583 = vadd.f32 %v2952, %v3382
  %v3584 = vadd.f32 %v2953, %v3396
  %v3585 = vadd.f32 %v2954, %v3410
  %v3586 = vadd.f32 %v2955, %v3424
  %v3587 = vadd.f32 %v2956, %v3438
  %v3588 = vadd.f32 %v2957, %v3452
  %v3589 = vadd.f32 %v2958, %v3466
  %v3590 = vadd.f32 %v2959, %v3480
  %v3591 = vadd.f32 %v2960, %v3494
  %v3592 = vadd.f32 %v2961, %v3508
  %v3593 = vadd.f32 %v2962, %v3522
  %v3594 = vadd.f32 %v2963, %v3536
  %v3595 = vadd.f32 %v2964, %v3550
  %v3596 = vadd.f32 %v2965, %v3564
  %v3597 = vadd.f32 %v2966, %v3578
  %v3598 = vadd.f32 %v2967, %v3370
  %v3599 = vadd.f32 %v2968, %v3384
  %v3600 = vadd.f32 %v2969, %v3398
  %v3601 = vadd.f32 %v2970, %v3412
  %v3602 = vadd.f32 %v2971, %v3426
  %v3603 = vadd.f32 %v2972, %v3440
  %v3604 = vadd.f32 %v2973, %v3454
  %v3605 = vadd.f32 %v2974, %v3468
  %v3606 = vadd.f32 %v2975, %v3482
  %v3607 = vadd.f32 %v2976, %v3496
  %v3608 = vadd.f32 %v2977, %v3510
  %v3609 = vadd.f32 %v2978, %v3524
  %v3610 = vadd.f32 %v2979, %v3538
  %v3611 = vadd.f32 %v2980, %v3552
  %v3612 = vadd.f32 %v2981, %v3566
  %v3613 = vadd.f32 %v2982, %v3580
  %vm3614 = vcmp.le.s32.totalorder %v182, 30
  %vm3615 = vcmp.le.s32.totalorder %v183, 30
  %vm3616 = vcmp.le.s32.totalorder %v184, 30
  %vm3617 = vcmp.le.s32.totalorder %v185, 30
  %vm3618 = vcmp.le.s32.totalorder %v186, 30
  %vm3619 = vcmp.le.s32.totalorder %v187, 30
  %vm3620 = vcmp.le.s32.totalorder %v188, 30
  %vm3621 = vcmp.le.s32.totalorder %v189, 30
  %vm3622 = vcmp.le.s32.totalorder %v190, 30
  %vm3623 = vcmp.le.s32.totalorder %v191, 30
  %vm3624 = vcmp.le.s32.totalorder %v192, 30
  %vm3625 = vcmp.le.s32.totalorder %v193, 30
  %vm3626 = vcmp.le.s32.totalorder %v194, 30
  %vm3627 = vcmp.le.s32.totalorder %v195, 30
  %vm3628 = vcmp.le.s32.totalorder %v196, 30
  %vm3629 = vcmp.le.s32.totalorder %v197, 30
  %vm3630 = vmand %vm3614, %vm214
  %vm3631 = vmand %vm3615, %vm215
  %vm3632 = vmand %vm3616, %vm216
  %vm3633 = vmand %vm3617, %vm217
  %vm3634 = vmand %vm3618, %vm218
  %vm3635 = vmand %vm3619, %vm219
  %vm3636 = vmand %vm3620, %vm220
  %vm3637 = vmand %vm3621, %vm221
  %vm3638 = vmand %vm3622, %vm222
  %vm3639 = vmand %vm3623, %vm223
  %vm3640 = vmand %vm3624, %vm224
  %vm3641 = vmand %vm3625, %vm225
  %vm3642 = vmand %vm3626, %vm226
  %vm3643 = vmand %vm3627, %vm227
  %vm3644 = vmand %vm3628, %vm228
  %vm3645 = vmand %vm3629, %vm229
  %v3646 = vsel %vm3630, 1, 0
  %v3647 = vsel %vm3631, 1, 0
  %v3648 = vsel %vm3632, 1, 0
  %v3649 = vsel %vm3633, 1, 0
  %v3650 = vsel %vm3634, 1, 0
  %v3651 = vsel %vm3635, 1, 0
  %v3652 = vsel %vm3636, 1, 0
  %v3653 = vsel %vm3637, 1, 0
  %v3654 = vsel %vm3638, 1, 0
  %v3655 = vsel %vm3639, 1, 0
  %v3656 = vsel %vm3640, 1, 0
  %v3657 = vsel %vm3641, 1, 0
  %v3658 = vsel %vm3642, 1, 0
  %v3659 = vsel %vm3643, 1, 0
  %v3660 = vsel %vm3644, 1, 0
  %v3661 = vsel %vm3645, 1, 0
  %vm3662 = vcmp.eq.s32.totalorder %v3646, 1
  %vm3663 = vcmp.eq.s32.totalorder %v3647, 1
  %vm3664 = vcmp.eq.s32.totalorder %v3648, 1
  %vm3665 = vcmp.eq.s32.totalorder %v3649, 1
  %vm3666 = vcmp.eq.s32.totalorder %v3650, 1
  %vm3667 = vcmp.eq.s32.totalorder %v3651, 1
  %vm3668 = vcmp.eq.s32.totalorder %v3652, 1
  %vm3669 = vcmp.eq.s32.totalorder %v3653, 1
  %vm3670 = vcmp.eq.s32.totalorder %v3654, 1
  %vm3671 = vcmp.eq.s32.totalorder %v3655, 1
  %vm3672 = vcmp.eq.s32.totalorder %v3656, 1
  %vm3673 = vcmp.eq.s32.totalorder %v3657, 1
  %vm3674 = vcmp.eq.s32.totalorder %v3658, 1
  %vm3675 = vcmp.eq.s32.totalorder %v3659, 1
  %vm3676 = vcmp.eq.s32.totalorder %v3660, 1
  %vm3677 = vcmp.eq.s32.totalorder %v3661, 1
  %vm3678 = vmpackc.low %vm3663, %vm3662
  %vm3679 = vmpackc.low %vm3665, %vm3664
  %vm3680 = vmpackc.low %vm3667, %vm3666
  %vm3681 = vmpackc.low %vm3669, %vm3668
  %vm3682 = vmpackc.low %vm3671, %vm3670
  %vm3683 = vmpackc.low %vm3673, %vm3672
  %vm3684 = vmpackc.low %vm3675, %vm3674
  %vm3685 = vmpackc.low %vm3677, %vm3676
  %v3686 = vsel %vm3678, 65537, 0
  %v3687 = vsel %vm3679, 65537, 0
  %v3688 = vsel %vm3680, 65537, 0
  %v3689 = vsel %vm3681, 65537, 0
  %v3690 = vsel %vm3682, 65537, 0
  %v3691 = vsel %vm3683, 65537, 0
  %v3692 = vsel %vm3684, 65537, 0
  %v3693 = vsel %vm3685, 65537, 0
  %v3694 = vperm.slane %v3686, 0
  %v3695 = vperm.slane %v3686, 4
  %v3696 = vperm.slane %v3687, 0
  %v3697 = vperm.slane %v3687, 4
  %v3698 = vperm.slane %v3688, 0
  %v3699 = vperm.slane %v3688, 4
  %v3700 = vperm.slane %v3689, 0
  %v3701 = vperm.slane %v3689, 4
  %v3702 = vperm.slane %v3690, 0
  %v3703 = vperm.slane %v3690, 4
  %v3704 = vperm.slane %v3691, 0
  %v3705 = vperm.slane %v3691, 4
  %v3706 = vperm.slane %v3692, 0
  %v3707 = vperm.slane %v3692, 4
  %v3708 = vperm.slane %v3693, 0
  %v3709 = vperm.slane %v3693, 4
  %3710 = vrot.lane.b32.xlu0 %v3694, 64
  %v3711 = vpop.permute.xlu0 %3710
  %3712 = vrot.lane.b32.xlu0 %v3695, 64
  %v3713 = vpop.permute.xlu0 %3712
  %3714 = vrot.lane.b32.xlu0 %v3696, 64
  %v3715 = vpop.permute.xlu0 %3714
  %3716 = vrot.lane.b32.xlu0 %v3697, 64
  %v3717 = vpop.permute.xlu0 %3716
  %3718 = vrot.lane.b32.xlu0 %v3698, 64
  %v3719 = vpop.permute.xlu0 %3718
  %3720 = vrot.lane.b32.xlu0 %v3699, 64
  %v3721 = vpop.permute.xlu0 %3720
  %3722 = vrot.lane.b32.xlu0 %v3700, 64
  %v3723 = vpop.permute.xlu0 %3722
  %3724 = vrot.lane.b32.xlu0 %v3701, 64
  %v3725 = vpop.permute.xlu0 %3724
  %3726 = vrot.lane.b32.xlu0 %v3702, 64
  %v3727 = vpop.permute.xlu0 %3726
  %3728 = vrot.lane.b32.xlu0 %v3703, 64
  %v3729 = vpop.permute.xlu0 %3728
  %3730 = vrot.lane.b32.xlu0 %v3704, 64
  %v3731 = vpop.permute.xlu0 %3730
  %3732 = vrot.lane.b32.xlu0 %v3705, 64
  %v3733 = vpop.permute.xlu0 %3732
  %3734 = vrot.lane.b32.xlu0 %v3706, 64
  %v3735 = vpop.permute.xlu0 %3734
  %3736 = vrot.lane.b32.xlu0 %v3707, 64
  %v3737 = vpop.permute.xlu0 %3736
  %3738 = vrot.lane.b32.xlu0 %v3708, 64
  %v3739 = vpop.permute.xlu0 %3738
  %3740 = vrot.lane.b32.xlu0 %v3709, 64
  %v3741 = vpop.permute.xlu0 %3740
  %vm3742 = vcmask 523264
  %v3743 = vsel %vm3742, %v3711, %v3713
  %v3744 = vsel %vm3742, %v3713, %v3715
  %v3745 = vsel %vm3742, %v3715, %v3717
  %v3746 = vsel %vm3742, %v3717, %v3719
  %v3747 = vsel %vm3742, %v3719, %v3721
  %v3748 = vsel %vm3742, %v3721, %v3723
  %v3749 = vsel %vm3742, %v3723, %v3725
  %v3750 = vsel %vm3742, %v3725, %v3727
  %v3751 = vsel %vm3742, %v3727, %v3729
  %v3752 = vsel %vm3742, %v3729, %v3731
  %v3753 = vsel %vm3742, %v3731, %v3733
  %v3754 = vsel %vm3742, %v3733, %v3735
  %v3755 = vsel %vm3742, %v3735, %v3737
  %v3756 = vsel %vm3742, %v3737, %v3739
  %v3757 = vsel %vm3742, %v3739, %v3741
  %v3758 = vunpack.c.l.b16 %v3711
  %v3759 = vunpack.c.h.b16 %v3711
  %v3760 = vunpack.c.l.b16 0
  %v3761 = vunpack.c.h.b16 0
  %vm3762 = vcmp.ne.s32.totalorder %v3758, %v3760
  %vm3763 = vcmp.ne.s32.totalorder %v3759, %v3761
  %vm3764 = vmpackc.low %vm3763, %vm3762
  %v3765 = vunpack.c.l.b16 %v3743
  %v3766 = vunpack.c.h.b16 %v3743
  %v3767 = vunpack.c.l.b16 0
  %v3768 = vunpack.c.h.b16 0
  %vm3769 = vcmp.ne.s32.totalorder %v3765, %v3767
  %vm3770 = vcmp.ne.s32.totalorder %v3766, %v3768
  %vm3771 = vmpackc.low %vm3770, %vm3769
  %v3772 = vunpack.c.l.b16 %v3744
  %v3773 = vunpack.c.h.b16 %v3744
  %v3774 = vunpack.c.l.b16 0
  %v3775 = vunpack.c.h.b16 0
  %vm3776 = vcmp.ne.s32.totalorder %v3772, %v3774
  %vm3777 = vcmp.ne.s32.totalorder %v3773, %v3775
  %vm3778 = vmpackc.low %vm3777, %vm3776
  %v3779 = vunpack.c.l.b16 %v3745
  %v3780 = vunpack.c.h.b16 %v3745
  %v3781 = vunpack.c.l.b16 0
  %v3782 = vunpack.c.h.b16 0
  %vm3783 = vcmp.ne.s32.totalorder %v3779, %v3781
  %vm3784 = vcmp.ne.s32.totalorder %v3780, %v3782
  %vm3785 = vmpackc.low %vm3784, %vm3783
  %v3786 = vunpack.c.l.b16 %v3746
  %v3787 = vunpack.c.h.b16 %v3746
  %v3788 = vunpack.c.l.b16 0
  %v3789 = vunpack.c.h.b16 0
  %vm3790 = vcmp.ne.s32.totalorder %v3786, %v3788
  %vm3791 = vcmp.ne.s32.totalorder %v3787, %v3789
  %vm3792 = vmpackc.low %vm3791, %vm3790
  %v3793 = vunpack.c.l.b16 %v3747
  %v3794 = vunpack.c.h.b16 %v3747
  %v3795 = vunpack.c.l.b16 0
  %v3796 = vunpack.c.h.b16 0
  %vm3797 = vcmp.ne.s32.totalorder %v3793, %v3795
  %vm3798 = vcmp.ne.s32.totalorder %v3794, %v3796
  %vm3799 = vmpackc.low %vm3798, %vm3797
  %v3800 = vunpack.c.l.b16 %v3748
  %v3801 = vunpack.c.h.b16 %v3748
  %v3802 = vunpack.c.l.b16 0
  %v3803 = vunpack.c.h.b16 0
  %vm3804 = vcmp.ne.s32.totalorder %v3800, %v3802
  %vm3805 = vcmp.ne.s32.totalorder %v3801, %v3803
  %vm3806 = vmpackc.low %vm3805, %vm3804
  %v3807 = vunpack.c.l.b16 %v3749
  %v3808 = vunpack.c.h.b16 %v3749
  %v3809 = vunpack.c.l.b16 0
  %v3810 = vunpack.c.h.b16 0
  %vm3811 = vcmp.ne.s32.totalorder %v3807, %v3809
  %vm3812 = vcmp.ne.s32.totalorder %v3808, %v3810
  %vm3813 = vmpackc.low %vm3812, %vm3811
  %v3814 = vunpack.c.l.b16 %v3750
  %v3815 = vunpack.c.h.b16 %v3750
  %v3816 = vunpack.c.l.b16 0
  %v3817 = vunpack.c.h.b16 0
  %vm3818 = vcmp.ne.s32.totalorder %v3814, %v3816
  %vm3819 = vcmp.ne.s32.totalorder %v3815, %v3817
  %vm3820 = vmpackc.low %vm3819, %vm3818
  %v3821 = vunpack.c.l.b16 %v3751
  %v3822 = vunpack.c.h.b16 %v3751
  %v3823 = vunpack.c.l.b16 0
  %v3824 = vunpack.c.h.b16 0
  %vm3825 = vcmp.ne.s32.totalorder %v3821, %v3823
  %vm3826 = vcmp.ne.s32.totalorder %v3822, %v3824
  %vm3827 = vmpackc.low %vm3826, %vm3825
  %v3828 = vunpack.c.l.b16 %v3752
  %v3829 = vunpack.c.h.b16 %v3752
  %v3830 = vunpack.c.l.b16 0
  %v3831 = vunpack.c.h.b16 0
  %vm3832 = vcmp.ne.s32.totalorder %v3828, %v3830
  %vm3833 = vcmp.ne.s32.totalorder %v3829, %v3831
  %vm3834 = vmpackc.low %vm3833, %vm3832
  %v3835 = vunpack.c.l.b16 %v3753
  %v3836 = vunpack.c.h.b16 %v3753
  %v3837 = vunpack.c.l.b16 0
  %v3838 = vunpack.c.h.b16 0
  %vm3839 = vcmp.ne.s32.totalorder %v3835, %v3837
  %vm3840 = vcmp.ne.s32.totalorder %v3836, %v3838
  %vm3841 = vmpackc.low %vm3840, %vm3839
  %v3842 = vunpack.c.l.b16 %v3754
  %v3843 = vunpack.c.h.b16 %v3754
  %v3844 = vunpack.c.l.b16 0
  %v3845 = vunpack.c.h.b16 0
  %vm3846 = vcmp.ne.s32.totalorder %v3842, %v3844
  %vm3847 = vcmp.ne.s32.totalorder %v3843, %v3845
  %vm3848 = vmpackc.low %vm3847, %vm3846
  %v3849 = vunpack.c.l.b16 %v3755
  %v3850 = vunpack.c.h.b16 %v3755
  %v3851 = vunpack.c.l.b16 0
  %v3852 = vunpack.c.h.b16 0
  %vm3853 = vcmp.ne.s32.totalorder %v3849, %v3851
  %vm3854 = vcmp.ne.s32.totalorder %v3850, %v3852
  %vm3855 = vmpackc.low %vm3854, %vm3853
  %v3856 = vunpack.c.l.b16 %v3756
  %v3857 = vunpack.c.h.b16 %v3756
  %v3858 = vunpack.c.l.b16 0
  %v3859 = vunpack.c.h.b16 0
  %vm3860 = vcmp.ne.s32.totalorder %v3856, %v3858
  %vm3861 = vcmp.ne.s32.totalorder %v3857, %v3859
  %vm3862 = vmpackc.low %vm3861, %vm3860
  %v3863 = vunpack.c.l.b16 %v3757
  %v3864 = vunpack.c.h.b16 %v3757
  %v3865 = vunpack.c.l.b16 0
  %v3866 = vunpack.c.h.b16 0
  %vm3867 = vcmp.ne.s32.totalorder %v3863, %v3865
  %vm3868 = vcmp.ne.s32.totalorder %v3864, %v3866
  %vm3869 = vmpackc.low %vm3868, %vm3867
  %v3870 = vunpack.c.l.b16 %v3741
  %v3871 = vunpack.c.h.b16 %v3741
  %v3872 = vunpack.c.l.b16 0
  %v3873 = vunpack.c.h.b16 0
  %vm3874 = vcmp.ne.s32.totalorder %v3870, %v3872
  %vm3875 = vcmp.ne.s32.totalorder %v3871, %v3873
  %vm3876 = vmpackc.low %vm3875, %vm3874
  %v3877 = vsel %vm3764, %v128, 0
  %v3878 = vsel %vm3771, %v95, 0
  %v3879 = vsel %vm3778, %v96, 0
  %v3880 = vsel %vm3785, %v97, 0
  %v3881 = vsel %vm3792, %v98, 0
  %v3882 = vsel %vm3799, %v99, 0
  %v3883 = vsel %vm3806, %v100, 0
  %v3884 = vsel %vm3813, %v101, 0
  %v3885 = vsel %vm3820, %v102, 0
  %v3886 = vsel %vm3827, %v103, 0
  %v3887 = vsel %vm3834, %v104, 0
  %v3888 = vsel %vm3841, %v105, 0
  %v3889 = vsel %vm3848, %v106, 0
  %v3890 = vsel %vm3855, %v107, 0
  %v3891 = vsel %vm3862, %v108, 0
  %v3892 = vsel %vm3869, %v109, 0
  %v3893 = vsel %vm3876, %v131, 0
  %s3894 = scalar_lea.vmem %s1, 48
  %v3895 = vld [vmem:[%s3894] sm:$0xf]
  %v3896 = vld [vmem:[%s3894 + $0x4] sm:$0x3]
  %v3899 = vunpack.c.l.b16 %v3895
  %v3900 = vunpack.c.l.b16 %v3896
  %v3901 = vpack.c.b16 %v3900, %v3899
  %3919 = vrot.lane.b32.xlu0 %v3877, 64
  %v3920 = vpop.permute.xlu0 %3919
  %3921 = vrot.lane.b32.xlu0 %v3878, 64
  %v3922 = vpop.permute.xlu0 %3921
  %3923 = vrot.lane.b32.xlu0 %v3879, 64
  %v3924 = vpop.permute.xlu0 %3923
  %3925 = vrot.lane.b32.xlu0 %v3880, 64
  %v3926 = vpop.permute.xlu0 %3925
  %3927 = vrot.lane.b32.xlu0 %v3881, 64
  %v3928 = vpop.permute.xlu0 %3927
  %3929 = vrot.lane.b32.xlu0 %v3882, 64
  %v3930 = vpop.permute.xlu0 %3929
  %3931 = vrot.lane.b32.xlu0 %v3883, 64
  %v3932 = vpop.permute.xlu0 %3931
  %3933 = vrot.lane.b32.xlu0 %v3884, 64
  %v3934 = vpop.permute.xlu0 %3933
  %3935 = vrot.lane.b32.xlu0 %v3885, 64
  %v3936 = vpop.permute.xlu0 %3935
  %3937 = vrot.lane.b32.xlu0 %v3886, 64
  %v3938 = vpop.permute.xlu0 %3937
  %3939 = vrot.lane.b32.xlu0 %v3887, 64
  %v3940 = vpop.permute.xlu0 %3939
  %3941 = vrot.lane.b32.xlu0 %v3888, 64
  %v3942 = vpop.permute.xlu0 %3941
  %3943 = vrot.lane.b32.xlu0 %v3889, 64
  %v3944 = vpop.permute.xlu0 %3943
  %3945 = vrot.lane.b32.xlu0 %v3890, 64
  %v3946 = vpop.permute.xlu0 %3945
  %3947 = vrot.lane.b32.xlu0 %v3891, 64
  %v3948 = vpop.permute.xlu0 %3947
  %3949 = vrot.lane.b32.xlu0 %v3892, 64
  %v3950 = vpop.permute.xlu0 %3949
  %3951 = vrot.lane.b32.xlu0 %v3893, 64
  %v3952 = vpop.permute.xlu0 %3951
  %v3953 = vsel %vm3742, %v3920, %v3922
  %v3954 = vsel %vm3742, %v3922, %v3924
  %v3955 = vsel %vm3742, %v3924, %v3926
  %v3956 = vsel %vm3742, %v3926, %v3928
  %v3957 = vsel %vm3742, %v3928, %v3930
  %v3958 = vsel %vm3742, %v3930, %v3932
  %v3959 = vsel %vm3742, %v3932, %v3934
  %v3960 = vsel %vm3742, %v3934, %v3936
  %v3961 = vsel %vm3742, %v3936, %v3938
  %v3962 = vsel %vm3742, %v3938, %v3940
  %v3963 = vsel %vm3742, %v3940, %v3942
  %v3964 = vsel %vm3742, %v3942, %v3944
  %v3965 = vsel %vm3742, %v3944, %v3946
  %v3966 = vsel %vm3742, %v3946, %v3948
  %v3967 = vsel %vm3742, %v3948, %v3950
  %v3968 = vsel %vm3742, %v3950, %v3952
  %v3970 = vsel %vm764, %v3901, 0
  %v3973 = vsel %vm768, %v3953, 0
  %v3976 = vsel %vm768, %v3954, 0
  %v3979 = vsel %vm768, %v3955, 0
  %v3982 = vsel %vm768, %v3956, 0
  %v3985 = vsel %vm768, %v3957, 0
  %v3988 = vsel %vm768, %v3958, 0
  %v3991 = vsel %vm768, %v3959, 0
  %v3994 = vsel %vm768, %v3960, 0
  %v3997 = vsel %vm768, %v3961, 0
  %v4000 = vsel %vm768, %v3962, 0
  %v4003 = vsel %vm768, %v3963, 0
  %v4006 = vsel %vm768, %v3964, 0
  %v4009 = vsel %vm768, %v3965, 0
  %v4012 = vsel %vm768, %v3966, 0
  %v4015 = vsel %vm768, %v3967, 0
  %v4018 = vsel %vm768, %v3968, 0
  %4020 = vmatpush.bf16.msra.mxu0 0
  %4021 = vmatpush.bf16.msra.mxu0 0
  %4022 = vmatpush.bf16.msra.mxu0 0
  %4023 = vmatpush.bf16.msra.mxu0 0
  %4024 = vmatpush.bf16.msra.mxu0 0
  %4025 = vmatpush.bf16.msra.mxu0 0
  %4026 = vmatpush.bf16.msra.mxu0 0
  %4027 = vmatpush.bf16.msra.mxu0 %v3973
  %4028 = vmatmul.bf16.gmra.mxu0 %v3970
  %v4029 = vpop.f32.mrf.mxu0
  %v4030 = vadd.f32 0.0, %v4029
  %v4031 = vpop.f32.mrf.mxu0
  %v4032 = vadd.f32 0.0, %v4031
  %4033 = vdwg.mxu0
  %4034 = vmatpush.bf16.msra.mxu0 0
  %4035 = vmatpush.bf16.msra.mxu0 0
  %4036 = vmatpush.bf16.msra.mxu0 0
  %4037 = vmatpush.bf16.msra.mxu0 0
  %4038 = vmatpush.bf16.msra.mxu0 0
  %4039 = vmatpush.bf16.msra.mxu0 0
  %4040 = vmatpush.bf16.msra.mxu0 0
  %4041 = vmatpush.bf16.msra.mxu0 %v3976
  %4042 = vmatmul.bf16.gmra.mxu0 %v3970
  %v4043 = vpop.f32.mrf.mxu0
  %v4044 = vadd.f32 0.0, %v4043
  %v4045 = vpop.f32.mrf.mxu0
  %v4046 = vadd.f32 0.0, %v4045
  %4047 = vdwg.mxu0
  %4048 = vmatpush.bf16.msra.mxu0 0
  %4049 = vmatpush.bf16.msra.mxu0 0
  %4050 = vmatpush.bf16.msra.mxu0 0
  %4051 = vmatpush.bf16.msra.mxu0 0
  %4052 = vmatpush.bf16.msra.mxu0 0
  %4053 = vmatpush.bf16.msra.mxu0 0
  %4054 = vmatpush.bf16.msra.mxu0 0
  %4055 = vmatpush.bf16.msra.mxu0 %v3979
  %4056 = vmatmul.bf16.gmra.mxu0 %v3970
  %v4057 = vpop.f32.mrf.mxu0
  %v4058 = vadd.f32 0.0, %v4057
  %v4059 = vpop.f32.mrf.mxu0
  %v4060 = vadd.f32 0.0, %v4059
  %4061 = vdwg.mxu0
  %4062 = vmatpush.bf16.msra.mxu0 0
  %4063 = vmatpush.bf16.msra.mxu0 0
  %4064 = vmatpush.bf16.msra.mxu0 0
  %4065 = vmatpush.bf16.msra.mxu0 0
  %4066 = vmatpush.bf16.msra.mxu0 0
  %4067 = vmatpush.bf16.msra.mxu0 0
  %4068 = vmatpush.bf16.msra.mxu0 0
  %4069 = vmatpush.bf16.msra.mxu0 %v3982
  %4070 = vmatmul.bf16.gmra.mxu0 %v3970
  %v4071 = vpop.f32.mrf.mxu0
  %v4072 = vadd.f32 0.0, %v4071
  %v4073 = vpop.f32.mrf.mxu0
  %v4074 = vadd.f32 0.0, %v4073
  %4075 = vdwg.mxu0
  %4076 = vmatpush.bf16.msra.mxu0 0
  %4077 = vmatpush.bf16.msra.mxu0 0
  %4078 = vmatpush.bf16.msra.mxu0 0
  %4079 = vmatpush.bf16.msra.mxu0 0
  %4080 = vmatpush.bf16.msra.mxu0 0
  %4081 = vmatpush.bf16.msra.mxu0 0
  %4082 = vmatpush.bf16.msra.mxu0 0
  %4083 = vmatpush.bf16.msra.mxu0 %v3985
  %4084 = vmatmul.bf16.gmra.mxu0 %v3970
  %v4085 = vpop.f32.mrf.mxu0
  %v4086 = vadd.f32 0.0, %v4085
  %v4087 = vpop.f32.mrf.mxu0
  %v4088 = vadd.f32 0.0, %v4087
  %4089 = vdwg.mxu0
  %4090 = vmatpush.bf16.msra.mxu0 0
  %4091 = vmatpush.bf16.msra.mxu0 0
  %4092 = vmatpush.bf16.msra.mxu0 0
  %4093 = vmatpush.bf16.msra.mxu0 0
  %4094 = vmatpush.bf16.msra.mxu0 0
  %4095 = vmatpush.bf16.msra.mxu0 0
  %4096 = vmatpush.bf16.msra.mxu0 0
  %4097 = vmatpush.bf16.msra.mxu0 %v3988
  %4098 = vmatmul.bf16.gmra.mxu0 %v3970
  %v4099 = vpop.f32.mrf.mxu0
  %v4100 = vadd.f32 0.0, %v4099
  %v4101 = vpop.f32.mrf.mxu0
  %v4102 = vadd.f32 0.0, %v4101
  %4103 = vdwg.mxu0
  %4104 = vmatpush.bf16.msra.mxu0 0
  %4105 = vmatpush.bf16.msra.mxu0 0
  %4106 = vmatpush.bf16.msra.mxu0 0
  %4107 = vmatpush.bf16.msra.mxu0 0
  %4108 = vmatpush.bf16.msra.mxu0 0
  %4109 = vmatpush.bf16.msra.mxu0 0
  %4110 = vmatpush.bf16.msra.mxu0 0
  %4111 = vmatpush.bf16.msra.mxu0 %v3991
  %4112 = vmatmul.bf16.gmra.mxu0 %v3970
  %v4113 = vpop.f32.mrf.mxu0
  %v4114 = vadd.f32 0.0, %v4113
  %v4115 = vpop.f32.mrf.mxu0
  %v4116 = vadd.f32 0.0, %v4115
  %4117 = vdwg.mxu0
  %4118 = vmatpush.bf16.msra.mxu0 0
  %4119 = vmatpush.bf16.msra.mxu0 0
  %4120 = vmatpush.bf16.msra.mxu0 0
  %4121 = vmatpush.bf16.msra.mxu0 0
  %4122 = vmatpush.bf16.msra.mxu0 0
  %4123 = vmatpush.bf16.msra.mxu0 0
  %4124 = vmatpush.bf16.msra.mxu0 0
  %4125 = vmatpush.bf16.msra.mxu0 %v3994
  %4126 = vmatmul.bf16.gmra.mxu0 %v3970
  %v4127 = vpop.f32.mrf.mxu0
  %v4128 = vadd.f32 0.0, %v4127
  %v4129 = vpop.f32.mrf.mxu0
  %v4130 = vadd.f32 0.0, %v4129
  %4131 = vdwg.mxu0
  %4132 = vmatpush.bf16.msra.mxu0 0
  %4133 = vmatpush.bf16.msra.mxu0 0
  %4134 = vmatpush.bf16.msra.mxu0 0
  %4135 = vmatpush.bf16.msra.mxu0 0
  %4136 = vmatpush.bf16.msra.mxu0 0
  %4137 = vmatpush.bf16.msra.mxu0 0
  %4138 = vmatpush.bf16.msra.mxu0 0
  %4139 = vmatpush.bf16.msra.mxu0 %v3997
  %4140 = vmatmul.bf16.gmra.mxu0 %v3970
  %v4141 = vpop.f32.mrf.mxu0
  %v4142 = vadd.f32 0.0, %v4141
  %v4143 = vpop.f32.mrf.mxu0
  %v4144 = vadd.f32 0.0, %v4143
  %4145 = vdwg.mxu0
  %4146 = vmatpush.bf16.msra.mxu0 0
  %4147 = vmatpush.bf16.msra.mxu0 0
  %4148 = vmatpush.bf16.msra.mxu0 0
  %4149 = vmatpush.bf16.msra.mxu0 0
  %4150 = vmatpush.bf16.msra.mxu0 0
  %4151 = vmatpush.bf16.msra.mxu0 0
  %4152 = vmatpush.bf16.msra.mxu0 0
  %4153 = vmatpush.bf16.msra.mxu0 %v4000
  %4154 = vmatmul.bf16.gmra.mxu0 %v3970
  %v4155 = vpop.f32.mrf.mxu0
  %v4156 = vadd.f32 0.0, %v4155
  %v4157 = vpop.f32.mrf.mxu0
  %v4158 = vadd.f32 0.0, %v4157
  %4159 = vdwg.mxu0
  %4160 = vmatpush.bf16.msra.mxu0 0
  %4161 = vmatpush.bf16.msra.mxu0 0
  %4162 = vmatpush.bf16.msra.mxu0 0
  %4163 = vmatpush.bf16.msra.mxu0 0
  %4164 = vmatpush.bf16.msra.mxu0 0
  %4165 = vmatpush.bf16.msra.mxu0 0
  %4166 = vmatpush.bf16.msra.mxu0 0
  %4167 = vmatpush.bf16.msra.mxu0 %v4003
  %4168 = vmatmul.bf16.gmra.mxu0 %v3970
  %v4169 = vpop.f32.mrf.mxu0
  %v4170 = vadd.f32 0.0, %v4169
  %v4171 = vpop.f32.mrf.mxu0
  %v4172 = vadd.f32 0.0, %v4171
  %4173 = vdwg.mxu0
  %4174 = vmatpush.bf16.msra.mxu0 0
  %4175 = vmatpush.bf16.msra.mxu0 0
  %4176 = vmatpush.bf16.msra.mxu0 0
  %4177 = vmatpush.bf16.msra.mxu0 0
  %4178 = vmatpush.bf16.msra.mxu0 0
  %4179 = vmatpush.bf16.msra.mxu0 0
  %4180 = vmatpush.bf16.msra.mxu0 0
  %4181 = vmatpush.bf16.msra.mxu0 %v4006
  %4182 = vmatmul.bf16.gmra.mxu0 %v3970
  %v4183 = vpop.f32.mrf.mxu0
  %v4184 = vadd.f32 0.0, %v4183
  %v4185 = vpop.f32.mrf.mxu0
  %v4186 = vadd.f32 0.0, %v4185
  %4187 = vdwg.mxu0
  %4188 = vmatpush.bf16.msra.mxu0 0
  %4189 = vmatpush.bf16.msra.mxu0 0
  %4190 = vmatpush.bf16.msra.mxu0 0
  %4191 = vmatpush.bf16.msra.mxu0 0
  %4192 = vmatpush.bf16.msra.mxu0 0
  %4193 = vmatpush.bf16.msra.mxu0 0
  %4194 = vmatpush.bf16.msra.mxu0 0
  %4195 = vmatpush.bf16.msra.mxu0 %v4009
  %4196 = vmatmul.bf16.gmra.mxu0 %v3970
  %v4197 = vpop.f32.mrf.mxu0
  %v4198 = vadd.f32 0.0, %v4197
  %v4199 = vpop.f32.mrf.mxu0
  %v4200 = vadd.f32 0.0, %v4199
  %4201 = vdwg.mxu0
  %4202 = vmatpush.bf16.msra.mxu0 0
  %4203 = vmatpush.bf16.msra.mxu0 0
  %4204 = vmatpush.bf16.msra.mxu0 0
  %4205 = vmatpush.bf16.msra.mxu0 0
  %4206 = vmatpush.bf16.msra.mxu0 0
  %4207 = vmatpush.bf16.msra.mxu0 0
  %4208 = vmatpush.bf16.msra.mxu0 0
  %4209 = vmatpush.bf16.msra.mxu0 %v4012
  %4210 = vmatmul.bf16.gmra.mxu0 %v3970
  %v4211 = vpop.f32.mrf.mxu0
  %v4212 = vadd.f32 0.0, %v4211
  %v4213 = vpop.f32.mrf.mxu0
  %v4214 = vadd.f32 0.0, %v4213
  %4215 = vdwg.mxu0
  %4216 = vmatpush.bf16.msra.mxu0 0
  %4217 = vmatpush.bf16.msra.mxu0 0
  %4218 = vmatpush.bf16.msra.mxu0 0
  %4219 = vmatpush.bf16.msra.mxu0 0
  %4220 = vmatpush.bf16.msra.mxu0 0
  %4221 = vmatpush.bf16.msra.mxu0 0
  %4222 = vmatpush.bf16.msra.mxu0 0
  %4223 = vmatpush.bf16.msra.mxu0 %v4015
  %4224 = vmatmul.bf16.gmra.mxu0 %v3970
  %v4225 = vpop.f32.mrf.mxu0
  %v4226 = vadd.f32 0.0, %v4225
  %v4227 = vpop.f32.mrf.mxu0
  %v4228 = vadd.f32 0.0, %v4227
  %4229 = vdwg.mxu0
  %4230 = vmatpush.bf16.msra.mxu0 0
  %4231 = vmatpush.bf16.msra.mxu0 0
  %4232 = vmatpush.bf16.msra.mxu0 0
  %4233 = vmatpush.bf16.msra.mxu0 0
  %4234 = vmatpush.bf16.msra.mxu0 0
  %4235 = vmatpush.bf16.msra.mxu0 0
  %4236 = vmatpush.bf16.msra.mxu0 0
  %4237 = vmatpush.bf16.msra.mxu0 %v4018
  %4238 = vmatmul.bf16.gmra.mxu0 %v3970
  %v4239 = vpop.f32.mrf.mxu0
  %v4240 = vadd.f32 0.0, %v4239
  %v4241 = vpop.f32.mrf.mxu0
  %v4242 = vadd.f32 0.0, %v4241
  %4243 = vdwg.mxu0
  %v4244 = vadd.f32 %v3582, %v4030
  %v4245 = vadd.f32 %v3583, %v4044
  %v4246 = vadd.f32 %v3584, %v4058
  %v4247 = vadd.f32 %v3585, %v4072
  %v4248 = vadd.f32 %v3586, %v4086
  %v4249 = vadd.f32 %v3587, %v4100
  %v4250 = vadd.f32 %v3588, %v4114
  %v4251 = vadd.f32 %v3589, %v4128
  %v4252 = vadd.f32 %v3590, %v4142
  %v4253 = vadd.f32 %v3591, %v4156
  %v4254 = vadd.f32 %v3592, %v4170
  %v4255 = vadd.f32 %v3593, %v4184
  %v4256 = vadd.f32 %v3594, %v4198
  %v4257 = vadd.f32 %v3595, %v4212
  %v4258 = vadd.f32 %v3596, %v4226
  %v4259 = vadd.f32 %v3597, %v4240
  %v4260 = vadd.f32 %v3598, %v4032
  %v4261 = vadd.f32 %v3599, %v4046
  %v4262 = vadd.f32 %v3600, %v4060
  %v4263 = vadd.f32 %v3601, %v4074
  %v4264 = vadd.f32 %v3602, %v4088
  %v4265 = vadd.f32 %v3603, %v4102
  %v4266 = vadd.f32 %v3604, %v4116
  %v4267 = vadd.f32 %v3605, %v4130
  %v4268 = vadd.f32 %v3606, %v4144
  %v4269 = vadd.f32 %v3607, %v4158
  %v4270 = vadd.f32 %v3608, %v4172
  %v4271 = vadd.f32 %v3609, %v4186
  %v4272 = vadd.f32 %v3610, %v4200
  %v4273 = vadd.f32 %v3611, %v4214
  %v4274 = vadd.f32 %v3612, %v4228
  %v4275 = vadd.f32 %v3613, %v4242
  %v4276 = vsel %vm3614, 1, 0
  %v4277 = vsel %vm3615, 1, 0
  %v4278 = vsel %vm3616, 1, 0
  %v4279 = vsel %vm3617, 1, 0
  %v4280 = vsel %vm3618, 1, 0
  %v4281 = vsel %vm3619, 1, 0
  %v4282 = vsel %vm3620, 1, 0
  %v4283 = vsel %vm3621, 1, 0
  %v4284 = vsel %vm3622, 1, 0
  %v4285 = vsel %vm3623, 1, 0
  %v4286 = vsel %vm3624, 1, 0
  %v4287 = vsel %vm3625, 1, 0
  %v4288 = vsel %vm3626, 1, 0
  %v4289 = vsel %vm3627, 1, 0
  %v4290 = vsel %vm3628, 1, 0
  %v4291 = vsel %vm3629, 1, 0
  %vm4292 = vcmp.eq.s32.totalorder %v4276, 1
  %vm4293 = vcmp.eq.s32.totalorder %v4277, 1
  %vm4294 = vcmp.eq.s32.totalorder %v4278, 1
  %vm4295 = vcmp.eq.s32.totalorder %v4279, 1
  %vm4296 = vcmp.eq.s32.totalorder %v4280, 1
  %vm4297 = vcmp.eq.s32.totalorder %v4281, 1
  %vm4298 = vcmp.eq.s32.totalorder %v4282, 1
  %vm4299 = vcmp.eq.s32.totalorder %v4283, 1
  %vm4300 = vcmp.eq.s32.totalorder %v4284, 1
  %vm4301 = vcmp.eq.s32.totalorder %v4285, 1
  %vm4302 = vcmp.eq.s32.totalorder %v4286, 1
  %vm4303 = vcmp.eq.s32.totalorder %v4287, 1
  %vm4304 = vcmp.eq.s32.totalorder %v4288, 1
  %vm4305 = vcmp.eq.s32.totalorder %v4289, 1
  %vm4306 = vcmp.eq.s32.totalorder %v4290, 1
  %vm4307 = vcmp.eq.s32.totalorder %v4291, 1
  %vm4308 = vmpackc.low %vm4293, %vm4292
  %vm4309 = vmpackc.low %vm4295, %vm4294
  %vm4310 = vmpackc.low %vm4297, %vm4296
  %vm4311 = vmpackc.low %vm4299, %vm4298
  %vm4312 = vmpackc.low %vm4301, %vm4300
  %vm4313 = vmpackc.low %vm4303, %vm4302
  %vm4314 = vmpackc.low %vm4305, %vm4304
  %vm4315 = vmpackc.low %vm4307, %vm4306
  %v4316 = vsel %vm4308, 65537, 0
  %v4317 = vsel %vm4309, 65537, 0
  %v4318 = vsel %vm4310, 65537, 0
  %v4319 = vsel %vm4311, 65537, 0
  %v4320 = vsel %vm4312, 65537, 0
  %v4321 = vsel %vm4313, 65537, 0
  %v4322 = vsel %vm4314, 65537, 0
  %v4323 = vsel %vm4315, 65537, 0
  %v4324 = vperm.slane %v4316, 0
  %v4325 = vperm.slane %v4316, 4
  %v4326 = vperm.slane %v4317, 0
  %v4327 = vperm.slane %v4317, 4
  %v4328 = vperm.slane %v4318, 0
  %v4329 = vperm.slane %v4318, 4
  %v4330 = vperm.slane %v4319, 0
  %v4331 = vperm.slane %v4319, 4
  %v4332 = vperm.slane %v4320, 0
  %v4333 = vperm.slane %v4320, 4
  %v4334 = vperm.slane %v4321, 0
  %v4335 = vperm.slane %v4321, 4
  %v4336 = vperm.slane %v4322, 0
  %v4337 = vperm.slane %v4322, 4
  %v4338 = vperm.slane %v4323, 0
  %v4339 = vperm.slane %v4323, 4
  %4340 = vrot.lane.b32.xlu0 %v4324, 65
  %v4341 = vpop.permute.xlu0 %4340
  %4342 = vrot.lane.b32.xlu0 %v4325, 65
  %v4343 = vpop.permute.xlu0 %4342
  %4344 = vrot.lane.b32.xlu0 %v4326, 65
  %v4345 = vpop.permute.xlu0 %4344
  %4346 = vrot.lane.b32.xlu0 %v4327, 65
  %v4347 = vpop.permute.xlu0 %4346
  %4348 = vrot.lane.b32.xlu0 %v4328, 65
  %v4349 = vpop.permute.xlu0 %4348
  %4350 = vrot.lane.b32.xlu0 %v4329, 65
  %v4351 = vpop.permute.xlu0 %4350
  %4352 = vrot.lane.b32.xlu0 %v4330, 65
  %v4353 = vpop.permute.xlu0 %4352
  %4354 = vrot.lane.b32.xlu0 %v4331, 65
  %v4355 = vpop.permute.xlu0 %4354
  %4356 = vrot.lane.b32.xlu0 %v4332, 65
  %v4357 = vpop.permute.xlu0 %4356
  %4358 = vrot.lane.b32.xlu0 %v4333, 65
  %v4359 = vpop.permute.xlu0 %4358
  %4360 = vrot.lane.b32.xlu0 %v4334, 65
  %v4361 = vpop.permute.xlu0 %4360
  %4362 = vrot.lane.b32.xlu0 %v4335, 65
  %v4363 = vpop.permute.xlu0 %4362
  %4364 = vrot.lane.b32.xlu0 %v4336, 65
  %v4365 = vpop.permute.xlu0 %4364
  %4366 = vrot.lane.b32.xlu0 %v4337, 65
  %v4367 = vpop.permute.xlu0 %4366
  %4368 = vrot.lane.b32.xlu0 %v4338, 65
  %v4369 = vpop.permute.xlu0 %4368
  %4370 = vrot.lane.b32.xlu0 %v4339, 65
  %v4371 = vpop.permute.xlu0 %4370
  %vm4372 = vcmask 531456
  %v4373 = vsel %vm4372, %v4341, %v4343
  %v4374 = vsel %vm4372, %v4343, %v4345
  %v4375 = vsel %vm4372, %v4345, %v4347
  %v4376 = vsel %vm4372, %v4347, %v4349
  %v4377 = vsel %vm4372, %v4349, %v4351
  %v4378 = vsel %vm4372, %v4351, %v4353
  %v4379 = vsel %vm4372, %v4353, %v4355
  %v4380 = vsel %vm4372, %v4355, %v4357
  %v4381 = vsel %vm4372, %v4357, %v4359
  %v4382 = vsel %vm4372, %v4359, %v4361
  %v4383 = vsel %vm4372, %v4361, %v4363
  %v4384 = vsel %vm4372, %v4363, %v4365
  %v4385 = vsel %vm4372, %v4365, %v4367
  %v4386 = vsel %vm4372, %v4367, %v4369
  %v4387 = vsel %vm4372, %v4369, %v4371
  %v4388 = vunpack.c.l.b16 %v4341
  %v4389 = vunpack.c.h.b16 %v4341
  %v4390 = vunpack.c.l.b16 0
  %v4391 = vunpack.c.h.b16 0
  %vm4392 = vcmp.ne.s32.totalorder %v4388, %v4390
  %vm4393 = vcmp.ne.s32.totalorder %v4389, %v4391
  %vm4394 = vmpackc.low %vm4393, %vm4392
  %v4395 = vunpack.c.l.b16 %v4373
  %v4396 = vunpack.c.h.b16 %v4373
  %v4397 = vunpack.c.l.b16 0
  %v4398 = vunpack.c.h.b16 0
  %vm4399 = vcmp.ne.s32.totalorder %v4395, %v4397
  %vm4400 = vcmp.ne.s32.totalorder %v4396, %v4398
  %vm4401 = vmpackc.low %vm4400, %vm4399
  %v4402 = vunpack.c.l.b16 %v4374
  %v4403 = vunpack.c.h.b16 %v4374
  %v4404 = vunpack.c.l.b16 0
  %v4405 = vunpack.c.h.b16 0
  %vm4406 = vcmp.ne.s32.totalorder %v4402, %v4404
  %vm4407 = vcmp.ne.s32.totalorder %v4403, %v4405
  %vm4408 = vmpackc.low %vm4407, %vm4406
  %v4409 = vunpack.c.l.b16 %v4375
  %v4410 = vunpack.c.h.b16 %v4375
  %v4411 = vunpack.c.l.b16 0
  %v4412 = vunpack.c.h.b16 0
  %vm4413 = vcmp.ne.s32.totalorder %v4409, %v4411
  %vm4414 = vcmp.ne.s32.totalorder %v4410, %v4412
  %vm4415 = vmpackc.low %vm4414, %vm4413
  %v4416 = vunpack.c.l.b16 %v4376
  %v4417 = vunpack.c.h.b16 %v4376
  %v4418 = vunpack.c.l.b16 0
  %v4419 = vunpack.c.h.b16 0
  %vm4420 = vcmp.ne.s32.totalorder %v4416, %v4418
  %vm4421 = vcmp.ne.s32.totalorder %v4417, %v4419
  %vm4422 = vmpackc.low %vm4421, %vm4420
  %v4423 = vunpack.c.l.b16 %v4377
  %v4424 = vunpack.c.h.b16 %v4377
  %v4425 = vunpack.c.l.b16 0
  %v4426 = vunpack.c.h.b16 0
  %vm4427 = vcmp.ne.s32.totalorder %v4423, %v4425
  %vm4428 = vcmp.ne.s32.totalorder %v4424, %v4426
  %vm4429 = vmpackc.low %vm4428, %vm4427
  %v4430 = vunpack.c.l.b16 %v4378
  %v4431 = vunpack.c.h.b16 %v4378
  %v4432 = vunpack.c.l.b16 0
  %v4433 = vunpack.c.h.b16 0
  %vm4434 = vcmp.ne.s32.totalorder %v4430, %v4432
  %vm4435 = vcmp.ne.s32.totalorder %v4431, %v4433
  %vm4436 = vmpackc.low %vm4435, %vm4434
  %v4437 = vunpack.c.l.b16 %v4379
  %v4438 = vunpack.c.h.b16 %v4379
  %v4439 = vunpack.c.l.b16 0
  %v4440 = vunpack.c.h.b16 0
  %vm4441 = vcmp.ne.s32.totalorder %v4437, %v4439
  %vm4442 = vcmp.ne.s32.totalorder %v4438, %v4440
  %vm4443 = vmpackc.low %vm4442, %vm4441
  %v4444 = vunpack.c.l.b16 %v4380
  %v4445 = vunpack.c.h.b16 %v4380
  %v4446 = vunpack.c.l.b16 0
  %v4447 = vunpack.c.h.b16 0
  %vm4448 = vcmp.ne.s32.totalorder %v4444, %v4446
  %vm4449 = vcmp.ne.s32.totalorder %v4445, %v4447
  %vm4450 = vmpackc.low %vm4449, %vm4448
  %v4451 = vunpack.c.l.b16 %v4381
  %v4452 = vunpack.c.h.b16 %v4381
  %v4453 = vunpack.c.l.b16 0
  %v4454 = vunpack.c.h.b16 0
  %vm4455 = vcmp.ne.s32.totalorder %v4451, %v4453
  %vm4456 = vcmp.ne.s32.totalorder %v4452, %v4454
  %vm4457 = vmpackc.low %vm4456, %vm4455
  %v4458 = vunpack.c.l.b16 %v4382
  %v4459 = vunpack.c.h.b16 %v4382
  %v4460 = vunpack.c.l.b16 0
  %v4461 = vunpack.c.h.b16 0
  %vm4462 = vcmp.ne.s32.totalorder %v4458, %v4460
  %vm4463 = vcmp.ne.s32.totalorder %v4459, %v4461
  %vm4464 = vmpackc.low %vm4463, %vm4462
  %v4465 = vunpack.c.l.b16 %v4383
  %v4466 = vunpack.c.h.b16 %v4383
  %v4467 = vunpack.c.l.b16 0
  %v4468 = vunpack.c.h.b16 0
  %vm4469 = vcmp.ne.s32.totalorder %v4465, %v4467
  %vm4470 = vcmp.ne.s32.totalorder %v4466, %v4468
  %vm4471 = vmpackc.low %vm4470, %vm4469
  %v4472 = vunpack.c.l.b16 %v4384
  %v4473 = vunpack.c.h.b16 %v4384
  %v4474 = vunpack.c.l.b16 0
  %v4475 = vunpack.c.h.b16 0
  %vm4476 = vcmp.ne.s32.totalorder %v4472, %v4474
  %vm4477 = vcmp.ne.s32.totalorder %v4473, %v4475
  %vm4478 = vmpackc.low %vm4477, %vm4476
  %v4479 = vunpack.c.l.b16 %v4385
  %v4480 = vunpack.c.h.b16 %v4385
  %v4481 = vunpack.c.l.b16 0
  %v4482 = vunpack.c.h.b16 0
  %vm4483 = vcmp.ne.s32.totalorder %v4479, %v4481
  %vm4484 = vcmp.ne.s32.totalorder %v4480, %v4482
  %vm4485 = vmpackc.low %vm4484, %vm4483
  %v4486 = vunpack.c.l.b16 %v4386
  %v4487 = vunpack.c.h.b16 %v4386
  %v4488 = vunpack.c.l.b16 0
  %v4489 = vunpack.c.h.b16 0
  %vm4490 = vcmp.ne.s32.totalorder %v4486, %v4488
  %vm4491 = vcmp.ne.s32.totalorder %v4487, %v4489
  %vm4492 = vmpackc.low %vm4491, %vm4490
  %v4493 = vunpack.c.l.b16 %v4387
  %v4494 = vunpack.c.h.b16 %v4387
  %v4495 = vunpack.c.l.b16 0
  %v4496 = vunpack.c.h.b16 0
  %vm4497 = vcmp.ne.s32.totalorder %v4493, %v4495
  %vm4498 = vcmp.ne.s32.totalorder %v4494, %v4496
  %vm4499 = vmpackc.low %vm4498, %vm4497
  %v4500 = vunpack.c.l.b16 %v4371
  %v4501 = vunpack.c.h.b16 %v4371
  %v4502 = vunpack.c.l.b16 0
  %v4503 = vunpack.c.h.b16 0
  %vm4504 = vcmp.ne.s32.totalorder %v4500, %v4502
  %vm4505 = vcmp.ne.s32.totalorder %v4501, %v4503
  %vm4506 = vmpackc.low %vm4505, %vm4504
  %v4507 = vsel %vm4394, %v128, 0
  %v4508 = vsel %vm4401, %v95, 0
  %v4509 = vsel %vm4408, %v96, 0
  %v4510 = vsel %vm4415, %v97, 0
  %v4511 = vsel %vm4422, %v98, 0
  %v4512 = vsel %vm4429, %v99, 0
  %v4513 = vsel %vm4436, %v100, 0
  %v4514 = vsel %vm4443, %v101, 0
  %v4515 = vsel %vm4450, %v102, 0
  %v4516 = vsel %vm4457, %v103, 0
  %v4517 = vsel %vm4464, %v104, 0
  %v4518 = vsel %vm4471, %v105, 0
  %v4519 = vsel %vm4478, %v106, 0
  %v4520 = vsel %vm4485, %v107, 0
  %v4521 = vsel %vm4492, %v108, 0
  %v4522 = vsel %vm4499, %v109, 0
  %v4523 = vsel %vm4506, %v131, 0
  %s4524 = scalar_lea.vmem %s1, 56
  %v4525 = vld [vmem:[%s4524] sm:$0xf]
  %v4526 = vld [vmem:[%s4524 + $0x4] sm:$0x3]
  %v4529 = vunpack.c.l.b16 %v4525
  %v4530 = vunpack.c.l.b16 %v4526
  %v4531 = vpack.c.b16 %v4530, %v4529
  %4549 = vrot.lane.b32.xlu0 %v4507, 63
  %v4550 = vpop.permute.xlu0 %4549
  %4551 = vrot.lane.b32.xlu0 %v4508, 63
  %v4552 = vpop.permute.xlu0 %4551
  %4553 = vrot.lane.b32.xlu0 %v4509, 63
  %v4554 = vpop.permute.xlu0 %4553
  %4555 = vrot.lane.b32.xlu0 %v4510, 63
  %v4556 = vpop.permute.xlu0 %4555
  %4557 = vrot.lane.b32.xlu0 %v4511, 63
  %v4558 = vpop.permute.xlu0 %4557
  %4559 = vrot.lane.b32.xlu0 %v4512, 63
  %v4560 = vpop.permute.xlu0 %4559
  %4561 = vrot.lane.b32.xlu0 %v4513, 63
  %v4562 = vpop.permute.xlu0 %4561
  %4563 = vrot.lane.b32.xlu0 %v4514, 63
  %v4564 = vpop.permute.xlu0 %4563
  %4565 = vrot.lane.b32.xlu0 %v4515, 63
  %v4566 = vpop.permute.xlu0 %4565
  %4567 = vrot.lane.b32.xlu0 %v4516, 63
  %v4568 = vpop.permute.xlu0 %4567
  %4569 = vrot.lane.b32.xlu0 %v4517, 63
  %v4570 = vpop.permute.xlu0 %4569
  %4571 = vrot.lane.b32.xlu0 %v4518, 63
  %v4572 = vpop.permute.xlu0 %4571
  %4573 = vrot.lane.b32.xlu0 %v4519, 63
  %v4574 = vpop.permute.xlu0 %4573
  %4575 = vrot.lane.b32.xlu0 %v4520, 63
  %v4576 = vpop.permute.xlu0 %4575
  %4577 = vrot.lane.b32.xlu0 %v4521, 63
  %v4578 = vpop.permute.xlu0 %4577
  %4579 = vrot.lane.b32.xlu0 %v4522, 63
  %v4580 = vpop.permute.xlu0 %4579
  %4581 = vrot.lane.b32.xlu0 %v4523, 63
  %v4582 = vpop.permute.xlu0 %4581
  %vm4583 = vcmask 515072
  %v4584 = vsel %vm4583, %v4550, %v4552
  %v4585 = vsel %vm4583, %v4552, %v4554
  %v4586 = vsel %vm4583, %v4554, %v4556
  %v4587 = vsel %vm4583, %v4556, %v4558
  %v4588 = vsel %vm4583, %v4558, %v4560
  %v4589 = vsel %vm4583, %v4560, %v4562
  %v4590 = vsel %vm4583, %v4562, %v4564
  %v4591 = vsel %vm4583, %v4564, %v4566
  %v4592 = vsel %vm4583, %v4566, %v4568
  %v4593 = vsel %vm4583, %v4568, %v4570
  %v4594 = vsel %vm4583, %v4570, %v4572
  %v4595 = vsel %vm4583, %v4572, %v4574
  %v4596 = vsel %vm4583, %v4574, %v4576
  %v4597 = vsel %vm4583, %v4576, %v4578
  %v4598 = vsel %vm4583, %v4578, %v4580
  %v4599 = vsel %vm4583, %v4580, %v4582
  %v4601 = vsel %vm764, %v4531, 0
  %v4604 = vsel %vm768, %v4584, 0
  %v4607 = vsel %vm768, %v4585, 0
  %v4610 = vsel %vm768, %v4586, 0
  %v4613 = vsel %vm768, %v4587, 0
  %v4616 = vsel %vm768, %v4588, 0
  %v4619 = vsel %vm768, %v4589, 0
  %v4622 = vsel %vm768, %v4590, 0
  %v4625 = vsel %vm768, %v4591, 0
  %v4628 = vsel %vm768, %v4592, 0
  %v4631 = vsel %vm768, %v4593, 0
  %v4634 = vsel %vm768, %v4594, 0
  %v4637 = vsel %vm768, %v4595, 0
  %v4640 = vsel %vm768, %v4596, 0
  %v4643 = vsel %vm768, %v4597, 0
  %v4646 = vsel %vm768, %v4598, 0
  %v4649 = vsel %vm768, %v4599, 0
  %4651 = vmatpush.bf16.msra.mxu0 0
  %4652 = vmatpush.bf16.msra.mxu0 0
  %4653 = vmatpush.bf16.msra.mxu0 0
  %4654 = vmatpush.bf16.msra.mxu0 0
  %4655 = vmatpush.bf16.msra.mxu0 0
  %4656 = vmatpush.bf16.msra.mxu0 0
  %4657 = vmatpush.bf16.msra.mxu0 0
  %4658 = vmatpush.bf16.msra.mxu0 %v4604
  %4659 = vmatmul.bf16.gmra.mxu0 %v4601
  %v4660 = vpop.f32.mrf.mxu0
  %v4661 = vadd.f32 0.0, %v4660
  %v4662 = vpop.f32.mrf.mxu0
  %v4663 = vadd.f32 0.0, %v4662
  %4664 = vdwg.mxu0
  %4665 = vmatpush.bf16.msra.mxu0 0
  %4666 = vmatpush.bf16.msra.mxu0 0
  %4667 = vmatpush.bf16.msra.mxu0 0
  %4668 = vmatpush.bf16.msra.mxu0 0
  %4669 = vmatpush.bf16.msra.mxu0 0
  %4670 = vmatpush.bf16.msra.mxu0 0
  %4671 = vmatpush.bf16.msra.mxu0 0
  %4672 = vmatpush.bf16.msra.mxu0 %v4607
  %4673 = vmatmul.bf16.gmra.mxu0 %v4601
  %v4674 = vpop.f32.mrf.mxu0
  %v4675 = vadd.f32 0.0, %v4674
  %v4676 = vpop.f32.mrf.mxu0
  %v4677 = vadd.f32 0.0, %v4676
  %4678 = vdwg.mxu0
  %4679 = vmatpush.bf16.msra.mxu0 0
  %4680 = vmatpush.bf16.msra.mxu0 0
  %4681 = vmatpush.bf16.msra.mxu0 0
  %4682 = vmatpush.bf16.msra.mxu0 0
  %4683 = vmatpush.bf16.msra.mxu0 0
  %4684 = vmatpush.bf16.msra.mxu0 0
  %4685 = vmatpush.bf16.msra.mxu0 0
  %4686 = vmatpush.bf16.msra.mxu0 %v4610
  %4687 = vmatmul.bf16.gmra.mxu0 %v4601
  %v4688 = vpop.f32.mrf.mxu0
  %v4689 = vadd.f32 0.0, %v4688
  %v4690 = vpop.f32.mrf.mxu0
  %v4691 = vadd.f32 0.0, %v4690
  %4692 = vdwg.mxu0
  %4693 = vmatpush.bf16.msra.mxu0 0
  %4694 = vmatpush.bf16.msra.mxu0 0
  %4695 = vmatpush.bf16.msra.mxu0 0
  %4696 = vmatpush.bf16.msra.mxu0 0
  %4697 = vmatpush.bf16.msra.mxu0 0
  %4698 = vmatpush.bf16.msra.mxu0 0
  %4699 = vmatpush.bf16.msra.mxu0 0
  %4700 = vmatpush.bf16.msra.mxu0 %v4613
  %4701 = vmatmul.bf16.gmra.mxu0 %v4601
  %v4702 = vpop.f32.mrf.mxu0
  %v4703 = vadd.f32 0.0, %v4702
  %v4704 = vpop.f32.mrf.mxu0
  %v4705 = vadd.f32 0.0, %v4704
  %4706 = vdwg.mxu0
  %4707 = vmatpush.bf16.msra.mxu0 0
  %4708 = vmatpush.bf16.msra.mxu0 0
  %4709 = vmatpush.bf16.msra.mxu0 0
  %4710 = vmatpush.bf16.msra.mxu0 0
  %4711 = vmatpush.bf16.msra.mxu0 0
  %4712 = vmatpush.bf16.msra.mxu0 0
  %4713 = vmatpush.bf16.msra.mxu0 0
  %4714 = vmatpush.bf16.msra.mxu0 %v4616
  %4715 = vmatmul.bf16.gmra.mxu0 %v4601
  %v4716 = vpop.f32.mrf.mxu0
  %v4717 = vadd.f32 0.0, %v4716
  %v4718 = vpop.f32.mrf.mxu0
  %v4719 = vadd.f32 0.0, %v4718
  %4720 = vdwg.mxu0
  %4721 = vmatpush.bf16.msra.mxu0 0
  %4722 = vmatpush.bf16.msra.mxu0 0
  %4723 = vmatpush.bf16.msra.mxu0 0
  %4724 = vmatpush.bf16.msra.mxu0 0
  %4725 = vmatpush.bf16.msra.mxu0 0
  %4726 = vmatpush.bf16.msra.mxu0 0
  %4727 = vmatpush.bf16.msra.mxu0 0
  %4728 = vmatpush.bf16.msra.mxu0 %v4619
  %4729 = vmatmul.bf16.gmra.mxu0 %v4601
  %v4730 = vpop.f32.mrf.mxu0
  %v4731 = vadd.f32 0.0, %v4730
  %v4732 = vpop.f32.mrf.mxu0
  %v4733 = vadd.f32 0.0, %v4732
  %4734 = vdwg.mxu0
  %4735 = vmatpush.bf16.msra.mxu0 0
  %4736 = vmatpush.bf16.msra.mxu0 0
  %4737 = vmatpush.bf16.msra.mxu0 0
  %4738 = vmatpush.bf16.msra.mxu0 0
  %4739 = vmatpush.bf16.msra.mxu0 0
  %4740 = vmatpush.bf16.msra.mxu0 0
  %4741 = vmatpush.bf16.msra.mxu0 0
  %4742 = vmatpush.bf16.msra.mxu0 %v4622
  %4743 = vmatmul.bf16.gmra.mxu0 %v4601
  %v4744 = vpop.f32.mrf.mxu0
  %v4745 = vadd.f32 0.0, %v4744
  %v4746 = vpop.f32.mrf.mxu0
  %v4747 = vadd.f32 0.0, %v4746
  %4748 = vdwg.mxu0
  %4749 = vmatpush.bf16.msra.mxu0 0
  %4750 = vmatpush.bf16.msra.mxu0 0
  %4751 = vmatpush.bf16.msra.mxu0 0
  %4752 = vmatpush.bf16.msra.mxu0 0
  %4753 = vmatpush.bf16.msra.mxu0 0
  %4754 = vmatpush.bf16.msra.mxu0 0
  %4755 = vmatpush.bf16.msra.mxu0 0
  %4756 = vmatpush.bf16.msra.mxu0 %v4625
  %4757 = vmatmul.bf16.gmra.mxu0 %v4601
  %v4758 = vpop.f32.mrf.mxu0
  %v4759 = vadd.f32 0.0, %v4758
  %v4760 = vpop.f32.mrf.mxu0
  %v4761 = vadd.f32 0.0, %v4760
  %4762 = vdwg.mxu0
  %4763 = vmatpush.bf16.msra.mxu0 0
  %4764 = vmatpush.bf16.msra.mxu0 0
  %4765 = vmatpush.bf16.msra.mxu0 0
  %4766 = vmatpush.bf16.msra.mxu0 0
  %4767 = vmatpush.bf16.msra.mxu0 0
  %4768 = vmatpush.bf16.msra.mxu0 0
  %4769 = vmatpush.bf16.msra.mxu0 0
  %4770 = vmatpush.bf16.msra.mxu0 %v4628
  %4771 = vmatmul.bf16.gmra.mxu0 %v4601
  %v4772 = vpop.f32.mrf.mxu0
  %v4773 = vadd.f32 0.0, %v4772
  %v4774 = vpop.f32.mrf.mxu0
  %v4775 = vadd.f32 0.0, %v4774
  %4776 = vdwg.mxu0
  %4777 = vmatpush.bf16.msra.mxu0 0
  %4778 = vmatpush.bf16.msra.mxu0 0
  %4779 = vmatpush.bf16.msra.mxu0 0
  %4780 = vmatpush.bf16.msra.mxu0 0
  %4781 = vmatpush.bf16.msra.mxu0 0
  %4782 = vmatpush.bf16.msra.mxu0 0
  %4783 = vmatpush.bf16.msra.mxu0 0
  %4784 = vmatpush.bf16.msra.mxu0 %v4631
  %4785 = vmatmul.bf16.gmra.mxu0 %v4601
  %v4786 = vpop.f32.mrf.mxu0
  %v4787 = vadd.f32 0.0, %v4786
  %v4788 = vpop.f32.mrf.mxu0
  %v4789 = vadd.f32 0.0, %v4788
  %4790 = vdwg.mxu0
  %4791 = vmatpush.bf16.msra.mxu0 0
  %4792 = vmatpush.bf16.msra.mxu0 0
  %4793 = vmatpush.bf16.msra.mxu0 0
  %4794 = vmatpush.bf16.msra.mxu0 0
  %4795 = vmatpush.bf16.msra.mxu0 0
  %4796 = vmatpush.bf16.msra.mxu0 0
  %4797 = vmatpush.bf16.msra.mxu0 0
  %4798 = vmatpush.bf16.msra.mxu0 %v4634
  %4799 = vmatmul.bf16.gmra.mxu0 %v4601
  %v4800 = vpop.f32.mrf.mxu0
  %v4801 = vadd.f32 0.0, %v4800
  %v4802 = vpop.f32.mrf.mxu0
  %v4803 = vadd.f32 0.0, %v4802
  %4804 = vdwg.mxu0
  %4805 = vmatpush.bf16.msra.mxu0 0
  %4806 = vmatpush.bf16.msra.mxu0 0
  %4807 = vmatpush.bf16.msra.mxu0 0
  %4808 = vmatpush.bf16.msra.mxu0 0
  %4809 = vmatpush.bf16.msra.mxu0 0
  %4810 = vmatpush.bf16.msra.mxu0 0
  %4811 = vmatpush.bf16.msra.mxu0 0
  %4812 = vmatpush.bf16.msra.mxu0 %v4637
  %4813 = vmatmul.bf16.gmra.mxu0 %v4601
  %v4814 = vpop.f32.mrf.mxu0
  %v4815 = vadd.f32 0.0, %v4814
  %v4816 = vpop.f32.mrf.mxu0
  %v4817 = vadd.f32 0.0, %v4816
  %4818 = vdwg.mxu0
  %4819 = vmatpush.bf16.msra.mxu0 0
  %4820 = vmatpush.bf16.msra.mxu0 0
  %4821 = vmatpush.bf16.msra.mxu0 0
  %4822 = vmatpush.bf16.msra.mxu0 0
  %4823 = vmatpush.bf16.msra.mxu0 0
  %4824 = vmatpush.bf16.msra.mxu0 0
  %4825 = vmatpush.bf16.msra.mxu0 0
  %4826 = vmatpush.bf16.msra.mxu0 %v4640
  %4827 = vmatmul.bf16.gmra.mxu0 %v4601
  %v4828 = vpop.f32.mrf.mxu0
  %v4829 = vadd.f32 0.0, %v4828
  %v4830 = vpop.f32.mrf.mxu0
  %v4831 = vadd.f32 0.0, %v4830
  %4832 = vdwg.mxu0
  %4833 = vmatpush.bf16.msra.mxu0 0
  %4834 = vmatpush.bf16.msra.mxu0 0
  %4835 = vmatpush.bf16.msra.mxu0 0
  %4836 = vmatpush.bf16.msra.mxu0 0
  %4837 = vmatpush.bf16.msra.mxu0 0
  %4838 = vmatpush.bf16.msra.mxu0 0
  %4839 = vmatpush.bf16.msra.mxu0 0
  %4840 = vmatpush.bf16.msra.mxu0 %v4643
  %4841 = vmatmul.bf16.gmra.mxu0 %v4601
  %v4842 = vpop.f32.mrf.mxu0
  %v4843 = vadd.f32 0.0, %v4842
  %v4844 = vpop.f32.mrf.mxu0
  %v4845 = vadd.f32 0.0, %v4844
  %4846 = vdwg.mxu0
  %4847 = vmatpush.bf16.msra.mxu0 0
  %4848 = vmatpush.bf16.msra.mxu0 0
  %4849 = vmatpush.bf16.msra.mxu0 0
  %4850 = vmatpush.bf16.msra.mxu0 0
  %4851 = vmatpush.bf16.msra.mxu0 0
  %4852 = vmatpush.bf16.msra.mxu0 0
  %4853 = vmatpush.bf16.msra.mxu0 0
  %4854 = vmatpush.bf16.msra.mxu0 %v4646
  %4855 = vmatmul.bf16.gmra.mxu0 %v4601
  %v4856 = vpop.f32.mrf.mxu0
  %v4857 = vadd.f32 0.0, %v4856
  %v4858 = vpop.f32.mrf.mxu0
  %v4859 = vadd.f32 0.0, %v4858
  %4860 = vdwg.mxu0
  %4861 = vmatpush.bf16.msra.mxu0 0
  %4862 = vmatpush.bf16.msra.mxu0 0
  %4863 = vmatpush.bf16.msra.mxu0 0
  %4864 = vmatpush.bf16.msra.mxu0 0
  %4865 = vmatpush.bf16.msra.mxu0 0
  %4866 = vmatpush.bf16.msra.mxu0 0
  %4867 = vmatpush.bf16.msra.mxu0 0
  %4868 = vmatpush.bf16.msra.mxu0 %v4649
  %4869 = vmatmul.bf16.gmra.mxu0 %v4601
  %v4870 = vpop.f32.mrf.mxu0
  %v4871 = vadd.f32 0.0, %v4870
  %v4872 = vpop.f32.mrf.mxu0
  %v4873 = vadd.f32 0.0, %v4872
  %4874 = vdwg.mxu0
  %v4875 = vadd.f32 %v4244, %v4661
  %v4876 = vadd.f32 %v4245, %v4675
  %v4877 = vadd.f32 %v4246, %v4689
  %v4878 = vadd.f32 %v4247, %v4703
  %v4879 = vadd.f32 %v4248, %v4717
  %v4880 = vadd.f32 %v4249, %v4731
  %v4881 = vadd.f32 %v4250, %v4745
  %v4882 = vadd.f32 %v4251, %v4759
  %v4883 = vadd.f32 %v4252, %v4773
  %v4884 = vadd.f32 %v4253, %v4787
  %v4885 = vadd.f32 %v4254, %v4801
  %v4886 = vadd.f32 %v4255, %v4815
  %v4887 = vadd.f32 %v4256, %v4829
  %v4888 = vadd.f32 %v4257, %v4843
  %v4889 = vadd.f32 %v4258, %v4857
  %v4890 = vadd.f32 %v4259, %v4871
  %v4891 = vadd.f32 %v4260, %v4663
  %v4892 = vadd.f32 %v4261, %v4677
  %v4893 = vadd.f32 %v4262, %v4691
  %v4894 = vadd.f32 %v4263, %v4705
  %v4895 = vadd.f32 %v4264, %v4719
  %v4896 = vadd.f32 %v4265, %v4733
  %v4897 = vadd.f32 %v4266, %v4747
  %v4898 = vadd.f32 %v4267, %v4761
  %v4899 = vadd.f32 %v4268, %v4775
  %v4900 = vadd.f32 %v4269, %v4789
  %v4901 = vadd.f32 %v4270, %v4803
  %v4902 = vadd.f32 %v4271, %v4817
  %v4903 = vadd.f32 %v4272, %v4831
  %v4904 = vadd.f32 %v4273, %v4845
  %v4905 = vadd.f32 %v4274, %v4859
  %v4906 = vadd.f32 %v4275, %v4873
  %vm4907 = vmand %vm3614, %vm1321
  %vm4908 = vmand %vm3615, %vm1322
  %vm4909 = vmand %vm3616, %vm1323
  %vm4910 = vmand %vm3617, %vm1324
  %vm4911 = vmand %vm3618, %vm1325
  %vm4912 = vmand %vm3619, %vm1326
  %vm4913 = vmand %vm3620, %vm1327
  %vm4914 = vmand %vm3621, %vm1328
  %vm4915 = vmand %vm3622, %vm1329
  %vm4916 = vmand %vm3623, %vm1330
  %vm4917 = vmand %vm3624, %vm1331
  %vm4918 = vmand %vm3625, %vm1332
  %vm4919 = vmand %vm3626, %vm1333
  %vm4920 = vmand %vm3627, %vm1334
  %vm4921 = vmand %vm3628, %vm1335
  %vm4922 = vmand %vm3629, %vm1336
  %v4923 = vsel %vm4907, 1, 0
  %v4924 = vsel %vm4908, 1, 0
  %v4925 = vsel %vm4909, 1, 0
  %v4926 = vsel %vm4910, 1, 0
  %v4927 = vsel %vm4911, 1, 0
  %v4928 = vsel %vm4912, 1, 0
  %v4929 = vsel %vm4913, 1, 0
  %v4930 = vsel %vm4914, 1, 0
  %v4931 = vsel %vm4915, 1, 0
  %v4932 = vsel %vm4916, 1, 0
  %v4933 = vsel %vm4917, 1, 0
  %v4934 = vsel %vm4918, 1, 0
  %v4935 = vsel %vm4919, 1, 0
  %v4936 = vsel %vm4920, 1, 0
  %v4937 = vsel %vm4921, 1, 0
  %v4938 = vsel %vm4922, 1, 0
  %vm4939 = vcmp.eq.s32.totalorder %v4923, 1
  %vm4940 = vcmp.eq.s32.totalorder %v4924, 1
  %vm4941 = vcmp.eq.s32.totalorder %v4925, 1
  %vm4942 = vcmp.eq.s32.totalorder %v4926, 1
  %vm4943 = vcmp.eq.s32.totalorder %v4927, 1
  %vm4944 = vcmp.eq.s32.totalorder %v4928, 1
  %vm4945 = vcmp.eq.s32.totalorder %v4929, 1
  %vm4946 = vcmp.eq.s32.totalorder %v4930, 1
  %vm4947 = vcmp.eq.s32.totalorder %v4931, 1
  %vm4948 = vcmp.eq.s32.totalorder %v4932, 1
  %vm4949 = vcmp.eq.s32.totalorder %v4933, 1
  %vm4950 = vcmp.eq.s32.totalorder %v4934, 1
  %vm4951 = vcmp.eq.s32.totalorder %v4935, 1
  %vm4952 = vcmp.eq.s32.totalorder %v4936, 1
  %vm4953 = vcmp.eq.s32.totalorder %v4937, 1
  %vm4954 = vcmp.eq.s32.totalorder %v4938, 1
  %vm4955 = vmpackc.low %vm4940, %vm4939
  %vm4956 = vmpackc.low %vm4942, %vm4941
  %vm4957 = vmpackc.low %vm4944, %vm4943
  %vm4958 = vmpackc.low %vm4946, %vm4945
  %vm4959 = vmpackc.low %vm4948, %vm4947
  %vm4960 = vmpackc.low %vm4950, %vm4949
  %vm4961 = vmpackc.low %vm4952, %vm4951
  %vm4962 = vmpackc.low %vm4954, %vm4953
  %v4963 = vsel %vm4955, 65537, 0
  %v4964 = vsel %vm4956, 65537, 0
  %v4965 = vsel %vm4957, 65537, 0
  %v4966 = vsel %vm4958, 65537, 0
  %v4967 = vsel %vm4959, 65537, 0
  %v4968 = vsel %vm4960, 65537, 0
  %v4969 = vsel %vm4961, 65537, 0
  %v4970 = vsel %vm4962, 65537, 0
  %v4971 = vperm.slane %v4963, 0
  %v4972 = vperm.slane %v4963, 4
  %v4973 = vperm.slane %v4964, 0
  %v4974 = vperm.slane %v4964, 4
  %v4975 = vperm.slane %v4965, 0
  %v4976 = vperm.slane %v4965, 4
  %v4977 = vperm.slane %v4966, 0
  %v4978 = vperm.slane %v4966, 4
  %v4979 = vperm.slane %v4967, 0
  %v4980 = vperm.slane %v4967, 4
  %v4981 = vperm.slane %v4968, 0
  %v4982 = vperm.slane %v4968, 4
  %v4983 = vperm.slane %v4969, 0
  %v4984 = vperm.slane %v4969, 4
  %v4985 = vperm.slane %v4970, 0
  %v4986 = vperm.slane %v4970, 4
  %4987 = vrot.lane.b32.xlu0 %v4971, 66
  %v4988 = vpop.permute.xlu0 %4987
  %4989 = vrot.lane.b32.xlu0 %v4972, 66
  %v4990 = vpop.permute.xlu0 %4989
  %4991 = vrot.lane.b32.xlu0 %v4973, 66
  %v4992 = vpop.permute.xlu0 %4991
  %4993 = vrot.lane.b32.xlu0 %v4974, 66
  %v4994 = vpop.permute.xlu0 %4993
  %4995 = vrot.lane.b32.xlu0 %v4975, 66
  %v4996 = vpop.permute.xlu0 %4995
  %4997 = vrot.lane.b32.xlu0 %v4976, 66
  %v4998 = vpop.permute.xlu0 %4997
  %4999 = vrot.lane.b32.xlu0 %v4977, 66
  %v5000 = vpop.permute.xlu0 %4999
  %5001 = vrot.lane.b32.xlu0 %v4978, 66
  %v5002 = vpop.permute.xlu0 %5001
  %5003 = vrot.lane.b32.xlu0 %v4979, 66
  %v5004 = vpop.permute.xlu0 %5003
  %5005 = vrot.lane.b32.xlu0 %v4980, 66
  %v5006 = vpop.permute.xlu0 %5005
  %5007 = vrot.lane.b32.xlu0 %v4981, 66
  %v5008 = vpop.permute.xlu0 %5007
  %5009 = vrot.lane.b32.xlu0 %v4982, 66
  %v5010 = vpop.permute.xlu0 %5009
  %5011 = vrot.lane.b32.xlu0 %v4983, 66
  %v5012 = vpop.permute.xlu0 %5011
  %5013 = vrot.lane.b32.xlu0 %v4984, 66
  %v5014 = vpop.permute.xlu0 %5013
  %5015 = vrot.lane.b32.xlu0 %v4985, 66
  %v5016 = vpop.permute.xlu0 %5015
  %5017 = vrot.lane.b32.xlu0 %v4986, 66
  %v5018 = vpop.permute.xlu0 %5017
  %vm5019 = vcmask 539648
  %v5020 = vsel %vm5019, %v4988, %v4990
  %v5021 = vsel %vm5019, %v4990, %v4992
  %v5022 = vsel %vm5019, %v4992, %v4994
  %v5023 = vsel %vm5019, %v4994, %v4996
  %v5024 = vsel %vm5019, %v4996, %v4998
  %v5025 = vsel %vm5019, %v4998, %v5000
  %v5026 = vsel %vm5019, %v5000, %v5002
  %v5027 = vsel %vm5019, %v5002, %v5004
  %v5028 = vsel %vm5019, %v5004, %v5006
  %v5029 = vsel %vm5019, %v5006, %v5008
  %v5030 = vsel %vm5019, %v5008, %v5010
  %v5031 = vsel %vm5019, %v5010, %v5012
  %v5032 = vsel %vm5019, %v5012, %v5014
  %v5033 = vsel %vm5019, %v5014, %v5016
  %v5034 = vsel %vm5019, %v5016, %v5018
  %v5035 = vunpack.c.l.b16 %v4988
  %v5036 = vunpack.c.h.b16 %v4988
  %v5037 = vunpack.c.l.b16 0
  %v5038 = vunpack.c.h.b16 0
  %vm5039 = vcmp.ne.s32.totalorder %v5035, %v5037
  %vm5040 = vcmp.ne.s32.totalorder %v5036, %v5038
  %vm5041 = vmpackc.low %vm5040, %vm5039
  %v5042 = vunpack.c.l.b16 %v5020
  %v5043 = vunpack.c.h.b16 %v5020
  %v5044 = vunpack.c.l.b16 0
  %v5045 = vunpack.c.h.b16 0
  %vm5046 = vcmp.ne.s32.totalorder %v5042, %v5044
  %vm5047 = vcmp.ne.s32.totalorder %v5043, %v5045
  %vm5048 = vmpackc.low %vm5047, %vm5046
  %v5049 = vunpack.c.l.b16 %v5021
  %v5050 = vunpack.c.h.b16 %v5021
  %v5051 = vunpack.c.l.b16 0
  %v5052 = vunpack.c.h.b16 0
  %vm5053 = vcmp.ne.s32.totalorder %v5049, %v5051
  %vm5054 = vcmp.ne.s32.totalorder %v5050, %v5052
  %vm5055 = vmpackc.low %vm5054, %vm5053
  %v5056 = vunpack.c.l.b16 %v5022
  %v5057 = vunpack.c.h.b16 %v5022
  %v5058 = vunpack.c.l.b16 0
  %v5059 = vunpack.c.h.b16 0
  %vm5060 = vcmp.ne.s32.totalorder %v5056, %v5058
  %vm5061 = vcmp.ne.s32.totalorder %v5057, %v5059
  %vm5062 = vmpackc.low %vm5061, %vm5060
  %v5063 = vunpack.c.l.b16 %v5023
  %v5064 = vunpack.c.h.b16 %v5023
  %v5065 = vunpack.c.l.b16 0
  %v5066 = vunpack.c.h.b16 0
  %vm5067 = vcmp.ne.s32.totalorder %v5063, %v5065
  %vm5068 = vcmp.ne.s32.totalorder %v5064, %v5066
  %vm5069 = vmpackc.low %vm5068, %vm5067
  %v5070 = vunpack.c.l.b16 %v5024
  %v5071 = vunpack.c.h.b16 %v5024
  %v5072 = vunpack.c.l.b16 0
  %v5073 = vunpack.c.h.b16 0
  %vm5074 = vcmp.ne.s32.totalorder %v5070, %v5072
  %vm5075 = vcmp.ne.s32.totalorder %v5071, %v5073
  %vm5076 = vmpackc.low %vm5075, %vm5074
  %v5077 = vunpack.c.l.b16 %v5025
  %v5078 = vunpack.c.h.b16 %v5025
  %v5079 = vunpack.c.l.b16 0
  %v5080 = vunpack.c.h.b16 0
  %vm5081 = vcmp.ne.s32.totalorder %v5077, %v5079
  %vm5082 = vcmp.ne.s32.totalorder %v5078, %v5080
  %vm5083 = vmpackc.low %vm5082, %vm5081
  %v5084 = vunpack.c.l.b16 %v5026
  %v5085 = vunpack.c.h.b16 %v5026
  %v5086 = vunpack.c.l.b16 0
  %v5087 = vunpack.c.h.b16 0
  %vm5088 = vcmp.ne.s32.totalorder %v5084, %v5086
  %vm5089 = vcmp.ne.s32.totalorder %v5085, %v5087
  %vm5090 = vmpackc.low %vm5089, %vm5088
  %v5091 = vunpack.c.l.b16 %v5027
  %v5092 = vunpack.c.h.b16 %v5027
  %v5093 = vunpack.c.l.b16 0
  %v5094 = vunpack.c.h.b16 0
  %vm5095 = vcmp.ne.s32.totalorder %v5091, %v5093
  %vm5096 = vcmp.ne.s32.totalorder %v5092, %v5094
  %vm5097 = vmpackc.low %vm5096, %vm5095
  %v5098 = vunpack.c.l.b16 %v5028
  %v5099 = vunpack.c.h.b16 %v5028
  %v5100 = vunpack.c.l.b16 0
  %v5101 = vunpack.c.h.b16 0
  %vm5102 = vcmp.ne.s32.totalorder %v5098, %v5100
  %vm5103 = vcmp.ne.s32.totalorder %v5099, %v5101
  %vm5104 = vmpackc.low %vm5103, %vm5102
  %v5105 = vunpack.c.l.b16 %v5029
  %v5106 = vunpack.c.h.b16 %v5029
  %v5107 = vunpack.c.l.b16 0
  %v5108 = vunpack.c.h.b16 0
  %vm5109 = vcmp.ne.s32.totalorder %v5105, %v5107
  %vm5110 = vcmp.ne.s32.totalorder %v5106, %v5108
  %vm5111 = vmpackc.low %vm5110, %vm5109
  %v5112 = vunpack.c.l.b16 %v5030
  %v5113 = vunpack.c.h.b16 %v5030
  %v5114 = vunpack.c.l.b16 0
  %v5115 = vunpack.c.h.b16 0
  %vm5116 = vcmp.ne.s32.totalorder %v5112, %v5114
  %vm5117 = vcmp.ne.s32.totalorder %v5113, %v5115
  %vm5118 = vmpackc.low %vm5117, %vm5116
  %v5119 = vunpack.c.l.b16 %v5031
  %v5120 = vunpack.c.h.b16 %v5031
  %v5121 = vunpack.c.l.b16 0
  %v5122 = vunpack.c.h.b16 0
  %vm5123 = vcmp.ne.s32.totalorder %v5119, %v5121
  %vm5124 = vcmp.ne.s32.totalorder %v5120, %v5122
  %vm5125 = vmpackc.low %vm5124, %vm5123
  %v5126 = vunpack.c.l.b16 %v5032
  %v5127 = vunpack.c.h.b16 %v5032
  %v5128 = vunpack.c.l.b16 0
  %v5129 = vunpack.c.h.b16 0
  %vm5130 = vcmp.ne.s32.totalorder %v5126, %v5128
  %vm5131 = vcmp.ne.s32.totalorder %v5127, %v5129
  %vm5132 = vmpackc.low %vm5131, %vm5130
  %v5133 = vunpack.c.l.b16 %v5033
  %v5134 = vunpack.c.h.b16 %v5033
  %v5135 = vunpack.c.l.b16 0
  %v5136 = vunpack.c.h.b16 0
  %vm5137 = vcmp.ne.s32.totalorder %v5133, %v5135
  %vm5138 = vcmp.ne.s32.totalorder %v5134, %v5136
  %vm5139 = vmpackc.low %vm5138, %vm5137
  %v5140 = vunpack.c.l.b16 %v5034
  %v5141 = vunpack.c.h.b16 %v5034
  %v5142 = vunpack.c.l.b16 0
  %v5143 = vunpack.c.h.b16 0
  %vm5144 = vcmp.ne.s32.totalorder %v5140, %v5142
  %vm5145 = vcmp.ne.s32.totalorder %v5141, %v5143
  %vm5146 = vmpackc.low %vm5145, %vm5144
  %v5147 = vunpack.c.l.b16 %v5018
  %v5148 = vunpack.c.h.b16 %v5018
  %v5149 = vunpack.c.l.b16 0
  %v5150 = vunpack.c.h.b16 0
  %vm5151 = vcmp.ne.s32.totalorder %v5147, %v5149
  %vm5152 = vcmp.ne.s32.totalorder %v5148, %v5150
  %vm5153 = vmpackc.low %vm5152, %vm5151
  %v5154 = vsel %vm5041, %v128, 0
  %v5155 = vsel %vm5048, %v95, 0
  %v5156 = vsel %vm5055, %v96, 0
  %v5157 = vsel %vm5062, %v97, 0
  %v5158 = vsel %vm5069, %v98, 0
  %v5159 = vsel %vm5076, %v99, 0
  %v5160 = vsel %vm5083, %v100, 0
  %v5161 = vsel %vm5090, %v101, 0
  %v5162 = vsel %vm5097, %v102, 0
  %v5163 = vsel %vm5104, %v103, 0
  %v5164 = vsel %vm5111, %v104, 0
  %v5165 = vsel %vm5118, %v105, 0
  %v5166 = vsel %vm5125, %v106, 0
  %v5167 = vsel %vm5132, %v107, 0
  %v5168 = vsel %vm5139, %v108, 0
  %v5169 = vsel %vm5146, %v109, 0
  %v5170 = vsel %vm5153, %v131, 0
  %s5171 = scalar_lea.vmem %s1, 64
  %v5172 = vld [vmem:[%s5171] sm:$0xf]
  %v5173 = vld [vmem:[%s5171 + $0x4] sm:$0x3]
  %v5176 = vunpack.c.l.b16 %v5172
  %v5177 = vunpack.c.l.b16 %v5173
  %v5178 = vpack.c.b16 %v5177, %v5176
  %5196 = vrot.lane.b32.xlu0 %v5154, 62
  %v5197 = vpop.permute.xlu0 %5196
  %5198 = vrot.lane.b32.xlu0 %v5155, 62
  %v5199 = vpop.permute.xlu0 %5198
  %5200 = vrot.lane.b32.xlu0 %v5156, 62
  %v5201 = vpop.permute.xlu0 %5200
  %5202 = vrot.lane.b32.xlu0 %v5157, 62
  %v5203 = vpop.permute.xlu0 %5202
  %5204 = vrot.lane.b32.xlu0 %v5158, 62
  %v5205 = vpop.permute.xlu0 %5204
  %5206 = vrot.lane.b32.xlu0 %v5159, 62
  %v5207 = vpop.permute.xlu0 %5206
  %5208 = vrot.lane.b32.xlu0 %v5160, 62
  %v5209 = vpop.permute.xlu0 %5208
  %5210 = vrot.lane.b32.xlu0 %v5161, 62
  %v5211 = vpop.permute.xlu0 %5210
  %5212 = vrot.lane.b32.xlu0 %v5162, 62
  %v5213 = vpop.permute.xlu0 %5212
  %5214 = vrot.lane.b32.xlu0 %v5163, 62
  %v5215 = vpop.permute.xlu0 %5214
  %5216 = vrot.lane.b32.xlu0 %v5164, 62
  %v5217 = vpop.permute.xlu0 %5216
  %5218 = vrot.lane.b32.xlu0 %v5165, 62
  %v5219 = vpop.permute.xlu0 %5218
  %5220 = vrot.lane.b32.xlu0 %v5166, 62
  %v5221 = vpop.permute.xlu0 %5220
  %5222 = vrot.lane.b32.xlu0 %v5167, 62
  %v5223 = vpop.permute.xlu0 %5222
  %5224 = vrot.lane.b32.xlu0 %v5168, 62
  %v5225 = vpop.permute.xlu0 %5224
  %5226 = vrot.lane.b32.xlu0 %v5169, 62
  %v5227 = vpop.permute.xlu0 %5226
  %5228 = vrot.lane.b32.xlu0 %v5170, 62
  %v5229 = vpop.permute.xlu0 %5228
  %vm5230 = vcmask 506880
  %v5231 = vsel %vm5230, %v5197, %v5199
  %v5232 = vsel %vm5230, %v5199, %v5201
  %v5233 = vsel %vm5230, %v5201, %v5203
  %v5234 = vsel %vm5230, %v5203, %v5205
  %v5235 = vsel %vm5230, %v5205, %v5207
  %v5236 = vsel %vm5230, %v5207, %v5209
  %v5237 = vsel %vm5230, %v5209, %v5211
  %v5238 = vsel %vm5230, %v5211, %v5213
  %v5239 = vsel %vm5230, %v5213, %v5215
  %v5240 = vsel %vm5230, %v5215, %v5217
  %v5241 = vsel %vm5230, %v5217, %v5219
  %v5242 = vsel %vm5230, %v5219, %v5221
  %v5243 = vsel %vm5230, %v5221, %v5223
  %v5244 = vsel %vm5230, %v5223, %v5225
  %v5245 = vsel %vm5230, %v5225, %v5227
  %v5246 = vsel %vm5230, %v5227, %v5229
  %v5248 = vsel %vm764, %v5178, 0
  %v5251 = vsel %vm768, %v5231, 0
  %v5254 = vsel %vm768, %v5232, 0
  %v5257 = vsel %vm768, %v5233, 0
  %v5260 = vsel %vm768, %v5234, 0
  %v5263 = vsel %vm768, %v5235, 0
  %v5266 = vsel %vm768, %v5236, 0
  %v5269 = vsel %vm768, %v5237, 0
  %v5272 = vsel %vm768, %v5238, 0
  %v5275 = vsel %vm768, %v5239, 0
  %v5278 = vsel %vm768, %v5240, 0
  %v5281 = vsel %vm768, %v5241, 0
  %v5284 = vsel %vm768, %v5242, 0
  %v5287 = vsel %vm768, %v5243, 0
  %v5290 = vsel %vm768, %v5244, 0
  %v5293 = vsel %vm768, %v5245, 0
  %v5296 = vsel %vm768, %v5246, 0
  %5298 = vmatpush.bf16.msra.mxu0 0
  %5299 = vmatpush.bf16.msra.mxu0 0
  %5300 = vmatpush.bf16.msra.mxu0 0
  %5301 = vmatpush.bf16.msra.mxu0 0
  %5302 = vmatpush.bf16.msra.mxu0 0
  %5303 = vmatpush.bf16.msra.mxu0 0
  %5304 = vmatpush.bf16.msra.mxu0 0
  %5305 = vmatpush.bf16.msra.mxu0 %v5251
  %5306 = vmatmul.bf16.gmra.mxu0 %v5248
  %v5307 = vpop.f32.mrf.mxu0
  %v5308 = vadd.f32 0.0, %v5307
  %v5309 = vpop.f32.mrf.mxu0
  %v5310 = vadd.f32 0.0, %v5309
  %5311 = vdwg.mxu0
  %5312 = vmatpush.bf16.msra.mxu0 0
  %5313 = vmatpush.bf16.msra.mxu0 0
  %5314 = vmatpush.bf16.msra.mxu0 0
  %5315 = vmatpush.bf16.msra.mxu0 0
  %5316 = vmatpush.bf16.msra.mxu0 0
  %5317 = vmatpush.bf16.msra.mxu0 0
  %5318 = vmatpush.bf16.msra.mxu0 0
  %5319 = vmatpush.bf16.msra.mxu0 %v5254
  %5320 = vmatmul.bf16.gmra.mxu0 %v5248
  %v5321 = vpop.f32.mrf.mxu0
  %v5322 = vadd.f32 0.0, %v5321
  %v5323 = vpop.f32.mrf.mxu0
  %v5324 = vadd.f32 0.0, %v5323
  %5325 = vdwg.mxu0
  %5326 = vmatpush.bf16.msra.mxu0 0
  %5327 = vmatpush.bf16.msra.mxu0 0
  %5328 = vmatpush.bf16.msra.mxu0 0
  %5329 = vmatpush.bf16.msra.mxu0 0
  %5330 = vmatpush.bf16.msra.mxu0 0
  %5331 = vmatpush.bf16.msra.mxu0 0
  %5332 = vmatpush.bf16.msra.mxu0 0
  %5333 = vmatpush.bf16.msra.mxu0 %v5257
  %5334 = vmatmul.bf16.gmra.mxu0 %v5248
  %v5335 = vpop.f32.mrf.mxu0
  %v5336 = vadd.f32 0.0, %v5335
  %v5337 = vpop.f32.mrf.mxu0
  %v5338 = vadd.f32 0.0, %v5337
  %5339 = vdwg.mxu0
  %5340 = vmatpush.bf16.msra.mxu0 0
  %5341 = vmatpush.bf16.msra.mxu0 0
  %5342 = vmatpush.bf16.msra.mxu0 0
  %5343 = vmatpush.bf16.msra.mxu0 0
  %5344 = vmatpush.bf16.msra.mxu0 0
  %5345 = vmatpush.bf16.msra.mxu0 0
  %5346 = vmatpush.bf16.msra.mxu0 0
  %5347 = vmatpush.bf16.msra.mxu0 %v5260
  %5348 = vmatmul.bf16.gmra.mxu0 %v5248
  %v5349 = vpop.f32.mrf.mxu0
  %v5350 = vadd.f32 0.0, %v5349
  %v5351 = vpop.f32.mrf.mxu0
  %v5352 = vadd.f32 0.0, %v5351
  %5353 = vdwg.mxu0
  %5354 = vmatpush.bf16.msra.mxu0 0
  %5355 = vmatpush.bf16.msra.mxu0 0
  %5356 = vmatpush.bf16.msra.mxu0 0
  %5357 = vmatpush.bf16.msra.mxu0 0
  %5358 = vmatpush.bf16.msra.mxu0 0
  %5359 = vmatpush.bf16.msra.mxu0 0
  %5360 = vmatpush.bf16.msra.mxu0 0
  %5361 = vmatpush.bf16.msra.mxu0 %v5263
  %5362 = vmatmul.bf16.gmra.mxu0 %v5248
  %v5363 = vpop.f32.mrf.mxu0
  %v5364 = vadd.f32 0.0, %v5363
  %v5365 = vpop.f32.mrf.mxu0
  %v5366 = vadd.f32 0.0, %v5365
  %5367 = vdwg.mxu0
  %5368 = vmatpush.bf16.msra.mxu0 0
  %5369 = vmatpush.bf16.msra.mxu0 0
  %5370 = vmatpush.bf16.msra.mxu0 0
  %5371 = vmatpush.bf16.msra.mxu0 0
  %5372 = vmatpush.bf16.msra.mxu0 0
  %5373 = vmatpush.bf16.msra.mxu0 0
  %5374 = vmatpush.bf16.msra.mxu0 0
  %5375 = vmatpush.bf16.msra.mxu0 %v5266
  %5376 = vmatmul.bf16.gmra.mxu0 %v5248
  %v5377 = vpop.f32.mrf.mxu0
  %v5378 = vadd.f32 0.0, %v5377
  %v5379 = vpop.f32.mrf.mxu0
  %v5380 = vadd.f32 0.0, %v5379
  %5381 = vdwg.mxu0
  %5382 = vmatpush.bf16.msra.mxu0 0
  %5383 = vmatpush.bf16.msra.mxu0 0
  %5384 = vmatpush.bf16.msra.mxu0 0
  %5385 = vmatpush.bf16.msra.mxu0 0
  %5386 = vmatpush.bf16.msra.mxu0 0
  %5387 = vmatpush.bf16.msra.mxu0 0
  %5388 = vmatpush.bf16.msra.mxu0 0
  %5389 = vmatpush.bf16.msra.mxu0 %v5269
  %5390 = vmatmul.bf16.gmra.mxu0 %v5248
  %v5391 = vpop.f32.mrf.mxu0
  %v5392 = vadd.f32 0.0, %v5391
  %v5393 = vpop.f32.mrf.mxu0
  %v5394 = vadd.f32 0.0, %v5393
  %5395 = vdwg.mxu0
  %5396 = vmatpush.bf16.msra.mxu0 0
  %5397 = vmatpush.bf16.msra.mxu0 0
  %5398 = vmatpush.bf16.msra.mxu0 0
  %5399 = vmatpush.bf16.msra.mxu0 0
  %5400 = vmatpush.bf16.msra.mxu0 0
  %5401 = vmatpush.bf16.msra.mxu0 0
  %5402 = vmatpush.bf16.msra.mxu0 0
  %5403 = vmatpush.bf16.msra.mxu0 %v5272
  %5404 = vmatmul.bf16.gmra.mxu0 %v5248
  %v5405 = vpop.f32.mrf.mxu0
  %v5406 = vadd.f32 0.0, %v5405
  %v5407 = vpop.f32.mrf.mxu0
  %v5408 = vadd.f32 0.0, %v5407
  %5409 = vdwg.mxu0
  %5410 = vmatpush.bf16.msra.mxu0 0
  %5411 = vmatpush.bf16.msra.mxu0 0
  %5412 = vmatpush.bf16.msra.mxu0 0
  %5413 = vmatpush.bf16.msra.mxu0 0
  %5414 = vmatpush.bf16.msra.mxu0 0
  %5415 = vmatpush.bf16.msra.mxu0 0
  %5416 = vmatpush.bf16.msra.mxu0 0
  %5417 = vmatpush.bf16.msra.mxu0 %v5275
  %5418 = vmatmul.bf16.gmra.mxu0 %v5248
  %v5419 = vpop.f32.mrf.mxu0
  %v5420 = vadd.f32 0.0, %v5419
  %v5421 = vpop.f32.mrf.mxu0
  %v5422 = vadd.f32 0.0, %v5421
  %5423 = vdwg.mxu0
  %5424 = vmatpush.bf16.msra.mxu0 0
  %5425 = vmatpush.bf16.msra.mxu0 0
  %5426 = vmatpush.bf16.msra.mxu0 0
  %5427 = vmatpush.bf16.msra.mxu0 0
  %5428 = vmatpush.bf16.msra.mxu0 0
  %5429 = vmatpush.bf16.msra.mxu0 0
  %5430 = vmatpush.bf16.msra.mxu0 0
  %5431 = vmatpush.bf16.msra.mxu0 %v5278
  %5432 = vmatmul.bf16.gmra.mxu0 %v5248
  %v5433 = vpop.f32.mrf.mxu0
  %v5434 = vadd.f32 0.0, %v5433
  %v5435 = vpop.f32.mrf.mxu0
  %v5436 = vadd.f32 0.0, %v5435
  %5437 = vdwg.mxu0
  %5438 = vmatpush.bf16.msra.mxu0 0
  %5439 = vmatpush.bf16.msra.mxu0 0
  %5440 = vmatpush.bf16.msra.mxu0 0
  %5441 = vmatpush.bf16.msra.mxu0 0
  %5442 = vmatpush.bf16.msra.mxu0 0
  %5443 = vmatpush.bf16.msra.mxu0 0
  %5444 = vmatpush.bf16.msra.mxu0 0
  %5445 = vmatpush.bf16.msra.mxu0 %v5281
  %5446 = vmatmul.bf16.gmra.mxu0 %v5248
  %v5447 = vpop.f32.mrf.mxu0
  %v5448 = vadd.f32 0.0, %v5447
  %v5449 = vpop.f32.mrf.mxu0
  %v5450 = vadd.f32 0.0, %v5449
  %5451 = vdwg.mxu0
  %5452 = vmatpush.bf16.msra.mxu0 0
  %5453 = vmatpush.bf16.msra.mxu0 0
  %5454 = vmatpush.bf16.msra.mxu0 0
  %5455 = vmatpush.bf16.msra.mxu0 0
  %5456 = vmatpush.bf16.msra.mxu0 0
  %5457 = vmatpush.bf16.msra.mxu0 0
  %5458 = vmatpush.bf16.msra.mxu0 0
  %5459 = vmatpush.bf16.msra.mxu0 %v5284
  %5460 = vmatmul.bf16.gmra.mxu0 %v5248
  %v5461 = vpop.f32.mrf.mxu0
  %v5462 = vadd.f32 0.0, %v5461
  %v5463 = vpop.f32.mrf.mxu0
  %v5464 = vadd.f32 0.0, %v5463
  %5465 = vdwg.mxu0
  %5466 = vmatpush.bf16.msra.mxu0 0
  %5467 = vmatpush.bf16.msra.mxu0 0
  %5468 = vmatpush.bf16.msra.mxu0 0
  %5469 = vmatpush.bf16.msra.mxu0 0
  %5470 = vmatpush.bf16.msra.mxu0 0
  %5471 = vmatpush.bf16.msra.mxu0 0
  %5472 = vmatpush.bf16.msra.mxu0 0
  %5473 = vmatpush.bf16.msra.mxu0 %v5287
  %5474 = vmatmul.bf16.gmra.mxu0 %v5248
  %v5475 = vpop.f32.mrf.mxu0
  %v5476 = vadd.f32 0.0, %v5475
  %v5477 = vpop.f32.mrf.mxu0
  %v5478 = vadd.f32 0.0, %v5477
  %5479 = vdwg.mxu0
  %5480 = vmatpush.bf16.msra.mxu0 0
  %5481 = vmatpush.bf16.msra.mxu0 0
  %5482 = vmatpush.bf16.msra.mxu0 0
  %5483 = vmatpush.bf16.msra.mxu0 0
  %5484 = vmatpush.bf16.msra.mxu0 0
  %5485 = vmatpush.bf16.msra.mxu0 0
  %5486 = vmatpush.bf16.msra.mxu0 0
  %5487 = vmatpush.bf16.msra.mxu0 %v5290
  %5488 = vmatmul.bf16.gmra.mxu0 %v5248
  %v5489 = vpop.f32.mrf.mxu0
  %v5490 = vadd.f32 0.0, %v5489
  %v5491 = vpop.f32.mrf.mxu0
  %v5492 = vadd.f32 0.0, %v5491
  %5493 = vdwg.mxu0
  %5494 = vmatpush.bf16.msra.mxu0 0
  %5495 = vmatpush.bf16.msra.mxu0 0
  %5496 = vmatpush.bf16.msra.mxu0 0
  %5497 = vmatpush.bf16.msra.mxu0 0
  %5498 = vmatpush.bf16.msra.mxu0 0
  %5499 = vmatpush.bf16.msra.mxu0 0
  %5500 = vmatpush.bf16.msra.mxu0 0
  %5501 = vmatpush.bf16.msra.mxu0 %v5293
  %5502 = vmatmul.bf16.gmra.mxu0 %v5248
  %v5503 = vpop.f32.mrf.mxu0
  %v5504 = vadd.f32 0.0, %v5503
  %v5505 = vpop.f32.mrf.mxu0
  %v5506 = vadd.f32 0.0, %v5505
  %5507 = vdwg.mxu0
  %5508 = vmatpush.bf16.msra.mxu0 0
  %5509 = vmatpush.bf16.msra.mxu0 0
  %5510 = vmatpush.bf16.msra.mxu0 0
  %5511 = vmatpush.bf16.msra.mxu0 0
  %5512 = vmatpush.bf16.msra.mxu0 0
  %5513 = vmatpush.bf16.msra.mxu0 0
  %5514 = vmatpush.bf16.msra.mxu0 0
  %5515 = vmatpush.bf16.msra.mxu0 %v5296
  %5516 = vmatmul.bf16.gmra.mxu0 %v5248
  %v5517 = vpop.f32.mrf.mxu0
  %v5518 = vadd.f32 0.0, %v5517
  %v5519 = vpop.f32.mrf.mxu0
  %v5520 = vadd.f32 0.0, %v5519
  %5521 = vdwg.mxu0
  %v5522 = vadd.f32 %v4875, %v5308
  %v5523 = vadd.f32 %v4876, %v5322
  %v5524 = vadd.f32 %v4877, %v5336
  %v5525 = vadd.f32 %v4878, %v5350
  %v5526 = vadd.f32 %v4879, %v5364
  %v5527 = vadd.f32 %v4880, %v5378
  %v5528 = vadd.f32 %v4881, %v5392
  %v5529 = vadd.f32 %v4882, %v5406
  %v5530 = vadd.f32 %v4883, %v5420
  %v5531 = vadd.f32 %v4884, %v5434
  %v5532 = vadd.f32 %v4885, %v5448
  %v5533 = vadd.f32 %v4886, %v5462
  %v5534 = vadd.f32 %v4887, %v5476
  %v5535 = vadd.f32 %v4888, %v5490
  %v5536 = vadd.f32 %v4889, %v5504
  %v5537 = vadd.f32 %v4890, %v5518
  %v5538 = vadd.f32 %v4891, %v5310
  %v5539 = vadd.f32 %v4892, %v5324
  %v5540 = vadd.f32 %v4893, %v5338
  %v5541 = vadd.f32 %v4894, %v5352
  %v5542 = vadd.f32 %v4895, %v5366
  %v5543 = vadd.f32 %v4896, %v5380
  %v5544 = vadd.f32 %v4897, %v5394
  %v5545 = vadd.f32 %v4898, %v5408
  %v5546 = vadd.f32 %v4899, %v5422
  %v5547 = vadd.f32 %v4900, %v5436
  %v5548 = vadd.f32 %v4901, %v5450
  %v5549 = vadd.f32 %v4902, %v5464
  %v5550 = vadd.f32 %v4903, %v5478
  %v5551 = vadd.f32 %v4904, %v5492
  %v5552 = vadd.f32 %v4905, %v5506
  %v5553 = vadd.f32 %v4906, %v5520
  %v5554 = vtanh.pop %v5522
  %v5555 = vtanh.pop %v5523
  %v5556 = vtanh.pop %v5524
  %v5557 = vtanh.pop %v5525
  %v5558 = vtanh.pop %v5526
  %v5559 = vtanh.pop %v5527
  %v5560 = vtanh.pop %v5528
  %v5561 = vtanh.pop %v5529
  %v5562 = vtanh.pop %v5530
  %v5563 = vtanh.pop %v5531
  %v5564 = vtanh.pop %v5532
  %v5565 = vtanh.pop %v5533
  %v5566 = vtanh.pop %v5534
  %v5567 = vtanh.pop %v5535
  %v5568 = vtanh.pop %v5536
  %v5569 = vtanh.pop %v5537
  %v5570 = vtanh.pop %v5538
  %v5571 = vtanh.pop %v5539
  %v5572 = vtanh.pop %v5540
  %v5573 = vtanh.pop %v5541
  %v5574 = vtanh.pop %v5542
  %v5575 = vtanh.pop %v5543
  %v5576 = vtanh.pop %v5544
  %v5577 = vtanh.pop %v5545
  %v5578 = vtanh.pop %v5546
  %v5579 = vtanh.pop %v5547
  %v5580 = vtanh.pop %v5548
  %v5581 = vtanh.pop %v5549
  %v5582 = vtanh.pop %v5550
  %v5583 = vtanh.pop %v5551
  %v5584 = vtanh.pop %v5552
  %v5585 = vtanh.pop %v5553
  %5586 = vst [vmem:[%s2] sm:$0xff] %v5554
  %5587 = vst [vmem:[%s2 + $0x8] sm:$0xff] %v5555
  %5588 = vst [vmem:[%s2 + $0x10] sm:$0xff] %v5556
  %5589 = vst [vmem:[%s2 + $0x18] sm:$0xff] %v5557
  %5590 = vst [vmem:[%s2 + $0x20] sm:$0xff] %v5558
  %5591 = vst [vmem:[%s2 + $0x28] sm:$0xff] %v5559
  %5592 = vst [vmem:[%s2 + $0x30] sm:$0xff] %v5560
  %5593 = vst [vmem:[%s2 + $0x38] sm:$0xff] %v5561
  %5594 = vst [vmem:[%s2 + $0x40] sm:$0xff] %v5562
  %5595 = vst [vmem:[%s2 + $0x48] sm:$0xff] %v5563
  %5596 = vst [vmem:[%s2 + $0x50] sm:$0xff] %v5564
  %5597 = vst [vmem:[%s2 + $0x58] sm:$0xff] %v5565
  %5598 = vst [vmem:[%s2 + $0x60] sm:$0xff] %v5566
  %5599 = vst [vmem:[%s2 + $0x68] sm:$0xff] %v5567
  %5600 = vst [vmem:[%s2 + $0x70] sm:$0xff] %v5568
  %5601 = vst [vmem:[%s2 + $0x78] sm:$0xff] %v5569
  %5602 = vst [vmem:[%s2 + $0x80] sm:$0xf] %v5570
  %5603 = vst [vmem:[%s2 + $0x88] sm:$0xf] %v5571
  %5604 = vst [vmem:[%s2 + $0x90] sm:$0xf] %v5572
  %5605 = vst [vmem:[%s2 + $0x98] sm:$0xf] %v5573
  %5606 = vst [vmem:[%s2 + $0xa0] sm:$0xf] %v5574
  %5607 = vst [vmem:[%s2 + $0xa8] sm:$0xf] %v5575
  %5608 = vst [vmem:[%s2 + $0xb0] sm:$0xf] %v5576
  %5609 = vst [vmem:[%s2 + $0xb8] sm:$0xf] %v5577
  %5610 = vst [vmem:[%s2 + $0xc0] sm:$0xf] %v5578
  %5611 = vst [vmem:[%s2 + $0xc8] sm:$0xf] %v5579
  %5612 = vst [vmem:[%s2 + $0xd0] sm:$0xf] %v5580
  %5613 = vst [vmem:[%s2 + $0xd8] sm:$0xf] %v5581
  %5614 = vst [vmem:[%s2 + $0xe0] sm:$0xf] %v5582
  %5615 = vst [vmem:[%s2 + $0xe8] sm:$0xf] %v5583
  %5616 = vst [vmem:[%s2 + $0xf0] sm:$0xf] %v5584
  %5617 = vst [vmem:[%s2 + $0xf8] sm:$0xf] %v5585
  // Predicated region
  $region10: #{decoder_forward.7} parent=0 // pred_check
    _
  $region11: #{decoder_forward.7} parent=0 // pred_check_branch
    %5619 = sbr.rel (0) target = $region13
  $region12: #{decoder_forward.7} parent=0 // pred_region
    _
  $region13: #{decoder_forward.7} parent=0 // pred_fallthru
    _
  // Predicated region
  $region14: #{decoder_forward.7} parent=0 // pred_check
    _
  $region15: #{decoder_forward.7} parent=0 // pred_check_branch
    %5621 = sbr.rel (0) target = $region17
  $region16: #{decoder_forward.7} parent=0 // pred_region
    _
  $region17: #{decoder_forward.7} parent=0 // pred_fallthru
    _

</llo_original>
